<compile_context>
chip_gen: v6e
topology: v6e:2x2x1
jax: 0.10.0
libtpu: 0.0.40
codegen_flags: <defaults>
</compile_context>

<pallas_src>
import jax
import jax.numpy as jnp
from jax.experimental import pallas as pl
from jax.experimental.pallas import tpu as pltpu

_VMEM_LIMIT = 32 * 1024 * 1024   # within v7x's 32 MiB scoped default (64 MiB physical)
_MAX_TILE_M = 512                # [512, 2523] bf16 input tile; ~22 MB total footprint


def _round_up(x, m):
    return (x + m - 1) // m * m


def _pick_tile_m(M):
    # 8-aligned; aim for >=2 grid steps when the batch permits (v7x megacore sharding).
    half = -(-M // 2)
    return max(8, min(_round_up(half, 8), _MAX_TILE_M))


# ----------------------------- Pallas kernel ---------------------------------
def _fused_net_kernel(x_ref, w1_ref, b1_ref, w2_ref, b2_ref,
                      w3_ref, b3_ref, w4_ref, b4_ref, o_ref):
    # conv1 (as exact dense matmul) + ReLU
    h = jnp.dot(x_ref[...], w1_ref[...], preferred_element_type=jnp.float32)
    h = jnp.maximum(h + b1_ref[...], 0.0).astype(jnp.bfloat16)
    # conv2 (as exact dense matmul) + ReLU; its output columns are already in
    # PyTorch's x.view(-1, 400) order, so no in-kernel flatten is needed.
    h = jnp.dot(h, w2_ref[...], preferred_element_type=jnp.float32)
    h = jnp.maximum(h + b2_ref[...], 0.0).astype(jnp.bfloat16)
    # fc1 + ReLU
    h = jnp.dot(h, w3_ref[...], preferred_element_type=jnp.float32)
    h = jnp.maximum(h + b3_ref[...], 0.0).astype(jnp.bfloat16)
    # fc2
    y = jnp.dot(h, w4_ref[...], preferred_element_type=jnp.float32)
    o_ref[...] = (y + b4_ref[...]).astype(o_ref.dtype)


# ----------------------------- kernel wrapper ---------------------------------
def fused_net(x_flat, w1, b1, w2, b2, w3, b3, w4, b4):
    """Full Net forward.  x_flat:[B, 3*29*29] bf16 (NCHW flatten) -> [B, 10] f32."""
    M, K = x_flat.shape
    N = w4.shape[1]
    tm = _pick_tile_m(M)
    grid = (pl.cdiv(M, tm),)

    def resident(shape):
        # Weights/biases: constant block index -> DMA'd once, resident across the grid.
        return pl.BlockSpec(shape, lambda i: (0, 0))

    return pl.pallas_call(
        _fused_net_kernel,
        out_shape=jax.ShapeDtypeStruct((M, N), jnp.float32),
        grid=grid,
        in_specs=[
            pl.BlockSpec((tm, K), lambda i: (i, 0)),   # input activations, batch-tiled
            resident(w1.shape), resident(b1.shape),
            resident(w2.shape), resident(b2.shape),
            resident(w3.shape), resident(b3.shape),
            resident(w4.shape), resident(b4.shape),
        ],
        out_specs=pl.BlockSpec((tm, N), lambda i: (i, 0)),
        compiler_params=pltpu.CompilerParams(
            dimension_semantics=("parallel",),
            vmem_limit_bytes=_VMEM_LIMIT,
        ),
    )(x_flat, w1, b1, w2, b2, w3, b3, w4, b4)


# ------------------------------ weight prep -----------------------------------
def _conv_as_dense_matrix(w, in_h, in_w, stride):
    """Exact dense equivalent of a VALID, stride-`stride` Conv2d.

    w: [OC, IC, KH, KW] (PyTorch layout).  Returns (dense, OH, OW) with dense of
    shape [IC*in_h*in_w, OC*OH*OW] such that x.reshape(B, IC*in_h*in_w) @ dense
    equals the conv output flattened in NCHW (oc, oh, ow) order."""
    OC, IC, KH, KW = w.shape
    OH = (in_h - KH) // stride + 1
    OW = (in_w - KW) // stride + 1
    oc, c, ki, kj, oh, ow = jnp.meshgrid(
        jnp.arange(OC), jnp.arange(IC), jnp.arange(KH), jnp.arange(KW),
        jnp.arange(OH), jnp.arange(OW), indexing="ij")
    in_idx = (c * in_h + (stride * oh + ki)) * in_w + (stride * ow + kj)
    out_idx = (oc * OH + oh) * OW + ow
    dense = jnp.zeros((IC * in_h * in_w, OC * OH * OW), jnp.float32)
    dense = dense.at[in_idx.ravel(), out_idx.ravel()].set(w[oc, c, ki, kj].ravel())
    return dense, OH, OW


def init_params(key):
    """PyTorch-layout parameters (Conv2d: [OC,IC,KH,KW], Linear: [out,in])."""
    def uniform(key, shape, fan_in):
        bound = 1.0 / jnp.sqrt(jnp.float32(fan_in))
        return jax.random.uniform(key, shape, jnp.float32, -bound, bound)

    ks = jax.random.split(key, 8)
    return {
        "conv1_w": uniform(ks[0], (6, 3, 5, 5), 3 * 5 * 5),
        "conv1_b": uniform(ks[1], (6,), 3 * 5 * 5),
        "conv2_w": uniform(ks[2], (16, 6, 5, 5), 6 * 5 * 5),
        "conv2_b": uniform(ks[3], (16,), 6 * 5 * 5),
        "fc1_w": uniform(ks[4], (100, 16 * 5 * 5), 16 * 5 * 5),
        "fc1_b": uniform(ks[5], (100,), 16 * 5 * 5),
        "fc2_w": uniform(ks[6], (10, 100), 100),
        "fc2_b": uniform(ks[7], (10,), 100),
    }


def prepare_params(params):
    """One-time O(weight) pre-packing into the fused kernel's layouts (bf16 matmuls)."""
    w1, oh1, ow1 = _conv_as_dense_matrix(params["conv1_w"], 29, 29, 2)    # [2523, 1014]
    w2, oh2, ow2 = _conv_as_dense_matrix(params["conv2_w"], oh1, ow1, 2)  # [1014, 400]
    return {
        "w1": w1.astype(jnp.bfloat16),
        "b1": jnp.repeat(params["conv1_b"], oh1 * ow1).reshape(1, -1).astype(jnp.float32),
        "w2": w2.astype(jnp.bfloat16),
        "b2": jnp.repeat(params["conv2_b"], oh2 * ow2).reshape(1, -1).astype(jnp.float32),
        "w3": params["fc1_w"].T.astype(jnp.bfloat16),        # [400, 100]
        "b3": params["fc1_b"].reshape(1, -1).astype(jnp.float32),
        "w4": params["fc2_w"].T.astype(jnp.bfloat16),        # [100, 10]
        "b4": params["fc2_b"].reshape(1, -1).astype(jnp.float32),
    }


# ------------------------------- Net forward ----------------------------------
def net_forward(prepped, x_nchw):
    # x: [B, 3, 29, 29] (PyTorch NCHW).  One cheap cast+flatten; everything else is
    # inside the single fused pallas_call.
    B = x_nchw.shape[0]
    x_flat = x_nchw.reshape(B, -1).astype(jnp.bfloat16)      # [B, 2523], NCHW flatten
    return fused_net(x_flat,
                     prepped["w1"], prepped["b1"], prepped["w2"], prepped["b2"],
                     prepped["w3"], prepped["b3"], prepped["w4"], prepped["b4"])


def net_reference(params, x):
    """Pure-JAX f32 reference matching the PyTorch module."""
    y = jax.lax.conv_general_dilated(x, params["conv1_w"], (2, 2), "VALID",
                                     dimension_numbers=("NCHW", "OIHW", "NCHW"))
    y = jax.nn.relu(y + params["conv1_b"][None, :, None, None])
    y = jax.lax.conv_general_dilated(y, params["conv2_w"], (2, 2), "VALID",
                                     dimension_numbers=("NCHW", "OIHW", "NCHW"))
    y = jax.nn.relu(y + params["conv2_b"][None, :, None, None])
    y = y.reshape(-1, 16 * 5 * 5)
    y = jax.nn.relu(y @ params["fc1_w"].T + params["fc1_b"])
    return y @ params["fc2_w"].T + params["fc2_b"]


if __name__ == "__main__":
    key = jax.random.PRNGKey(0)
    pkey, xkey = jax.random.split(key)
    params = init_params(pkey)
    prepped = prepare_params(params)

    B = 2
    x = jax.random.normal(xkey, (B, 3, 29, 29), jnp.float32)

    fwd = jax.jit(net_forward)
    out = jax.block_until_ready(fwd(prepped, x))
    assert out.shape == (B, 10), out.shape

    # Tolerance check vs. f32 reference (bf16 operands -> expect ~1e-2 level diffs).
    ref = jax.block_until_ready(net_reference(params, x))
    assert bool(jnp.allclose(out, ref, rtol=0.1, atol=0.15)), float(
        jnp.max(jnp.abs(out - ref)))

    print("KERNEL_OK")
</pallas_src>

<mosaic_0001>
module attributes {stable_mosaic.version = 11 : i64} {
  func.func @_fused_net_kernel(%arg0: i32, %arg1: memref<8x2523xbf16, #tpu.memory_space<vmem>>, %arg2: memref<2523x1014xbf16, #tpu.memory_space<vmem>>, %arg3: memref<1x1014xf32, #tpu.memory_space<vmem>>, %arg4: memref<1014x400xbf16, #tpu.memory_space<vmem>>, %arg5: memref<1x400xf32, #tpu.memory_space<vmem>>, %arg6: memref<400x100xbf16, #tpu.memory_space<vmem>>, %arg7: memref<1x100xf32, #tpu.memory_space<vmem>>, %arg8: memref<100x10xbf16, #tpu.memory_space<vmem>>, %arg9: memref<1x10xf32, #tpu.memory_space<vmem>>, %arg10: memref<8x10xf32, #tpu.memory_space<vmem>>) attributes {dimension_semantics = [#tpu.dimension_semantics<parallel>], iteration_bounds = array<i64: 1>, scalar_prefetch = 0 : i64, scratch_operands = 0 : i64, tpu.core_type = #tpu.core_type<tc>, window_params = [{transform_indices = @transform_0, window_bounds = array<i64: 8, 2523>}, {pipeline_mode = #tpu.pipeline_mode<synchronous>, transform_indices = @transform_1, window_bounds = array<i64: 2523, 1014>}, {pipeline_mode = #tpu.pipeline_mode<synchronous>, transform_indices = @transform_2, window_bounds = array<i64: 1, 1014>}, {pipeline_mode = #tpu.pipeline_mode<synchronous>, transform_indices = @transform_3, window_bounds = array<i64: 1014, 400>}, {pipeline_mode = #tpu.pipeline_mode<synchronous>, transform_indices = @transform_4, window_bounds = array<i64: 1, 400>}, {pipeline_mode = #tpu.pipeline_mode<synchronous>, transform_indices = @transform_5, window_bounds = array<i64: 400, 100>}, {pipeline_mode = #tpu.pipeline_mode<synchronous>, transform_indices = @transform_6, window_bounds = array<i64: 1, 100>}, {pipeline_mode = #tpu.pipeline_mode<synchronous>, transform_indices = @transform_7, window_bounds = array<i64: 100, 10>}, {pipeline_mode = #tpu.pipeline_mode<synchronous>, transform_indices = @transform_8, window_bounds = array<i64: 1, 10>}, {transform_indices = @transform_9, window_bounds = array<i64: 8, 10>}]} {
    %c0 = arith.constant 0 : index
    %c0_0 = arith.constant 0 : index
    %0 = vector.load %arg1[%c0, %c0_0] : memref<8x2523xbf16, #tpu.memory_space<vmem>>, vector<8x2523xbf16>
    %c0_1 = arith.constant 0 : index
    %c0_2 = arith.constant 0 : index
    %1 = vector.load %arg2[%c0_1, %c0_2] : memref<2523x1014xbf16, #tpu.memory_space<vmem>>, vector<2523x1014xbf16>
    %cst = arith.constant dense<0.000000e+00> : vector<8x1014xf32>
    %2 = tpu.matmul %0, %1, %cst {dimension_numbers = #tpu.dot_dimension_numbers<[1], [0], [0], [1], [0, 0, 1, 1], [], []>} : vector<8x2523xbf16>, vector<2523x1014xbf16>, vector<8x1014xf32> -> vector<8x1014xf32>
    %c0_3 = arith.constant 0 : index
    %c0_4 = arith.constant 0 : index
    %3 = vector.load %arg3[%c0_3, %c0_4] : memref<1x1014xf32, #tpu.memory_space<vmem>>, vector<1x1014xf32>
    %4 = vector.broadcast %3 : vector<1x1014xf32> to vector<8x1014xf32>
    %5 = arith.addf %2, %4 : vector<8x1014xf32>
    %cst_5 = arith.constant 0.000000e+00 : f32
    %6 = vector.broadcast %cst_5 : f32 to vector<8x1014xf32>
    %7 = arith.maximumf %5, %6 : vector<8x1014xf32>
    %8 = arith.truncf %7 : vector<8x1014xf32> to vector<8x1014xbf16>
    %c0_6 = arith.constant 0 : index
    %c0_7 = arith.constant 0 : index
    %9 = vector.load %arg4[%c0_6, %c0_7] : memref<1014x400xbf16, #tpu.memory_space<vmem>>, vector<1014x400xbf16>
    %cst_8 = arith.constant dense<0.000000e+00> : vector<8x400xf32>
    %10 = tpu.matmul %8, %9, %cst_8 {dimension_numbers = #tpu.dot_dimension_numbers<[1], [0], [0], [1], [0, 0, 1, 1], [], []>} : vector<8x1014xbf16>, vector<1014x400xbf16>, vector<8x400xf32> -> vector<8x400xf32>
    %c0_9 = arith.constant 0 : index
    %c0_10 = arith.constant 0 : index
    %11 = vector.load %arg5[%c0_9, %c0_10] : memref<1x400xf32, #tpu.memory_space<vmem>>, vector<1x400xf32>
    %12 = vector.broadcast %11 : vector<1x400xf32> to vector<8x400xf32>
    %13 = arith.addf %10, %12 : vector<8x400xf32>
    %cst_11 = arith.constant 0.000000e+00 : f32
    %14 = vector.broadcast %cst_11 : f32 to vector<8x400xf32>
    %15 = arith.maximumf %13, %14 : vector<8x400xf32>
    %16 = arith.truncf %15 : vector<8x400xf32> to vector<8x400xbf16>
    %c0_12 = arith.constant 0 : index
    %c0_13 = arith.constant 0 : index
    %17 = vector.load %arg6[%c0_12, %c0_13] : memref<400x100xbf16, #tpu.memory_space<vmem>>, vector<400x100xbf16>
    %cst_14 = arith.constant dense<0.000000e+00> : vector<8x100xf32>
    %18 = tpu.matmul %16, %17, %cst_14 {dimension_numbers = #tpu.dot_dimension_numbers<[1], [0], [0], [1], [0, 0, 1, 1], [], []>} : vector<8x400xbf16>, vector<400x100xbf16>, vector<8x100xf32> -> vector<8x100xf32>
    %c0_15 = arith.constant 0 : index
    %c0_16 = arith.constant 0 : index
    %19 = vector.load %arg7[%c0_15, %c0_16] : memref<1x100xf32, #tpu.memory_space<vmem>>, vector<1x100xf32>
    %20 = vector.broadcast %19 : vector<1x100xf32> to vector<8x100xf32>
    %21 = arith.addf %18, %20 : vector<8x100xf32>
    %cst_17 = arith.constant 0.000000e+00 : f32
    %22 = vector.broadcast %cst_17 : f32 to vector<8x100xf32>
    %23 = arith.maximumf %21, %22 : vector<8x100xf32>
    %24 = arith.truncf %23 : vector<8x100xf32> to vector<8x100xbf16>
    %c0_18 = arith.constant 0 : index
    %c0_19 = arith.constant 0 : index
    %25 = vector.load %arg8[%c0_18, %c0_19] : memref<100x10xbf16, #tpu.memory_space<vmem>>, vector<100x10xbf16>
    %cst_20 = arith.constant dense<0.000000e+00> : vector<8x10xf32>
    %26 = tpu.matmul %24, %25, %cst_20 {dimension_numbers = #tpu.dot_dimension_numbers<[1], [0], [0], [1], [0, 0, 1, 1], [], []>} : vector<8x100xbf16>, vector<100x10xbf16>, vector<8x10xf32> -> vector<8x10xf32>
    %c0_21 = arith.constant 0 : index
    %c0_22 = arith.constant 0 : index
    %27 = vector.load %arg9[%c0_21, %c0_22] : memref<1x10xf32, #tpu.memory_space<vmem>>, vector<1x10xf32>
    %28 = vector.broadcast %27 : vector<1x10xf32> to vector<8x10xf32>
    %29 = arith.addf %26, %28 : vector<8x10xf32>
    %c0_23 = arith.constant 0 : index
    %c0_24 = arith.constant 0 : index
    %30 = vector.load %arg10[%c0_23, %c0_24] : memref<8x10xf32, #tpu.memory_space<vmem>>, vector<8x10xf32>
    tpu.vector_store %arg10[%c0_23, %c0_24], %29 {strides = array<i32>} : memref<8x10xf32, #tpu.memory_space<vmem>>, vector<8x10xf32>,
    return
  }
  func.func @transform_0(%arg0: i32) -> (i32, i32) {
    %c0_i32 = arith.constant 0 : i32
    %c0_i32_0 = arith.constant 0 : i32
    return %arg0, %c0_i32 : i32, i32
  }
  func.func @transform_1(%arg0: i32) -> (i32, i32) {
    %c0_i32 = arith.constant 0 : i32
    %c0_i32_0 = arith.constant 0 : i32
    %c0_i32_1 = arith.constant 0 : i32
    return %c0_i32, %c0_i32_0 : i32, i32
  }
  func.func @transform_2(%arg0: i32) -> (i32, i32) {
    %c0_i32 = arith.constant 0 : i32
    %c0_i32_0 = arith.constant 0 : i32
    %c0_i32_1 = arith.constant 0 : i32
    return %c0_i32, %c0_i32_0 : i32, i32
  }
  func.func @transform_3(%arg0: i32) -> (i32, i32) {
    %c0_i32 = arith.constant 0 : i32
    %c0_i32_0 = arith.constant 0 : i32
    %c0_i32_1 = arith.constant 0 : i32
    return %c0_i32, %c0_i32_0 : i32, i32
  }
  func.func @transform_4(%arg0: i32) -> (i32, i32) {
    %c0_i32 = arith.constant 0 : i32
    %c0_i32_0 = arith.constant 0 : i32
    %c0_i32_1 = arith.constant 0 : i32
    return %c0_i32, %c0_i32_0 : i32, i32
  }
  func.func @transform_5(%arg0: i32) -> (i32, i32) {
    %c0_i32 = arith.constant 0 : i32
    %c0_i32_0 = arith.constant 0 : i32
    %c0_i32_1 = arith.constant 0 : i32
    return %c0_i32, %c0_i32_0 : i32, i32
  }
  func.func @transform_6(%arg0: i32) -> (i32, i32) {
    %c0_i32 = arith.constant 0 : i32
    %c0_i32_0 = arith.constant 0 : i32
    %c0_i32_1 = arith.constant 0 : i32
    return %c0_i32, %c0_i32_0 : i32, i32
  }
  func.func @transform_7(%arg0: i32) -> (i32, i32) {
    %c0_i32 = arith.constant 0 : i32
    %c0_i32_0 = arith.constant 0 : i32
    %c0_i32_1 = arith.constant 0 : i32
    return %c0_i32, %c0_i32_0 : i32, i32
  }
  func.func @transform_8(%arg0: i32) -> (i32, i32) {
    %c0_i32 = arith.constant 0 : i32
    %c0_i32_0 = arith.constant 0 : i32
    %c0_i32_1 = arith.constant 0 : i32
    return %c0_i32, %c0_i32_0 : i32, i32
  }
  func.func @transform_9(%arg0: i32) -> (i32, i32) {
    %c0_i32 = arith.constant 0 : i32
    %c0_i32_0 = arith.constant 0 : i32
    return %arg0, %c0_i32 : i32, i32
  }
}

</mosaic_0001>

<llo_original>
// kernel: net_forward.1
$region0: #{net_forward.1}
  #allocation0 [shape = 'u32[]', space=smem, size = 0x4, offset = 0x4, fixed_abs, tag = 'smem constant byte address 0x4 - core index']
  #allocation1 [shape = 'u32[144,128]{1,0:T(1,128)}', space=vmem, size = 0x12000, scoped, tag = 'internal scratch']
  %s0 = inlined_call_operand.vmem [shape: bf16[2,2523], index: 0, kind: input, shape index: {}]
  %s1 = inlined_call_operand.hbm [shape: bf16[2523,1014], index: 1, kind: input, shape index: {}]
  %s2 = inlined_call_operand.hbm [shape: f32[1,1014], index: 2, kind: input, shape index: {}]
  %s3 = inlined_call_operand.vmem [shape: bf16[1014,400], index: 3, kind: input, shape index: {}]
  %s4 = inlined_call_operand.hbm [shape: f32[1,400], index: 4, kind: input, shape index: {}]
  %s5 = inlined_call_operand.hbm [shape: bf16[400,100], index: 5, kind: input, shape index: {}]
  %s6 = inlined_call_operand.hbm [shape: f32[1,100], index: 6, kind: input, shape index: {}]
  %s7 = inlined_call_operand.vmem [shape: bf16[100,10], index: 7, kind: input, shape index: {}]
  %s8 = inlined_call_operand.hbm [shape: f32[1,10], index: 8, kind: input, shape index: {}]
  %s9 = inlined_call_operand.hbm [shape: f32[2,10], index: 9, kind: output, shape index: {}]
  %s10 = sld [smem:[#allocation0]]
  $region70: #{net_forward.1} parent=0
    _
  %s12 = ssub.s32 1, %s10
  %s13 = scalar_select 0, %s12, %s10
  $region1: #{net_forward.1} parent=0
    #allocation2 [shape = 'u8[5177344]{0}', space=vmem, size = 0x4f0000, scoped, tag = 'input window, operand 1, single buffered']
    #allocation3 [shape = 's32[1]{0}', space=sflag, size = 0x4, scoped, tag = 'scoped memory for net_forward.1']
    #allocation4 [shape = 's32[1]{0}', space=sflag, size = 0x4, scoped, tag = 'scoped memory for net_forward.1']
    #allocation5 [shape = 'u8[4096]{0}', space=vmem, size = 0x1000, scoped, tag = 'input window, operand 2, single buffered']
    #allocation6 [shape = 's32[1]{0}', space=sflag, size = 0x4, scoped, tag = 'scoped memory for net_forward.1']
    #allocation7 [shape = 'u8[2048]{0}', space=vmem, size = 0x800, scoped, tag = 'input window, operand 4, single buffered']
    #allocation8 [shape = 'u8[102400]{0}', space=vmem, size = 0x19000, scoped, tag = 'input window, operand 5, single buffered']
    #allocation9 [shape = 's32[1]{0}', space=sflag, size = 0x4, scoped, tag = 'scoped memory for net_forward.1']
    #allocation10 [shape = 'u8[512]{0}', space=vmem, size = 0x400, scoped, tag = 'input window, operand 6, single buffered']
    #allocation11 [shape = 'u8[512]{0}', space=vmem, size = 0x400, scoped, tag = 'input window, operand 8, single buffered']
    #allocation12 [shape = 's32[1]{0}', space=sflag, size = 0x4, scoped, tag = 'scoped memory for net_forward.1']
    #allocation13 [shape = 'u8[4096]{0}', space=vmem, size = 0x1000, scoped, tag = 'output window, operand 0, single buffered']
    %14 = vsyncpa [#allocation3], 0
    %15 = vsyncpa [#allocation6], 0
    %16 = vsyncpa [#allocation9], 0
    %17 = vsyncpa [#allocation12], 0
    %18 = vsyncpa [#allocation4], 0
    // Predicated region
    $region2: #{net_forward.1} parent=1 // pred_check
      _
    $region3: #{net_forward.1} parent=1 // pred_check_branch
      %20 = sbr.rel (0) target = $region5
    $region4: #{net_forward.1} parent=1 // pred_region
      _
    $region5: #{net_forward.1} parent=1 // pred_fallthru
      _
    // Predicated region
    $region6: #{net_forward.1} parent=1 // pred_check
      _
    $region7: #{net_forward.1} parent=1 // pred_check_branch
      %22 = sbr.rel (0) target = $region9
    $region8: #{net_forward.1} parent=1 // pred_region
      %s24 = ssub.s32 161792, 161792
      %25 = vsyncadd [#allocation3], %s24
      %s26 = sshll.u32 [#allocation2], 4
      %s27 = int_to_ptr.vmem [resolvable:$true] %s26
      %32 = dma.hbm_to_vmem [thread:$0]  %s1, 161792, %s27, [#allocation3], 512, 512, 32
    $region9: #{net_forward.1} parent=1 // pred_fallthru
      _
    // Predicated region
    $region10: #{net_forward.1} parent=1 // pred_check
      _
    $region11: #{net_forward.1} parent=1 // pred_check_branch
      %34 = sbr.rel (0) target = $region13
    $region12: #{net_forward.1} parent=1 // pred_region
      %s36 = ssub.s32 128, 128
      %37 = vsyncadd [#allocation6], %s36
      %s39 = sshll.u32 [#allocation5], 4
      %s40 = int_to_ptr.vmem [resolvable:$true] %s39
      %42 = dma.hbm_to_vmem [thread:$0]  %s2, 128, %s40, [#allocation6]
    $region13: #{net_forward.1} parent=1 // pred_fallthru
      _
    // Predicated region
    $region14: #{net_forward.1} parent=1 // pred_check
      _
    $region15: #{net_forward.1} parent=1 // pred_check_branch
      %44 = sbr.rel (0) target = $region17
    $region16: #{net_forward.1} parent=1 // pred_region
      _
    $region17: #{net_forward.1} parent=1 // pred_fallthru
      _
    // Predicated region
    $region18: #{net_forward.1} parent=1 // pred_check
      _
    $region19: #{net_forward.1} parent=1 // pred_check_branch
      %46 = sbr.rel (0) target = $region21
    $region20: #{net_forward.1} parent=1 // pred_region
      %s48 = ssub.s32 64, 64
      %49 = vsyncadd [#allocation6], %s48
      %s51 = sshll.u32 [#allocation7], 4
      %s52 = int_to_ptr.vmem [resolvable:$true] %s51
      %54 = dma.hbm_to_vmem [thread:$0]  %s4, 64, %s52, [#allocation6]
    $region21: #{net_forward.1} parent=1 // pred_fallthru
      _
    // Predicated region
    $region22: #{net_forward.1} parent=1 // pred_check
      _
    $region23: #{net_forward.1} parent=1 // pred_check_branch
      %56 = sbr.rel (0) target = $region25
    $region24: #{net_forward.1} parent=1 // pred_region
      %s58 = ssub.s32 3200, 3200
      %59 = vsyncadd [#allocation9], %s58
      %s60 = sshll.u32 [#allocation8], 4
      %s61 = int_to_ptr.vmem [resolvable:$true] %s60
      %66 = dma.hbm_to_vmem [thread:$0]  %s5, 3200, %s61, [#allocation9], 64, 64, 4
    $region25: #{net_forward.1} parent=1 // pred_fallthru
      _
    // Predicated region
    $region26: #{net_forward.1} parent=1 // pred_check
      _
    $region27: #{net_forward.1} parent=1 // pred_check_branch
      %68 = sbr.rel (0) target = $region29
    $region28: #{net_forward.1} parent=1 // pred_region
      %s70 = ssub.s32 16, 16
      %71 = vsyncadd [#allocation9], %s70
      %s73 = sshll.u32 [#allocation10], 4
      %s74 = int_to_ptr.vmem [resolvable:$true] %s73
      %76 = dma.hbm_to_vmem [thread:$0]  %s6, 16, %s74, [#allocation9]
    $region29: #{net_forward.1} parent=1 // pred_fallthru
      _
    // Predicated region
    $region30: #{net_forward.1} parent=1 // pred_check
      _
    $region31: #{net_forward.1} parent=1 // pred_check_branch
      %78 = sbr.rel (0) target = $region33
    $region32: #{net_forward.1} parent=1 // pred_region
      _
    $region33: #{net_forward.1} parent=1 // pred_fallthru
      _
    // Predicated region
    $region34: #{net_forward.1} parent=1 // pred_check
      _
    $region35: #{net_forward.1} parent=1 // pred_check_branch
      %80 = sbr.rel (0) target = $region37
    $region36: #{net_forward.1} parent=1 // pred_region
      %s82 = ssub.s32 16, 16
      %83 = vsyncadd [#allocation12], %s82
      %s85 = sshll.u32 [#allocation11], 4
      %s86 = int_to_ptr.vmem [resolvable:$true] %s85
      %88 = dma.hbm_to_vmem [thread:$0]  %s8, 16, %s86, [#allocation12]
    $region37: #{net_forward.1} parent=1 // pred_fallthru
      _
    // Predicated region
    $region38: #{net_forward.1} parent=1 // pred_check
      _
    $region39: #{net_forward.1} parent=1 // pred_check_branch
      %90 = sbr.rel (0) target = $region41
    $region40: #{net_forward.1} parent=1 // pred_region
      %91 = dma.done [#allocation3], 161792
    $region41: #{net_forward.1} parent=1 // pred_fallthru
      _
    // Predicated region
    $region42: #{net_forward.1} parent=1 // pred_check
      _
    $region43: #{net_forward.1} parent=1 // pred_check_branch
      %93 = sbr.rel (0) target = $region45
    $region44: #{net_forward.1} parent=1 // pred_region
      %94 = dma.done [#allocation6], 128
    $region45: #{net_forward.1} parent=1 // pred_fallthru
      _
    // Predicated region
    $region46: #{net_forward.1} parent=1 // pred_check
      _
    $region47: #{net_forward.1} parent=1 // pred_check_branch
      %96 = sbr.rel (0) target = $region49
    $region48: #{net_forward.1} parent=1 // pred_region
      %97 = dma.done [#allocation6], 64
    $region49: #{net_forward.1} parent=1 // pred_fallthru
      _
    // Predicated region
    $region50: #{net_forward.1} parent=1 // pred_check
      _
    $region51: #{net_forward.1} parent=1 // pred_check_branch
      %99 = sbr.rel (0) target = $region53
    $region52: #{net_forward.1} parent=1 // pred_region
      %100 = dma.done [#allocation9], 3200
    $region53: #{net_forward.1} parent=1 // pred_fallthru
      _
    // Predicated region
    $region54: #{net_forward.1} parent=1 // pred_check
      _
    $region55: #{net_forward.1} parent=1 // pred_check_branch
      %102 = sbr.rel (0) target = $region57
    $region56: #{net_forward.1} parent=1 // pred_region
      %103 = dma.done [#allocation9], 16
    $region57: #{net_forward.1} parent=1 // pred_fallthru
      _
    // Predicated region
    $region58: #{net_forward.1} parent=1 // pred_check
      _
    $region59: #{net_forward.1} parent=1 // pred_check_branch
      %105 = sbr.rel (0) target = $region61
    $region60: #{net_forward.1} parent=1 // pred_region
      %106 = dma.done [#allocation12], 16
    $region61: #{net_forward.1} parent=1 // pred_fallthru
      _
    %v108 = vld [vmem:[%s0] sm:$0xff]
    %v109 = vld [vmem:[%s0 + $0x8] sm:$0xff]
    %v110 = vld [vmem:[%s0 + $0x10] sm:$0xf]
    %v111 = vld [vmem:[%s0 + $0x14] sm:$0xff]
    %v112 = vld [vmem:[%s0 + $0x1c] sm:$0xff]
    %v113 = vld [vmem:[%s0 + $0x24] sm:$0xf]
    %v114 = vld [vmem:[%s0 + $0x28] sm:$0xff]
    %v115 = vld [vmem:[%s0 + $0x30] sm:$0xff]
    %v116 = vld [vmem:[%s0 + $0x38] sm:$0xf]
    %v117 = vld [vmem:[%s0 + $0x3c] sm:$0xff]
    %v118 = vld [vmem:[%s0 + $0x44] sm:$0xff]
    %v119 = vld [vmem:[%s0 + $0x4c] sm:$0xf]
    %v120 = vld [vmem:[#allocation2] sm:$0xff]
    %v121 = vld [vmem:[#allocation2 + $0x8] sm:$0xff]
    %v122 = vld [vmem:[#allocation2 + $0x10] sm:$0xff]
    %v123 = vld [vmem:[#allocation2 + $0x18] sm:$0xff]
    %v124 = vld [vmem:[#allocation2 + $0x20] sm:$0xff]
    %v125 = vld [vmem:[#allocation2 + $0x28] sm:$0xff]
    %v126 = vld [vmem:[#allocation2 + $0x30] sm:$0xff]
    %v127 = vld [vmem:[#allocation2 + $0x38] sm:$0xff]
    %v128 = vld [vmem:[#allocation2 + $0x40] sm:$0xff]
    %v129 = vld [vmem:[#allocation2 + $0x48] sm:$0xff]
    %v130 = vld [vmem:[#allocation2 + $0x50] sm:$0xff]
    %v131 = vld [vmem:[#allocation2 + $0x58] sm:$0xff]
    %v132 = vld [vmem:[#allocation2 + $0x60] sm:$0xff]
    %v133 = vld [vmem:[#allocation2 + $0x68] sm:$0xff]
    %v134 = vld [vmem:[#allocation2 + $0x70] sm:$0xff]
    %v135 = vld [vmem:[#allocation2 + $0x78] sm:$0xff]
    %v136 = vld [vmem:[#allocation2 + $0x80] sm:$0xff]
    %v137 = vld [vmem:[#allocation2 + $0x88] sm:$0xff]
    %v138 = vld [vmem:[#allocation2 + $0x90] sm:$0xff]
    %v139 = vld [vmem:[#allocation2 + $0x98] sm:$0xff]
    %v140 = vld [vmem:[#allocation2 + $0xa0] sm:$0xff]
    %v141 = vld [vmem:[#allocation2 + $0xa8] sm:$0xff]
    %v142 = vld [vmem:[#allocation2 + $0xb0] sm:$0xff]
    %v143 = vld [vmem:[#allocation2 + $0xb8] sm:$0xff]
    %v144 = vld [vmem:[#allocation2 + $0xc0] sm:$0xff]
    %v145 = vld [vmem:[#allocation2 + $0xc8] sm:$0xff]
    %v146 = vld [vmem:[#allocation2 + $0xd0] sm:$0xff]
    %v147 = vld [vmem:[#allocation2 + $0xd8] sm:$0xff]
    %v148 = vld [vmem:[#allocation2 + $0xe0] sm:$0xff]
    %v149 = vld [vmem:[#allocation2 + $0xe8] sm:$0xff]
    %v150 = vld [vmem:[#allocation2 + $0xf0] sm:$0xff]
    %v151 = vld [vmem:[#allocation2 + $0xf8] sm:$0xff]
    %v152 = vld [vmem:[#allocation2 + $0x100] sm:$0xff]
    %v153 = vld [vmem:[#allocation2 + $0x108] sm:$0xff]
    %v154 = vld [vmem:[#allocation2 + $0x110] sm:$0xff]
    %v155 = vld [vmem:[#allocation2 + $0x118] sm:$0xff]
    %v156 = vld [vmem:[#allocation2 + $0x120] sm:$0xff]
    %v157 = vld [vmem:[#allocation2 + $0x128] sm:$0xff]
    %v158 = vld [vmem:[#allocation2 + $0x130] sm:$0xff]
    %v159 = vld [vmem:[#allocation2 + $0x138] sm:$0xff]
    %v160 = vld [vmem:[#allocation2 + $0x140] sm:$0xff]
    %v161 = vld [vmem:[#allocation2 + $0x148] sm:$0xff]
    %v162 = vld [vmem:[#allocation2 + $0x150] sm:$0xff]
    %v163 = vld [vmem:[#allocation2 + $0x158] sm:$0xff]
    %v164 = vld [vmem:[#allocation2 + $0x160] sm:$0xff]
    %v165 = vld [vmem:[#allocation2 + $0x168] sm:$0xff]
    %v166 = vld [vmem:[#allocation2 + $0x170] sm:$0xff]
    %v167 = vld [vmem:[#allocation2 + $0x178] sm:$0xff]
    %v168 = vld [vmem:[#allocation2 + $0x180] sm:$0xff]
    %v169 = vld [vmem:[#allocation2 + $0x188] sm:$0xff]
    %v170 = vld [vmem:[#allocation2 + $0x190] sm:$0xff]
    %v171 = vld [vmem:[#allocation2 + $0x198] sm:$0xff]
    %v172 = vld [vmem:[#allocation2 + $0x1a0] sm:$0xff]
    %v173 = vld [vmem:[#allocation2 + $0x1a8] sm:$0xff]
    %v174 = vld [vmem:[#allocation2 + $0x1b0] sm:$0xff]
    %v175 = vld [vmem:[#allocation2 + $0x1b8] sm:$0xff]
    %v176 = vld [vmem:[#allocation2 + $0x1c0] sm:$0xff]
    %v177 = vld [vmem:[#allocation2 + $0x1c8] sm:$0xff]
    %v178 = vld [vmem:[#allocation2 + $0x1d0] sm:$0xff]
    %v179 = vld [vmem:[#allocation2 + $0x1d8] sm:$0xff]
    %v180 = vld [vmem:[#allocation2 + $0x1e0] sm:$0xff]
    %v181 = vld [vmem:[#allocation2 + $0x1e8] sm:$0xff]
    %v182 = vld [vmem:[#allocation2 + $0x1f0] sm:$0xff]
    %v183 = vld [vmem:[#allocation2 + $0x1f8] sm:$0xff]
    %v184 = vld [vmem:[#allocation2 + $0x200] sm:$0xff]
    %v185 = vld [vmem:[#allocation2 + $0x208] sm:$0xff]
    %v186 = vld [vmem:[#allocation2 + $0x210] sm:$0xff]
    %v187 = vld [vmem:[#allocation2 + $0x218] sm:$0xff]
    %v188 = vld [vmem:[#allocation2 + $0x220] sm:$0xff]
    %v189 = vld [vmem:[#allocation2 + $0x228] sm:$0xff]
    %v190 = vld [vmem:[#allocation2 + $0x230] sm:$0xff]
    %v191 = vld [vmem:[#allocation2 + $0x238] sm:$0xff]
    %v192 = vld [vmem:[#allocation2 + $0x240] sm:$0xff]
    %v193 = vld [vmem:[#allocation2 + $0x248] sm:$0xff]
    %v194 = vld [vmem:[#allocation2 + $0x250] sm:$0xff]
    %v195 = vld [vmem:[#allocation2 + $0x258] sm:$0xff]
    %v196 = vld [vmem:[#allocation2 + $0x260] sm:$0xff]
    %v197 = vld [vmem:[#allocation2 + $0x268] sm:$0xff]
    %v198 = vld [vmem:[#allocation2 + $0x270] sm:$0xff]
    %v199 = vld [vmem:[#allocation2 + $0x278] sm:$0xff]
    %v200 = vld [vmem:[#allocation2 + $0x280] sm:$0xff]
    %v201 = vld [vmem:[#allocation2 + $0x288] sm:$0xff]
    %v202 = vld [vmem:[#allocation2 + $0x290] sm:$0xff]
    %v203 = vld [vmem:[#allocation2 + $0x298] sm:$0xff]
    %v204 = vld [vmem:[#allocation2 + $0x2a0] sm:$0xff]
    %v205 = vld [vmem:[#allocation2 + $0x2a8] sm:$0xff]
    %v206 = vld [vmem:[#allocation2 + $0x2b0] sm:$0xff]
    %v207 = vld [vmem:[#allocation2 + $0x2b8] sm:$0xff]
    %v208 = vld [vmem:[#allocation2 + $0x2c0] sm:$0xff]
    %v209 = vld [vmem:[#allocation2 + $0x2c8] sm:$0xff]
    %v210 = vld [vmem:[#allocation2 + $0x2d0] sm:$0xff]
    %v211 = vld [vmem:[#allocation2 + $0x2d8] sm:$0xff]
    %v212 = vld [vmem:[#allocation2 + $0x2e0] sm:$0xff]
    %v213 = vld [vmem:[#allocation2 + $0x2e8] sm:$0xff]
    %v214 = vld [vmem:[#allocation2 + $0x2f0] sm:$0xff]
    %v215 = vld [vmem:[#allocation2 + $0x2f8] sm:$0xff]
    %v216 = vld [vmem:[#allocation2 + $0x300] sm:$0xff]
    %v217 = vld [vmem:[#allocation2 + $0x308] sm:$0xff]
    %v218 = vld [vmem:[#allocation2 + $0x310] sm:$0xff]
    %v219 = vld [vmem:[#allocation2 + $0x318] sm:$0xff]
    %v220 = vld [vmem:[#allocation2 + $0x320] sm:$0xff]
    %v221 = vld [vmem:[#allocation2 + $0x328] sm:$0xff]
    %v222 = vld [vmem:[#allocation2 + $0x330] sm:$0xff]
    %v223 = vld [vmem:[#allocation2 + $0x338] sm:$0xff]
    %v224 = vld [vmem:[#allocation2 + $0x340] sm:$0xff]
    %v225 = vld [vmem:[#allocation2 + $0x348] sm:$0xff]
    %v226 = vld [vmem:[#allocation2 + $0x350] sm:$0xff]
    %v227 = vld [vmem:[#allocation2 + $0x358] sm:$0xff]
    %v228 = vld [vmem:[#allocation2 + $0x360] sm:$0xff]
    %v229 = vld [vmem:[#allocation2 + $0x368] sm:$0xff]
    %v230 = vld [vmem:[#allocation2 + $0x370] sm:$0xff]
    %v231 = vld [vmem:[#allocation2 + $0x378] sm:$0xff]
    %v232 = vld [vmem:[#allocation2 + $0x380] sm:$0xff]
    %v233 = vld [vmem:[#allocation2 + $0x388] sm:$0xff]
    %v234 = vld [vmem:[#allocation2 + $0x390] sm:$0xff]
    %v235 = vld [vmem:[#allocation2 + $0x398] sm:$0xff]
    %v236 = vld [vmem:[#allocation2 + $0x3a0] sm:$0xff]
    %v237 = vld [vmem:[#allocation2 + $0x3a8] sm:$0xff]
    %v238 = vld [vmem:[#allocation2 + $0x3b0] sm:$0xff]
    %v239 = vld [vmem:[#allocation2 + $0x3b8] sm:$0xff]
    %v240 = vld [vmem:[#allocation2 + $0x3c0] sm:$0xff]
    %v241 = vld [vmem:[#allocation2 + $0x3c8] sm:$0xff]
    %v242 = vld [vmem:[#allocation2 + $0x3d0] sm:$0xff]
    %v243 = vld [vmem:[#allocation2 + $0x3d8] sm:$0xff]
    %v244 = vld [vmem:[#allocation2 + $0x3e0] sm:$0xff]
    %v245 = vld [vmem:[#allocation2 + $0x3e8] sm:$0xff]
    %v246 = vld [vmem:[#allocation2 + $0x3f0] sm:$0xff]
    %v247 = vld [vmem:[#allocation2 + $0x3f8] sm:$0xff]
    %v248 = vld [vmem:[#allocation2 + $0x400] sm:$0xff]
    %v249 = vld [vmem:[#allocation2 + $0x408] sm:$0xff]
    %v250 = vld [vmem:[#allocation2 + $0x410] sm:$0xff]
    %v251 = vld [vmem:[#allocation2 + $0x418] sm:$0xff]
    %v252 = vld [vmem:[#allocation2 + $0x420] sm:$0xff]
    %v253 = vld [vmem:[#allocation2 + $0x428] sm:$0xff]
    %v254 = vld [vmem:[#allocation2 + $0x430] sm:$0xff]
    %v255 = vld [vmem:[#allocation2 + $0x438] sm:$0xff]
    %v256 = vld [vmem:[#allocation2 + $0x440] sm:$0xff]
    %v257 = vld [vmem:[#allocation2 + $0x448] sm:$0xff]
    %v258 = vld [vmem:[#allocation2 + $0x450] sm:$0xff]
    %v259 = vld [vmem:[#allocation2 + $0x458] sm:$0xff]
    %v260 = vld [vmem:[#allocation2 + $0x460] sm:$0xff]
    %v261 = vld [vmem:[#allocation2 + $0x468] sm:$0xff]
    %v262 = vld [vmem:[#allocation2 + $0x470] sm:$0xff]
    %v263 = vld [vmem:[#allocation2 + $0x478] sm:$0xff]
    %v264 = vld [vmem:[#allocation2 + $0x480] sm:$0xff]
    %v265 = vld [vmem:[#allocation2 + $0x488] sm:$0xff]
    %v266 = vld [vmem:[#allocation2 + $0x490] sm:$0xff]
    %v267 = vld [vmem:[#allocation2 + $0x498] sm:$0xff]
    %v268 = vld [vmem:[#allocation2 + $0x4a0] sm:$0xff]
    %v269 = vld [vmem:[#allocation2 + $0x4a8] sm:$0xff]
    %v270 = vld [vmem:[#allocation2 + $0x4b0] sm:$0xff]
    %v271 = vld [vmem:[#allocation2 + $0x4b8] sm:$0xff]
    %v272 = vld [vmem:[#allocation2 + $0x4c0] sm:$0xff]
    %v273 = vld [vmem:[#allocation2 + $0x4c8] sm:$0xff]
    %v274 = vld [vmem:[#allocation2 + $0x4d0] sm:$0xff]
    %v275 = vld [vmem:[#allocation2 + $0x4d8] sm:$0xff]
    %v276 = vld [vmem:[#allocation2 + $0x4e0] sm:$0xff]
    %v277 = vld [vmem:[#allocation2 + $0x4e8] sm:$0xff]
    %v278 = vld [vmem:[#allocation2 + $0x4f0] sm:$0xff]
    %v279 = vld [vmem:[#allocation2 + $0x4f8] sm:$0xff]
    %v280 = vld [vmem:[#allocation2 + $0x500] sm:$0xff]
    %v281 = vld [vmem:[#allocation2 + $0x508] sm:$0xff]
    %v282 = vld [vmem:[#allocation2 + $0x510] sm:$0xff]
    %v283 = vld [vmem:[#allocation2 + $0x518] sm:$0xff]
    %v284 = vld [vmem:[#allocation2 + $0x520] sm:$0xff]
    %v285 = vld [vmem:[#allocation2 + $0x528] sm:$0xff]
    %v286 = vld [vmem:[#allocation2 + $0x530] sm:$0xff]
    %v287 = vld [vmem:[#allocation2 + $0x538] sm:$0xff]
    %v288 = vld [vmem:[#allocation2 + $0x540] sm:$0xff]
    %v289 = vld [vmem:[#allocation2 + $0x548] sm:$0xff]
    %v290 = vld [vmem:[#allocation2 + $0x550] sm:$0xff]
    %v291 = vld [vmem:[#allocation2 + $0x558] sm:$0xff]
    %v292 = vld [vmem:[#allocation2 + $0x560] sm:$0xff]
    %v293 = vld [vmem:[#allocation2 + $0x568] sm:$0xff]
    %v294 = vld [vmem:[#allocation2 + $0x570] sm:$0xff]
    %v295 = vld [vmem:[#allocation2 + $0x578] sm:$0xff]
    %v296 = vld [vmem:[#allocation2 + $0x580] sm:$0xff]
    %v297 = vld [vmem:[#allocation2 + $0x588] sm:$0xff]
    %v298 = vld [vmem:[#allocation2 + $0x590] sm:$0xff]
    %v299 = vld [vmem:[#allocation2 + $0x598] sm:$0xff]
    %v300 = vld [vmem:[#allocation2 + $0x5a0] sm:$0xff]
    %v301 = vld [vmem:[#allocation2 + $0x5a8] sm:$0xff]
    %v302 = vld [vmem:[#allocation2 + $0x5b0] sm:$0xff]
    %v303 = vld [vmem:[#allocation2 + $0x5b8] sm:$0xff]
    %v304 = vld [vmem:[#allocation2 + $0x5c0] sm:$0xff]
    %v305 = vld [vmem:[#allocation2 + $0x5c8] sm:$0xff]
    %v306 = vld [vmem:[#allocation2 + $0x5d0] sm:$0xff]
    %v307 = vld [vmem:[#allocation2 + $0x5d8] sm:$0xff]
    %v308 = vld [vmem:[#allocation2 + $0x5e0] sm:$0xff]
    %v309 = vld [vmem:[#allocation2 + $0x5e8] sm:$0xff]
    %v310 = vld [vmem:[#allocation2 + $0x5f0] sm:$0xff]
    %v311 = vld [vmem:[#allocation2 + $0x5f8] sm:$0xff]
    %v312 = vld [vmem:[#allocation2 + $0x600] sm:$0xff]
    %v313 = vld [vmem:[#allocation2 + $0x608] sm:$0xff]
    %v314 = vld [vmem:[#allocation2 + $0x610] sm:$0xff]
    %v315 = vld [vmem:[#allocation2 + $0x618] sm:$0xff]
    %v316 = vld [vmem:[#allocation2 + $0x620] sm:$0xff]
    %v317 = vld [vmem:[#allocation2 + $0x628] sm:$0xff]
    %v318 = vld [vmem:[#allocation2 + $0x630] sm:$0xff]
    %v319 = vld [vmem:[#allocation2 + $0x638] sm:$0xff]
    %v320 = vld [vmem:[#allocation2 + $0x640] sm:$0xff]
    %v321 = vld [vmem:[#allocation2 + $0x648] sm:$0xff]
    %v322 = vld [vmem:[#allocation2 + $0x650] sm:$0xff]
    %v323 = vld [vmem:[#allocation2 + $0x658] sm:$0xff]
    %v324 = vld [vmem:[#allocation2 + $0x660] sm:$0xff]
    %v325 = vld [vmem:[#allocation2 + $0x668] sm:$0xff]
    %v326 = vld [vmem:[#allocation2 + $0x670] sm:$0xff]
    %v327 = vld [vmem:[#allocation2 + $0x678] sm:$0xff]
    %v328 = vld [vmem:[#allocation2 + $0x680] sm:$0xff]
    %v329 = vld [vmem:[#allocation2 + $0x688] sm:$0xff]
    %v330 = vld [vmem:[#allocation2 + $0x690] sm:$0xff]
    %v331 = vld [vmem:[#allocation2 + $0x698] sm:$0xff]
    %v332 = vld [vmem:[#allocation2 + $0x6a0] sm:$0xff]
    %v333 = vld [vmem:[#allocation2 + $0x6a8] sm:$0xff]
    %v334 = vld [vmem:[#allocation2 + $0x6b0] sm:$0xff]
    %v335 = vld [vmem:[#allocation2 + $0x6b8] sm:$0xff]
    %v336 = vld [vmem:[#allocation2 + $0x6c0] sm:$0xff]
    %v337 = vld [vmem:[#allocation2 + $0x6c8] sm:$0xff]
    %v338 = vld [vmem:[#allocation2 + $0x6d0] sm:$0xff]
    %v339 = vld [vmem:[#allocation2 + $0x6d8] sm:$0xff]
    %v340 = vld [vmem:[#allocation2 + $0x6e0] sm:$0xff]
    %v341 = vld [vmem:[#allocation2 + $0x6e8] sm:$0xff]
    %v342 = vld [vmem:[#allocation2 + $0x6f0] sm:$0xff]
    %v343 = vld [vmem:[#allocation2 + $0x6f8] sm:$0xff]
    %v344 = vld [vmem:[#allocation2 + $0x700] sm:$0xff]
    %v345 = vld [vmem:[#allocation2 + $0x708] sm:$0xff]
    %v346 = vld [vmem:[#allocation2 + $0x710] sm:$0xff]
    %v347 = vld [vmem:[#allocation2 + $0x718] sm:$0xff]
    %v348 = vld [vmem:[#allocation2 + $0x720] sm:$0xff]
    %v349 = vld [vmem:[#allocation2 + $0x728] sm:$0xff]
    %v350 = vld [vmem:[#allocation2 + $0x730] sm:$0xff]
    %v351 = vld [vmem:[#allocation2 + $0x738] sm:$0xff]
    %v352 = vld [vmem:[#allocation2 + $0x740] sm:$0xff]
    %v353 = vld [vmem:[#allocation2 + $0x748] sm:$0xff]
    %v354 = vld [vmem:[#allocation2 + $0x750] sm:$0xff]
    %v355 = vld [vmem:[#allocation2 + $0x758] sm:$0xff]
    %v356 = vld [vmem:[#allocation2 + $0x760] sm:$0xff]
    %v357 = vld [vmem:[#allocation2 + $0x768] sm:$0xff]
    %v358 = vld [vmem:[#allocation2 + $0x770] sm:$0xff]
    %v359 = vld [vmem:[#allocation2 + $0x778] sm:$0xff]
    %v360 = vld [vmem:[#allocation2 + $0x780] sm:$0xff]
    %v361 = vld [vmem:[#allocation2 + $0x788] sm:$0xff]
    %v362 = vld [vmem:[#allocation2 + $0x790] sm:$0xff]
    %v363 = vld [vmem:[#allocation2 + $0x798] sm:$0xff]
    %v364 = vld [vmem:[#allocation2 + $0x7a0] sm:$0xff]
    %v365 = vld [vmem:[#allocation2 + $0x7a8] sm:$0xff]
    %v366 = vld [vmem:[#allocation2 + $0x7b0] sm:$0xff]
    %v367 = vld [vmem:[#allocation2 + $0x7b8] sm:$0xff]
    %v368 = vld [vmem:[#allocation2 + $0x7c0] sm:$0xff]
    %v369 = vld [vmem:[#allocation2 + $0x7c8] sm:$0xff]
    %v370 = vld [vmem:[#allocation2 + $0x7d0] sm:$0xff]
    %v371 = vld [vmem:[#allocation2 + $0x7d8] sm:$0xff]
    %v372 = vld [vmem:[#allocation2 + $0x7e0] sm:$0xff]
    %v373 = vld [vmem:[#allocation2 + $0x7e8] sm:$0xff]
    %v374 = vld [vmem:[#allocation2 + $0x7f0] sm:$0xff]
    %v375 = vld [vmem:[#allocation2 + $0x7f8] sm:$0xff]
    %v376 = vld [vmem:[#allocation2 + $0x800] sm:$0xff]
    %v377 = vld [vmem:[#allocation2 + $0x808] sm:$0xff]
    %v378 = vld [vmem:[#allocation2 + $0x810] sm:$0xff]
    %v379 = vld [vmem:[#allocation2 + $0x818] sm:$0xff]
    %v380 = vld [vmem:[#allocation2 + $0x820] sm:$0xff]
    %v381 = vld [vmem:[#allocation2 + $0x828] sm:$0xff]
    %v382 = vld [vmem:[#allocation2 + $0x830] sm:$0xff]
    %v383 = vld [vmem:[#allocation2 + $0x838] sm:$0xff]
    %v384 = vld [vmem:[#allocation2 + $0x840] sm:$0xff]
    %v385 = vld [vmem:[#allocation2 + $0x848] sm:$0xff]
    %v386 = vld [vmem:[#allocation2 + $0x850] sm:$0xff]
    %v387 = vld [vmem:[#allocation2 + $0x858] sm:$0xff]
    %v388 = vld [vmem:[#allocation2 + $0x860] sm:$0xff]
    %v389 = vld [vmem:[#allocation2 + $0x868] sm:$0xff]
    %v390 = vld [vmem:[#allocation2 + $0x870] sm:$0xff]
    %v391 = vld [vmem:[#allocation2 + $0x878] sm:$0xff]
    %v392 = vld [vmem:[#allocation2 + $0x880] sm:$0xff]
    %v393 = vld [vmem:[#allocation2 + $0x888] sm:$0xff]
    %v394 = vld [vmem:[#allocation2 + $0x890] sm:$0xff]
    %v395 = vld [vmem:[#allocation2 + $0x898] sm:$0xff]
    %v396 = vld [vmem:[#allocation2 + $0x8a0] sm:$0xff]
    %v397 = vld [vmem:[#allocation2 + $0x8a8] sm:$0xff]
    %v398 = vld [vmem:[#allocation2 + $0x8b0] sm:$0xff]
    %v399 = vld [vmem:[#allocation2 + $0x8b8] sm:$0xff]
    %v400 = vld [vmem:[#allocation2 + $0x8c0] sm:$0xff]
    %v401 = vld [vmem:[#allocation2 + $0x8c8] sm:$0xff]
    %v402 = vld [vmem:[#allocation2 + $0x8d0] sm:$0xff]
    %v403 = vld [vmem:[#allocation2 + $0x8d8] sm:$0xff]
    %v404 = vld [vmem:[#allocation2 + $0x8e0] sm:$0xff]
    %v405 = vld [vmem:[#allocation2 + $0x8e8] sm:$0xff]
    %v406 = vld [vmem:[#allocation2 + $0x8f0] sm:$0xff]
    %v407 = vld [vmem:[#allocation2 + $0x8f8] sm:$0xff]
    %v408 = vld [vmem:[#allocation2 + $0x900] sm:$0xff]
    %v409 = vld [vmem:[#allocation2 + $0x908] sm:$0xff]
    %v410 = vld [vmem:[#allocation2 + $0x910] sm:$0xff]
    %v411 = vld [vmem:[#allocation2 + $0x918] sm:$0xff]
    %v412 = vld [vmem:[#allocation2 + $0x920] sm:$0xff]
    %v413 = vld [vmem:[#allocation2 + $0x928] sm:$0xff]
    %v414 = vld [vmem:[#allocation2 + $0x930] sm:$0xff]
    %v415 = vld [vmem:[#allocation2 + $0x938] sm:$0xff]
    %v416 = vld [vmem:[#allocation2 + $0x940] sm:$0xff]
    %v417 = vld [vmem:[#allocation2 + $0x948] sm:$0xff]
    %v418 = vld [vmem:[#allocation2 + $0x950] sm:$0xff]
    %v419 = vld [vmem:[#allocation2 + $0x958] sm:$0xff]
    %v420 = vld [vmem:[#allocation2 + $0x960] sm:$0xff]
    %v421 = vld [vmem:[#allocation2 + $0x968] sm:$0xff]
    %v422 = vld [vmem:[#allocation2 + $0x970] sm:$0xff]
    %v423 = vld [vmem:[#allocation2 + $0x978] sm:$0xff]
    %v424 = vld [vmem:[#allocation2 + $0x980] sm:$0xff]
    %v425 = vld [vmem:[#allocation2 + $0x988] sm:$0xff]
    %v426 = vld [vmem:[#allocation2 + $0x990] sm:$0xff]
    %v427 = vld [vmem:[#allocation2 + $0x998] sm:$0xff]
    %v428 = vld [vmem:[#allocation2 + $0x9a0] sm:$0xff]
    %v429 = vld [vmem:[#allocation2 + $0x9a8] sm:$0xff]
    %v430 = vld [vmem:[#allocation2 + $0x9b0] sm:$0xff]
    %v431 = vld [vmem:[#allocation2 + $0x9b8] sm:$0xff]
    %v432 = vld [vmem:[#allocation2 + $0x9c0] sm:$0xff]
    %v433 = vld [vmem:[#allocation2 + $0x9c8] sm:$0xff]
    %v434 = vld [vmem:[#allocation2 + $0x9d0] sm:$0xff]
    %v435 = vld [vmem:[#allocation2 + $0x9d8] sm:$0xff]
    %v436 = vld [vmem:[#allocation2 + $0x9e0] sm:$0xff]
    %v437 = vld [vmem:[#allocation2 + $0x9e8] sm:$0xff]
    %v438 = vld [vmem:[#allocation2 + $0x9f0] sm:$0xff]
    %v439 = vld [vmem:[#allocation2 + $0x9f8] sm:$0xff]
    %v440 = vld [vmem:[#allocation2 + $0xa00] sm:$0xff]
    %v441 = vld [vmem:[#allocation2 + $0xa08] sm:$0xff]
    %v442 = vld [vmem:[#allocation2 + $0xa10] sm:$0xff]
    %v443 = vld [vmem:[#allocation2 + $0xa18] sm:$0xff]
    %v444 = vld [vmem:[#allocation2 + $0xa20] sm:$0xff]
    %v445 = vld [vmem:[#allocation2 + $0xa28] sm:$0xff]
    %v446 = vld [vmem:[#allocation2 + $0xa30] sm:$0xff]
    %v447 = vld [vmem:[#allocation2 + $0xa38] sm:$0xff]
    %v448 = vld [vmem:[#allocation2 + $0xa40] sm:$0xff]
    %v449 = vld [vmem:[#allocation2 + $0xa48] sm:$0xff]
    %v450 = vld [vmem:[#allocation2 + $0xa50] sm:$0xff]
    %v451 = vld [vmem:[#allocation2 + $0xa58] sm:$0xff]
    %v452 = vld [vmem:[#allocation2 + $0xa60] sm:$0xff]
    %v453 = vld [vmem:[#allocation2 + $0xa68] sm:$0xff]
    %v454 = vld [vmem:[#allocation2 + $0xa70] sm:$0xff]
    %v455 = vld [vmem:[#allocation2 + $0xa78] sm:$0xff]
    %v456 = vld [vmem:[#allocation2 + $0xa80] sm:$0xff]
    %v457 = vld [vmem:[#allocation2 + $0xa88] sm:$0xff]
    %v458 = vld [vmem:[#allocation2 + $0xa90] sm:$0xff]
    %v459 = vld [vmem:[#allocation2 + $0xa98] sm:$0xff]
    %v460 = vld [vmem:[#allocation2 + $0xaa0] sm:$0xff]
    %v461 = vld [vmem:[#allocation2 + $0xaa8] sm:$0xff]
    %v462 = vld [vmem:[#allocation2 + $0xab0] sm:$0xff]
    %v463 = vld [vmem:[#allocation2 + $0xab8] sm:$0xff]
    %v464 = vld [vmem:[#allocation2 + $0xac0] sm:$0xff]
    %v465 = vld [vmem:[#allocation2 + $0xac8] sm:$0xff]
    %v466 = vld [vmem:[#allocation2 + $0xad0] sm:$0xff]
    %v467 = vld [vmem:[#allocation2 + $0xad8] sm:$0xff]
    %v468 = vld [vmem:[#allocation2 + $0xae0] sm:$0xff]
    %v469 = vld [vmem:[#allocation2 + $0xae8] sm:$0xff]
    %v470 = vld [vmem:[#allocation2 + $0xaf0] sm:$0xff]
    %v471 = vld [vmem:[#allocation2 + $0xaf8] sm:$0xff]
    %v472 = vld [vmem:[#allocation2 + $0xb00] sm:$0xff]
    %v473 = vld [vmem:[#allocation2 + $0xb08] sm:$0xff]
    %v474 = vld [vmem:[#allocation2 + $0xb10] sm:$0xff]
    %v475 = vld [vmem:[#allocation2 + $0xb18] sm:$0xff]
    %v476 = vld [vmem:[#allocation2 + $0xb20] sm:$0xff]
    %v477 = vld [vmem:[#allocation2 + $0xb28] sm:$0xff]
    %v478 = vld [vmem:[#allocation2 + $0xb30] sm:$0xff]
    %v479 = vld [vmem:[#allocation2 + $0xb38] sm:$0xff]
    %v480 = vld [vmem:[#allocation2 + $0xb40] sm:$0xff]
    %v481 = vld [vmem:[#allocation2 + $0xb48] sm:$0xff]
    %v482 = vld [vmem:[#allocation2 + $0xb50] sm:$0xff]
    %v483 = vld [vmem:[#allocation2 + $0xb58] sm:$0xff]
    %v484 = vld [vmem:[#allocation2 + $0xb60] sm:$0xff]
    %v485 = vld [vmem:[#allocation2 + $0xb68] sm:$0xff]
    %v486 = vld [vmem:[#allocation2 + $0xb70] sm:$0xff]
    %v487 = vld [vmem:[#allocation2 + $0xb78] sm:$0xff]
    %v488 = vld [vmem:[#allocation2 + $0xb80] sm:$0xff]
    %v489 = vld [vmem:[#allocation2 + $0xb88] sm:$0xff]
    %v490 = vld [vmem:[#allocation2 + $0xb90] sm:$0xff]
    %v491 = vld [vmem:[#allocation2 + $0xb98] sm:$0xff]
    %v492 = vld [vmem:[#allocation2 + $0xba0] sm:$0xff]
    %v493 = vld [vmem:[#allocation2 + $0xba8] sm:$0xff]
    %v494 = vld [vmem:[#allocation2 + $0xbb0] sm:$0xff]
    %v495 = vld [vmem:[#allocation2 + $0xbb8] sm:$0xff]
    %v496 = vld [vmem:[#allocation2 + $0xbc0] sm:$0xff]
    %v497 = vld [vmem:[#allocation2 + $0xbc8] sm:$0xff]
    %v498 = vld [vmem:[#allocation2 + $0xbd0] sm:$0xff]
    %v499 = vld [vmem:[#allocation2 + $0xbd8] sm:$0xff]
    %v500 = vld [vmem:[#allocation2 + $0xbe0] sm:$0xff]
    %v501 = vld [vmem:[#allocation2 + $0xbe8] sm:$0xff]
    %v502 = vld [vmem:[#allocation2 + $0xbf0] sm:$0xff]
    %v503 = vld [vmem:[#allocation2 + $0xbf8] sm:$0xff]
    %v504 = vld [vmem:[#allocation2 + $0xc00] sm:$0xff]
    %v505 = vld [vmem:[#allocation2 + $0xc08] sm:$0xff]
    %v506 = vld [vmem:[#allocation2 + $0xc10] sm:$0xff]
    %v507 = vld [vmem:[#allocation2 + $0xc18] sm:$0xff]
    %v508 = vld [vmem:[#allocation2 + $0xc20] sm:$0xff]
    %v509 = vld [vmem:[#allocation2 + $0xc28] sm:$0xff]
    %v510 = vld [vmem:[#allocation2 + $0xc30] sm:$0xff]
    %v511 = vld [vmem:[#allocation2 + $0xc38] sm:$0xff]
    %v512 = vld [vmem:[#allocation2 + $0xc40] sm:$0xff]
    %v513 = vld [vmem:[#allocation2 + $0xc48] sm:$0xff]
    %v514 = vld [vmem:[#allocation2 + $0xc50] sm:$0xff]
    %v515 = vld [vmem:[#allocation2 + $0xc58] sm:$0xff]
    %v516 = vld [vmem:[#allocation2 + $0xc60] sm:$0xff]
    %v517 = vld [vmem:[#allocation2 + $0xc68] sm:$0xff]
    %v518 = vld [vmem:[#allocation2 + $0xc70] sm:$0xff]
    %v519 = vld [vmem:[#allocation2 + $0xc78] sm:$0xff]
    %v520 = vld [vmem:[#allocation2 + $0xc80] sm:$0xff]
    %v521 = vld [vmem:[#allocation2 + $0xc88] sm:$0xff]
    %v522 = vld [vmem:[#allocation2 + $0xc90] sm:$0xff]
    %v523 = vld [vmem:[#allocation2 + $0xc98] sm:$0xff]
    %v524 = vld [vmem:[#allocation2 + $0xca0] sm:$0xff]
    %v525 = vld [vmem:[#allocation2 + $0xca8] sm:$0xff]
    %v526 = vld [vmem:[#allocation2 + $0xcb0] sm:$0xff]
    %v527 = vld [vmem:[#allocation2 + $0xcb8] sm:$0xff]
    %v528 = vld [vmem:[#allocation2 + $0xcc0] sm:$0xff]
    %v529 = vld [vmem:[#allocation2 + $0xcc8] sm:$0xff]
    %v530 = vld [vmem:[#allocation2 + $0xcd0] sm:$0xff]
    %v531 = vld [vmem:[#allocation2 + $0xcd8] sm:$0xff]
    %v532 = vld [vmem:[#allocation2 + $0xce0] sm:$0xff]
    %v533 = vld [vmem:[#allocation2 + $0xce8] sm:$0xff]
    %v534 = vld [vmem:[#allocation2 + $0xcf0] sm:$0xff]
    %v535 = vld [vmem:[#allocation2 + $0xcf8] sm:$0xff]
    %v536 = vld [vmem:[#allocation2 + $0xd00] sm:$0xff]
    %v537 = vld [vmem:[#allocation2 + $0xd08] sm:$0xff]
    %v538 = vld [vmem:[#allocation2 + $0xd10] sm:$0xff]
    %v539 = vld [vmem:[#allocation2 + $0xd18] sm:$0xff]
    %v540 = vld [vmem:[#allocation2 + $0xd20] sm:$0xff]
    %v541 = vld [vmem:[#allocation2 + $0xd28] sm:$0xff]
    %v542 = vld [vmem:[#allocation2 + $0xd30] sm:$0xff]
    %v543 = vld [vmem:[#allocation2 + $0xd38] sm:$0xff]
    %v544 = vld [vmem:[#allocation2 + $0xd40] sm:$0xff]
    %v545 = vld [vmem:[#allocation2 + $0xd48] sm:$0xff]
    %v546 = vld [vmem:[#allocation2 + $0xd50] sm:$0xff]
    %v547 = vld [vmem:[#allocation2 + $0xd58] sm:$0xff]
    %v548 = vld [vmem:[#allocation2 + $0xd60] sm:$0xff]
    %v549 = vld [vmem:[#allocation2 + $0xd68] sm:$0xff]
    %v550 = vld [vmem:[#allocation2 + $0xd70] sm:$0xff]
    %v551 = vld [vmem:[#allocation2 + $0xd78] sm:$0xff]
    %v552 = vld [vmem:[#allocation2 + $0xd80] sm:$0xff]
    %v553 = vld [vmem:[#allocation2 + $0xd88] sm:$0xff]
    %v554 = vld [vmem:[#allocation2 + $0xd90] sm:$0xff]
    %v555 = vld [vmem:[#allocation2 + $0xd98] sm:$0xff]
    %v556 = vld [vmem:[#allocation2 + $0xda0] sm:$0xff]
    %v557 = vld [vmem:[#allocation2 + $0xda8] sm:$0xff]
    %v558 = vld [vmem:[#allocation2 + $0xdb0] sm:$0xff]
    %v559 = vld [vmem:[#allocation2 + $0xdb8] sm:$0xff]
    %v560 = vld [vmem:[#allocation2 + $0xdc0] sm:$0xff]
    %v561 = vld [vmem:[#allocation2 + $0xdc8] sm:$0xff]
    %v562 = vld [vmem:[#allocation2 + $0xdd0] sm:$0xff]
    %v563 = vld [vmem:[#allocation2 + $0xdd8] sm:$0xff]
    %v564 = vld [vmem:[#allocation2 + $0xde0] sm:$0xff]
    %v565 = vld [vmem:[#allocation2 + $0xde8] sm:$0xff]
    %v566 = vld [vmem:[#allocation2 + $0xdf0] sm:$0xff]
    %v567 = vld [vmem:[#allocation2 + $0xdf8] sm:$0xff]
    %v568 = vld [vmem:[#allocation2 + $0xe00] sm:$0xff]
    %v569 = vld [vmem:[#allocation2 + $0xe08] sm:$0xff]
    %v570 = vld [vmem:[#allocation2 + $0xe10] sm:$0xff]
    %v571 = vld [vmem:[#allocation2 + $0xe18] sm:$0xff]
    %v572 = vld [vmem:[#allocation2 + $0xe20] sm:$0xff]
    %v573 = vld [vmem:[#allocation2 + $0xe28] sm:$0xff]
    %v574 = vld [vmem:[#allocation2 + $0xe30] sm:$0xff]
    %v575 = vld [vmem:[#allocation2 + $0xe38] sm:$0xff]
    %v576 = vld [vmem:[#allocation2 + $0xe40] sm:$0xff]
    %v577 = vld [vmem:[#allocation2 + $0xe48] sm:$0xff]
    %v578 = vld [vmem:[#allocation2 + $0xe50] sm:$0xff]
    %v579 = vld [vmem:[#allocation2 + $0xe58] sm:$0xff]
    %v580 = vld [vmem:[#allocation2 + $0xe60] sm:$0xff]
    %v581 = vld [vmem:[#allocation2 + $0xe68] sm:$0xff]
    %v582 = vld [vmem:[#allocation2 + $0xe70] sm:$0xff]
    %v583 = vld [vmem:[#allocation2 + $0xe78] sm:$0xff]
    %v584 = vld [vmem:[#allocation2 + $0xe80] sm:$0xff]
    %v585 = vld [vmem:[#allocation2 + $0xe88] sm:$0xff]
    %v586 = vld [vmem:[#allocation2 + $0xe90] sm:$0xff]
    %v587 = vld [vmem:[#allocation2 + $0xe98] sm:$0xff]
    %v588 = vld [vmem:[#allocation2 + $0xea0] sm:$0xff]
    %v589 = vld [vmem:[#allocation2 + $0xea8] sm:$0xff]
    %v590 = vld [vmem:[#allocation2 + $0xeb0] sm:$0xff]
    %v591 = vld [vmem:[#allocation2 + $0xeb8] sm:$0xff]
    %v592 = vld [vmem:[#allocation2 + $0xec0] sm:$0xff]
    %v593 = vld [vmem:[#allocation2 + $0xec8] sm:$0xff]
    %v594 = vld [vmem:[#allocation2 + $0xed0] sm:$0xff]
    %v595 = vld [vmem:[#allocation2 + $0xed8] sm:$0xff]
    %v596 = vld [vmem:[#allocation2 + $0xee0] sm:$0xff]
    %v597 = vld [vmem:[#allocation2 + $0xee8] sm:$0xff]
    %v598 = vld [vmem:[#allocation2 + $0xef0] sm:$0xff]
    %v599 = vld [vmem:[#allocation2 + $0xef8] sm:$0xff]
    %v600 = vld [vmem:[#allocation2 + $0xf00] sm:$0xff]
    %v601 = vld [vmem:[#allocation2 + $0xf08] sm:$0xff]
    %v602 = vld [vmem:[#allocation2 + $0xf10] sm:$0xff]
    %v603 = vld [vmem:[#allocation2 + $0xf18] sm:$0xff]
    %v604 = vld [vmem:[#allocation2 + $0xf20] sm:$0xff]
    %v605 = vld [vmem:[#allocation2 + $0xf28] sm:$0xff]
    %v606 = vld [vmem:[#allocation2 + $0xf30] sm:$0xff]
    %v607 = vld [vmem:[#allocation2 + $0xf38] sm:$0xff]
    %v608 = vld [vmem:[#allocation2 + $0xf40] sm:$0xff]
    %v609 = vld [vmem:[#allocation2 + $0xf48] sm:$0xff]
    %v610 = vld [vmem:[#allocation2 + $0xf50] sm:$0xff]
    %v611 = vld [vmem:[#allocation2 + $0xf58] sm:$0xff]
    %v612 = vld [vmem:[#allocation2 + $0xf60] sm:$0xff]
    %v613 = vld [vmem:[#allocation2 + $0xf68] sm:$0xff]
    %v614 = vld [vmem:[#allocation2 + $0xf70] sm:$0xff]
    %v615 = vld [vmem:[#allocation2 + $0xf78] sm:$0xff]
    %v616 = vld [vmem:[#allocation2 + $0xf80] sm:$0xff]
    %v617 = vld [vmem:[#allocation2 + $0xf88] sm:$0xff]
    %v618 = vld [vmem:[#allocation2 + $0xf90] sm:$0xff]
    %v619 = vld [vmem:[#allocation2 + $0xf98] sm:$0xff]
    %v620 = vld [vmem:[#allocation2 + $0xfa0] sm:$0xff]
    %v621 = vld [vmem:[#allocation2 + $0xfa8] sm:$0xff]
    %v622 = vld [vmem:[#allocation2 + $0xfb0] sm:$0xff]
    %v623 = vld [vmem:[#allocation2 + $0xfb8] sm:$0xff]
    %v624 = vld [vmem:[#allocation2 + $0xfc0] sm:$0xff]
    %v625 = vld [vmem:[#allocation2 + $0xfc8] sm:$0xff]
    %v626 = vld [vmem:[#allocation2 + $0xfd0] sm:$0xff]
    %v627 = vld [vmem:[#allocation2 + $0xfd8] sm:$0xff]
    %v628 = vld [vmem:[#allocation2 + $0xfe0] sm:$0xff]
    %v629 = vld [vmem:[#allocation2 + $0xfe8] sm:$0xff]
    %v630 = vld [vmem:[#allocation2 + $0xff0] sm:$0xff]
    %v631 = vld [vmem:[#allocation2 + $0xff8] sm:$0xff]
    %v632 = vld [vmem:[#allocation2 + $0x1000] sm:$0xff]
    %v633 = vld [vmem:[#allocation2 + $0x1008] sm:$0xff]
    %v634 = vld [vmem:[#allocation2 + $0x1010] sm:$0xff]
    %v635 = vld [vmem:[#allocation2 + $0x1018] sm:$0xff]
    %v636 = vld [vmem:[#allocation2 + $0x1020] sm:$0xff]
    %v637 = vld [vmem:[#allocation2 + $0x1028] sm:$0xff]
    %v638 = vld [vmem:[#allocation2 + $0x1030] sm:$0xff]
    %v639 = vld [vmem:[#allocation2 + $0x1038] sm:$0xff]
    %v640 = vld [vmem:[#allocation2 + $0x1040] sm:$0xff]
    %v641 = vld [vmem:[#allocation2 + $0x1048] sm:$0xff]
    %v642 = vld [vmem:[#allocation2 + $0x1050] sm:$0xff]
    %v643 = vld [vmem:[#allocation2 + $0x1058] sm:$0xff]
    %v644 = vld [vmem:[#allocation2 + $0x1060] sm:$0xff]
    %v645 = vld [vmem:[#allocation2 + $0x1068] sm:$0xff]
    %v646 = vld [vmem:[#allocation2 + $0x1070] sm:$0xff]
    %v647 = vld [vmem:[#allocation2 + $0x1078] sm:$0xff]
    %v648 = vld [vmem:[#allocation2 + $0x1080] sm:$0xff]
    %v649 = vld [vmem:[#allocation2 + $0x1088] sm:$0xff]
    %v650 = vld [vmem:[#allocation2 + $0x1090] sm:$0xff]
    %v651 = vld [vmem:[#allocation2 + $0x1098] sm:$0xff]
    %v652 = vld [vmem:[#allocation2 + $0x10a0] sm:$0xff]
    %v653 = vld [vmem:[#allocation2 + $0x10a8] sm:$0xff]
    %v654 = vld [vmem:[#allocation2 + $0x10b0] sm:$0xff]
    %v655 = vld [vmem:[#allocation2 + $0x10b8] sm:$0xff]
    %v656 = vld [vmem:[#allocation2 + $0x10c0] sm:$0xff]
    %v657 = vld [vmem:[#allocation2 + $0x10c8] sm:$0xff]
    %v658 = vld [vmem:[#allocation2 + $0x10d0] sm:$0xff]
    %v659 = vld [vmem:[#allocation2 + $0x10d8] sm:$0xff]
    %v660 = vld [vmem:[#allocation2 + $0x10e0] sm:$0xff]
    %v661 = vld [vmem:[#allocation2 + $0x10e8] sm:$0xff]
    %v662 = vld [vmem:[#allocation2 + $0x10f0] sm:$0xff]
    %v663 = vld [vmem:[#allocation2 + $0x10f8] sm:$0xff]
    %v664 = vld [vmem:[#allocation2 + $0x1100] sm:$0xff]
    %v665 = vld [vmem:[#allocation2 + $0x1108] sm:$0xff]
    %v666 = vld [vmem:[#allocation2 + $0x1110] sm:$0xff]
    %v667 = vld [vmem:[#allocation2 + $0x1118] sm:$0xff]
    %v668 = vld [vmem:[#allocation2 + $0x1120] sm:$0xff]
    %v669 = vld [vmem:[#allocation2 + $0x1128] sm:$0xff]
    %v670 = vld [vmem:[#allocation2 + $0x1130] sm:$0xff]
    %v671 = vld [vmem:[#allocation2 + $0x1138] sm:$0xff]
    %v672 = vld [vmem:[#allocation2 + $0x1140] sm:$0xff]
    %v673 = vld [vmem:[#allocation2 + $0x1148] sm:$0xff]
    %v674 = vld [vmem:[#allocation2 + $0x1150] sm:$0xff]
    %v675 = vld [vmem:[#allocation2 + $0x1158] sm:$0xff]
    %v676 = vld [vmem:[#allocation2 + $0x1160] sm:$0xff]
    %v677 = vld [vmem:[#allocation2 + $0x1168] sm:$0xff]
    %v678 = vld [vmem:[#allocation2 + $0x1170] sm:$0xff]
    %v679 = vld [vmem:[#allocation2 + $0x1178] sm:$0xff]
    %v680 = vld [vmem:[#allocation2 + $0x1180] sm:$0xff]
    %v681 = vld [vmem:[#allocation2 + $0x1188] sm:$0xff]
    %v682 = vld [vmem:[#allocation2 + $0x1190] sm:$0xff]
    %v683 = vld [vmem:[#allocation2 + $0x1198] sm:$0xff]
    %v684 = vld [vmem:[#allocation2 + $0x11a0] sm:$0xff]
    %v685 = vld [vmem:[#allocation2 + $0x11a8] sm:$0xff]
    %v686 = vld [vmem:[#allocation2 + $0x11b0] sm:$0xff]
    %v687 = vld [vmem:[#allocation2 + $0x11b8] sm:$0xff]
    %v688 = vld [vmem:[#allocation2 + $0x11c0] sm:$0xff]
    %v689 = vld [vmem:[#allocation2 + $0x11c8] sm:$0xff]
    %v690 = vld [vmem:[#allocation2 + $0x11d0] sm:$0xff]
    %v691 = vld [vmem:[#allocation2 + $0x11d8] sm:$0xff]
    %v692 = vld [vmem:[#allocation2 + $0x11e0] sm:$0xff]
    %v693 = vld [vmem:[#allocation2 + $0x11e8] sm:$0xff]
    %v694 = vld [vmem:[#allocation2 + $0x11f0] sm:$0xff]
    %v695 = vld [vmem:[#allocation2 + $0x11f8] sm:$0xff]
    %v696 = vld [vmem:[#allocation2 + $0x1200] sm:$0xff]
    %v697 = vld [vmem:[#allocation2 + $0x1208] sm:$0xff]
    %v698 = vld [vmem:[#allocation2 + $0x1210] sm:$0xff]
    %v699 = vld [vmem:[#allocation2 + $0x1218] sm:$0xff]
    %v700 = vld [vmem:[#allocation2 + $0x1220] sm:$0xff]
    %v701 = vld [vmem:[#allocation2 + $0x1228] sm:$0xff]
    %v702 = vld [vmem:[#allocation2 + $0x1230] sm:$0xff]
    %v703 = vld [vmem:[#allocation2 + $0x1238] sm:$0xff]
    %v704 = vld [vmem:[#allocation2 + $0x1240] sm:$0xff]
    %v705 = vld [vmem:[#allocation2 + $0x1248] sm:$0xff]
    %v706 = vld [vmem:[#allocation2 + $0x1250] sm:$0xff]
    %v707 = vld [vmem:[#allocation2 + $0x1258] sm:$0xff]
    %v708 = vld [vmem:[#allocation2 + $0x1260] sm:$0xff]
    %v709 = vld [vmem:[#allocation2 + $0x1268] sm:$0xff]
    %v710 = vld [vmem:[#allocation2 + $0x1270] sm:$0xff]
    %v711 = vld [vmem:[#allocation2 + $0x1278] sm:$0xff]
    %v712 = vld [vmem:[#allocation2 + $0x1280] sm:$0xff]
    %v713 = vld [vmem:[#allocation2 + $0x1288] sm:$0xff]
    %v714 = vld [vmem:[#allocation2 + $0x1290] sm:$0xff]
    %v715 = vld [vmem:[#allocation2 + $0x1298] sm:$0xff]
    %v716 = vld [vmem:[#allocation2 + $0x12a0] sm:$0xff]
    %v717 = vld [vmem:[#allocation2 + $0x12a8] sm:$0xff]
    %v718 = vld [vmem:[#allocation2 + $0x12b0] sm:$0xff]
    %v719 = vld [vmem:[#allocation2 + $0x12b8] sm:$0xff]
    %v720 = vld [vmem:[#allocation2 + $0x12c0] sm:$0xff]
    %v721 = vld [vmem:[#allocation2 + $0x12c8] sm:$0xff]
    %v722 = vld [vmem:[#allocation2 + $0x12d0] sm:$0xff]
    %v723 = vld [vmem:[#allocation2 + $0x12d8] sm:$0xff]
    %v724 = vld [vmem:[#allocation2 + $0x12e0] sm:$0xff]
    %v725 = vld [vmem:[#allocation2 + $0x12e8] sm:$0xff]
    %v726 = vld [vmem:[#allocation2 + $0x12f0] sm:$0xff]
    %v727 = vld [vmem:[#allocation2 + $0x12f8] sm:$0xff]
    %v728 = vld [vmem:[#allocation2 + $0x1300] sm:$0xff]
    %v729 = vld [vmem:[#allocation2 + $0x1308] sm:$0xff]
    %v730 = vld [vmem:[#allocation2 + $0x1310] sm:$0xff]
    %v731 = vld [vmem:[#allocation2 + $0x1318] sm:$0xff]
    %v732 = vld [vmem:[#allocation2 + $0x1320] sm:$0xff]
    %v733 = vld [vmem:[#allocation2 + $0x1328] sm:$0xff]
    %v734 = vld [vmem:[#allocation2 + $0x1330] sm:$0xff]
    %v735 = vld [vmem:[#allocation2 + $0x1338] sm:$0xff]
    %v736 = vld [vmem:[#allocation2 + $0x1340] sm:$0xff]
    %v737 = vld [vmem:[#allocation2 + $0x1348] sm:$0xff]
    %v738 = vld [vmem:[#allocation2 + $0x1350] sm:$0xff]
    %v739 = vld [vmem:[#allocation2 + $0x1358] sm:$0xff]
    %v740 = vld [vmem:[#allocation2 + $0x1360] sm:$0xff]
    %v741 = vld [vmem:[#allocation2 + $0x1368] sm:$0xff]
    %v742 = vld [vmem:[#allocation2 + $0x1370] sm:$0xff]
    %v743 = vld [vmem:[#allocation2 + $0x1378] sm:$0xff]
    %v744 = vld [vmem:[#allocation2 + $0x1380] sm:$0xff]
    %v745 = vld [vmem:[#allocation2 + $0x1388] sm:$0xff]
    %v746 = vld [vmem:[#allocation2 + $0x1390] sm:$0xff]
    %v747 = vld [vmem:[#allocation2 + $0x1398] sm:$0xff]
    %v748 = vld [vmem:[#allocation2 + $0x13a0] sm:$0xff]
    %v749 = vld [vmem:[#allocation2 + $0x13a8] sm:$0xff]
    %v750 = vld [vmem:[#allocation2 + $0x13b0] sm:$0xff]
    %v751 = vld [vmem:[#allocation2 + $0x13b8] sm:$0xff]
    %v752 = vld [vmem:[#allocation2 + $0x13c0] sm:$0xff]
    %v753 = vld [vmem:[#allocation2 + $0x13c8] sm:$0xff]
    %v754 = vld [vmem:[#allocation2 + $0x13d0] sm:$0xff]
    %v755 = vld [vmem:[#allocation2 + $0x13d8] sm:$0xff]
    %v756 = vld [vmem:[#allocation2 + $0x13e0] sm:$0xff]
    %v757 = vld [vmem:[#allocation2 + $0x13e8] sm:$0xff]
    %v758 = vld [vmem:[#allocation2 + $0x13f0] sm:$0xff]
    %v759 = vld [vmem:[#allocation2 + $0x13f8] sm:$0xff]
    %v760 = vld [vmem:[#allocation2 + $0x1400] sm:$0xff]
    %v761 = vld [vmem:[#allocation2 + $0x1408] sm:$0xff]
    %v762 = vld [vmem:[#allocation2 + $0x1410] sm:$0xff]
    %v763 = vld [vmem:[#allocation2 + $0x1418] sm:$0xff]
    %v764 = vld [vmem:[#allocation2 + $0x1420] sm:$0xff]
    %v765 = vld [vmem:[#allocation2 + $0x1428] sm:$0xff]
    %v766 = vld [vmem:[#allocation2 + $0x1430] sm:$0xff]
    %v767 = vld [vmem:[#allocation2 + $0x1438] sm:$0xff]
    %v768 = vld [vmem:[#allocation2 + $0x1440] sm:$0xff]
    %v769 = vld [vmem:[#allocation2 + $0x1448] sm:$0xff]
    %v770 = vld [vmem:[#allocation2 + $0x1450] sm:$0xff]
    %v771 = vld [vmem:[#allocation2 + $0x1458] sm:$0xff]
    %v772 = vld [vmem:[#allocation2 + $0x1460] sm:$0xff]
    %v773 = vld [vmem:[#allocation2 + $0x1468] sm:$0xff]
    %v774 = vld [vmem:[#allocation2 + $0x1470] sm:$0xff]
    %v775 = vld [vmem:[#allocation2 + $0x1478] sm:$0xff]
    %v776 = vld [vmem:[#allocation2 + $0x1480] sm:$0xff]
    %v777 = vld [vmem:[#allocation2 + $0x1488] sm:$0xff]
    %v778 = vld [vmem:[#allocation2 + $0x1490] sm:$0xff]
    %v779 = vld [vmem:[#allocation2 + $0x1498] sm:$0xff]
    %v780 = vld [vmem:[#allocation2 + $0x14a0] sm:$0xff]
    %v781 = vld [vmem:[#allocation2 + $0x14a8] sm:$0xff]
    %v782 = vld [vmem:[#allocation2 + $0x14b0] sm:$0xff]
    %v783 = vld [vmem:[#allocation2 + $0x14b8] sm:$0xff]
    %v784 = vld [vmem:[#allocation2 + $0x14c0] sm:$0xff]
    %v785 = vld [vmem:[#allocation2 + $0x14c8] sm:$0xff]
    %v786 = vld [vmem:[#allocation2 + $0x14d0] sm:$0xff]
    %v787 = vld [vmem:[#allocation2 + $0x14d8] sm:$0xff]
    %v788 = vld [vmem:[#allocation2 + $0x14e0] sm:$0xff]
    %v789 = vld [vmem:[#allocation2 + $0x14e8] sm:$0xff]
    %v790 = vld [vmem:[#allocation2 + $0x14f0] sm:$0xff]
    %v791 = vld [vmem:[#allocation2 + $0x14f8] sm:$0xff]
    %v792 = vld [vmem:[#allocation2 + $0x1500] sm:$0xff]
    %v793 = vld [vmem:[#allocation2 + $0x1508] sm:$0xff]
    %v794 = vld [vmem:[#allocation2 + $0x1510] sm:$0xff]
    %v795 = vld [vmem:[#allocation2 + $0x1518] sm:$0xff]
    %v796 = vld [vmem:[#allocation2 + $0x1520] sm:$0xff]
    %v797 = vld [vmem:[#allocation2 + $0x1528] sm:$0xff]
    %v798 = vld [vmem:[#allocation2 + $0x1530] sm:$0xff]
    %v799 = vld [vmem:[#allocation2 + $0x1538] sm:$0xff]
    %v800 = vld [vmem:[#allocation2 + $0x1540] sm:$0xff]
    %v801 = vld [vmem:[#allocation2 + $0x1548] sm:$0xff]
    %v802 = vld [vmem:[#allocation2 + $0x1550] sm:$0xff]
    %v803 = vld [vmem:[#allocation2 + $0x1558] sm:$0xff]
    %v804 = vld [vmem:[#allocation2 + $0x1560] sm:$0xff]
    %v805 = vld [vmem:[#allocation2 + $0x1568] sm:$0xff]
    %v806 = vld [vmem:[#allocation2 + $0x1570] sm:$0xff]
    %v807 = vld [vmem:[#allocation2 + $0x1578] sm:$0xff]
    %v808 = vld [vmem:[#allocation2 + $0x1580] sm:$0xff]
    %v809 = vld [vmem:[#allocation2 + $0x1588] sm:$0xff]
    %v810 = vld [vmem:[#allocation2 + $0x1590] sm:$0xff]
    %v811 = vld [vmem:[#allocation2 + $0x1598] sm:$0xff]
    %v812 = vld [vmem:[#allocation2 + $0x15a0] sm:$0xff]
    %v813 = vld [vmem:[#allocation2 + $0x15a8] sm:$0xff]
    %v814 = vld [vmem:[#allocation2 + $0x15b0] sm:$0xff]
    %v815 = vld [vmem:[#allocation2 + $0x15b8] sm:$0xff]
    %v816 = vld [vmem:[#allocation2 + $0x15c0] sm:$0xff]
    %v817 = vld [vmem:[#allocation2 + $0x15c8] sm:$0xff]
    %v818 = vld [vmem:[#allocation2 + $0x15d0] sm:$0xff]
    %v819 = vld [vmem:[#allocation2 + $0x15d8] sm:$0xff]
    %v820 = vld [vmem:[#allocation2 + $0x15e0] sm:$0xff]
    %v821 = vld [vmem:[#allocation2 + $0x15e8] sm:$0xff]
    %v822 = vld [vmem:[#allocation2 + $0x15f0] sm:$0xff]
    %v823 = vld [vmem:[#allocation2 + $0x15f8] sm:$0xff]
    %v824 = vld [vmem:[#allocation2 + $0x1600] sm:$0xff]
    %v825 = vld [vmem:[#allocation2 + $0x1608] sm:$0xff]
    %v826 = vld [vmem:[#allocation2 + $0x1610] sm:$0xff]
    %v827 = vld [vmem:[#allocation2 + $0x1618] sm:$0xff]
    %v828 = vld [vmem:[#allocation2 + $0x1620] sm:$0xff]
    %v829 = vld [vmem:[#allocation2 + $0x1628] sm:$0xff]
    %v830 = vld [vmem:[#allocation2 + $0x1630] sm:$0xff]
    %v831 = vld [vmem:[#allocation2 + $0x1638] sm:$0xff]
    %v832 = vld [vmem:[#allocation2 + $0x1640] sm:$0xff]
    %v833 = vld [vmem:[#allocation2 + $0x1648] sm:$0xff]
    %v834 = vld [vmem:[#allocation2 + $0x1650] sm:$0xff]
    %v835 = vld [vmem:[#allocation2 + $0x1658] sm:$0xff]
    %v836 = vld [vmem:[#allocation2 + $0x1660] sm:$0xff]
    %v837 = vld [vmem:[#allocation2 + $0x1668] sm:$0xff]
    %v838 = vld [vmem:[#allocation2 + $0x1670] sm:$0xff]
    %v839 = vld [vmem:[#allocation2 + $0x1678] sm:$0xff]
    %v840 = vld [vmem:[#allocation2 + $0x1680] sm:$0xff]
    %v841 = vld [vmem:[#allocation2 + $0x1688] sm:$0xff]
    %v842 = vld [vmem:[#allocation2 + $0x1690] sm:$0xff]
    %v843 = vld [vmem:[#allocation2 + $0x1698] sm:$0xff]
    %v844 = vld [vmem:[#allocation2 + $0x16a0] sm:$0xff]
    %v845 = vld [vmem:[#allocation2 + $0x16a8] sm:$0xff]
    %v846 = vld [vmem:[#allocation2 + $0x16b0] sm:$0xff]
    %v847 = vld [vmem:[#allocation2 + $0x16b8] sm:$0xff]
    %v848 = vld [vmem:[#allocation2 + $0x16c0] sm:$0xff]
    %v849 = vld [vmem:[#allocation2 + $0x16c8] sm:$0xff]
    %v850 = vld [vmem:[#allocation2 + $0x16d0] sm:$0xff]
    %v851 = vld [vmem:[#allocation2 + $0x16d8] sm:$0xff]
    %v852 = vld [vmem:[#allocation2 + $0x16e0] sm:$0xff]
    %v853 = vld [vmem:[#allocation2 + $0x16e8] sm:$0xff]
    %v854 = vld [vmem:[#allocation2 + $0x16f0] sm:$0xff]
    %v855 = vld [vmem:[#allocation2 + $0x16f8] sm:$0xff]
    %v856 = vld [vmem:[#allocation2 + $0x1700] sm:$0xff]
    %v857 = vld [vmem:[#allocation2 + $0x1708] sm:$0xff]
    %v858 = vld [vmem:[#allocation2 + $0x1710] sm:$0xff]
    %v859 = vld [vmem:[#allocation2 + $0x1718] sm:$0xff]
    %v860 = vld [vmem:[#allocation2 + $0x1720] sm:$0xff]
    %v861 = vld [vmem:[#allocation2 + $0x1728] sm:$0xff]
    %v862 = vld [vmem:[#allocation2 + $0x1730] sm:$0xff]
    %v863 = vld [vmem:[#allocation2 + $0x1738] sm:$0xff]
    %v864 = vld [vmem:[#allocation2 + $0x1740] sm:$0xff]
    %v865 = vld [vmem:[#allocation2 + $0x1748] sm:$0xff]
    %v866 = vld [vmem:[#allocation2 + $0x1750] sm:$0xff]
    %v867 = vld [vmem:[#allocation2 + $0x1758] sm:$0xff]
    %v868 = vld [vmem:[#allocation2 + $0x1760] sm:$0xff]
    %v869 = vld [vmem:[#allocation2 + $0x1768] sm:$0xff]
    %v870 = vld [vmem:[#allocation2 + $0x1770] sm:$0xff]
    %v871 = vld [vmem:[#allocation2 + $0x1778] sm:$0xff]
    %v872 = vld [vmem:[#allocation2 + $0x1780] sm:$0xff]
    %v873 = vld [vmem:[#allocation2 + $0x1788] sm:$0xff]
    %v874 = vld [vmem:[#allocation2 + $0x1790] sm:$0xff]
    %v875 = vld [vmem:[#allocation2 + $0x1798] sm:$0xff]
    %v876 = vld [vmem:[#allocation2 + $0x17a0] sm:$0xff]
    %v877 = vld [vmem:[#allocation2 + $0x17a8] sm:$0xff]
    %v878 = vld [vmem:[#allocation2 + $0x17b0] sm:$0xff]
    %v879 = vld [vmem:[#allocation2 + $0x17b8] sm:$0xff]
    %v880 = vld [vmem:[#allocation2 + $0x17c0] sm:$0xff]
    %v881 = vld [vmem:[#allocation2 + $0x17c8] sm:$0xff]
    %v882 = vld [vmem:[#allocation2 + $0x17d0] sm:$0xff]
    %v883 = vld [vmem:[#allocation2 + $0x17d8] sm:$0xff]
    %v884 = vld [vmem:[#allocation2 + $0x17e0] sm:$0xff]
    %v885 = vld [vmem:[#allocation2 + $0x17e8] sm:$0xff]
    %v886 = vld [vmem:[#allocation2 + $0x17f0] sm:$0xff]
    %v887 = vld [vmem:[#allocation2 + $0x17f8] sm:$0xff]
    %v888 = vld [vmem:[#allocation2 + $0x1800] sm:$0xff]
    %v889 = vld [vmem:[#allocation2 + $0x1808] sm:$0xff]
    %v890 = vld [vmem:[#allocation2 + $0x1810] sm:$0xff]
    %v891 = vld [vmem:[#allocation2 + $0x1818] sm:$0xff]
    %v892 = vld [vmem:[#allocation2 + $0x1820] sm:$0xff]
    %v893 = vld [vmem:[#allocation2 + $0x1828] sm:$0xff]
    %v894 = vld [vmem:[#allocation2 + $0x1830] sm:$0xff]
    %v895 = vld [vmem:[#allocation2 + $0x1838] sm:$0xff]
    %v896 = vld [vmem:[#allocation2 + $0x1840] sm:$0xff]
    %v897 = vld [vmem:[#allocation2 + $0x1848] sm:$0xff]
    %v898 = vld [vmem:[#allocation2 + $0x1850] sm:$0xff]
    %v899 = vld [vmem:[#allocation2 + $0x1858] sm:$0xff]
    %v900 = vld [vmem:[#allocation2 + $0x1860] sm:$0xff]
    %v901 = vld [vmem:[#allocation2 + $0x1868] sm:$0xff]
    %v902 = vld [vmem:[#allocation2 + $0x1870] sm:$0xff]
    %v903 = vld [vmem:[#allocation2 + $0x1878] sm:$0xff]
    %v904 = vld [vmem:[#allocation2 + $0x1880] sm:$0xff]
    %v905 = vld [vmem:[#allocation2 + $0x1888] sm:$0xff]
    %v906 = vld [vmem:[#allocation2 + $0x1890] sm:$0xff]
    %v907 = vld [vmem:[#allocation2 + $0x1898] sm:$0xff]
    %v908 = vld [vmem:[#allocation2 + $0x18a0] sm:$0xff]
    %v909 = vld [vmem:[#allocation2 + $0x18a8] sm:$0xff]
    %v910 = vld [vmem:[#allocation2 + $0x18b0] sm:$0xff]
    %v911 = vld [vmem:[#allocation2 + $0x18b8] sm:$0xff]
    %v912 = vld [vmem:[#allocation2 + $0x18c0] sm:$0xff]
    %v913 = vld [vmem:[#allocation2 + $0x18c8] sm:$0xff]
    %v914 = vld [vmem:[#allocation2 + $0x18d0] sm:$0xff]
    %v915 = vld [vmem:[#allocation2 + $0x18d8] sm:$0xff]
    %v916 = vld [vmem:[#allocation2 + $0x18e0] sm:$0xff]
    %v917 = vld [vmem:[#allocation2 + $0x18e8] sm:$0xff]
    %v918 = vld [vmem:[#allocation2 + $0x18f0] sm:$0xff]
    %v919 = vld [vmem:[#allocation2 + $0x18f8] sm:$0xff]
    %v920 = vld [vmem:[#allocation2 + $0x1900] sm:$0xff]
    %v921 = vld [vmem:[#allocation2 + $0x1908] sm:$0xff]
    %v922 = vld [vmem:[#allocation2 + $0x1910] sm:$0xff]
    %v923 = vld [vmem:[#allocation2 + $0x1918] sm:$0xff]
    %v924 = vld [vmem:[#allocation2 + $0x1920] sm:$0xff]
    %v925 = vld [vmem:[#allocation2 + $0x1928] sm:$0xff]
    %v926 = vld [vmem:[#allocation2 + $0x1930] sm:$0xff]
    %v927 = vld [vmem:[#allocation2 + $0x1938] sm:$0xff]
    %v928 = vld [vmem:[#allocation2 + $0x1940] sm:$0xff]
    %v929 = vld [vmem:[#allocation2 + $0x1948] sm:$0xff]
    %v930 = vld [vmem:[#allocation2 + $0x1950] sm:$0xff]
    %v931 = vld [vmem:[#allocation2 + $0x1958] sm:$0xff]
    %v932 = vld [vmem:[#allocation2 + $0x1960] sm:$0xff]
    %v933 = vld [vmem:[#allocation2 + $0x1968] sm:$0xff]
    %v934 = vld [vmem:[#allocation2 + $0x1970] sm:$0xff]
    %v935 = vld [vmem:[#allocation2 + $0x1978] sm:$0xff]
    %v936 = vld [vmem:[#allocation2 + $0x1980] sm:$0xff]
    %v937 = vld [vmem:[#allocation2 + $0x1988] sm:$0xff]
    %v938 = vld [vmem:[#allocation2 + $0x1990] sm:$0xff]
    %v939 = vld [vmem:[#allocation2 + $0x1998] sm:$0xff]
    %v940 = vld [vmem:[#allocation2 + $0x19a0] sm:$0xff]
    %v941 = vld [vmem:[#allocation2 + $0x19a8] sm:$0xff]
    %v942 = vld [vmem:[#allocation2 + $0x19b0] sm:$0xff]
    %v943 = vld [vmem:[#allocation2 + $0x19b8] sm:$0xff]
    %v944 = vld [vmem:[#allocation2 + $0x19c0] sm:$0xff]
    %v945 = vld [vmem:[#allocation2 + $0x19c8] sm:$0xff]
    %v946 = vld [vmem:[#allocation2 + $0x19d0] sm:$0xff]
    %v947 = vld [vmem:[#allocation2 + $0x19d8] sm:$0xff]
    %v948 = vld [vmem:[#allocation2 + $0x19e0] sm:$0xff]
    %v949 = vld [vmem:[#allocation2 + $0x19e8] sm:$0xff]
    %v950 = vld [vmem:[#allocation2 + $0x19f0] sm:$0xff]
    %v951 = vld [vmem:[#allocation2 + $0x19f8] sm:$0xff]
    %v952 = vld [vmem:[#allocation2 + $0x1a00] sm:$0xff]
    %v953 = vld [vmem:[#allocation2 + $0x1a08] sm:$0xff]
    %v954 = vld [vmem:[#allocation2 + $0x1a10] sm:$0xff]
    %v955 = vld [vmem:[#allocation2 + $0x1a18] sm:$0xff]
    %v956 = vld [vmem:[#allocation2 + $0x1a20] sm:$0xff]
    %v957 = vld [vmem:[#allocation2 + $0x1a28] sm:$0xff]
    %v958 = vld [vmem:[#allocation2 + $0x1a30] sm:$0xff]
    %v959 = vld [vmem:[#allocation2 + $0x1a38] sm:$0xff]
    %v960 = vld [vmem:[#allocation2 + $0x1a40] sm:$0xff]
    %v961 = vld [vmem:[#allocation2 + $0x1a48] sm:$0xff]
    %v962 = vld [vmem:[#allocation2 + $0x1a50] sm:$0xff]
    %v963 = vld [vmem:[#allocation2 + $0x1a58] sm:$0xff]
    %v964 = vld [vmem:[#allocation2 + $0x1a60] sm:$0xff]
    %v965 = vld [vmem:[#allocation2 + $0x1a68] sm:$0xff]
    %v966 = vld [vmem:[#allocation2 + $0x1a70] sm:$0xff]
    %v967 = vld [vmem:[#allocation2 + $0x1a78] sm:$0xff]
    %v968 = vld [vmem:[#allocation2 + $0x1a80] sm:$0xff]
    %v969 = vld [vmem:[#allocation2 + $0x1a88] sm:$0xff]
    %v970 = vld [vmem:[#allocation2 + $0x1a90] sm:$0xff]
    %v971 = vld [vmem:[#allocation2 + $0x1a98] sm:$0xff]
    %v972 = vld [vmem:[#allocation2 + $0x1aa0] sm:$0xff]
    %v973 = vld [vmem:[#allocation2 + $0x1aa8] sm:$0xff]
    %v974 = vld [vmem:[#allocation2 + $0x1ab0] sm:$0xff]
    %v975 = vld [vmem:[#allocation2 + $0x1ab8] sm:$0xff]
    %v976 = vld [vmem:[#allocation2 + $0x1ac0] sm:$0xff]
    %v977 = vld [vmem:[#allocation2 + $0x1ac8] sm:$0xff]
    %v978 = vld [vmem:[#allocation2 + $0x1ad0] sm:$0xff]
    %v979 = vld [vmem:[#allocation2 + $0x1ad8] sm:$0xff]
    %v980 = vld [vmem:[#allocation2 + $0x1ae0] sm:$0xff]
    %v981 = vld [vmem:[#allocation2 + $0x1ae8] sm:$0xff]
    %v982 = vld [vmem:[#allocation2 + $0x1af0] sm:$0xff]
    %v983 = vld [vmem:[#allocation2 + $0x1af8] sm:$0xff]
    %v984 = vld [vmem:[#allocation2 + $0x1b00] sm:$0xff]
    %v985 = vld [vmem:[#allocation2 + $0x1b08] sm:$0xff]
    %v986 = vld [vmem:[#allocation2 + $0x1b10] sm:$0xff]
    %v987 = vld [vmem:[#allocation2 + $0x1b18] sm:$0xff]
    %v988 = vld [vmem:[#allocation2 + $0x1b20] sm:$0xff]
    %v989 = vld [vmem:[#allocation2 + $0x1b28] sm:$0xff]
    %v990 = vld [vmem:[#allocation2 + $0x1b30] sm:$0xff]
    %v991 = vld [vmem:[#allocation2 + $0x1b38] sm:$0xff]
    %v992 = vld [vmem:[#allocation2 + $0x1b40] sm:$0xff]
    %v993 = vld [vmem:[#allocation2 + $0x1b48] sm:$0xff]
    %v994 = vld [vmem:[#allocation2 + $0x1b50] sm:$0xff]
    %v995 = vld [vmem:[#allocation2 + $0x1b58] sm:$0xff]
    %v996 = vld [vmem:[#allocation2 + $0x1b60] sm:$0xff]
    %v997 = vld [vmem:[#allocation2 + $0x1b68] sm:$0xff]
    %v998 = vld [vmem:[#allocation2 + $0x1b70] sm:$0xff]
    %v999 = vld [vmem:[#allocation2 + $0x1b78] sm:$0xff]
    %v1000 = vld [vmem:[#allocation2 + $0x1b80] sm:$0xff]
    %v1001 = vld [vmem:[#allocation2 + $0x1b88] sm:$0xff]
    %v1002 = vld [vmem:[#allocation2 + $0x1b90] sm:$0xff]
    %v1003 = vld [vmem:[#allocation2 + $0x1b98] sm:$0xff]
    %v1004 = vld [vmem:[#allocation2 + $0x1ba0] sm:$0xff]
    %v1005 = vld [vmem:[#allocation2 + $0x1ba8] sm:$0xff]
    %v1006 = vld [vmem:[#allocation2 + $0x1bb0] sm:$0xff]
    %v1007 = vld [vmem:[#allocation2 + $0x1bb8] sm:$0xff]
    %v1008 = vld [vmem:[#allocation2 + $0x1bc0] sm:$0xff]
    %v1009 = vld [vmem:[#allocation2 + $0x1bc8] sm:$0xff]
    %v1010 = vld [vmem:[#allocation2 + $0x1bd0] sm:$0xff]
    %v1011 = vld [vmem:[#allocation2 + $0x1bd8] sm:$0xff]
    %v1012 = vld [vmem:[#allocation2 + $0x1be0] sm:$0xff]
    %v1013 = vld [vmem:[#allocation2 + $0x1be8] sm:$0xff]
    %v1014 = vld [vmem:[#allocation2 + $0x1bf0] sm:$0xff]
    %v1015 = vld [vmem:[#allocation2 + $0x1bf8] sm:$0xff]
    %v1016 = vld [vmem:[#allocation2 + $0x1c00] sm:$0xff]
    %v1017 = vld [vmem:[#allocation2 + $0x1c08] sm:$0xff]
    %v1018 = vld [vmem:[#allocation2 + $0x1c10] sm:$0xff]
    %v1019 = vld [vmem:[#allocation2 + $0x1c18] sm:$0xff]
    %v1020 = vld [vmem:[#allocation2 + $0x1c20] sm:$0xff]
    %v1021 = vld [vmem:[#allocation2 + $0x1c28] sm:$0xff]
    %v1022 = vld [vmem:[#allocation2 + $0x1c30] sm:$0xff]
    %v1023 = vld [vmem:[#allocation2 + $0x1c38] sm:$0xff]
    %v1024 = vld [vmem:[#allocation2 + $0x1c40] sm:$0xff]
    %v1025 = vld [vmem:[#allocation2 + $0x1c48] sm:$0xff]
    %v1026 = vld [vmem:[#allocation2 + $0x1c50] sm:$0xff]
    %v1027 = vld [vmem:[#allocation2 + $0x1c58] sm:$0xff]
    %v1028 = vld [vmem:[#allocation2 + $0x1c60] sm:$0xff]
    %v1029 = vld [vmem:[#allocation2 + $0x1c68] sm:$0xff]
    %v1030 = vld [vmem:[#allocation2 + $0x1c70] sm:$0xff]
    %v1031 = vld [vmem:[#allocation2 + $0x1c78] sm:$0xff]
    %v1032 = vld [vmem:[#allocation2 + $0x1c80] sm:$0xff]
    %v1033 = vld [vmem:[#allocation2 + $0x1c88] sm:$0xff]
    %v1034 = vld [vmem:[#allocation2 + $0x1c90] sm:$0xff]
    %v1035 = vld [vmem:[#allocation2 + $0x1c98] sm:$0xff]
    %v1036 = vld [vmem:[#allocation2 + $0x1ca0] sm:$0xff]
    %v1037 = vld [vmem:[#allocation2 + $0x1ca8] sm:$0xff]
    %v1038 = vld [vmem:[#allocation2 + $0x1cb0] sm:$0xff]
    %v1039 = vld [vmem:[#allocation2 + $0x1cb8] sm:$0xff]
    %v1040 = vld [vmem:[#allocation2 + $0x1cc0] sm:$0xff]
    %v1041 = vld [vmem:[#allocation2 + $0x1cc8] sm:$0xff]
    %v1042 = vld [vmem:[#allocation2 + $0x1cd0] sm:$0xff]
    %v1043 = vld [vmem:[#allocation2 + $0x1cd8] sm:$0xff]
    %v1044 = vld [vmem:[#allocation2 + $0x1ce0] sm:$0xff]
    %v1045 = vld [vmem:[#allocation2 + $0x1ce8] sm:$0xff]
    %v1046 = vld [vmem:[#allocation2 + $0x1cf0] sm:$0xff]
    %v1047 = vld [vmem:[#allocation2 + $0x1cf8] sm:$0xff]
    %v1048 = vld [vmem:[#allocation2 + $0x1d00] sm:$0xff]
    %v1049 = vld [vmem:[#allocation2 + $0x1d08] sm:$0xff]
    %v1050 = vld [vmem:[#allocation2 + $0x1d10] sm:$0xff]
    %v1051 = vld [vmem:[#allocation2 + $0x1d18] sm:$0xff]
    %v1052 = vld [vmem:[#allocation2 + $0x1d20] sm:$0xff]
    %v1053 = vld [vmem:[#allocation2 + $0x1d28] sm:$0xff]
    %v1054 = vld [vmem:[#allocation2 + $0x1d30] sm:$0xff]
    %v1055 = vld [vmem:[#allocation2 + $0x1d38] sm:$0xff]
    %v1056 = vld [vmem:[#allocation2 + $0x1d40] sm:$0xff]
    %v1057 = vld [vmem:[#allocation2 + $0x1d48] sm:$0xff]
    %v1058 = vld [vmem:[#allocation2 + $0x1d50] sm:$0xff]
    %v1059 = vld [vmem:[#allocation2 + $0x1d58] sm:$0xff]
    %v1060 = vld [vmem:[#allocation2 + $0x1d60] sm:$0xff]
    %v1061 = vld [vmem:[#allocation2 + $0x1d68] sm:$0xff]
    %v1062 = vld [vmem:[#allocation2 + $0x1d70] sm:$0xff]
    %v1063 = vld [vmem:[#allocation2 + $0x1d78] sm:$0xff]
    %v1064 = vld [vmem:[#allocation2 + $0x1d80] sm:$0xff]
    %v1065 = vld [vmem:[#allocation2 + $0x1d88] sm:$0xff]
    %v1066 = vld [vmem:[#allocation2 + $0x1d90] sm:$0xff]
    %v1067 = vld [vmem:[#allocation2 + $0x1d98] sm:$0xff]
    %v1068 = vld [vmem:[#allocation2 + $0x1da0] sm:$0xff]
    %v1069 = vld [vmem:[#allocation2 + $0x1da8] sm:$0xff]
    %v1070 = vld [vmem:[#allocation2 + $0x1db0] sm:$0xff]
    %v1071 = vld [vmem:[#allocation2 + $0x1db8] sm:$0xff]
    %v1072 = vld [vmem:[#allocation2 + $0x1dc0] sm:$0xff]
    %v1073 = vld [vmem:[#allocation2 + $0x1dc8] sm:$0xff]
    %v1074 = vld [vmem:[#allocation2 + $0x1dd0] sm:$0xff]
    %v1075 = vld [vmem:[#allocation2 + $0x1dd8] sm:$0xff]
    %v1076 = vld [vmem:[#allocation2 + $0x1de0] sm:$0xff]
    %v1077 = vld [vmem:[#allocation2 + $0x1de8] sm:$0xff]
    %v1078 = vld [vmem:[#allocation2 + $0x1df0] sm:$0xff]
    %v1079 = vld [vmem:[#allocation2 + $0x1df8] sm:$0xff]
    %v1080 = vld [vmem:[#allocation2 + $0x1e00] sm:$0xff]
    %v1081 = vld [vmem:[#allocation2 + $0x1e08] sm:$0xff]
    %v1082 = vld [vmem:[#allocation2 + $0x1e10] sm:$0xff]
    %v1083 = vld [vmem:[#allocation2 + $0x1e18] sm:$0xff]
    %v1084 = vld [vmem:[#allocation2 + $0x1e20] sm:$0xff]
    %v1085 = vld [vmem:[#allocation2 + $0x1e28] sm:$0xff]
    %v1086 = vld [vmem:[#allocation2 + $0x1e30] sm:$0xff]
    %v1087 = vld [vmem:[#allocation2 + $0x1e38] sm:$0xff]
    %v1088 = vld [vmem:[#allocation2 + $0x1e40] sm:$0xff]
    %v1089 = vld [vmem:[#allocation2 + $0x1e48] sm:$0xff]
    %v1090 = vld [vmem:[#allocation2 + $0x1e50] sm:$0xff]
    %v1091 = vld [vmem:[#allocation2 + $0x1e58] sm:$0xff]
    %v1092 = vld [vmem:[#allocation2 + $0x1e60] sm:$0xff]
    %v1093 = vld [vmem:[#allocation2 + $0x1e68] sm:$0xff]
    %v1094 = vld [vmem:[#allocation2 + $0x1e70] sm:$0xff]
    %v1095 = vld [vmem:[#allocation2 + $0x1e78] sm:$0xff]
    %v1096 = vld [vmem:[#allocation2 + $0x1e80] sm:$0xff]
    %v1097 = vld [vmem:[#allocation2 + $0x1e88] sm:$0xff]
    %v1098 = vld [vmem:[#allocation2 + $0x1e90] sm:$0xff]
    %v1099 = vld [vmem:[#allocation2 + $0x1e98] sm:$0xff]
    %v1100 = vld [vmem:[#allocation2 + $0x1ea0] sm:$0xff]
    %v1101 = vld [vmem:[#allocation2 + $0x1ea8] sm:$0xff]
    %v1102 = vld [vmem:[#allocation2 + $0x1eb0] sm:$0xff]
    %v1103 = vld [vmem:[#allocation2 + $0x1eb8] sm:$0xff]
    %v1104 = vld [vmem:[#allocation2 + $0x1ec0] sm:$0xff]
    %v1105 = vld [vmem:[#allocation2 + $0x1ec8] sm:$0xff]
    %v1106 = vld [vmem:[#allocation2 + $0x1ed0] sm:$0xff]
    %v1107 = vld [vmem:[#allocation2 + $0x1ed8] sm:$0xff]
    %v1108 = vld [vmem:[#allocation2 + $0x1ee0] sm:$0xff]
    %v1109 = vld [vmem:[#allocation2 + $0x1ee8] sm:$0xff]
    %v1110 = vld [vmem:[#allocation2 + $0x1ef0] sm:$0xff]
    %v1111 = vld [vmem:[#allocation2 + $0x1ef8] sm:$0xff]
    %v1112 = vld [vmem:[#allocation2 + $0x1f00] sm:$0xff]
    %v1113 = vld [vmem:[#allocation2 + $0x1f08] sm:$0xff]
    %v1114 = vld [vmem:[#allocation2 + $0x1f10] sm:$0xff]
    %v1115 = vld [vmem:[#allocation2 + $0x1f18] sm:$0xff]
    %v1116 = vld [vmem:[#allocation2 + $0x1f20] sm:$0xff]
    %v1117 = vld [vmem:[#allocation2 + $0x1f28] sm:$0xff]
    %v1118 = vld [vmem:[#allocation2 + $0x1f30] sm:$0xff]
    %v1119 = vld [vmem:[#allocation2 + $0x1f38] sm:$0xff]
    %v1120 = vld [vmem:[#allocation2 + $0x1f40] sm:$0xff]
    %v1121 = vld [vmem:[#allocation2 + $0x1f48] sm:$0xff]
    %v1122 = vld [vmem:[#allocation2 + $0x1f50] sm:$0xff]
    %v1123 = vld [vmem:[#allocation2 + $0x1f58] sm:$0xff]
    %v1124 = vld [vmem:[#allocation2 + $0x1f60] sm:$0xff]
    %v1125 = vld [vmem:[#allocation2 + $0x1f68] sm:$0xff]
    %v1126 = vld [vmem:[#allocation2 + $0x1f70] sm:$0xff]
    %v1127 = vld [vmem:[#allocation2 + $0x1f78] sm:$0xff]
    %v1128 = vld [vmem:[#allocation2 + $0x1f80] sm:$0xff]
    %v1129 = vld [vmem:[#allocation2 + $0x1f88] sm:$0xff]
    %v1130 = vld [vmem:[#allocation2 + $0x1f90] sm:$0xff]
    %v1131 = vld [vmem:[#allocation2 + $0x1f98] sm:$0xff]
    %v1132 = vld [vmem:[#allocation2 + $0x1fa0] sm:$0xff]
    %v1133 = vld [vmem:[#allocation2 + $0x1fa8] sm:$0xff]
    %v1134 = vld [vmem:[#allocation2 + $0x1fb0] sm:$0xff]
    %v1135 = vld [vmem:[#allocation2 + $0x1fb8] sm:$0xff]
    %v1136 = vld [vmem:[#allocation2 + $0x1fc0] sm:$0xff]
    %v1137 = vld [vmem:[#allocation2 + $0x1fc8] sm:$0xff]
    %v1138 = vld [vmem:[#allocation2 + $0x1fd0] sm:$0xff]
    %v1139 = vld [vmem:[#allocation2 + $0x1fd8] sm:$0xff]
    %v1140 = vld [vmem:[#allocation2 + $0x1fe0] sm:$0xff]
    %v1141 = vld [vmem:[#allocation2 + $0x1fe8] sm:$0xff]
    %v1142 = vld [vmem:[#allocation2 + $0x1ff0] sm:$0xff]
    %v1143 = vld [vmem:[#allocation2 + $0x1ff8] sm:$0xff]
    %v1144 = vld [vmem:[#allocation2 + $0x2000] sm:$0xff]
    %v1145 = vld [vmem:[#allocation2 + $0x2008] sm:$0xff]
    %v1146 = vld [vmem:[#allocation2 + $0x2010] sm:$0xff]
    %v1147 = vld [vmem:[#allocation2 + $0x2018] sm:$0xff]
    %v1148 = vld [vmem:[#allocation2 + $0x2020] sm:$0xff]
    %v1149 = vld [vmem:[#allocation2 + $0x2028] sm:$0xff]
    %v1150 = vld [vmem:[#allocation2 + $0x2030] sm:$0xff]
    %v1151 = vld [vmem:[#allocation2 + $0x2038] sm:$0xff]
    %v1152 = vld [vmem:[#allocation2 + $0x2040] sm:$0xff]
    %v1153 = vld [vmem:[#allocation2 + $0x2048] sm:$0xff]
    %v1154 = vld [vmem:[#allocation2 + $0x2050] sm:$0xff]
    %v1155 = vld [vmem:[#allocation2 + $0x2058] sm:$0xff]
    %v1156 = vld [vmem:[#allocation2 + $0x2060] sm:$0xff]
    %v1157 = vld [vmem:[#allocation2 + $0x2068] sm:$0xff]
    %v1158 = vld [vmem:[#allocation2 + $0x2070] sm:$0xff]
    %v1159 = vld [vmem:[#allocation2 + $0x2078] sm:$0xff]
    %v1160 = vld [vmem:[#allocation2 + $0x2080] sm:$0xff]
    %v1161 = vld [vmem:[#allocation2 + $0x2088] sm:$0xff]
    %v1162 = vld [vmem:[#allocation2 + $0x2090] sm:$0xff]
    %v1163 = vld [vmem:[#allocation2 + $0x2098] sm:$0xff]
    %v1164 = vld [vmem:[#allocation2 + $0x20a0] sm:$0xff]
    %v1165 = vld [vmem:[#allocation2 + $0x20a8] sm:$0xff]
    %v1166 = vld [vmem:[#allocation2 + $0x20b0] sm:$0xff]
    %v1167 = vld [vmem:[#allocation2 + $0x20b8] sm:$0xff]
    %v1168 = vld [vmem:[#allocation2 + $0x20c0] sm:$0xff]
    %v1169 = vld [vmem:[#allocation2 + $0x20c8] sm:$0xff]
    %v1170 = vld [vmem:[#allocation2 + $0x20d0] sm:$0xff]
    %v1171 = vld [vmem:[#allocation2 + $0x20d8] sm:$0xff]
    %v1172 = vld [vmem:[#allocation2 + $0x20e0] sm:$0xff]
    %v1173 = vld [vmem:[#allocation2 + $0x20e8] sm:$0xff]
    %v1174 = vld [vmem:[#allocation2 + $0x20f0] sm:$0xff]
    %v1175 = vld [vmem:[#allocation2 + $0x20f8] sm:$0xff]
    %v1176 = vld [vmem:[#allocation2 + $0x2100] sm:$0xff]
    %v1177 = vld [vmem:[#allocation2 + $0x2108] sm:$0xff]
    %v1178 = vld [vmem:[#allocation2 + $0x2110] sm:$0xff]
    %v1179 = vld [vmem:[#allocation2 + $0x2118] sm:$0xff]
    %v1180 = vld [vmem:[#allocation2 + $0x2120] sm:$0xff]
    %v1181 = vld [vmem:[#allocation2 + $0x2128] sm:$0xff]
    %v1182 = vld [vmem:[#allocation2 + $0x2130] sm:$0xff]
    %v1183 = vld [vmem:[#allocation2 + $0x2138] sm:$0xff]
    %v1184 = vld [vmem:[#allocation2 + $0x2140] sm:$0xff]
    %v1185 = vld [vmem:[#allocation2 + $0x2148] sm:$0xff]
    %v1186 = vld [vmem:[#allocation2 + $0x2150] sm:$0xff]
    %v1187 = vld [vmem:[#allocation2 + $0x2158] sm:$0xff]
    %v1188 = vld [vmem:[#allocation2 + $0x2160] sm:$0xff]
    %v1189 = vld [vmem:[#allocation2 + $0x2168] sm:$0xff]
    %v1190 = vld [vmem:[#allocation2 + $0x2170] sm:$0xff]
    %v1191 = vld [vmem:[#allocation2 + $0x2178] sm:$0xff]
    %v1192 = vld [vmem:[#allocation2 + $0x2180] sm:$0xff]
    %v1193 = vld [vmem:[#allocation2 + $0x2188] sm:$0xff]
    %v1194 = vld [vmem:[#allocation2 + $0x2190] sm:$0xff]
    %v1195 = vld [vmem:[#allocation2 + $0x2198] sm:$0xff]
    %v1196 = vld [vmem:[#allocation2 + $0x21a0] sm:$0xff]
    %v1197 = vld [vmem:[#allocation2 + $0x21a8] sm:$0xff]
    %v1198 = vld [vmem:[#allocation2 + $0x21b0] sm:$0xff]
    %v1199 = vld [vmem:[#allocation2 + $0x21b8] sm:$0xff]
    %v1200 = vld [vmem:[#allocation2 + $0x21c0] sm:$0xff]
    %v1201 = vld [vmem:[#allocation2 + $0x21c8] sm:$0xff]
    %v1202 = vld [vmem:[#allocation2 + $0x21d0] sm:$0xff]
    %v1203 = vld [vmem:[#allocation2 + $0x21d8] sm:$0xff]
    %v1204 = vld [vmem:[#allocation2 + $0x21e0] sm:$0xff]
    %v1205 = vld [vmem:[#allocation2 + $0x21e8] sm:$0xff]
    %v1206 = vld [vmem:[#allocation2 + $0x21f0] sm:$0xff]
    %v1207 = vld [vmem:[#allocation2 + $0x21f8] sm:$0xff]
    %v1208 = vld [vmem:[#allocation2 + $0x2200] sm:$0xff]
    %v1209 = vld [vmem:[#allocation2 + $0x2208] sm:$0xff]
    %v1210 = vld [vmem:[#allocation2 + $0x2210] sm:$0xff]
    %v1211 = vld [vmem:[#allocation2 + $0x2218] sm:$0xff]
    %v1212 = vld [vmem:[#allocation2 + $0x2220] sm:$0xff]
    %v1213 = vld [vmem:[#allocation2 + $0x2228] sm:$0xff]
    %v1214 = vld [vmem:[#allocation2 + $0x2230] sm:$0xff]
    %v1215 = vld [vmem:[#allocation2 + $0x2238] sm:$0xff]
    %v1216 = vld [vmem:[#allocation2 + $0x2240] sm:$0xff]
    %v1217 = vld [vmem:[#allocation2 + $0x2248] sm:$0xff]
    %v1218 = vld [vmem:[#allocation2 + $0x2250] sm:$0xff]
    %v1219 = vld [vmem:[#allocation2 + $0x2258] sm:$0xff]
    %v1220 = vld [vmem:[#allocation2 + $0x2260] sm:$0xff]
    %v1221 = vld [vmem:[#allocation2 + $0x2268] sm:$0xff]
    %v1222 = vld [vmem:[#allocation2 + $0x2270] sm:$0xff]
    %v1223 = vld [vmem:[#allocation2 + $0x2278] sm:$0xff]
    %v1224 = vld [vmem:[#allocation2 + $0x2280] sm:$0xff]
    %v1225 = vld [vmem:[#allocation2 + $0x2288] sm:$0xff]
    %v1226 = vld [vmem:[#allocation2 + $0x2290] sm:$0xff]
    %v1227 = vld [vmem:[#allocation2 + $0x2298] sm:$0xff]
    %v1228 = vld [vmem:[#allocation2 + $0x22a0] sm:$0xff]
    %v1229 = vld [vmem:[#allocation2 + $0x22a8] sm:$0xff]
    %v1230 = vld [vmem:[#allocation2 + $0x22b0] sm:$0xff]
    %v1231 = vld [vmem:[#allocation2 + $0x22b8] sm:$0xff]
    %v1232 = vld [vmem:[#allocation2 + $0x22c0] sm:$0xff]
    %v1233 = vld [vmem:[#allocation2 + $0x22c8] sm:$0xff]
    %v1234 = vld [vmem:[#allocation2 + $0x22d0] sm:$0xff]
    %v1235 = vld [vmem:[#allocation2 + $0x22d8] sm:$0xff]
    %v1236 = vld [vmem:[#allocation2 + $0x22e0] sm:$0xff]
    %v1237 = vld [vmem:[#allocation2 + $0x22e8] sm:$0xff]
    %v1238 = vld [vmem:[#allocation2 + $0x22f0] sm:$0xff]
    %v1239 = vld [vmem:[#allocation2 + $0x22f8] sm:$0xff]
    %v1240 = vld [vmem:[#allocation2 + $0x2300] sm:$0xff]
    %v1241 = vld [vmem:[#allocation2 + $0x2308] sm:$0xff]
    %v1242 = vld [vmem:[#allocation2 + $0x2310] sm:$0xff]
    %v1243 = vld [vmem:[#allocation2 + $0x2318] sm:$0xff]
    %v1244 = vld [vmem:[#allocation2 + $0x2320] sm:$0xff]
    %v1245 = vld [vmem:[#allocation2 + $0x2328] sm:$0xff]
    %v1246 = vld [vmem:[#allocation2 + $0x2330] sm:$0xff]
    %v1247 = vld [vmem:[#allocation2 + $0x2338] sm:$0xff]
    %v1248 = vld [vmem:[#allocation2 + $0x2340] sm:$0xff]
    %v1249 = vld [vmem:[#allocation2 + $0x2348] sm:$0xff]
    %v1250 = vld [vmem:[#allocation2 + $0x2350] sm:$0xff]
    %v1251 = vld [vmem:[#allocation2 + $0x2358] sm:$0xff]
    %v1252 = vld [vmem:[#allocation2 + $0x2360] sm:$0xff]
    %v1253 = vld [vmem:[#allocation2 + $0x2368] sm:$0xff]
    %v1254 = vld [vmem:[#allocation2 + $0x2370] sm:$0xff]
    %v1255 = vld [vmem:[#allocation2 + $0x2378] sm:$0xff]
    %v1256 = vld [vmem:[#allocation2 + $0x2380] sm:$0xff]
    %v1257 = vld [vmem:[#allocation2 + $0x2388] sm:$0xff]
    %v1258 = vld [vmem:[#allocation2 + $0x2390] sm:$0xff]
    %v1259 = vld [vmem:[#allocation2 + $0x2398] sm:$0xff]
    %v1260 = vld [vmem:[#allocation2 + $0x23a0] sm:$0xff]
    %v1261 = vld [vmem:[#allocation2 + $0x23a8] sm:$0xff]
    %v1262 = vld [vmem:[#allocation2 + $0x23b0] sm:$0xff]
    %v1263 = vld [vmem:[#allocation2 + $0x23b8] sm:$0xff]
    %v1264 = vld [vmem:[#allocation2 + $0x23c0] sm:$0xff]
    %v1265 = vld [vmem:[#allocation2 + $0x23c8] sm:$0xff]
    %v1266 = vld [vmem:[#allocation2 + $0x23d0] sm:$0xff]
    %v1267 = vld [vmem:[#allocation2 + $0x23d8] sm:$0xff]
    %v1268 = vld [vmem:[#allocation2 + $0x23e0] sm:$0xff]
    %v1269 = vld [vmem:[#allocation2 + $0x23e8] sm:$0xff]
    %v1270 = vld [vmem:[#allocation2 + $0x23f0] sm:$0xff]
    %v1271 = vld [vmem:[#allocation2 + $0x23f8] sm:$0xff]
    %v1272 = vld [vmem:[#allocation2 + $0x2400] sm:$0xff]
    %v1273 = vld [vmem:[#allocation2 + $0x2408] sm:$0xff]
    %v1274 = vld [vmem:[#allocation2 + $0x2410] sm:$0xff]
    %v1275 = vld [vmem:[#allocation2 + $0x2418] sm:$0xff]
    %v1276 = vld [vmem:[#allocation2 + $0x2420] sm:$0xff]
    %v1277 = vld [vmem:[#allocation2 + $0x2428] sm:$0xff]
    %v1278 = vld [vmem:[#allocation2 + $0x2430] sm:$0xff]
    %v1279 = vld [vmem:[#allocation2 + $0x2438] sm:$0xff]
    %v1280 = vld [vmem:[#allocation2 + $0x2440] sm:$0xff]
    %v1281 = vld [vmem:[#allocation2 + $0x2448] sm:$0xff]
    %v1282 = vld [vmem:[#allocation2 + $0x2450] sm:$0xff]
    %v1283 = vld [vmem:[#allocation2 + $0x2458] sm:$0xff]
    %v1284 = vld [vmem:[#allocation2 + $0x2460] sm:$0xff]
    %v1285 = vld [vmem:[#allocation2 + $0x2468] sm:$0xff]
    %v1286 = vld [vmem:[#allocation2 + $0x2470] sm:$0xff]
    %v1287 = vld [vmem:[#allocation2 + $0x2478] sm:$0xff]
    %v1288 = vld [vmem:[#allocation2 + $0x2480] sm:$0xff]
    %v1289 = vld [vmem:[#allocation2 + $0x2488] sm:$0xff]
    %v1290 = vld [vmem:[#allocation2 + $0x2490] sm:$0xff]
    %v1291 = vld [vmem:[#allocation2 + $0x2498] sm:$0xff]
    %v1292 = vld [vmem:[#allocation2 + $0x24a0] sm:$0xff]
    %v1293 = vld [vmem:[#allocation2 + $0x24a8] sm:$0xff]
    %v1294 = vld [vmem:[#allocation2 + $0x24b0] sm:$0xff]
    %v1295 = vld [vmem:[#allocation2 + $0x24b8] sm:$0xff]
    %v1296 = vld [vmem:[#allocation2 + $0x24c0] sm:$0xff]
    %v1297 = vld [vmem:[#allocation2 + $0x24c8] sm:$0xff]
    %v1298 = vld [vmem:[#allocation2 + $0x24d0] sm:$0xff]
    %v1299 = vld [vmem:[#allocation2 + $0x24d8] sm:$0xff]
    %v1300 = vld [vmem:[#allocation2 + $0x24e0] sm:$0xff]
    %v1301 = vld [vmem:[#allocation2 + $0x24e8] sm:$0xff]
    %v1302 = vld [vmem:[#allocation2 + $0x24f0] sm:$0xff]
    %v1303 = vld [vmem:[#allocation2 + $0x24f8] sm:$0xff]
    %v1304 = vld [vmem:[#allocation2 + $0x2500] sm:$0xff]
    %v1305 = vld [vmem:[#allocation2 + $0x2508] sm:$0xff]
    %v1306 = vld [vmem:[#allocation2 + $0x2510] sm:$0xff]
    %v1307 = vld [vmem:[#allocation2 + $0x2518] sm:$0xff]
    %v1308 = vld [vmem:[#allocation2 + $0x2520] sm:$0xff]
    %v1309 = vld [vmem:[#allocation2 + $0x2528] sm:$0xff]
    %v1310 = vld [vmem:[#allocation2 + $0x2530] sm:$0xff]
    %v1311 = vld [vmem:[#allocation2 + $0x2538] sm:$0xff]
    %v1312 = vld [vmem:[#allocation2 + $0x2540] sm:$0xff]
    %v1313 = vld [vmem:[#allocation2 + $0x2548] sm:$0xff]
    %v1314 = vld [vmem:[#allocation2 + $0x2550] sm:$0xff]
    %v1315 = vld [vmem:[#allocation2 + $0x2558] sm:$0xff]
    %v1316 = vld [vmem:[#allocation2 + $0x2560] sm:$0xff]
    %v1317 = vld [vmem:[#allocation2 + $0x2568] sm:$0xff]
    %v1318 = vld [vmem:[#allocation2 + $0x2570] sm:$0xff]
    %v1319 = vld [vmem:[#allocation2 + $0x2578] sm:$0xff]
    %v1320 = vld [vmem:[#allocation2 + $0x2580] sm:$0xff]
    %v1321 = vld [vmem:[#allocation2 + $0x2588] sm:$0xff]
    %v1322 = vld [vmem:[#allocation2 + $0x2590] sm:$0xff]
    %v1323 = vld [vmem:[#allocation2 + $0x2598] sm:$0xff]
    %v1324 = vld [vmem:[#allocation2 + $0x25a0] sm:$0xff]
    %v1325 = vld [vmem:[#allocation2 + $0x25a8] sm:$0xff]
    %v1326 = vld [vmem:[#allocation2 + $0x25b0] sm:$0xff]
    %v1327 = vld [vmem:[#allocation2 + $0x25b8] sm:$0xff]
    %v1328 = vld [vmem:[#allocation2 + $0x25c0] sm:$0xff]
    %v1329 = vld [vmem:[#allocation2 + $0x25c8] sm:$0xff]
    %v1330 = vld [vmem:[#allocation2 + $0x25d0] sm:$0xff]
    %v1331 = vld [vmem:[#allocation2 + $0x25d8] sm:$0xff]
    %v1332 = vld [vmem:[#allocation2 + $0x25e0] sm:$0xff]
    %v1333 = vld [vmem:[#allocation2 + $0x25e8] sm:$0xff]
    %v1334 = vld [vmem:[#allocation2 + $0x25f0] sm:$0xff]
    %v1335 = vld [vmem:[#allocation2 + $0x25f8] sm:$0xff]
    %v1336 = vld [vmem:[#allocation2 + $0x2600] sm:$0xff]
    %v1337 = vld [vmem:[#allocation2 + $0x2608] sm:$0xff]
    %v1338 = vld [vmem:[#allocation2 + $0x2610] sm:$0xff]
    %v1339 = vld [vmem:[#allocation2 + $0x2618] sm:$0xff]
    %v1340 = vld [vmem:[#allocation2 + $0x2620] sm:$0xff]
    %v1341 = vld [vmem:[#allocation2 + $0x2628] sm:$0xff]
    %v1342 = vld [vmem:[#allocation2 + $0x2630] sm:$0xff]
    %v1343 = vld [vmem:[#allocation2 + $0x2638] sm:$0xff]
    %v1344 = vld [vmem:[#allocation2 + $0x2640] sm:$0xff]
    %v1345 = vld [vmem:[#allocation2 + $0x2648] sm:$0xff]
    %v1346 = vld [vmem:[#allocation2 + $0x2650] sm:$0xff]
    %v1347 = vld [vmem:[#allocation2 + $0x2658] sm:$0xff]
    %v1348 = vld [vmem:[#allocation2 + $0x2660] sm:$0xff]
    %v1349 = vld [vmem:[#allocation2 + $0x2668] sm:$0xff]
    %v1350 = vld [vmem:[#allocation2 + $0x2670] sm:$0xff]
    %v1351 = vld [vmem:[#allocation2 + $0x2678] sm:$0xff]
    %v1352 = vld [vmem:[#allocation2 + $0x2680] sm:$0xff]
    %v1353 = vld [vmem:[#allocation2 + $0x2688] sm:$0xff]
    %v1354 = vld [vmem:[#allocation2 + $0x2690] sm:$0xff]
    %v1355 = vld [vmem:[#allocation2 + $0x2698] sm:$0xff]
    %v1356 = vld [vmem:[#allocation2 + $0x26a0] sm:$0xff]
    %v1357 = vld [vmem:[#allocation2 + $0x26a8] sm:$0xff]
    %v1358 = vld [vmem:[#allocation2 + $0x26b0] sm:$0xff]
    %v1359 = vld [vmem:[#allocation2 + $0x26b8] sm:$0xff]
    %v1360 = vld [vmem:[#allocation2 + $0x26c0] sm:$0xff]
    %v1361 = vld [vmem:[#allocation2 + $0x26c8] sm:$0xff]
    %v1362 = vld [vmem:[#allocation2 + $0x26d0] sm:$0xff]
    %v1363 = vld [vmem:[#allocation2 + $0x26d8] sm:$0xff]
    %v1364 = vld [vmem:[#allocation2 + $0x26e0] sm:$0xff]
    %v1365 = vld [vmem:[#allocation2 + $0x26e8] sm:$0xff]
    %v1366 = vld [vmem:[#allocation2 + $0x26f0] sm:$0xff]
    %v1367 = vld [vmem:[#allocation2 + $0x26f8] sm:$0xff]
    %v1368 = vld [vmem:[#allocation2 + $0x2700] sm:$0xff]
    %v1369 = vld [vmem:[#allocation2 + $0x2708] sm:$0xff]
    %v1370 = vld [vmem:[#allocation2 + $0x2710] sm:$0xff]
    %v1371 = vld [vmem:[#allocation2 + $0x2718] sm:$0xff]
    %v1372 = vld [vmem:[#allocation2 + $0x2720] sm:$0xff]
    %v1373 = vld [vmem:[#allocation2 + $0x2728] sm:$0xff]
    %v1374 = vld [vmem:[#allocation2 + $0x2730] sm:$0xff]
    %v1375 = vld [vmem:[#allocation2 + $0x2738] sm:$0xff]
    %v1376 = vld [vmem:[#allocation2 + $0x2740] sm:$0xff]
    %v1377 = vld [vmem:[#allocation2 + $0x2748] sm:$0xff]
    %v1378 = vld [vmem:[#allocation2 + $0x2750] sm:$0xff]
    %v1379 = vld [vmem:[#allocation2 + $0x2758] sm:$0xff]
    %v1380 = vld [vmem:[#allocation2 + $0x2760] sm:$0x33]
    %v1381 = vld [vmem:[#allocation2 + $0x2768] sm:$0x33]
    %v1382 = vld [vmem:[#allocation2 + $0x2770] sm:$0x33]
    %v1383 = vld [vmem:[#allocation2 + $0x2778] sm:$0x33]
    %v1384 = vld [vmem:[#allocation5] sm:$0xff]
    %v1386 = vlaneseq
    %v1387 = vshrl.u32 %v1386, 7
    %v1388 = vsub.s32 0, %v1387
    %v1389 = vrot.slane %v1384, %v1388
    %v1390 = vlaneseq
    %v1391 = vshrl.u32 %v1390, 7
    %v1392 = vsub.s32 1, %v1391
    %v1393 = vrot.slane %v1384, %v1392
    %v1394 = vlaneseq
    %v1395 = vshrl.u32 %v1394, 7
    %v1396 = vsub.s32 2, %v1395
    %v1397 = vrot.slane %v1384, %v1396
    %v1398 = vlaneseq
    %v1399 = vshrl.u32 %v1398, 7
    %v1400 = vsub.s32 3, %v1399
    %v1401 = vrot.slane %v1384, %v1400
    %v1402 = vlaneseq
    %v1403 = vshrl.u32 %v1402, 7
    %v1404 = vsub.s32 4, %v1403
    %v1405 = vrot.slane %v1384, %v1404
    %v1406 = vlaneseq
    %v1407 = vshrl.u32 %v1406, 7
    %v1408 = vsub.s32 5, %v1407
    %v1409 = vrot.slane %v1384, %v1408
    %v1410 = vlaneseq
    %v1411 = vshrl.u32 %v1410, 7
    %v1412 = vsub.s32 6, %v1411
    %v1413 = vrot.slane %v1384, %v1412
    %v1414 = vlaneseq
    %v1415 = vshrl.u32 %v1414, 7
    %v1416 = vsub.s32 7, %v1415
    %v1417 = vrot.slane %v1384, %v1416
    %v1438 = vcombine.low %v108, %v111
    %v1439 = vcombine.high %v108, %v111
    %v1440 = vcombine.low %v114, %v117
    %v1441 = vcombine.high %v114, %v117
    %v1443 = vunpack.c.l.s4 1966171168
    %v1444 = vunpack.c.0.s8 %v1443
    %v1445 = vlaneseq
    %v1446 = vshrl.u32 %v1445, 7
    %v1447 = vsub.s32 %v1444, %v1446
    %v1448 = vrot.slane %v1438, %v1447
    %v1450 = vunpack.c.l.s4 1966171168
    %v1451 = vunpack.c.0.s8 %v1450
    %v1452 = vlaneseq
    %v1453 = vshrl.u32 %v1452, 7
    %v1454 = vsub.s32 %v1451, %v1453
    %v1455 = vrot.slane %v1439, %v1454
    %v1457 = vunpack.c.l.s4 1966171168
    %v1458 = vunpack.c.0.s8 %v1457
    %v1459 = vlaneseq
    %v1460 = vshrl.u32 %v1459, 7
    %v1461 = vsub.s32 %v1458, %v1460
    %v1462 = vrot.slane %v1440, %v1461
    %v1464 = vunpack.c.l.s4 1966171168
    %v1465 = vunpack.c.0.s8 %v1464
    %v1466 = vlaneseq
    %v1467 = vshrl.u32 %v1466, 7
    %v1468 = vsub.s32 %v1465, %v1467
    %v1469 = vrot.slane %v1441, %v1468
    %v1470 = vcombine.low %v1448, %v1462
    %v1471 = vcombine.high %v1448, %v1462
    %v1472 = vcombine.low %v1455, %v1469
    %v1473 = vcombine.high %v1455, %v1469
    %v1475 = vunpack.c.l.s4 1966171168
    %v1476 = vunpack.c.0.s8 %v1475
    %v1477 = vlaneseq
    %v1478 = vshrl.u32 %v1477, 7
    %v1479 = vsub.s32 %v1476, %v1478
    %v1480 = vrot.slane %v1470, %v1479
    %v1482 = vunpack.c.l.s4 1966171168
    %v1483 = vunpack.c.0.s8 %v1482
    %v1484 = vlaneseq
    %v1485 = vshrl.u32 %v1484, 7
    %v1486 = vsub.s32 %v1483, %v1485
    %v1487 = vrot.slane %v1472, %v1486
    %v1489 = vunpack.c.l.s4 1966171168
    %v1490 = vunpack.c.0.s8 %v1489
    %v1491 = vlaneseq
    %v1492 = vshrl.u32 %v1491, 7
    %v1493 = vsub.s32 %v1490, %v1492
    %v1494 = vrot.slane %v1471, %v1493
    %v1496 = vunpack.c.l.s4 1966171168
    %v1497 = vunpack.c.0.s8 %v1496
    %v1498 = vlaneseq
    %v1499 = vshrl.u32 %v1498, 7
    %v1500 = vsub.s32 %v1497, %v1499
    %v1501 = vrot.slane %v1473, %v1500
    %v1502 = vcombine.high %v1480, %v1480
    %v1503 = vcombine.high %v1487, %v1487
    %v1504 = vcombine.high %v1494, %v1494
    %v1505 = vcombine.high %v1501, %v1501
    %v1506 = vcombine.low %v109, %v112
    %v1507 = vcombine.high %v109, %v112
    %v1508 = vcombine.low %v115, %v118
    %v1509 = vcombine.high %v115, %v118
    %v1511 = vunpack.c.l.s4 1966171168
    %v1512 = vunpack.c.0.s8 %v1511
    %v1513 = vlaneseq
    %v1514 = vshrl.u32 %v1513, 7
    %v1515 = vsub.s32 %v1512, %v1514
    %v1516 = vrot.slane %v1506, %v1515
    %v1518 = vunpack.c.l.s4 1966171168
    %v1519 = vunpack.c.0.s8 %v1518
    %v1520 = vlaneseq
    %v1521 = vshrl.u32 %v1520, 7
    %v1522 = vsub.s32 %v1519, %v1521
    %v1523 = vrot.slane %v1507, %v1522
    %v1525 = vunpack.c.l.s4 1966171168
    %v1526 = vunpack.c.0.s8 %v1525
    %v1527 = vlaneseq
    %v1528 = vshrl.u32 %v1527, 7
    %v1529 = vsub.s32 %v1526, %v1528
    %v1530 = vrot.slane %v1508, %v1529
    %v1532 = vunpack.c.l.s4 1966171168
    %v1533 = vunpack.c.0.s8 %v1532
    %v1534 = vlaneseq
    %v1535 = vshrl.u32 %v1534, 7
    %v1536 = vsub.s32 %v1533, %v1535
    %v1537 = vrot.slane %v1509, %v1536
    %v1538 = vcombine.low %v1516, %v1530
    %v1539 = vcombine.high %v1516, %v1530
    %v1540 = vcombine.low %v1523, %v1537
    %v1541 = vcombine.high %v1523, %v1537
    %v1543 = vunpack.c.l.s4 1966171168
    %v1544 = vunpack.c.0.s8 %v1543
    %v1545 = vlaneseq
    %v1546 = vshrl.u32 %v1545, 7
    %v1547 = vsub.s32 %v1544, %v1546
    %v1548 = vrot.slane %v1538, %v1547
    %v1550 = vunpack.c.l.s4 1966171168
    %v1551 = vunpack.c.0.s8 %v1550
    %v1552 = vlaneseq
    %v1553 = vshrl.u32 %v1552, 7
    %v1554 = vsub.s32 %v1551, %v1553
    %v1555 = vrot.slane %v1540, %v1554
    %v1557 = vunpack.c.l.s4 1966171168
    %v1558 = vunpack.c.0.s8 %v1557
    %v1559 = vlaneseq
    %v1560 = vshrl.u32 %v1559, 7
    %v1561 = vsub.s32 %v1558, %v1560
    %v1562 = vrot.slane %v1539, %v1561
    %v1564 = vunpack.c.l.s4 1966171168
    %v1565 = vunpack.c.0.s8 %v1564
    %v1566 = vlaneseq
    %v1567 = vshrl.u32 %v1566, 7
    %v1568 = vsub.s32 %v1565, %v1567
    %v1569 = vrot.slane %v1541, %v1568
    %v1570 = vcombine.high %v1548, %v1548
    %v1571 = vcombine.high %v1555, %v1555
    %v1572 = vcombine.high %v1562, %v1562
    %v1573 = vcombine.high %v1569, %v1569
    %v1574 = vcombine.low %v110, %v113
    %v1575 = vcombine.low %v116, %v119
    %v1577 = vunpack.c.l.s4 1966171168
    %v1578 = vunpack.c.0.s8 %v1577
    %v1579 = vlaneseq
    %v1580 = vshrl.u32 %v1579, 7
    %v1581 = vsub.s32 %v1578, %v1580
    %v1582 = vrot.slane %v1574, %v1581
    %v1584 = vunpack.c.l.s4 1966171168
    %v1585 = vunpack.c.0.s8 %v1584
    %v1586 = vlaneseq
    %v1587 = vshrl.u32 %v1586, 7
    %v1588 = vsub.s32 %v1585, %v1587
    %v1589 = vrot.slane %v1575, %v1588
    %v1590 = vcombine.low %v1582, %v1589
    %v1591 = vcombine.high %v1582, %v1589
    %v1593 = vunpack.c.l.s4 1966171168
    %v1594 = vunpack.c.0.s8 %v1593
    %v1595 = vlaneseq
    %v1596 = vshrl.u32 %v1595, 7
    %v1597 = vsub.s32 %v1594, %v1596
    %v1598 = vrot.slane %v1590, %v1597
    %v1600 = vunpack.c.l.s4 1966171168
    %v1601 = vunpack.c.0.s8 %v1600
    %v1602 = vlaneseq
    %v1603 = vshrl.u32 %v1602, 7
    %v1604 = vsub.s32 %v1601, %v1603
    %v1605 = vrot.slane %v1591, %v1604
    %v1606 = vcombine.high %v1598, %v1598
    %v1607 = vcombine.high %v1605, %v1605
    %v2891 = vunpack.c.l.b16 %v120
    %v2892 = vunpack.c.h.b16 %v120
    %v2893 = vunpack.c.l.b16 %v121
    %v2894 = vunpack.c.h.b16 %v121
    %v2895 = vunpack.c.l.b16 %v122
    %v2896 = vunpack.c.h.b16 %v122
    %v2897 = vunpack.c.l.b16 %v123
    %v2898 = vunpack.c.h.b16 %v123
    %v2899 = vunpack.c.l.b16 %v124
    %v2900 = vunpack.c.h.b16 %v124
    %v2901 = vunpack.c.l.b16 %v125
    %v2902 = vunpack.c.h.b16 %v125
    %v2903 = vunpack.c.l.b16 %v126
    %v2904 = vunpack.c.h.b16 %v126
    %v2905 = vunpack.c.l.b16 %v127
    %v2906 = vunpack.c.h.b16 %v127
    %v2907 = vunpack.c.l.b16 %v128
    %v2908 = vunpack.c.h.b16 %v128
    %v2909 = vunpack.c.l.b16 %v129
    %v2910 = vunpack.c.h.b16 %v129
    %v2911 = vunpack.c.l.b16 %v130
    %v2912 = vunpack.c.h.b16 %v130
    %v2913 = vunpack.c.l.b16 %v131
    %v2914 = vunpack.c.h.b16 %v131
    %v2915 = vunpack.c.l.b16 %v132
    %v2916 = vunpack.c.h.b16 %v132
    %v2917 = vunpack.c.l.b16 %v133
    %v2918 = vunpack.c.h.b16 %v133
    %v2919 = vunpack.c.l.b16 %v134
    %v2920 = vunpack.c.h.b16 %v134
    %v2921 = vunpack.c.l.b16 %v135
    %v2922 = vunpack.c.h.b16 %v135
    %v2923 = vunpack.c.l.b16 %v136
    %v2924 = vunpack.c.h.b16 %v136
    %v2925 = vunpack.c.l.b16 %v137
    %v2926 = vunpack.c.h.b16 %v137
    %v2927 = vunpack.c.l.b16 %v138
    %v2928 = vunpack.c.h.b16 %v138
    %v2929 = vunpack.c.l.b16 %v139
    %v2930 = vunpack.c.h.b16 %v139
    %v2931 = vunpack.c.l.b16 %v140
    %v2932 = vunpack.c.h.b16 %v140
    %v2933 = vunpack.c.l.b16 %v141
    %v2934 = vunpack.c.h.b16 %v141
    %v2935 = vunpack.c.l.b16 %v142
    %v2936 = vunpack.c.h.b16 %v142
    %v2937 = vunpack.c.l.b16 %v143
    %v2938 = vunpack.c.h.b16 %v143
    %v2939 = vunpack.c.l.b16 %v144
    %v2940 = vunpack.c.h.b16 %v144
    %v2941 = vunpack.c.l.b16 %v145
    %v2942 = vunpack.c.h.b16 %v145
    %v2943 = vunpack.c.l.b16 %v146
    %v2944 = vunpack.c.h.b16 %v146
    %v2945 = vunpack.c.l.b16 %v147
    %v2946 = vunpack.c.h.b16 %v147
    %v2947 = vunpack.c.l.b16 %v148
    %v2948 = vunpack.c.h.b16 %v148
    %v2949 = vunpack.c.l.b16 %v149
    %v2950 = vunpack.c.h.b16 %v149
    %v2951 = vunpack.c.l.b16 %v150
    %v2952 = vunpack.c.h.b16 %v150
    %v2953 = vunpack.c.l.b16 %v151
    %v2954 = vunpack.c.h.b16 %v151
    %v2955 = vunpack.c.l.b16 %v152
    %v2956 = vunpack.c.h.b16 %v152
    %v2957 = vunpack.c.l.b16 %v153
    %v2958 = vunpack.c.h.b16 %v153
    %v2959 = vunpack.c.l.b16 %v154
    %v2960 = vunpack.c.h.b16 %v154
    %v2961 = vunpack.c.l.b16 %v155
    %v2962 = vunpack.c.h.b16 %v155
    %v2963 = vunpack.c.l.b16 %v156
    %v2964 = vunpack.c.h.b16 %v156
    %v2965 = vunpack.c.l.b16 %v157
    %v2966 = vunpack.c.h.b16 %v157
    %v2967 = vunpack.c.l.b16 %v158
    %v2968 = vunpack.c.h.b16 %v158
    %v2969 = vunpack.c.l.b16 %v159
    %v2970 = vunpack.c.h.b16 %v159
    %v2971 = vunpack.c.l.b16 %v160
    %v2972 = vunpack.c.h.b16 %v160
    %v2973 = vunpack.c.l.b16 %v161
    %v2974 = vunpack.c.h.b16 %v161
    %v2975 = vunpack.c.l.b16 %v162
    %v2976 = vunpack.c.h.b16 %v162
    %v2977 = vunpack.c.l.b16 %v163
    %v2978 = vunpack.c.h.b16 %v163
    %v2979 = vunpack.c.l.b16 %v164
    %v2980 = vunpack.c.h.b16 %v164
    %v2981 = vunpack.c.l.b16 %v165
    %v2982 = vunpack.c.h.b16 %v165
    %v2983 = vunpack.c.l.b16 %v166
    %v2984 = vunpack.c.h.b16 %v166
    %v2985 = vunpack.c.l.b16 %v167
    %v2986 = vunpack.c.h.b16 %v167
    %v2987 = vunpack.c.l.b16 %v168
    %v2988 = vunpack.c.h.b16 %v168
    %v2989 = vunpack.c.l.b16 %v169
    %v2990 = vunpack.c.h.b16 %v169
    %v2991 = vunpack.c.l.b16 %v170
    %v2992 = vunpack.c.h.b16 %v170
    %v2993 = vunpack.c.l.b16 %v171
    %v2994 = vunpack.c.h.b16 %v171
    %v2995 = vunpack.c.l.b16 %v172
    %v2996 = vunpack.c.h.b16 %v172
    %v2997 = vunpack.c.l.b16 %v173
    %v2998 = vunpack.c.h.b16 %v173
    %v2999 = vunpack.c.l.b16 %v174
    %v3000 = vunpack.c.h.b16 %v174
    %v3001 = vunpack.c.l.b16 %v175
    %v3002 = vunpack.c.h.b16 %v175
    %v3003 = vunpack.c.l.b16 %v176
    %v3004 = vunpack.c.h.b16 %v176
    %v3005 = vunpack.c.l.b16 %v177
    %v3006 = vunpack.c.h.b16 %v177
    %v3007 = vunpack.c.l.b16 %v178
    %v3008 = vunpack.c.h.b16 %v178
    %v3009 = vunpack.c.l.b16 %v179
    %v3010 = vunpack.c.h.b16 %v179
    %v3011 = vunpack.c.l.b16 %v180
    %v3012 = vunpack.c.h.b16 %v180
    %v3013 = vunpack.c.l.b16 %v181
    %v3014 = vunpack.c.h.b16 %v181
    %v3015 = vunpack.c.l.b16 %v182
    %v3016 = vunpack.c.h.b16 %v182
    %v3017 = vunpack.c.l.b16 %v183
    %v3018 = vunpack.c.h.b16 %v183
    %v3019 = vunpack.c.l.b16 %v184
    %v3020 = vunpack.c.h.b16 %v184
    %v3021 = vunpack.c.l.b16 %v185
    %v3022 = vunpack.c.h.b16 %v185
    %v3023 = vunpack.c.l.b16 %v186
    %v3024 = vunpack.c.h.b16 %v186
    %v3025 = vunpack.c.l.b16 %v187
    %v3026 = vunpack.c.h.b16 %v187
    %v3027 = vunpack.c.l.b16 %v188
    %v3028 = vunpack.c.h.b16 %v188
    %v3029 = vunpack.c.l.b16 %v189
    %v3030 = vunpack.c.h.b16 %v189
    %v3031 = vunpack.c.l.b16 %v190
    %v3032 = vunpack.c.h.b16 %v190
    %v3033 = vunpack.c.l.b16 %v191
    %v3034 = vunpack.c.h.b16 %v191
    %v3035 = vunpack.c.l.b16 %v192
    %v3036 = vunpack.c.h.b16 %v192
    %v3037 = vunpack.c.l.b16 %v193
    %v3038 = vunpack.c.h.b16 %v193
    %v3039 = vunpack.c.l.b16 %v194
    %v3040 = vunpack.c.h.b16 %v194
    %v3041 = vunpack.c.l.b16 %v195
    %v3042 = vunpack.c.h.b16 %v195
    %v3043 = vunpack.c.l.b16 %v196
    %v3044 = vunpack.c.h.b16 %v196
    %v3045 = vunpack.c.l.b16 %v197
    %v3046 = vunpack.c.h.b16 %v197
    %v3047 = vunpack.c.l.b16 %v198
    %v3048 = vunpack.c.h.b16 %v198
    %v3049 = vunpack.c.l.b16 %v199
    %v3050 = vunpack.c.h.b16 %v199
    %v3051 = vunpack.c.l.b16 %v200
    %v3052 = vunpack.c.h.b16 %v200
    %v3053 = vunpack.c.l.b16 %v201
    %v3054 = vunpack.c.h.b16 %v201
    %v3055 = vunpack.c.l.b16 %v202
    %v3056 = vunpack.c.h.b16 %v202
    %v3057 = vunpack.c.l.b16 %v203
    %v3058 = vunpack.c.h.b16 %v203
    %v3059 = vunpack.c.l.b16 %v204
    %v3060 = vunpack.c.h.b16 %v204
    %v3061 = vunpack.c.l.b16 %v205
    %v3062 = vunpack.c.h.b16 %v205
    %v3063 = vunpack.c.l.b16 %v206
    %v3064 = vunpack.c.h.b16 %v206
    %v3065 = vunpack.c.l.b16 %v207
    %v3066 = vunpack.c.h.b16 %v207
    %v3067 = vunpack.c.l.b16 %v208
    %v3068 = vunpack.c.h.b16 %v208
    %v3069 = vunpack.c.l.b16 %v209
    %v3070 = vunpack.c.h.b16 %v209
    %v3071 = vunpack.c.l.b16 %v210
    %v3072 = vunpack.c.h.b16 %v210
    %v3073 = vunpack.c.l.b16 %v211
    %v3074 = vunpack.c.h.b16 %v211
    %v3075 = vunpack.c.l.b16 %v212
    %v3076 = vunpack.c.h.b16 %v212
    %v3077 = vunpack.c.l.b16 %v213
    %v3078 = vunpack.c.h.b16 %v213
    %v3079 = vunpack.c.l.b16 %v214
    %v3080 = vunpack.c.h.b16 %v214
    %v3081 = vunpack.c.l.b16 %v215
    %v3082 = vunpack.c.h.b16 %v215
    %v3083 = vunpack.c.l.b16 %v216
    %v3084 = vunpack.c.h.b16 %v216
    %v3085 = vunpack.c.l.b16 %v217
    %v3086 = vunpack.c.h.b16 %v217
    %v3087 = vunpack.c.l.b16 %v218
    %v3088 = vunpack.c.h.b16 %v218
    %v3089 = vunpack.c.l.b16 %v219
    %v3090 = vunpack.c.h.b16 %v219
    %v3091 = vunpack.c.l.b16 %v220
    %v3092 = vunpack.c.h.b16 %v220
    %v3093 = vunpack.c.l.b16 %v221
    %v3094 = vunpack.c.h.b16 %v221
    %v3095 = vunpack.c.l.b16 %v222
    %v3096 = vunpack.c.h.b16 %v222
    %v3097 = vunpack.c.l.b16 %v223
    %v3098 = vunpack.c.h.b16 %v223
    %v3099 = vunpack.c.l.b16 %v224
    %v3100 = vunpack.c.h.b16 %v224
    %v3101 = vunpack.c.l.b16 %v225
    %v3102 = vunpack.c.h.b16 %v225
    %v3103 = vunpack.c.l.b16 %v226
    %v3104 = vunpack.c.h.b16 %v226
    %v3105 = vunpack.c.l.b16 %v227
    %v3106 = vunpack.c.h.b16 %v227
    %v3107 = vunpack.c.l.b16 %v228
    %v3108 = vunpack.c.h.b16 %v228
    %v3109 = vunpack.c.l.b16 %v229
    %v3110 = vunpack.c.h.b16 %v229
    %v3111 = vunpack.c.l.b16 %v230
    %v3112 = vunpack.c.h.b16 %v230
    %v3113 = vunpack.c.l.b16 %v231
    %v3114 = vunpack.c.h.b16 %v231
    %v3115 = vunpack.c.l.b16 %v232
    %v3116 = vunpack.c.h.b16 %v232
    %v3117 = vunpack.c.l.b16 %v233
    %v3118 = vunpack.c.h.b16 %v233
    %v3119 = vunpack.c.l.b16 %v234
    %v3120 = vunpack.c.h.b16 %v234
    %v3121 = vunpack.c.l.b16 %v235
    %v3122 = vunpack.c.h.b16 %v235
    %v3123 = vunpack.c.l.b16 %v236
    %v3124 = vunpack.c.h.b16 %v236
    %v3125 = vunpack.c.l.b16 %v237
    %v3126 = vunpack.c.h.b16 %v237
    %v3127 = vunpack.c.l.b16 %v238
    %v3128 = vunpack.c.h.b16 %v238
    %v3129 = vunpack.c.l.b16 %v239
    %v3130 = vunpack.c.h.b16 %v239
    %v3131 = vunpack.c.l.b16 %v240
    %v3132 = vunpack.c.h.b16 %v240
    %v3133 = vunpack.c.l.b16 %v241
    %v3134 = vunpack.c.h.b16 %v241
    %v3135 = vunpack.c.l.b16 %v242
    %v3136 = vunpack.c.h.b16 %v242
    %v3137 = vunpack.c.l.b16 %v243
    %v3138 = vunpack.c.h.b16 %v243
    %v3139 = vunpack.c.l.b16 %v244
    %v3140 = vunpack.c.h.b16 %v244
    %v3141 = vunpack.c.l.b16 %v245
    %v3142 = vunpack.c.h.b16 %v245
    %v3143 = vunpack.c.l.b16 %v246
    %v3144 = vunpack.c.h.b16 %v246
    %v3145 = vunpack.c.l.b16 %v247
    %v3146 = vunpack.c.h.b16 %v247
    %v3147 = vunpack.c.l.b16 %v248
    %v3148 = vunpack.c.h.b16 %v248
    %v3149 = vunpack.c.l.b16 %v249
    %v3150 = vunpack.c.h.b16 %v249
    %v3151 = vunpack.c.l.b16 %v250
    %v3152 = vunpack.c.h.b16 %v250
    %v3153 = vunpack.c.l.b16 %v251
    %v3154 = vunpack.c.h.b16 %v251
    %v3155 = vunpack.c.l.b16 %v252
    %v3156 = vunpack.c.h.b16 %v252
    %v3157 = vunpack.c.l.b16 %v253
    %v3158 = vunpack.c.h.b16 %v253
    %v3159 = vunpack.c.l.b16 %v254
    %v3160 = vunpack.c.h.b16 %v254
    %v3161 = vunpack.c.l.b16 %v255
    %v3162 = vunpack.c.h.b16 %v255
    %v3163 = vunpack.c.l.b16 %v256
    %v3164 = vunpack.c.h.b16 %v256
    %v3165 = vunpack.c.l.b16 %v257
    %v3166 = vunpack.c.h.b16 %v257
    %v3167 = vunpack.c.l.b16 %v258
    %v3168 = vunpack.c.h.b16 %v258
    %v3169 = vunpack.c.l.b16 %v259
    %v3170 = vunpack.c.h.b16 %v259
    %v3171 = vunpack.c.l.b16 %v260
    %v3172 = vunpack.c.h.b16 %v260
    %v3173 = vunpack.c.l.b16 %v261
    %v3174 = vunpack.c.h.b16 %v261
    %v3175 = vunpack.c.l.b16 %v262
    %v3176 = vunpack.c.h.b16 %v262
    %v3177 = vunpack.c.l.b16 %v263
    %v3178 = vunpack.c.h.b16 %v263
    %v3179 = vunpack.c.l.b16 %v264
    %v3180 = vunpack.c.h.b16 %v264
    %v3181 = vunpack.c.l.b16 %v265
    %v3182 = vunpack.c.h.b16 %v265
    %v3183 = vunpack.c.l.b16 %v266
    %v3184 = vunpack.c.h.b16 %v266
    %v3185 = vunpack.c.l.b16 %v267
    %v3186 = vunpack.c.h.b16 %v267
    %v3187 = vunpack.c.l.b16 %v268
    %v3188 = vunpack.c.h.b16 %v268
    %v3189 = vunpack.c.l.b16 %v269
    %v3190 = vunpack.c.h.b16 %v269
    %v3191 = vunpack.c.l.b16 %v270
    %v3192 = vunpack.c.h.b16 %v270
    %v3193 = vunpack.c.l.b16 %v271
    %v3194 = vunpack.c.h.b16 %v271
    %v3195 = vunpack.c.l.b16 %v272
    %v3196 = vunpack.c.h.b16 %v272
    %v3197 = vunpack.c.l.b16 %v273
    %v3198 = vunpack.c.h.b16 %v273
    %v3199 = vunpack.c.l.b16 %v274
    %v3200 = vunpack.c.h.b16 %v274
    %v3201 = vunpack.c.l.b16 %v275
    %v3202 = vunpack.c.h.b16 %v275
    %v3203 = vunpack.c.l.b16 %v276
    %v3204 = vunpack.c.h.b16 %v276
    %v3205 = vunpack.c.l.b16 %v277
    %v3206 = vunpack.c.h.b16 %v277
    %v3207 = vunpack.c.l.b16 %v278
    %v3208 = vunpack.c.h.b16 %v278
    %v3209 = vunpack.c.l.b16 %v279
    %v3210 = vunpack.c.h.b16 %v279
    %v3211 = vunpack.c.l.b16 %v280
    %v3212 = vunpack.c.h.b16 %v280
    %v3213 = vunpack.c.l.b16 %v281
    %v3214 = vunpack.c.h.b16 %v281
    %v3215 = vunpack.c.l.b16 %v282
    %v3216 = vunpack.c.h.b16 %v282
    %v3217 = vunpack.c.l.b16 %v283
    %v3218 = vunpack.c.h.b16 %v283
    %v3219 = vunpack.c.l.b16 %v284
    %v3220 = vunpack.c.h.b16 %v284
    %v3221 = vunpack.c.l.b16 %v285
    %v3222 = vunpack.c.h.b16 %v285
    %v3223 = vunpack.c.l.b16 %v286
    %v3224 = vunpack.c.h.b16 %v286
    %v3225 = vunpack.c.l.b16 %v287
    %v3226 = vunpack.c.h.b16 %v287
    %v3227 = vunpack.c.l.b16 %v288
    %v3228 = vunpack.c.h.b16 %v288
    %v3229 = vunpack.c.l.b16 %v289
    %v3230 = vunpack.c.h.b16 %v289
    %v3231 = vunpack.c.l.b16 %v290
    %v3232 = vunpack.c.h.b16 %v290
    %v3233 = vunpack.c.l.b16 %v291
    %v3234 = vunpack.c.h.b16 %v291
    %v3235 = vunpack.c.l.b16 %v292
    %v3236 = vunpack.c.h.b16 %v292
    %v3237 = vunpack.c.l.b16 %v293
    %v3238 = vunpack.c.h.b16 %v293
    %v3239 = vunpack.c.l.b16 %v294
    %v3240 = vunpack.c.h.b16 %v294
    %v3241 = vunpack.c.l.b16 %v295
    %v3242 = vunpack.c.h.b16 %v295
    %v3243 = vunpack.c.l.b16 %v296
    %v3244 = vunpack.c.h.b16 %v296
    %v3245 = vunpack.c.l.b16 %v297
    %v3246 = vunpack.c.h.b16 %v297
    %v3247 = vunpack.c.l.b16 %v298
    %v3248 = vunpack.c.h.b16 %v298
    %v3249 = vunpack.c.l.b16 %v299
    %v3250 = vunpack.c.h.b16 %v299
    %v3251 = vunpack.c.l.b16 %v300
    %v3252 = vunpack.c.h.b16 %v300
    %v3253 = vunpack.c.l.b16 %v301
    %v3254 = vunpack.c.h.b16 %v301
    %v3255 = vunpack.c.l.b16 %v302
    %v3256 = vunpack.c.h.b16 %v302
    %v3257 = vunpack.c.l.b16 %v303
    %v3258 = vunpack.c.h.b16 %v303
    %v3259 = vunpack.c.l.b16 %v304
    %v3260 = vunpack.c.h.b16 %v304
    %v3261 = vunpack.c.l.b16 %v305
    %v3262 = vunpack.c.h.b16 %v305
    %v3263 = vunpack.c.l.b16 %v306
    %v3264 = vunpack.c.h.b16 %v306
    %v3265 = vunpack.c.l.b16 %v307
    %v3266 = vunpack.c.h.b16 %v307
    %v3267 = vunpack.c.l.b16 %v308
    %v3268 = vunpack.c.h.b16 %v308
    %v3269 = vunpack.c.l.b16 %v309
    %v3270 = vunpack.c.h.b16 %v309
    %v3271 = vunpack.c.l.b16 %v310
    %v3272 = vunpack.c.h.b16 %v310
    %v3273 = vunpack.c.l.b16 %v311
    %v3274 = vunpack.c.h.b16 %v311
    %v3275 = vunpack.c.l.b16 %v312
    %v3276 = vunpack.c.h.b16 %v312
    %v3277 = vunpack.c.l.b16 %v313
    %v3278 = vunpack.c.h.b16 %v313
    %v3279 = vunpack.c.l.b16 %v314
    %v3280 = vunpack.c.h.b16 %v314
    %v3281 = vunpack.c.l.b16 %v315
    %v3282 = vunpack.c.h.b16 %v315
    %v3283 = vunpack.c.l.b16 %v316
    %v3284 = vunpack.c.h.b16 %v316
    %v3285 = vunpack.c.l.b16 %v317
    %v3286 = vunpack.c.h.b16 %v317
    %v3287 = vunpack.c.l.b16 %v318
    %v3288 = vunpack.c.h.b16 %v318
    %v3289 = vunpack.c.l.b16 %v319
    %v3290 = vunpack.c.h.b16 %v319
    %v3291 = vunpack.c.l.b16 %v320
    %v3292 = vunpack.c.h.b16 %v320
    %v3293 = vunpack.c.l.b16 %v321
    %v3294 = vunpack.c.h.b16 %v321
    %v3295 = vunpack.c.l.b16 %v322
    %v3296 = vunpack.c.h.b16 %v322
    %v3297 = vunpack.c.l.b16 %v323
    %v3298 = vunpack.c.h.b16 %v323
    %v3299 = vunpack.c.l.b16 %v324
    %v3300 = vunpack.c.h.b16 %v324
    %v3301 = vunpack.c.l.b16 %v325
    %v3302 = vunpack.c.h.b16 %v325
    %v3303 = vunpack.c.l.b16 %v326
    %v3304 = vunpack.c.h.b16 %v326
    %v3305 = vunpack.c.l.b16 %v327
    %v3306 = vunpack.c.h.b16 %v327
    %v3307 = vunpack.c.l.b16 %v328
    %v3308 = vunpack.c.h.b16 %v328
    %v3309 = vunpack.c.l.b16 %v329
    %v3310 = vunpack.c.h.b16 %v329
    %v3311 = vunpack.c.l.b16 %v330
    %v3312 = vunpack.c.h.b16 %v330
    %v3313 = vunpack.c.l.b16 %v331
    %v3314 = vunpack.c.h.b16 %v331
    %v3315 = vunpack.c.l.b16 %v332
    %v3316 = vunpack.c.h.b16 %v332
    %v3317 = vunpack.c.l.b16 %v333
    %v3318 = vunpack.c.h.b16 %v333
    %v3319 = vunpack.c.l.b16 %v334
    %v3320 = vunpack.c.h.b16 %v334
    %v3321 = vunpack.c.l.b16 %v335
    %v3322 = vunpack.c.h.b16 %v335
    %v3323 = vunpack.c.l.b16 %v336
    %v3324 = vunpack.c.h.b16 %v336
    %v3325 = vunpack.c.l.b16 %v337
    %v3326 = vunpack.c.h.b16 %v337
    %v3327 = vunpack.c.l.b16 %v338
    %v3328 = vunpack.c.h.b16 %v338
    %v3329 = vunpack.c.l.b16 %v339
    %v3330 = vunpack.c.h.b16 %v339
    %v3331 = vunpack.c.l.b16 %v340
    %v3332 = vunpack.c.h.b16 %v340
    %v3333 = vunpack.c.l.b16 %v341
    %v3334 = vunpack.c.h.b16 %v341
    %v3335 = vunpack.c.l.b16 %v342
    %v3336 = vunpack.c.h.b16 %v342
    %v3337 = vunpack.c.l.b16 %v343
    %v3338 = vunpack.c.h.b16 %v343
    %v3339 = vunpack.c.l.b16 %v344
    %v3340 = vunpack.c.h.b16 %v344
    %v3341 = vunpack.c.l.b16 %v345
    %v3342 = vunpack.c.h.b16 %v345
    %v3343 = vunpack.c.l.b16 %v346
    %v3344 = vunpack.c.h.b16 %v346
    %v3345 = vunpack.c.l.b16 %v347
    %v3346 = vunpack.c.h.b16 %v347
    %v3347 = vunpack.c.l.b16 %v348
    %v3348 = vunpack.c.h.b16 %v348
    %v3349 = vunpack.c.l.b16 %v349
    %v3350 = vunpack.c.h.b16 %v349
    %v3351 = vunpack.c.l.b16 %v350
    %v3352 = vunpack.c.h.b16 %v350
    %v3353 = vunpack.c.l.b16 %v351
    %v3354 = vunpack.c.h.b16 %v351
    %v3355 = vunpack.c.l.b16 %v352
    %v3356 = vunpack.c.h.b16 %v352
    %v3357 = vunpack.c.l.b16 %v353
    %v3358 = vunpack.c.h.b16 %v353
    %v3359 = vunpack.c.l.b16 %v354
    %v3360 = vunpack.c.h.b16 %v354
    %v3361 = vunpack.c.l.b16 %v355
    %v3362 = vunpack.c.h.b16 %v355
    %v3363 = vunpack.c.l.b16 %v356
    %v3364 = vunpack.c.h.b16 %v356
    %v3365 = vunpack.c.l.b16 %v357
    %v3366 = vunpack.c.h.b16 %v357
    %v3367 = vunpack.c.l.b16 %v358
    %v3368 = vunpack.c.h.b16 %v358
    %v3369 = vunpack.c.l.b16 %v359
    %v3370 = vunpack.c.h.b16 %v359
    %v3371 = vunpack.c.l.b16 %v360
    %v3372 = vunpack.c.h.b16 %v360
    %v3373 = vunpack.c.l.b16 %v361
    %v3374 = vunpack.c.h.b16 %v361
    %v3375 = vunpack.c.l.b16 %v362
    %v3376 = vunpack.c.h.b16 %v362
    %v3377 = vunpack.c.l.b16 %v363
    %v3378 = vunpack.c.h.b16 %v363
    %v3379 = vunpack.c.l.b16 %v364
    %v3380 = vunpack.c.h.b16 %v364
    %v3381 = vunpack.c.l.b16 %v365
    %v3382 = vunpack.c.h.b16 %v365
    %v3383 = vunpack.c.l.b16 %v366
    %v3384 = vunpack.c.h.b16 %v366
    %v3385 = vunpack.c.l.b16 %v367
    %v3386 = vunpack.c.h.b16 %v367
    %v3387 = vunpack.c.l.b16 %v368
    %v3388 = vunpack.c.h.b16 %v368
    %v3389 = vunpack.c.l.b16 %v369
    %v3390 = vunpack.c.h.b16 %v369
    %v3391 = vunpack.c.l.b16 %v370
    %v3392 = vunpack.c.h.b16 %v370
    %v3393 = vunpack.c.l.b16 %v371
    %v3394 = vunpack.c.h.b16 %v371
    %v3395 = vunpack.c.l.b16 %v372
    %v3396 = vunpack.c.h.b16 %v372
    %v3397 = vunpack.c.l.b16 %v373
    %v3398 = vunpack.c.h.b16 %v373
    %v3399 = vunpack.c.l.b16 %v374
    %v3400 = vunpack.c.h.b16 %v374
    %v3401 = vunpack.c.l.b16 %v375
    %v3402 = vunpack.c.h.b16 %v375
    %v3403 = vunpack.c.l.b16 %v376
    %v3404 = vunpack.c.h.b16 %v376
    %v3405 = vunpack.c.l.b16 %v377
    %v3406 = vunpack.c.h.b16 %v377
    %v3407 = vunpack.c.l.b16 %v378
    %v3408 = vunpack.c.h.b16 %v378
    %v3409 = vunpack.c.l.b16 %v379
    %v3410 = vunpack.c.h.b16 %v379
    %v3411 = vunpack.c.l.b16 %v380
    %v3412 = vunpack.c.h.b16 %v380
    %v3413 = vunpack.c.l.b16 %v381
    %v3414 = vunpack.c.h.b16 %v381
    %v3415 = vunpack.c.l.b16 %v382
    %v3416 = vunpack.c.h.b16 %v382
    %v3417 = vunpack.c.l.b16 %v383
    %v3418 = vunpack.c.h.b16 %v383
    %v3419 = vunpack.c.l.b16 %v384
    %v3420 = vunpack.c.h.b16 %v384
    %v3421 = vunpack.c.l.b16 %v385
    %v3422 = vunpack.c.h.b16 %v385
    %v3423 = vunpack.c.l.b16 %v386
    %v3424 = vunpack.c.h.b16 %v386
    %v3425 = vunpack.c.l.b16 %v387
    %v3426 = vunpack.c.h.b16 %v387
    %v3427 = vunpack.c.l.b16 %v388
    %v3428 = vunpack.c.h.b16 %v388
    %v3429 = vunpack.c.l.b16 %v389
    %v3430 = vunpack.c.h.b16 %v389
    %v3431 = vunpack.c.l.b16 %v390
    %v3432 = vunpack.c.h.b16 %v390
    %v3433 = vunpack.c.l.b16 %v391
    %v3434 = vunpack.c.h.b16 %v391
    %v3435 = vunpack.c.l.b16 %v392
    %v3436 = vunpack.c.h.b16 %v392
    %v3437 = vunpack.c.l.b16 %v393
    %v3438 = vunpack.c.h.b16 %v393
    %v3439 = vunpack.c.l.b16 %v394
    %v3440 = vunpack.c.h.b16 %v394
    %v3441 = vunpack.c.l.b16 %v395
    %v3442 = vunpack.c.h.b16 %v395
    %v3443 = vunpack.c.l.b16 %v396
    %v3444 = vunpack.c.h.b16 %v396
    %v3445 = vunpack.c.l.b16 %v397
    %v3446 = vunpack.c.h.b16 %v397
    %v3447 = vunpack.c.l.b16 %v398
    %v3448 = vunpack.c.h.b16 %v398
    %v3449 = vunpack.c.l.b16 %v399
    %v3450 = vunpack.c.h.b16 %v399
    %v3451 = vunpack.c.l.b16 %v400
    %v3452 = vunpack.c.h.b16 %v400
    %v3453 = vunpack.c.l.b16 %v401
    %v3454 = vunpack.c.h.b16 %v401
    %v3455 = vunpack.c.l.b16 %v402
    %v3456 = vunpack.c.h.b16 %v402
    %v3457 = vunpack.c.l.b16 %v403
    %v3458 = vunpack.c.h.b16 %v403
    %v3459 = vunpack.c.l.b16 %v404
    %v3460 = vunpack.c.h.b16 %v404
    %v3461 = vunpack.c.l.b16 %v405
    %v3462 = vunpack.c.h.b16 %v405
    %v3463 = vunpack.c.l.b16 %v406
    %v3464 = vunpack.c.h.b16 %v406
    %v3465 = vunpack.c.l.b16 %v407
    %v3466 = vunpack.c.h.b16 %v407
    %v3467 = vunpack.c.l.b16 %v408
    %v3468 = vunpack.c.h.b16 %v408
    %v3469 = vunpack.c.l.b16 %v409
    %v3470 = vunpack.c.h.b16 %v409
    %v3471 = vunpack.c.l.b16 %v410
    %v3472 = vunpack.c.h.b16 %v410
    %v3473 = vunpack.c.l.b16 %v411
    %v3474 = vunpack.c.h.b16 %v411
    %v3475 = vunpack.c.l.b16 %v412
    %v3476 = vunpack.c.h.b16 %v412
    %v3477 = vunpack.c.l.b16 %v413
    %v3478 = vunpack.c.h.b16 %v413
    %v3479 = vunpack.c.l.b16 %v414
    %v3480 = vunpack.c.h.b16 %v414
    %v3481 = vunpack.c.l.b16 %v415
    %v3482 = vunpack.c.h.b16 %v415
    %v3483 = vunpack.c.l.b16 %v416
    %v3484 = vunpack.c.h.b16 %v416
    %v3485 = vunpack.c.l.b16 %v417
    %v3486 = vunpack.c.h.b16 %v417
    %v3487 = vunpack.c.l.b16 %v418
    %v3488 = vunpack.c.h.b16 %v418
    %v3489 = vunpack.c.l.b16 %v419
    %v3490 = vunpack.c.h.b16 %v419
    %v3491 = vunpack.c.l.b16 %v420
    %v3492 = vunpack.c.h.b16 %v420
    %v3493 = vunpack.c.l.b16 %v421
    %v3494 = vunpack.c.h.b16 %v421
    %v3495 = vunpack.c.l.b16 %v422
    %v3496 = vunpack.c.h.b16 %v422
    %v3497 = vunpack.c.l.b16 %v423
    %v3498 = vunpack.c.h.b16 %v423
    %v3499 = vunpack.c.l.b16 %v424
    %v3500 = vunpack.c.h.b16 %v424
    %v3501 = vunpack.c.l.b16 %v425
    %v3502 = vunpack.c.h.b16 %v425
    %v3503 = vunpack.c.l.b16 %v426
    %v3504 = vunpack.c.h.b16 %v426
    %v3505 = vunpack.c.l.b16 %v427
    %v3506 = vunpack.c.h.b16 %v427
    %v3507 = vunpack.c.l.b16 %v428
    %v3508 = vunpack.c.h.b16 %v428
    %v3509 = vunpack.c.l.b16 %v429
    %v3510 = vunpack.c.h.b16 %v429
    %v3511 = vunpack.c.l.b16 %v430
    %v3512 = vunpack.c.h.b16 %v430
    %v3513 = vunpack.c.l.b16 %v431
    %v3514 = vunpack.c.h.b16 %v431
    %v3515 = vunpack.c.l.b16 %v432
    %v3516 = vunpack.c.h.b16 %v432
    %v3517 = vunpack.c.l.b16 %v433
    %v3518 = vunpack.c.h.b16 %v433
    %v3519 = vunpack.c.l.b16 %v434
    %v3520 = vunpack.c.h.b16 %v434
    %v3521 = vunpack.c.l.b16 %v435
    %v3522 = vunpack.c.h.b16 %v435
    %v3523 = vunpack.c.l.b16 %v436
    %v3524 = vunpack.c.h.b16 %v436
    %v3525 = vunpack.c.l.b16 %v437
    %v3526 = vunpack.c.h.b16 %v437
    %v3527 = vunpack.c.l.b16 %v438
    %v3528 = vunpack.c.h.b16 %v438
    %v3529 = vunpack.c.l.b16 %v439
    %v3530 = vunpack.c.h.b16 %v439
    %v3531 = vunpack.c.l.b16 %v440
    %v3532 = vunpack.c.h.b16 %v440
    %v3533 = vunpack.c.l.b16 %v441
    %v3534 = vunpack.c.h.b16 %v441
    %v3535 = vunpack.c.l.b16 %v442
    %v3536 = vunpack.c.h.b16 %v442
    %v3537 = vunpack.c.l.b16 %v443
    %v3538 = vunpack.c.h.b16 %v443
    %v3539 = vunpack.c.l.b16 %v444
    %v3540 = vunpack.c.h.b16 %v444
    %v3541 = vunpack.c.l.b16 %v445
    %v3542 = vunpack.c.h.b16 %v445
    %v3543 = vunpack.c.l.b16 %v446
    %v3544 = vunpack.c.h.b16 %v446
    %v3545 = vunpack.c.l.b16 %v447
    %v3546 = vunpack.c.h.b16 %v447
    %v3547 = vunpack.c.l.b16 %v448
    %v3548 = vunpack.c.h.b16 %v448
    %v3549 = vunpack.c.l.b16 %v449
    %v3550 = vunpack.c.h.b16 %v449
    %v3551 = vunpack.c.l.b16 %v450
    %v3552 = vunpack.c.h.b16 %v450
    %v3553 = vunpack.c.l.b16 %v451
    %v3554 = vunpack.c.h.b16 %v451
    %v3555 = vunpack.c.l.b16 %v452
    %v3556 = vunpack.c.h.b16 %v452
    %v3557 = vunpack.c.l.b16 %v453
    %v3558 = vunpack.c.h.b16 %v453
    %v3559 = vunpack.c.l.b16 %v454
    %v3560 = vunpack.c.h.b16 %v454
    %v3561 = vunpack.c.l.b16 %v455
    %v3562 = vunpack.c.h.b16 %v455
    %v3563 = vunpack.c.l.b16 %v456
    %v3564 = vunpack.c.h.b16 %v456
    %v3565 = vunpack.c.l.b16 %v457
    %v3566 = vunpack.c.h.b16 %v457
    %v3567 = vunpack.c.l.b16 %v458
    %v3568 = vunpack.c.h.b16 %v458
    %v3569 = vunpack.c.l.b16 %v459
    %v3570 = vunpack.c.h.b16 %v459
    %v3571 = vunpack.c.l.b16 %v460
    %v3572 = vunpack.c.h.b16 %v460
    %v3573 = vunpack.c.l.b16 %v461
    %v3574 = vunpack.c.h.b16 %v461
    %v3575 = vunpack.c.l.b16 %v462
    %v3576 = vunpack.c.h.b16 %v462
    %v3577 = vunpack.c.l.b16 %v463
    %v3578 = vunpack.c.h.b16 %v463
    %v3579 = vunpack.c.l.b16 %v464
    %v3580 = vunpack.c.h.b16 %v464
    %v3581 = vunpack.c.l.b16 %v465
    %v3582 = vunpack.c.h.b16 %v465
    %v3583 = vunpack.c.l.b16 %v466
    %v3584 = vunpack.c.h.b16 %v466
    %v3585 = vunpack.c.l.b16 %v467
    %v3586 = vunpack.c.h.b16 %v467
    %v3587 = vunpack.c.l.b16 %v468
    %v3588 = vunpack.c.h.b16 %v468
    %v3589 = vunpack.c.l.b16 %v469
    %v3590 = vunpack.c.h.b16 %v469
    %v3591 = vunpack.c.l.b16 %v470
    %v3592 = vunpack.c.h.b16 %v470
    %v3593 = vunpack.c.l.b16 %v471
    %v3594 = vunpack.c.h.b16 %v471
    %v3595 = vunpack.c.l.b16 %v472
    %v3596 = vunpack.c.h.b16 %v472
    %v3597 = vunpack.c.l.b16 %v473
    %v3598 = vunpack.c.h.b16 %v473
    %v3599 = vunpack.c.l.b16 %v474
    %v3600 = vunpack.c.h.b16 %v474
    %v3601 = vunpack.c.l.b16 %v475
    %v3602 = vunpack.c.h.b16 %v475
    %v3603 = vunpack.c.l.b16 %v476
    %v3604 = vunpack.c.h.b16 %v476
    %v3605 = vunpack.c.l.b16 %v477
    %v3606 = vunpack.c.h.b16 %v477
    %v3607 = vunpack.c.l.b16 %v478
    %v3608 = vunpack.c.h.b16 %v478
    %v3609 = vunpack.c.l.b16 %v479
    %v3610 = vunpack.c.h.b16 %v479
    %v3611 = vunpack.c.l.b16 %v480
    %v3612 = vunpack.c.h.b16 %v480
    %v3613 = vunpack.c.l.b16 %v481
    %v3614 = vunpack.c.h.b16 %v481
    %v3615 = vunpack.c.l.b16 %v482
    %v3616 = vunpack.c.h.b16 %v482
    %v3617 = vunpack.c.l.b16 %v483
    %v3618 = vunpack.c.h.b16 %v483
    %v3619 = vunpack.c.l.b16 %v484
    %v3620 = vunpack.c.h.b16 %v484
    %v3621 = vunpack.c.l.b16 %v485
    %v3622 = vunpack.c.h.b16 %v485
    %v3623 = vunpack.c.l.b16 %v486
    %v3624 = vunpack.c.h.b16 %v486
    %v3625 = vunpack.c.l.b16 %v487
    %v3626 = vunpack.c.h.b16 %v487
    %v3627 = vunpack.c.l.b16 %v488
    %v3628 = vunpack.c.h.b16 %v488
    %v3629 = vunpack.c.l.b16 %v489
    %v3630 = vunpack.c.h.b16 %v489
    %v3631 = vunpack.c.l.b16 %v490
    %v3632 = vunpack.c.h.b16 %v490
    %v3633 = vunpack.c.l.b16 %v491
    %v3634 = vunpack.c.h.b16 %v491
    %v3635 = vunpack.c.l.b16 %v492
    %v3636 = vunpack.c.h.b16 %v492
    %v3637 = vunpack.c.l.b16 %v493
    %v3638 = vunpack.c.h.b16 %v493
    %v3639 = vunpack.c.l.b16 %v494
    %v3640 = vunpack.c.h.b16 %v494
    %v3641 = vunpack.c.l.b16 %v495
    %v3642 = vunpack.c.h.b16 %v495
    %v3643 = vunpack.c.l.b16 %v496
    %v3644 = vunpack.c.h.b16 %v496
    %v3645 = vunpack.c.l.b16 %v497
    %v3646 = vunpack.c.h.b16 %v497
    %v3647 = vunpack.c.l.b16 %v498
    %v3648 = vunpack.c.h.b16 %v498
    %v3649 = vunpack.c.l.b16 %v499
    %v3650 = vunpack.c.h.b16 %v499
    %v3651 = vunpack.c.l.b16 %v500
    %v3652 = vunpack.c.h.b16 %v500
    %v3653 = vunpack.c.l.b16 %v501
    %v3654 = vunpack.c.h.b16 %v501
    %v3655 = vunpack.c.l.b16 %v502
    %v3656 = vunpack.c.h.b16 %v502
    %v3657 = vunpack.c.l.b16 %v503
    %v3658 = vunpack.c.h.b16 %v503
    %v3659 = vunpack.c.l.b16 %v504
    %v3660 = vunpack.c.h.b16 %v504
    %v3661 = vunpack.c.l.b16 %v505
    %v3662 = vunpack.c.h.b16 %v505
    %v3663 = vunpack.c.l.b16 %v506
    %v3664 = vunpack.c.h.b16 %v506
    %v3665 = vunpack.c.l.b16 %v507
    %v3666 = vunpack.c.h.b16 %v507
    %v3667 = vunpack.c.l.b16 %v508
    %v3668 = vunpack.c.h.b16 %v508
    %v3669 = vunpack.c.l.b16 %v509
    %v3670 = vunpack.c.h.b16 %v509
    %v3671 = vunpack.c.l.b16 %v510
    %v3672 = vunpack.c.h.b16 %v510
    %v3673 = vunpack.c.l.b16 %v511
    %v3674 = vunpack.c.h.b16 %v511
    %v3675 = vunpack.c.l.b16 %v512
    %v3676 = vunpack.c.h.b16 %v512
    %v3677 = vunpack.c.l.b16 %v513
    %v3678 = vunpack.c.h.b16 %v513
    %v3679 = vunpack.c.l.b16 %v514
    %v3680 = vunpack.c.h.b16 %v514
    %v3681 = vunpack.c.l.b16 %v515
    %v3682 = vunpack.c.h.b16 %v515
    %v3683 = vunpack.c.l.b16 %v516
    %v3684 = vunpack.c.h.b16 %v516
    %v3685 = vunpack.c.l.b16 %v517
    %v3686 = vunpack.c.h.b16 %v517
    %v3687 = vunpack.c.l.b16 %v518
    %v3688 = vunpack.c.h.b16 %v518
    %v3689 = vunpack.c.l.b16 %v519
    %v3690 = vunpack.c.h.b16 %v519
    %v3691 = vunpack.c.l.b16 %v520
    %v3692 = vunpack.c.h.b16 %v520
    %v3693 = vunpack.c.l.b16 %v521
    %v3694 = vunpack.c.h.b16 %v521
    %v3695 = vunpack.c.l.b16 %v522
    %v3696 = vunpack.c.h.b16 %v522
    %v3697 = vunpack.c.l.b16 %v523
    %v3698 = vunpack.c.h.b16 %v523
    %v3699 = vunpack.c.l.b16 %v524
    %v3700 = vunpack.c.h.b16 %v524
    %v3701 = vunpack.c.l.b16 %v525
    %v3702 = vunpack.c.h.b16 %v525
    %v3703 = vunpack.c.l.b16 %v526
    %v3704 = vunpack.c.h.b16 %v526
    %v3705 = vunpack.c.l.b16 %v527
    %v3706 = vunpack.c.h.b16 %v527
    %v3707 = vunpack.c.l.b16 %v528
    %v3708 = vunpack.c.h.b16 %v528
    %v3709 = vunpack.c.l.b16 %v529
    %v3710 = vunpack.c.h.b16 %v529
    %v3711 = vunpack.c.l.b16 %v530
    %v3712 = vunpack.c.h.b16 %v530
    %v3713 = vunpack.c.l.b16 %v531
    %v3714 = vunpack.c.h.b16 %v531
    %v3715 = vunpack.c.l.b16 %v532
    %v3716 = vunpack.c.h.b16 %v532
    %v3717 = vunpack.c.l.b16 %v533
    %v3718 = vunpack.c.h.b16 %v533
    %v3719 = vunpack.c.l.b16 %v534
    %v3720 = vunpack.c.h.b16 %v534
    %v3721 = vunpack.c.l.b16 %v535
    %v3722 = vunpack.c.h.b16 %v535
    %v3723 = vunpack.c.l.b16 %v536
    %v3724 = vunpack.c.h.b16 %v536
    %v3725 = vunpack.c.l.b16 %v537
    %v3726 = vunpack.c.h.b16 %v537
    %v3727 = vunpack.c.l.b16 %v538
    %v3728 = vunpack.c.h.b16 %v538
    %v3729 = vunpack.c.l.b16 %v539
    %v3730 = vunpack.c.h.b16 %v539
    %v3731 = vunpack.c.l.b16 %v540
    %v3732 = vunpack.c.h.b16 %v540
    %v3733 = vunpack.c.l.b16 %v541
    %v3734 = vunpack.c.h.b16 %v541
    %v3735 = vunpack.c.l.b16 %v542
    %v3736 = vunpack.c.h.b16 %v542
    %v3737 = vunpack.c.l.b16 %v543
    %v3738 = vunpack.c.h.b16 %v543
    %v3739 = vunpack.c.l.b16 %v544
    %v3740 = vunpack.c.h.b16 %v544
    %v3741 = vunpack.c.l.b16 %v545
    %v3742 = vunpack.c.h.b16 %v545
    %v3743 = vunpack.c.l.b16 %v546
    %v3744 = vunpack.c.h.b16 %v546
    %v3745 = vunpack.c.l.b16 %v547
    %v3746 = vunpack.c.h.b16 %v547
    %v3747 = vunpack.c.l.b16 %v548
    %v3748 = vunpack.c.h.b16 %v548
    %v3749 = vunpack.c.l.b16 %v549
    %v3750 = vunpack.c.h.b16 %v549
    %v3751 = vunpack.c.l.b16 %v550
    %v3752 = vunpack.c.h.b16 %v550
    %v3753 = vunpack.c.l.b16 %v551
    %v3754 = vunpack.c.h.b16 %v551
    %v3755 = vunpack.c.l.b16 %v552
    %v3756 = vunpack.c.h.b16 %v552
    %v3757 = vunpack.c.l.b16 %v553
    %v3758 = vunpack.c.h.b16 %v553
    %v3759 = vunpack.c.l.b16 %v554
    %v3760 = vunpack.c.h.b16 %v554
    %v3761 = vunpack.c.l.b16 %v555
    %v3762 = vunpack.c.h.b16 %v555
    %v3763 = vunpack.c.l.b16 %v556
    %v3764 = vunpack.c.h.b16 %v556
    %v3765 = vunpack.c.l.b16 %v557
    %v3766 = vunpack.c.h.b16 %v557
    %v3767 = vunpack.c.l.b16 %v558
    %v3768 = vunpack.c.h.b16 %v558
    %v3769 = vunpack.c.l.b16 %v559
    %v3770 = vunpack.c.h.b16 %v559
    %v3771 = vunpack.c.l.b16 %v560
    %v3772 = vunpack.c.h.b16 %v560
    %v3773 = vunpack.c.l.b16 %v561
    %v3774 = vunpack.c.h.b16 %v561
    %v3775 = vunpack.c.l.b16 %v562
    %v3776 = vunpack.c.h.b16 %v562
    %v3777 = vunpack.c.l.b16 %v563
    %v3778 = vunpack.c.h.b16 %v563
    %v3779 = vunpack.c.l.b16 %v564
    %v3780 = vunpack.c.h.b16 %v564
    %v3781 = vunpack.c.l.b16 %v565
    %v3782 = vunpack.c.h.b16 %v565
    %v3783 = vunpack.c.l.b16 %v566
    %v3784 = vunpack.c.h.b16 %v566
    %v3785 = vunpack.c.l.b16 %v567
    %v3786 = vunpack.c.h.b16 %v567
    %v3787 = vunpack.c.l.b16 %v568
    %v3788 = vunpack.c.h.b16 %v568
    %v3789 = vunpack.c.l.b16 %v569
    %v3790 = vunpack.c.h.b16 %v569
    %v3791 = vunpack.c.l.b16 %v570
    %v3792 = vunpack.c.h.b16 %v570
    %v3793 = vunpack.c.l.b16 %v571
    %v3794 = vunpack.c.h.b16 %v571
    %v3795 = vunpack.c.l.b16 %v572
    %v3796 = vunpack.c.h.b16 %v572
    %v3797 = vunpack.c.l.b16 %v573
    %v3798 = vunpack.c.h.b16 %v573
    %v3799 = vunpack.c.l.b16 %v574
    %v3800 = vunpack.c.h.b16 %v574
    %v3801 = vunpack.c.l.b16 %v575
    %v3802 = vunpack.c.h.b16 %v575
    %v3803 = vunpack.c.l.b16 %v576
    %v3804 = vunpack.c.h.b16 %v576
    %v3805 = vunpack.c.l.b16 %v577
    %v3806 = vunpack.c.h.b16 %v577
    %v3807 = vunpack.c.l.b16 %v578
    %v3808 = vunpack.c.h.b16 %v578
    %v3809 = vunpack.c.l.b16 %v579
    %v3810 = vunpack.c.h.b16 %v579
    %v3811 = vunpack.c.l.b16 %v580
    %v3812 = vunpack.c.h.b16 %v580
    %v3813 = vunpack.c.l.b16 %v581
    %v3814 = vunpack.c.h.b16 %v581
    %v3815 = vunpack.c.l.b16 %v582
    %v3816 = vunpack.c.h.b16 %v582
    %v3817 = vunpack.c.l.b16 %v583
    %v3818 = vunpack.c.h.b16 %v583
    %v3819 = vunpack.c.l.b16 %v584
    %v3820 = vunpack.c.h.b16 %v584
    %v3821 = vunpack.c.l.b16 %v585
    %v3822 = vunpack.c.h.b16 %v585
    %v3823 = vunpack.c.l.b16 %v586
    %v3824 = vunpack.c.h.b16 %v586
    %v3825 = vunpack.c.l.b16 %v587
    %v3826 = vunpack.c.h.b16 %v587
    %v3827 = vunpack.c.l.b16 %v588
    %v3828 = vunpack.c.h.b16 %v588
    %v3829 = vunpack.c.l.b16 %v589
    %v3830 = vunpack.c.h.b16 %v589
    %v3831 = vunpack.c.l.b16 %v590
    %v3832 = vunpack.c.h.b16 %v590
    %v3833 = vunpack.c.l.b16 %v591
    %v3834 = vunpack.c.h.b16 %v591
    %v3835 = vunpack.c.l.b16 %v592
    %v3836 = vunpack.c.h.b16 %v592
    %v3837 = vunpack.c.l.b16 %v593
    %v3838 = vunpack.c.h.b16 %v593
    %v3839 = vunpack.c.l.b16 %v594
    %v3840 = vunpack.c.h.b16 %v594
    %v3841 = vunpack.c.l.b16 %v595
    %v3842 = vunpack.c.h.b16 %v595
    %v3843 = vunpack.c.l.b16 %v596
    %v3844 = vunpack.c.h.b16 %v596
    %v3845 = vunpack.c.l.b16 %v597
    %v3846 = vunpack.c.h.b16 %v597
    %v3847 = vunpack.c.l.b16 %v598
    %v3848 = vunpack.c.h.b16 %v598
    %v3849 = vunpack.c.l.b16 %v599
    %v3850 = vunpack.c.h.b16 %v599
    %v3851 = vunpack.c.l.b16 %v600
    %v3852 = vunpack.c.h.b16 %v600
    %v3853 = vunpack.c.l.b16 %v601
    %v3854 = vunpack.c.h.b16 %v601
    %v3855 = vunpack.c.l.b16 %v602
    %v3856 = vunpack.c.h.b16 %v602
    %v3857 = vunpack.c.l.b16 %v603
    %v3858 = vunpack.c.h.b16 %v603
    %v3859 = vunpack.c.l.b16 %v604
    %v3860 = vunpack.c.h.b16 %v604
    %v3861 = vunpack.c.l.b16 %v605
    %v3862 = vunpack.c.h.b16 %v605
    %v3863 = vunpack.c.l.b16 %v606
    %v3864 = vunpack.c.h.b16 %v606
    %v3865 = vunpack.c.l.b16 %v607
    %v3866 = vunpack.c.h.b16 %v607
    %v3867 = vunpack.c.l.b16 %v608
    %v3868 = vunpack.c.h.b16 %v608
    %v3869 = vunpack.c.l.b16 %v609
    %v3870 = vunpack.c.h.b16 %v609
    %v3871 = vunpack.c.l.b16 %v610
    %v3872 = vunpack.c.h.b16 %v610
    %v3873 = vunpack.c.l.b16 %v611
    %v3874 = vunpack.c.h.b16 %v611
    %v3875 = vunpack.c.l.b16 %v612
    %v3876 = vunpack.c.h.b16 %v612
    %v3877 = vunpack.c.l.b16 %v613
    %v3878 = vunpack.c.h.b16 %v613
    %v3879 = vunpack.c.l.b16 %v614
    %v3880 = vunpack.c.h.b16 %v614
    %v3881 = vunpack.c.l.b16 %v615
    %v3882 = vunpack.c.h.b16 %v615
    %v3883 = vunpack.c.l.b16 %v616
    %v3884 = vunpack.c.h.b16 %v616
    %v3885 = vunpack.c.l.b16 %v617
    %v3886 = vunpack.c.h.b16 %v617
    %v3887 = vunpack.c.l.b16 %v618
    %v3888 = vunpack.c.h.b16 %v618
    %v3889 = vunpack.c.l.b16 %v619
    %v3890 = vunpack.c.h.b16 %v619
    %v3891 = vunpack.c.l.b16 %v620
    %v3892 = vunpack.c.h.b16 %v620
    %v3893 = vunpack.c.l.b16 %v621
    %v3894 = vunpack.c.h.b16 %v621
    %v3895 = vunpack.c.l.b16 %v622
    %v3896 = vunpack.c.h.b16 %v622
    %v3897 = vunpack.c.l.b16 %v623
    %v3898 = vunpack.c.h.b16 %v623
    %v3899 = vunpack.c.l.b16 %v624
    %v3900 = vunpack.c.h.b16 %v624
    %v3901 = vunpack.c.l.b16 %v625
    %v3902 = vunpack.c.h.b16 %v625
    %v3903 = vunpack.c.l.b16 %v626
    %v3904 = vunpack.c.h.b16 %v626
    %v3905 = vunpack.c.l.b16 %v627
    %v3906 = vunpack.c.h.b16 %v627
    %v3907 = vunpack.c.l.b16 %v628
    %v3908 = vunpack.c.h.b16 %v628
    %v3909 = vunpack.c.l.b16 %v629
    %v3910 = vunpack.c.h.b16 %v629
    %v3911 = vunpack.c.l.b16 %v630
    %v3912 = vunpack.c.h.b16 %v630
    %v3913 = vunpack.c.l.b16 %v631
    %v3914 = vunpack.c.h.b16 %v631
    %v3915 = vunpack.c.l.b16 %v632
    %v3916 = vunpack.c.h.b16 %v632
    %v3917 = vunpack.c.l.b16 %v633
    %v3918 = vunpack.c.h.b16 %v633
    %v3919 = vunpack.c.l.b16 %v634
    %v3920 = vunpack.c.h.b16 %v634
    %v3921 = vunpack.c.l.b16 %v635
    %v3922 = vunpack.c.h.b16 %v635
    %v3923 = vunpack.c.l.b16 %v636
    %v3924 = vunpack.c.h.b16 %v636
    %v3925 = vunpack.c.l.b16 %v637
    %v3926 = vunpack.c.h.b16 %v637
    %v3927 = vunpack.c.l.b16 %v638
    %v3928 = vunpack.c.h.b16 %v638
    %v3929 = vunpack.c.l.b16 %v639
    %v3930 = vunpack.c.h.b16 %v639
    %v3931 = vunpack.c.l.b16 %v640
    %v3932 = vunpack.c.h.b16 %v640
    %v3933 = vunpack.c.l.b16 %v641
    %v3934 = vunpack.c.h.b16 %v641
    %v3935 = vunpack.c.l.b16 %v642
    %v3936 = vunpack.c.h.b16 %v642
    %v3937 = vunpack.c.l.b16 %v643
    %v3938 = vunpack.c.h.b16 %v643
    %v3939 = vunpack.c.l.b16 %v644
    %v3940 = vunpack.c.h.b16 %v644
    %v3941 = vunpack.c.l.b16 %v645
    %v3942 = vunpack.c.h.b16 %v645
    %v3943 = vunpack.c.l.b16 %v646
    %v3944 = vunpack.c.h.b16 %v646
    %v3945 = vunpack.c.l.b16 %v647
    %v3946 = vunpack.c.h.b16 %v647
    %v3947 = vunpack.c.l.b16 %v648
    %v3948 = vunpack.c.h.b16 %v648
    %v3949 = vunpack.c.l.b16 %v649
    %v3950 = vunpack.c.h.b16 %v649
    %v3951 = vunpack.c.l.b16 %v650
    %v3952 = vunpack.c.h.b16 %v650
    %v3953 = vunpack.c.l.b16 %v651
    %v3954 = vunpack.c.h.b16 %v651
    %v3955 = vunpack.c.l.b16 %v652
    %v3956 = vunpack.c.h.b16 %v652
    %v3957 = vunpack.c.l.b16 %v653
    %v3958 = vunpack.c.h.b16 %v653
    %v3959 = vunpack.c.l.b16 %v654
    %v3960 = vunpack.c.h.b16 %v654
    %v3961 = vunpack.c.l.b16 %v655
    %v3962 = vunpack.c.h.b16 %v655
    %v3963 = vunpack.c.l.b16 %v656
    %v3964 = vunpack.c.h.b16 %v656
    %v3965 = vunpack.c.l.b16 %v657
    %v3966 = vunpack.c.h.b16 %v657
    %v3967 = vunpack.c.l.b16 %v658
    %v3968 = vunpack.c.h.b16 %v658
    %v3969 = vunpack.c.l.b16 %v659
    %v3970 = vunpack.c.h.b16 %v659
    %v3971 = vunpack.c.l.b16 %v660
    %v3972 = vunpack.c.h.b16 %v660
    %v3973 = vunpack.c.l.b16 %v661
    %v3974 = vunpack.c.h.b16 %v661
    %v3975 = vunpack.c.l.b16 %v662
    %v3976 = vunpack.c.h.b16 %v662
    %v3977 = vunpack.c.l.b16 %v663
    %v3978 = vunpack.c.h.b16 %v663
    %v3979 = vunpack.c.l.b16 %v664
    %v3980 = vunpack.c.h.b16 %v664
    %v3981 = vunpack.c.l.b16 %v665
    %v3982 = vunpack.c.h.b16 %v665
    %v3983 = vunpack.c.l.b16 %v666
    %v3984 = vunpack.c.h.b16 %v666
    %v3985 = vunpack.c.l.b16 %v667
    %v3986 = vunpack.c.h.b16 %v667
    %v3987 = vunpack.c.l.b16 %v668
    %v3988 = vunpack.c.h.b16 %v668
    %v3989 = vunpack.c.l.b16 %v669
    %v3990 = vunpack.c.h.b16 %v669
    %v3991 = vunpack.c.l.b16 %v670
    %v3992 = vunpack.c.h.b16 %v670
    %v3993 = vunpack.c.l.b16 %v671
    %v3994 = vunpack.c.h.b16 %v671
    %v3995 = vunpack.c.l.b16 %v672
    %v3996 = vunpack.c.h.b16 %v672
    %v3997 = vunpack.c.l.b16 %v673
    %v3998 = vunpack.c.h.b16 %v673
    %v3999 = vunpack.c.l.b16 %v674
    %v4000 = vunpack.c.h.b16 %v674
    %v4001 = vunpack.c.l.b16 %v675
    %v4002 = vunpack.c.h.b16 %v675
    %v4003 = vunpack.c.l.b16 %v676
    %v4004 = vunpack.c.h.b16 %v676
    %v4005 = vunpack.c.l.b16 %v677
    %v4006 = vunpack.c.h.b16 %v677
    %v4007 = vunpack.c.l.b16 %v678
    %v4008 = vunpack.c.h.b16 %v678
    %v4009 = vunpack.c.l.b16 %v679
    %v4010 = vunpack.c.h.b16 %v679
    %v4011 = vunpack.c.l.b16 %v680
    %v4012 = vunpack.c.h.b16 %v680
    %v4013 = vunpack.c.l.b16 %v681
    %v4014 = vunpack.c.h.b16 %v681
    %v4015 = vunpack.c.l.b16 %v682
    %v4016 = vunpack.c.h.b16 %v682
    %v4017 = vunpack.c.l.b16 %v683
    %v4018 = vunpack.c.h.b16 %v683
    %v4019 = vunpack.c.l.b16 %v684
    %v4020 = vunpack.c.h.b16 %v684
    %v4021 = vunpack.c.l.b16 %v685
    %v4022 = vunpack.c.h.b16 %v685
    %v4023 = vunpack.c.l.b16 %v686
    %v4024 = vunpack.c.h.b16 %v686
    %v4025 = vunpack.c.l.b16 %v687
    %v4026 = vunpack.c.h.b16 %v687
    %v4027 = vunpack.c.l.b16 %v688
    %v4028 = vunpack.c.h.b16 %v688
    %v4029 = vunpack.c.l.b16 %v689
    %v4030 = vunpack.c.h.b16 %v689
    %v4031 = vunpack.c.l.b16 %v690
    %v4032 = vunpack.c.h.b16 %v690
    %v4033 = vunpack.c.l.b16 %v691
    %v4034 = vunpack.c.h.b16 %v691
    %v4035 = vunpack.c.l.b16 %v692
    %v4036 = vunpack.c.h.b16 %v692
    %v4037 = vunpack.c.l.b16 %v693
    %v4038 = vunpack.c.h.b16 %v693
    %v4039 = vunpack.c.l.b16 %v694
    %v4040 = vunpack.c.h.b16 %v694
    %v4041 = vunpack.c.l.b16 %v695
    %v4042 = vunpack.c.h.b16 %v695
    %v4043 = vunpack.c.l.b16 %v696
    %v4044 = vunpack.c.h.b16 %v696
    %v4045 = vunpack.c.l.b16 %v697
    %v4046 = vunpack.c.h.b16 %v697
    %v4047 = vunpack.c.l.b16 %v698
    %v4048 = vunpack.c.h.b16 %v698
    %v4049 = vunpack.c.l.b16 %v699
    %v4050 = vunpack.c.h.b16 %v699
    %v4051 = vunpack.c.l.b16 %v700
    %v4052 = vunpack.c.h.b16 %v700
    %v4053 = vunpack.c.l.b16 %v701
    %v4054 = vunpack.c.h.b16 %v701
    %v4055 = vunpack.c.l.b16 %v702
    %v4056 = vunpack.c.h.b16 %v702
    %v4057 = vunpack.c.l.b16 %v703
    %v4058 = vunpack.c.h.b16 %v703
    %v4059 = vunpack.c.l.b16 %v704
    %v4060 = vunpack.c.h.b16 %v704
    %v4061 = vunpack.c.l.b16 %v705
    %v4062 = vunpack.c.h.b16 %v705
    %v4063 = vunpack.c.l.b16 %v706
    %v4064 = vunpack.c.h.b16 %v706
    %v4065 = vunpack.c.l.b16 %v707
    %v4066 = vunpack.c.h.b16 %v707
    %v4067 = vunpack.c.l.b16 %v708
    %v4068 = vunpack.c.h.b16 %v708
    %v4069 = vunpack.c.l.b16 %v709
    %v4070 = vunpack.c.h.b16 %v709
    %v4071 = vunpack.c.l.b16 %v710
    %v4072 = vunpack.c.h.b16 %v710
    %v4073 = vunpack.c.l.b16 %v711
    %v4074 = vunpack.c.h.b16 %v711
    %v4075 = vunpack.c.l.b16 %v712
    %v4076 = vunpack.c.h.b16 %v712
    %v4077 = vunpack.c.l.b16 %v713
    %v4078 = vunpack.c.h.b16 %v713
    %v4079 = vunpack.c.l.b16 %v714
    %v4080 = vunpack.c.h.b16 %v714
    %v4081 = vunpack.c.l.b16 %v715
    %v4082 = vunpack.c.h.b16 %v715
    %v4083 = vunpack.c.l.b16 %v716
    %v4084 = vunpack.c.h.b16 %v716
    %v4085 = vunpack.c.l.b16 %v717
    %v4086 = vunpack.c.h.b16 %v717
    %v4087 = vunpack.c.l.b16 %v718
    %v4088 = vunpack.c.h.b16 %v718
    %v4089 = vunpack.c.l.b16 %v719
    %v4090 = vunpack.c.h.b16 %v719
    %v4091 = vunpack.c.l.b16 %v720
    %v4092 = vunpack.c.h.b16 %v720
    %v4093 = vunpack.c.l.b16 %v721
    %v4094 = vunpack.c.h.b16 %v721
    %v4095 = vunpack.c.l.b16 %v722
    %v4096 = vunpack.c.h.b16 %v722
    %v4097 = vunpack.c.l.b16 %v723
    %v4098 = vunpack.c.h.b16 %v723
    %v4099 = vunpack.c.l.b16 %v724
    %v4100 = vunpack.c.h.b16 %v724
    %v4101 = vunpack.c.l.b16 %v725
    %v4102 = vunpack.c.h.b16 %v725
    %v4103 = vunpack.c.l.b16 %v726
    %v4104 = vunpack.c.h.b16 %v726
    %v4105 = vunpack.c.l.b16 %v727
    %v4106 = vunpack.c.h.b16 %v727
    %v4107 = vunpack.c.l.b16 %v728
    %v4108 = vunpack.c.h.b16 %v728
    %v4109 = vunpack.c.l.b16 %v729
    %v4110 = vunpack.c.h.b16 %v729
    %v4111 = vunpack.c.l.b16 %v730
    %v4112 = vunpack.c.h.b16 %v730
    %v4113 = vunpack.c.l.b16 %v731
    %v4114 = vunpack.c.h.b16 %v731
    %v4115 = vunpack.c.l.b16 %v732
    %v4116 = vunpack.c.h.b16 %v732
    %v4117 = vunpack.c.l.b16 %v733
    %v4118 = vunpack.c.h.b16 %v733
    %v4119 = vunpack.c.l.b16 %v734
    %v4120 = vunpack.c.h.b16 %v734
    %v4121 = vunpack.c.l.b16 %v735
    %v4122 = vunpack.c.h.b16 %v735
    %v4123 = vunpack.c.l.b16 %v736
    %v4124 = vunpack.c.h.b16 %v736
    %v4125 = vunpack.c.l.b16 %v737
    %v4126 = vunpack.c.h.b16 %v737
    %v4127 = vunpack.c.l.b16 %v738
    %v4128 = vunpack.c.h.b16 %v738
    %v4129 = vunpack.c.l.b16 %v739
    %v4130 = vunpack.c.h.b16 %v739
    %v4131 = vunpack.c.l.b16 %v740
    %v4132 = vunpack.c.h.b16 %v740
    %v4133 = vunpack.c.l.b16 %v741
    %v4134 = vunpack.c.h.b16 %v741
    %v4135 = vunpack.c.l.b16 %v742
    %v4136 = vunpack.c.h.b16 %v742
    %v4137 = vunpack.c.l.b16 %v743
    %v4138 = vunpack.c.h.b16 %v743
    %v4139 = vunpack.c.l.b16 %v744
    %v4140 = vunpack.c.h.b16 %v744
    %v4141 = vunpack.c.l.b16 %v745
    %v4142 = vunpack.c.h.b16 %v745
    %v4143 = vunpack.c.l.b16 %v746
    %v4144 = vunpack.c.h.b16 %v746
    %v4145 = vunpack.c.l.b16 %v747
    %v4146 = vunpack.c.h.b16 %v747
    %v4147 = vunpack.c.l.b16 %v748
    %v4148 = vunpack.c.h.b16 %v748
    %v4149 = vunpack.c.l.b16 %v749
    %v4150 = vunpack.c.h.b16 %v749
    %v4151 = vunpack.c.l.b16 %v750
    %v4152 = vunpack.c.h.b16 %v750
    %v4153 = vunpack.c.l.b16 %v751
    %v4154 = vunpack.c.h.b16 %v751
    %v4155 = vunpack.c.l.b16 %v752
    %v4156 = vunpack.c.h.b16 %v752
    %v4157 = vunpack.c.l.b16 %v753
    %v4158 = vunpack.c.h.b16 %v753
    %v4159 = vunpack.c.l.b16 %v754
    %v4160 = vunpack.c.h.b16 %v754
    %v4161 = vunpack.c.l.b16 %v755
    %v4162 = vunpack.c.h.b16 %v755
    %v4163 = vunpack.c.l.b16 %v756
    %v4164 = vunpack.c.h.b16 %v756
    %v4165 = vunpack.c.l.b16 %v757
    %v4166 = vunpack.c.h.b16 %v757
    %v4167 = vunpack.c.l.b16 %v758
    %v4168 = vunpack.c.h.b16 %v758
    %v4169 = vunpack.c.l.b16 %v759
    %v4170 = vunpack.c.h.b16 %v759
    %v4171 = vunpack.c.l.b16 %v760
    %v4172 = vunpack.c.h.b16 %v760
    %v4173 = vunpack.c.l.b16 %v761
    %v4174 = vunpack.c.h.b16 %v761
    %v4175 = vunpack.c.l.b16 %v762
    %v4176 = vunpack.c.h.b16 %v762
    %v4177 = vunpack.c.l.b16 %v763
    %v4178 = vunpack.c.h.b16 %v763
    %v4179 = vunpack.c.l.b16 %v764
    %v4180 = vunpack.c.h.b16 %v764
    %v4181 = vunpack.c.l.b16 %v765
    %v4182 = vunpack.c.h.b16 %v765
    %v4183 = vunpack.c.l.b16 %v766
    %v4184 = vunpack.c.h.b16 %v766
    %v4185 = vunpack.c.l.b16 %v767
    %v4186 = vunpack.c.h.b16 %v767
    %v4187 = vunpack.c.l.b16 %v768
    %v4188 = vunpack.c.h.b16 %v768
    %v4189 = vunpack.c.l.b16 %v769
    %v4190 = vunpack.c.h.b16 %v769
    %v4191 = vunpack.c.l.b16 %v770
    %v4192 = vunpack.c.h.b16 %v770
    %v4193 = vunpack.c.l.b16 %v771
    %v4194 = vunpack.c.h.b16 %v771
    %v4195 = vunpack.c.l.b16 %v772
    %v4196 = vunpack.c.h.b16 %v772
    %v4197 = vunpack.c.l.b16 %v773
    %v4198 = vunpack.c.h.b16 %v773
    %v4199 = vunpack.c.l.b16 %v774
    %v4200 = vunpack.c.h.b16 %v774
    %v4201 = vunpack.c.l.b16 %v775
    %v4202 = vunpack.c.h.b16 %v775
    %v4203 = vunpack.c.l.b16 %v776
    %v4204 = vunpack.c.h.b16 %v776
    %v4205 = vunpack.c.l.b16 %v777
    %v4206 = vunpack.c.h.b16 %v777
    %v4207 = vunpack.c.l.b16 %v778
    %v4208 = vunpack.c.h.b16 %v778
    %v4209 = vunpack.c.l.b16 %v779
    %v4210 = vunpack.c.h.b16 %v779
    %v4211 = vunpack.c.l.b16 %v780
    %v4212 = vunpack.c.h.b16 %v780
    %v4213 = vunpack.c.l.b16 %v781
    %v4214 = vunpack.c.h.b16 %v781
    %v4215 = vunpack.c.l.b16 %v782
    %v4216 = vunpack.c.h.b16 %v782
    %v4217 = vunpack.c.l.b16 %v783
    %v4218 = vunpack.c.h.b16 %v783
    %v4219 = vunpack.c.l.b16 %v784
    %v4220 = vunpack.c.h.b16 %v784
    %v4221 = vunpack.c.l.b16 %v785
    %v4222 = vunpack.c.h.b16 %v785
    %v4223 = vunpack.c.l.b16 %v786
    %v4224 = vunpack.c.h.b16 %v786
    %v4225 = vunpack.c.l.b16 %v787
    %v4226 = vunpack.c.h.b16 %v787
    %v4227 = vunpack.c.l.b16 %v788
    %v4228 = vunpack.c.h.b16 %v788
    %v4229 = vunpack.c.l.b16 %v789
    %v4230 = vunpack.c.h.b16 %v789
    %v4231 = vunpack.c.l.b16 %v790
    %v4232 = vunpack.c.h.b16 %v790
    %v4233 = vunpack.c.l.b16 %v791
    %v4234 = vunpack.c.h.b16 %v791
    %v4235 = vunpack.c.l.b16 %v792
    %v4236 = vunpack.c.h.b16 %v792
    %v4237 = vunpack.c.l.b16 %v793
    %v4238 = vunpack.c.h.b16 %v793
    %v4239 = vunpack.c.l.b16 %v794
    %v4240 = vunpack.c.h.b16 %v794
    %v4241 = vunpack.c.l.b16 %v795
    %v4242 = vunpack.c.h.b16 %v795
    %v4243 = vunpack.c.l.b16 %v796
    %v4244 = vunpack.c.h.b16 %v796
    %v4245 = vunpack.c.l.b16 %v797
    %v4246 = vunpack.c.h.b16 %v797
    %v4247 = vunpack.c.l.b16 %v798
    %v4248 = vunpack.c.h.b16 %v798
    %v4249 = vunpack.c.l.b16 %v799
    %v4250 = vunpack.c.h.b16 %v799
    %v4251 = vunpack.c.l.b16 %v800
    %v4252 = vunpack.c.h.b16 %v800
    %v4253 = vunpack.c.l.b16 %v801
    %v4254 = vunpack.c.h.b16 %v801
    %v4255 = vunpack.c.l.b16 %v802
    %v4256 = vunpack.c.h.b16 %v802
    %v4257 = vunpack.c.l.b16 %v803
    %v4258 = vunpack.c.h.b16 %v803
    %v4259 = vunpack.c.l.b16 %v804
    %v4260 = vunpack.c.h.b16 %v804
    %v4261 = vunpack.c.l.b16 %v805
    %v4262 = vunpack.c.h.b16 %v805
    %v4263 = vunpack.c.l.b16 %v806
    %v4264 = vunpack.c.h.b16 %v806
    %v4265 = vunpack.c.l.b16 %v807
    %v4266 = vunpack.c.h.b16 %v807
    %v4267 = vunpack.c.l.b16 %v808
    %v4268 = vunpack.c.h.b16 %v808
    %v4269 = vunpack.c.l.b16 %v809
    %v4270 = vunpack.c.h.b16 %v809
    %v4271 = vunpack.c.l.b16 %v810
    %v4272 = vunpack.c.h.b16 %v810
    %v4273 = vunpack.c.l.b16 %v811
    %v4274 = vunpack.c.h.b16 %v811
    %v4275 = vunpack.c.l.b16 %v812
    %v4276 = vunpack.c.h.b16 %v812
    %v4277 = vunpack.c.l.b16 %v813
    %v4278 = vunpack.c.h.b16 %v813
    %v4279 = vunpack.c.l.b16 %v814
    %v4280 = vunpack.c.h.b16 %v814
    %v4281 = vunpack.c.l.b16 %v815
    %v4282 = vunpack.c.h.b16 %v815
    %v4283 = vunpack.c.l.b16 %v816
    %v4284 = vunpack.c.h.b16 %v816
    %v4285 = vunpack.c.l.b16 %v817
    %v4286 = vunpack.c.h.b16 %v817
    %v4287 = vunpack.c.l.b16 %v818
    %v4288 = vunpack.c.h.b16 %v818
    %v4289 = vunpack.c.l.b16 %v819
    %v4290 = vunpack.c.h.b16 %v819
    %v4291 = vunpack.c.l.b16 %v820
    %v4292 = vunpack.c.h.b16 %v820
    %v4293 = vunpack.c.l.b16 %v821
    %v4294 = vunpack.c.h.b16 %v821
    %v4295 = vunpack.c.l.b16 %v822
    %v4296 = vunpack.c.h.b16 %v822
    %v4297 = vunpack.c.l.b16 %v823
    %v4298 = vunpack.c.h.b16 %v823
    %v4299 = vunpack.c.l.b16 %v824
    %v4300 = vunpack.c.h.b16 %v824
    %v4301 = vunpack.c.l.b16 %v825
    %v4302 = vunpack.c.h.b16 %v825
    %v4303 = vunpack.c.l.b16 %v826
    %v4304 = vunpack.c.h.b16 %v826
    %v4305 = vunpack.c.l.b16 %v827
    %v4306 = vunpack.c.h.b16 %v827
    %v4307 = vunpack.c.l.b16 %v828
    %v4308 = vunpack.c.h.b16 %v828
    %v4309 = vunpack.c.l.b16 %v829
    %v4310 = vunpack.c.h.b16 %v829
    %v4311 = vunpack.c.l.b16 %v830
    %v4312 = vunpack.c.h.b16 %v830
    %v4313 = vunpack.c.l.b16 %v831
    %v4314 = vunpack.c.h.b16 %v831
    %v4315 = vunpack.c.l.b16 %v832
    %v4316 = vunpack.c.h.b16 %v832
    %v4317 = vunpack.c.l.b16 %v833
    %v4318 = vunpack.c.h.b16 %v833
    %v4319 = vunpack.c.l.b16 %v834
    %v4320 = vunpack.c.h.b16 %v834
    %v4321 = vunpack.c.l.b16 %v835
    %v4322 = vunpack.c.h.b16 %v835
    %v4323 = vunpack.c.l.b16 %v836
    %v4324 = vunpack.c.h.b16 %v836
    %v4325 = vunpack.c.l.b16 %v837
    %v4326 = vunpack.c.h.b16 %v837
    %v4327 = vunpack.c.l.b16 %v838
    %v4328 = vunpack.c.h.b16 %v838
    %v4329 = vunpack.c.l.b16 %v839
    %v4330 = vunpack.c.h.b16 %v839
    %v4331 = vunpack.c.l.b16 %v840
    %v4332 = vunpack.c.h.b16 %v840
    %v4333 = vunpack.c.l.b16 %v841
    %v4334 = vunpack.c.h.b16 %v841
    %v4335 = vunpack.c.l.b16 %v842
    %v4336 = vunpack.c.h.b16 %v842
    %v4337 = vunpack.c.l.b16 %v843
    %v4338 = vunpack.c.h.b16 %v843
    %v4339 = vunpack.c.l.b16 %v844
    %v4340 = vunpack.c.h.b16 %v844
    %v4341 = vunpack.c.l.b16 %v845
    %v4342 = vunpack.c.h.b16 %v845
    %v4343 = vunpack.c.l.b16 %v846
    %v4344 = vunpack.c.h.b16 %v846
    %v4345 = vunpack.c.l.b16 %v847
    %v4346 = vunpack.c.h.b16 %v847
    %v4347 = vunpack.c.l.b16 %v848
    %v4348 = vunpack.c.h.b16 %v848
    %v4349 = vunpack.c.l.b16 %v849
    %v4350 = vunpack.c.h.b16 %v849
    %v4351 = vunpack.c.l.b16 %v850
    %v4352 = vunpack.c.h.b16 %v850
    %v4353 = vunpack.c.l.b16 %v851
    %v4354 = vunpack.c.h.b16 %v851
    %v4355 = vunpack.c.l.b16 %v852
    %v4356 = vunpack.c.h.b16 %v852
    %v4357 = vunpack.c.l.b16 %v853
    %v4358 = vunpack.c.h.b16 %v853
    %v4359 = vunpack.c.l.b16 %v854
    %v4360 = vunpack.c.h.b16 %v854
    %v4361 = vunpack.c.l.b16 %v855
    %v4362 = vunpack.c.h.b16 %v855
    %v4363 = vunpack.c.l.b16 %v856
    %v4364 = vunpack.c.h.b16 %v856
    %v4365 = vunpack.c.l.b16 %v857
    %v4366 = vunpack.c.h.b16 %v857
    %v4367 = vunpack.c.l.b16 %v858
    %v4368 = vunpack.c.h.b16 %v858
    %v4369 = vunpack.c.l.b16 %v859
    %v4370 = vunpack.c.h.b16 %v859
    %v4371 = vunpack.c.l.b16 %v860
    %v4372 = vunpack.c.h.b16 %v860
    %v4373 = vunpack.c.l.b16 %v861
    %v4374 = vunpack.c.h.b16 %v861
    %v4375 = vunpack.c.l.b16 %v862
    %v4376 = vunpack.c.h.b16 %v862
    %v4377 = vunpack.c.l.b16 %v863
    %v4378 = vunpack.c.h.b16 %v863
    %v4379 = vunpack.c.l.b16 %v864
    %v4380 = vunpack.c.h.b16 %v864
    %v4381 = vunpack.c.l.b16 %v865
    %v4382 = vunpack.c.h.b16 %v865
    %v4383 = vunpack.c.l.b16 %v866
    %v4384 = vunpack.c.h.b16 %v866
    %v4385 = vunpack.c.l.b16 %v867
    %v4386 = vunpack.c.h.b16 %v867
    %v4387 = vunpack.c.l.b16 %v868
    %v4388 = vunpack.c.h.b16 %v868
    %v4389 = vunpack.c.l.b16 %v869
    %v4390 = vunpack.c.h.b16 %v869
    %v4391 = vunpack.c.l.b16 %v870
    %v4392 = vunpack.c.h.b16 %v870
    %v4393 = vunpack.c.l.b16 %v871
    %v4394 = vunpack.c.h.b16 %v871
    %v4395 = vunpack.c.l.b16 %v872
    %v4396 = vunpack.c.h.b16 %v872
    %v4397 = vunpack.c.l.b16 %v873
    %v4398 = vunpack.c.h.b16 %v873
    %v4399 = vunpack.c.l.b16 %v874
    %v4400 = vunpack.c.h.b16 %v874
    %v4401 = vunpack.c.l.b16 %v875
    %v4402 = vunpack.c.h.b16 %v875
    %v4403 = vunpack.c.l.b16 %v876
    %v4404 = vunpack.c.h.b16 %v876
    %v4405 = vunpack.c.l.b16 %v877
    %v4406 = vunpack.c.h.b16 %v877
    %v4407 = vunpack.c.l.b16 %v878
    %v4408 = vunpack.c.h.b16 %v878
    %v4409 = vunpack.c.l.b16 %v879
    %v4410 = vunpack.c.h.b16 %v879
    %v4411 = vunpack.c.l.b16 %v880
    %v4412 = vunpack.c.h.b16 %v880
    %v4413 = vunpack.c.l.b16 %v881
    %v4414 = vunpack.c.h.b16 %v881
    %v4415 = vunpack.c.l.b16 %v882
    %v4416 = vunpack.c.h.b16 %v882
    %v4417 = vunpack.c.l.b16 %v883
    %v4418 = vunpack.c.h.b16 %v883
    %v4419 = vunpack.c.l.b16 %v884
    %v4420 = vunpack.c.h.b16 %v884
    %v4421 = vunpack.c.l.b16 %v885
    %v4422 = vunpack.c.h.b16 %v885
    %v4423 = vunpack.c.l.b16 %v886
    %v4424 = vunpack.c.h.b16 %v886
    %v4425 = vunpack.c.l.b16 %v887
    %v4426 = vunpack.c.h.b16 %v887
    %v4427 = vunpack.c.l.b16 %v888
    %v4428 = vunpack.c.h.b16 %v888
    %v4429 = vunpack.c.l.b16 %v889
    %v4430 = vunpack.c.h.b16 %v889
    %v4431 = vunpack.c.l.b16 %v890
    %v4432 = vunpack.c.h.b16 %v890
    %v4433 = vunpack.c.l.b16 %v891
    %v4434 = vunpack.c.h.b16 %v891
    %v4435 = vunpack.c.l.b16 %v892
    %v4436 = vunpack.c.h.b16 %v892
    %v4437 = vunpack.c.l.b16 %v893
    %v4438 = vunpack.c.h.b16 %v893
    %v4439 = vunpack.c.l.b16 %v894
    %v4440 = vunpack.c.h.b16 %v894
    %v4441 = vunpack.c.l.b16 %v895
    %v4442 = vunpack.c.h.b16 %v895
    %v4443 = vunpack.c.l.b16 %v896
    %v4444 = vunpack.c.h.b16 %v896
    %v4445 = vunpack.c.l.b16 %v897
    %v4446 = vunpack.c.h.b16 %v897
    %v4447 = vunpack.c.l.b16 %v898
    %v4448 = vunpack.c.h.b16 %v898
    %v4449 = vunpack.c.l.b16 %v899
    %v4450 = vunpack.c.h.b16 %v899
    %v4451 = vunpack.c.l.b16 %v900
    %v4452 = vunpack.c.h.b16 %v900
    %v4453 = vunpack.c.l.b16 %v901
    %v4454 = vunpack.c.h.b16 %v901
    %v4455 = vunpack.c.l.b16 %v902
    %v4456 = vunpack.c.h.b16 %v902
    %v4457 = vunpack.c.l.b16 %v903
    %v4458 = vunpack.c.h.b16 %v903
    %v4459 = vunpack.c.l.b16 %v904
    %v4460 = vunpack.c.h.b16 %v904
    %v4461 = vunpack.c.l.b16 %v905
    %v4462 = vunpack.c.h.b16 %v905
    %v4463 = vunpack.c.l.b16 %v906
    %v4464 = vunpack.c.h.b16 %v906
    %v4465 = vunpack.c.l.b16 %v907
    %v4466 = vunpack.c.h.b16 %v907
    %v4467 = vunpack.c.l.b16 %v908
    %v4468 = vunpack.c.h.b16 %v908
    %v4469 = vunpack.c.l.b16 %v909
    %v4470 = vunpack.c.h.b16 %v909
    %v4471 = vunpack.c.l.b16 %v910
    %v4472 = vunpack.c.h.b16 %v910
    %v4473 = vunpack.c.l.b16 %v911
    %v4474 = vunpack.c.h.b16 %v911
    %v4475 = vunpack.c.l.b16 %v912
    %v4476 = vunpack.c.h.b16 %v912
    %v4477 = vunpack.c.l.b16 %v913
    %v4478 = vunpack.c.h.b16 %v913
    %v4479 = vunpack.c.l.b16 %v914
    %v4480 = vunpack.c.h.b16 %v914
    %v4481 = vunpack.c.l.b16 %v915
    %v4482 = vunpack.c.h.b16 %v915
    %v4483 = vunpack.c.l.b16 %v916
    %v4484 = vunpack.c.h.b16 %v916
    %v4485 = vunpack.c.l.b16 %v917
    %v4486 = vunpack.c.h.b16 %v917
    %v4487 = vunpack.c.l.b16 %v918
    %v4488 = vunpack.c.h.b16 %v918
    %v4489 = vunpack.c.l.b16 %v919
    %v4490 = vunpack.c.h.b16 %v919
    %v4491 = vunpack.c.l.b16 %v920
    %v4492 = vunpack.c.h.b16 %v920
    %v4493 = vunpack.c.l.b16 %v921
    %v4494 = vunpack.c.h.b16 %v921
    %v4495 = vunpack.c.l.b16 %v922
    %v4496 = vunpack.c.h.b16 %v922
    %v4497 = vunpack.c.l.b16 %v923
    %v4498 = vunpack.c.h.b16 %v923
    %v4499 = vunpack.c.l.b16 %v924
    %v4500 = vunpack.c.h.b16 %v924
    %v4501 = vunpack.c.l.b16 %v925
    %v4502 = vunpack.c.h.b16 %v925
    %v4503 = vunpack.c.l.b16 %v926
    %v4504 = vunpack.c.h.b16 %v926
    %v4505 = vunpack.c.l.b16 %v927
    %v4506 = vunpack.c.h.b16 %v927
    %v4507 = vunpack.c.l.b16 %v928
    %v4508 = vunpack.c.h.b16 %v928
    %v4509 = vunpack.c.l.b16 %v929
    %v4510 = vunpack.c.h.b16 %v929
    %v4511 = vunpack.c.l.b16 %v930
    %v4512 = vunpack.c.h.b16 %v930
    %v4513 = vunpack.c.l.b16 %v931
    %v4514 = vunpack.c.h.b16 %v931
    %v4515 = vunpack.c.l.b16 %v932
    %v4516 = vunpack.c.h.b16 %v932
    %v4517 = vunpack.c.l.b16 %v933
    %v4518 = vunpack.c.h.b16 %v933
    %v4519 = vunpack.c.l.b16 %v934
    %v4520 = vunpack.c.h.b16 %v934
    %v4521 = vunpack.c.l.b16 %v935
    %v4522 = vunpack.c.h.b16 %v935
    %v4523 = vunpack.c.l.b16 %v936
    %v4524 = vunpack.c.h.b16 %v936
    %v4525 = vunpack.c.l.b16 %v937
    %v4526 = vunpack.c.h.b16 %v937
    %v4527 = vunpack.c.l.b16 %v938
    %v4528 = vunpack.c.h.b16 %v938
    %v4529 = vunpack.c.l.b16 %v939
    %v4530 = vunpack.c.h.b16 %v939
    %v4531 = vunpack.c.l.b16 %v940
    %v4532 = vunpack.c.h.b16 %v940
    %v4533 = vunpack.c.l.b16 %v941
    %v4534 = vunpack.c.h.b16 %v941
    %v4535 = vunpack.c.l.b16 %v942
    %v4536 = vunpack.c.h.b16 %v942
    %v4537 = vunpack.c.l.b16 %v943
    %v4538 = vunpack.c.h.b16 %v943
    %v4539 = vunpack.c.l.b16 %v944
    %v4540 = vunpack.c.h.b16 %v944
    %v4541 = vunpack.c.l.b16 %v945
    %v4542 = vunpack.c.h.b16 %v945
    %v4543 = vunpack.c.l.b16 %v946
    %v4544 = vunpack.c.h.b16 %v946
    %v4545 = vunpack.c.l.b16 %v947
    %v4546 = vunpack.c.h.b16 %v947
    %v4547 = vunpack.c.l.b16 %v948
    %v4548 = vunpack.c.h.b16 %v948
    %v4549 = vunpack.c.l.b16 %v949
    %v4550 = vunpack.c.h.b16 %v949
    %v4551 = vunpack.c.l.b16 %v950
    %v4552 = vunpack.c.h.b16 %v950
    %v4553 = vunpack.c.l.b16 %v951
    %v4554 = vunpack.c.h.b16 %v951
    %v4555 = vunpack.c.l.b16 %v952
    %v4556 = vunpack.c.h.b16 %v952
    %v4557 = vunpack.c.l.b16 %v953
    %v4558 = vunpack.c.h.b16 %v953
    %v4559 = vunpack.c.l.b16 %v954
    %v4560 = vunpack.c.h.b16 %v954
    %v4561 = vunpack.c.l.b16 %v955
    %v4562 = vunpack.c.h.b16 %v955
    %v4563 = vunpack.c.l.b16 %v956
    %v4564 = vunpack.c.h.b16 %v956
    %v4565 = vunpack.c.l.b16 %v957
    %v4566 = vunpack.c.h.b16 %v957
    %v4567 = vunpack.c.l.b16 %v958
    %v4568 = vunpack.c.h.b16 %v958
    %v4569 = vunpack.c.l.b16 %v959
    %v4570 = vunpack.c.h.b16 %v959
    %v4571 = vunpack.c.l.b16 %v960
    %v4572 = vunpack.c.h.b16 %v960
    %v4573 = vunpack.c.l.b16 %v961
    %v4574 = vunpack.c.h.b16 %v961
    %v4575 = vunpack.c.l.b16 %v962
    %v4576 = vunpack.c.h.b16 %v962
    %v4577 = vunpack.c.l.b16 %v963
    %v4578 = vunpack.c.h.b16 %v963
    %v4579 = vunpack.c.l.b16 %v964
    %v4580 = vunpack.c.h.b16 %v964
    %v4581 = vunpack.c.l.b16 %v965
    %v4582 = vunpack.c.h.b16 %v965
    %v4583 = vunpack.c.l.b16 %v966
    %v4584 = vunpack.c.h.b16 %v966
    %v4585 = vunpack.c.l.b16 %v967
    %v4586 = vunpack.c.h.b16 %v967
    %v4587 = vunpack.c.l.b16 %v968
    %v4588 = vunpack.c.h.b16 %v968
    %v4589 = vunpack.c.l.b16 %v969
    %v4590 = vunpack.c.h.b16 %v969
    %v4591 = vunpack.c.l.b16 %v970
    %v4592 = vunpack.c.h.b16 %v970
    %v4593 = vunpack.c.l.b16 %v971
    %v4594 = vunpack.c.h.b16 %v971
    %v4595 = vunpack.c.l.b16 %v972
    %v4596 = vunpack.c.h.b16 %v972
    %v4597 = vunpack.c.l.b16 %v973
    %v4598 = vunpack.c.h.b16 %v973
    %v4599 = vunpack.c.l.b16 %v974
    %v4600 = vunpack.c.h.b16 %v974
    %v4601 = vunpack.c.l.b16 %v975
    %v4602 = vunpack.c.h.b16 %v975
    %v4603 = vunpack.c.l.b16 %v976
    %v4604 = vunpack.c.h.b16 %v976
    %v4605 = vunpack.c.l.b16 %v977
    %v4606 = vunpack.c.h.b16 %v977
    %v4607 = vunpack.c.l.b16 %v978
    %v4608 = vunpack.c.h.b16 %v978
    %v4609 = vunpack.c.l.b16 %v979
    %v4610 = vunpack.c.h.b16 %v979
    %v4611 = vunpack.c.l.b16 %v980
    %v4612 = vunpack.c.h.b16 %v980
    %v4613 = vunpack.c.l.b16 %v981
    %v4614 = vunpack.c.h.b16 %v981
    %v4615 = vunpack.c.l.b16 %v982
    %v4616 = vunpack.c.h.b16 %v982
    %v4617 = vunpack.c.l.b16 %v983
    %v4618 = vunpack.c.h.b16 %v983
    %v4619 = vunpack.c.l.b16 %v984
    %v4620 = vunpack.c.h.b16 %v984
    %v4621 = vunpack.c.l.b16 %v985
    %v4622 = vunpack.c.h.b16 %v985
    %v4623 = vunpack.c.l.b16 %v986
    %v4624 = vunpack.c.h.b16 %v986
    %v4625 = vunpack.c.l.b16 %v987
    %v4626 = vunpack.c.h.b16 %v987
    %v4627 = vunpack.c.l.b16 %v988
    %v4628 = vunpack.c.h.b16 %v988
    %v4629 = vunpack.c.l.b16 %v989
    %v4630 = vunpack.c.h.b16 %v989
    %v4631 = vunpack.c.l.b16 %v990
    %v4632 = vunpack.c.h.b16 %v990
    %v4633 = vunpack.c.l.b16 %v991
    %v4634 = vunpack.c.h.b16 %v991
    %v4635 = vunpack.c.l.b16 %v992
    %v4636 = vunpack.c.h.b16 %v992
    %v4637 = vunpack.c.l.b16 %v993
    %v4638 = vunpack.c.h.b16 %v993
    %v4639 = vunpack.c.l.b16 %v994
    %v4640 = vunpack.c.h.b16 %v994
    %v4641 = vunpack.c.l.b16 %v995
    %v4642 = vunpack.c.h.b16 %v995
    %v4643 = vunpack.c.l.b16 %v996
    %v4644 = vunpack.c.h.b16 %v996
    %v4645 = vunpack.c.l.b16 %v997
    %v4646 = vunpack.c.h.b16 %v997
    %v4647 = vunpack.c.l.b16 %v998
    %v4648 = vunpack.c.h.b16 %v998
    %v4649 = vunpack.c.l.b16 %v999
    %v4650 = vunpack.c.h.b16 %v999
    %v4651 = vunpack.c.l.b16 %v1000
    %v4652 = vunpack.c.h.b16 %v1000
    %v4653 = vunpack.c.l.b16 %v1001
    %v4654 = vunpack.c.h.b16 %v1001
    %v4655 = vunpack.c.l.b16 %v1002
    %v4656 = vunpack.c.h.b16 %v1002
    %v4657 = vunpack.c.l.b16 %v1003
    %v4658 = vunpack.c.h.b16 %v1003
    %v4659 = vunpack.c.l.b16 %v1004
    %v4660 = vunpack.c.h.b16 %v1004
    %v4661 = vunpack.c.l.b16 %v1005
    %v4662 = vunpack.c.h.b16 %v1005
    %v4663 = vunpack.c.l.b16 %v1006
    %v4664 = vunpack.c.h.b16 %v1006
    %v4665 = vunpack.c.l.b16 %v1007
    %v4666 = vunpack.c.h.b16 %v1007
    %v4667 = vunpack.c.l.b16 %v1008
    %v4668 = vunpack.c.h.b16 %v1008
    %v4669 = vunpack.c.l.b16 %v1009
    %v4670 = vunpack.c.h.b16 %v1009
    %v4671 = vunpack.c.l.b16 %v1010
    %v4672 = vunpack.c.h.b16 %v1010
    %v4673 = vunpack.c.l.b16 %v1011
    %v4674 = vunpack.c.h.b16 %v1011
    %v4675 = vunpack.c.l.b16 %v1012
    %v4676 = vunpack.c.h.b16 %v1012
    %v4677 = vunpack.c.l.b16 %v1013
    %v4678 = vunpack.c.h.b16 %v1013
    %v4679 = vunpack.c.l.b16 %v1014
    %v4680 = vunpack.c.h.b16 %v1014
    %v4681 = vunpack.c.l.b16 %v1015
    %v4682 = vunpack.c.h.b16 %v1015
    %v4683 = vunpack.c.l.b16 %v1016
    %v4684 = vunpack.c.h.b16 %v1016
    %v4685 = vunpack.c.l.b16 %v1017
    %v4686 = vunpack.c.h.b16 %v1017
    %v4687 = vunpack.c.l.b16 %v1018
    %v4688 = vunpack.c.h.b16 %v1018
    %v4689 = vunpack.c.l.b16 %v1019
    %v4690 = vunpack.c.h.b16 %v1019
    %v4691 = vunpack.c.l.b16 %v1020
    %v4692 = vunpack.c.h.b16 %v1020
    %v4693 = vunpack.c.l.b16 %v1021
    %v4694 = vunpack.c.h.b16 %v1021
    %v4695 = vunpack.c.l.b16 %v1022
    %v4696 = vunpack.c.h.b16 %v1022
    %v4697 = vunpack.c.l.b16 %v1023
    %v4698 = vunpack.c.h.b16 %v1023
    %v4699 = vunpack.c.l.b16 %v1024
    %v4700 = vunpack.c.h.b16 %v1024
    %v4701 = vunpack.c.l.b16 %v1025
    %v4702 = vunpack.c.h.b16 %v1025
    %v4703 = vunpack.c.l.b16 %v1026
    %v4704 = vunpack.c.h.b16 %v1026
    %v4705 = vunpack.c.l.b16 %v1027
    %v4706 = vunpack.c.h.b16 %v1027
    %v4707 = vunpack.c.l.b16 %v1028
    %v4708 = vunpack.c.h.b16 %v1028
    %v4709 = vunpack.c.l.b16 %v1029
    %v4710 = vunpack.c.h.b16 %v1029
    %v4711 = vunpack.c.l.b16 %v1030
    %v4712 = vunpack.c.h.b16 %v1030
    %v4713 = vunpack.c.l.b16 %v1031
    %v4714 = vunpack.c.h.b16 %v1031
    %v4715 = vunpack.c.l.b16 %v1032
    %v4716 = vunpack.c.h.b16 %v1032
    %v4717 = vunpack.c.l.b16 %v1033
    %v4718 = vunpack.c.h.b16 %v1033
    %v4719 = vunpack.c.l.b16 %v1034
    %v4720 = vunpack.c.h.b16 %v1034
    %v4721 = vunpack.c.l.b16 %v1035
    %v4722 = vunpack.c.h.b16 %v1035
    %v4723 = vunpack.c.l.b16 %v1036
    %v4724 = vunpack.c.h.b16 %v1036
    %v4725 = vunpack.c.l.b16 %v1037
    %v4726 = vunpack.c.h.b16 %v1037
    %v4727 = vunpack.c.l.b16 %v1038
    %v4728 = vunpack.c.h.b16 %v1038
    %v4729 = vunpack.c.l.b16 %v1039
    %v4730 = vunpack.c.h.b16 %v1039
    %v4731 = vunpack.c.l.b16 %v1040
    %v4732 = vunpack.c.h.b16 %v1040
    %v4733 = vunpack.c.l.b16 %v1041
    %v4734 = vunpack.c.h.b16 %v1041
    %v4735 = vunpack.c.l.b16 %v1042
    %v4736 = vunpack.c.h.b16 %v1042
    %v4737 = vunpack.c.l.b16 %v1043
    %v4738 = vunpack.c.h.b16 %v1043
    %v4739 = vunpack.c.l.b16 %v1044
    %v4740 = vunpack.c.h.b16 %v1044
    %v4741 = vunpack.c.l.b16 %v1045
    %v4742 = vunpack.c.h.b16 %v1045
    %v4743 = vunpack.c.l.b16 %v1046
    %v4744 = vunpack.c.h.b16 %v1046
    %v4745 = vunpack.c.l.b16 %v1047
    %v4746 = vunpack.c.h.b16 %v1047
    %v4747 = vunpack.c.l.b16 %v1048
    %v4748 = vunpack.c.h.b16 %v1048
    %v4749 = vunpack.c.l.b16 %v1049
    %v4750 = vunpack.c.h.b16 %v1049
    %v4751 = vunpack.c.l.b16 %v1050
    %v4752 = vunpack.c.h.b16 %v1050
    %v4753 = vunpack.c.l.b16 %v1051
    %v4754 = vunpack.c.h.b16 %v1051
    %v4755 = vunpack.c.l.b16 %v1052
    %v4756 = vunpack.c.h.b16 %v1052
    %v4757 = vunpack.c.l.b16 %v1053
    %v4758 = vunpack.c.h.b16 %v1053
    %v4759 = vunpack.c.l.b16 %v1054
    %v4760 = vunpack.c.h.b16 %v1054
    %v4761 = vunpack.c.l.b16 %v1055
    %v4762 = vunpack.c.h.b16 %v1055
    %v4763 = vunpack.c.l.b16 %v1056
    %v4764 = vunpack.c.h.b16 %v1056
    %v4765 = vunpack.c.l.b16 %v1057
    %v4766 = vunpack.c.h.b16 %v1057
    %v4767 = vunpack.c.l.b16 %v1058
    %v4768 = vunpack.c.h.b16 %v1058
    %v4769 = vunpack.c.l.b16 %v1059
    %v4770 = vunpack.c.h.b16 %v1059
    %v4771 = vunpack.c.l.b16 %v1060
    %v4772 = vunpack.c.h.b16 %v1060
    %v4773 = vunpack.c.l.b16 %v1061
    %v4774 = vunpack.c.h.b16 %v1061
    %v4775 = vunpack.c.l.b16 %v1062
    %v4776 = vunpack.c.h.b16 %v1062
    %v4777 = vunpack.c.l.b16 %v1063
    %v4778 = vunpack.c.h.b16 %v1063
    %v4779 = vunpack.c.l.b16 %v1064
    %v4780 = vunpack.c.h.b16 %v1064
    %v4781 = vunpack.c.l.b16 %v1065
    %v4782 = vunpack.c.h.b16 %v1065
    %v4783 = vunpack.c.l.b16 %v1066
    %v4784 = vunpack.c.h.b16 %v1066
    %v4785 = vunpack.c.l.b16 %v1067
    %v4786 = vunpack.c.h.b16 %v1067
    %v4787 = vunpack.c.l.b16 %v1068
    %v4788 = vunpack.c.h.b16 %v1068
    %v4789 = vunpack.c.l.b16 %v1069
    %v4790 = vunpack.c.h.b16 %v1069
    %v4791 = vunpack.c.l.b16 %v1070
    %v4792 = vunpack.c.h.b16 %v1070
    %v4793 = vunpack.c.l.b16 %v1071
    %v4794 = vunpack.c.h.b16 %v1071
    %v4795 = vunpack.c.l.b16 %v1072
    %v4796 = vunpack.c.h.b16 %v1072
    %v4797 = vunpack.c.l.b16 %v1073
    %v4798 = vunpack.c.h.b16 %v1073
    %v4799 = vunpack.c.l.b16 %v1074
    %v4800 = vunpack.c.h.b16 %v1074
    %v4801 = vunpack.c.l.b16 %v1075
    %v4802 = vunpack.c.h.b16 %v1075
    %v4803 = vunpack.c.l.b16 %v1076
    %v4804 = vunpack.c.h.b16 %v1076
    %v4805 = vunpack.c.l.b16 %v1077
    %v4806 = vunpack.c.h.b16 %v1077
    %v4807 = vunpack.c.l.b16 %v1078
    %v4808 = vunpack.c.h.b16 %v1078
    %v4809 = vunpack.c.l.b16 %v1079
    %v4810 = vunpack.c.h.b16 %v1079
    %v4811 = vunpack.c.l.b16 %v1080
    %v4812 = vunpack.c.h.b16 %v1080
    %v4813 = vunpack.c.l.b16 %v1081
    %v4814 = vunpack.c.h.b16 %v1081
    %v4815 = vunpack.c.l.b16 %v1082
    %v4816 = vunpack.c.h.b16 %v1082
    %v4817 = vunpack.c.l.b16 %v1083
    %v4818 = vunpack.c.h.b16 %v1083
    %v4819 = vunpack.c.l.b16 %v1084
    %v4820 = vunpack.c.h.b16 %v1084
    %v4821 = vunpack.c.l.b16 %v1085
    %v4822 = vunpack.c.h.b16 %v1085
    %v4823 = vunpack.c.l.b16 %v1086
    %v4824 = vunpack.c.h.b16 %v1086
    %v4825 = vunpack.c.l.b16 %v1087
    %v4826 = vunpack.c.h.b16 %v1087
    %v4827 = vunpack.c.l.b16 %v1088
    %v4828 = vunpack.c.h.b16 %v1088
    %v4829 = vunpack.c.l.b16 %v1089
    %v4830 = vunpack.c.h.b16 %v1089
    %v4831 = vunpack.c.l.b16 %v1090
    %v4832 = vunpack.c.h.b16 %v1090
    %v4833 = vunpack.c.l.b16 %v1091
    %v4834 = vunpack.c.h.b16 %v1091
    %v4835 = vunpack.c.l.b16 %v1092
    %v4836 = vunpack.c.h.b16 %v1092
    %v4837 = vunpack.c.l.b16 %v1093
    %v4838 = vunpack.c.h.b16 %v1093
    %v4839 = vunpack.c.l.b16 %v1094
    %v4840 = vunpack.c.h.b16 %v1094
    %v4841 = vunpack.c.l.b16 %v1095
    %v4842 = vunpack.c.h.b16 %v1095
    %v4843 = vunpack.c.l.b16 %v1096
    %v4844 = vunpack.c.h.b16 %v1096
    %v4845 = vunpack.c.l.b16 %v1097
    %v4846 = vunpack.c.h.b16 %v1097
    %v4847 = vunpack.c.l.b16 %v1098
    %v4848 = vunpack.c.h.b16 %v1098
    %v4849 = vunpack.c.l.b16 %v1099
    %v4850 = vunpack.c.h.b16 %v1099
    %v4851 = vunpack.c.l.b16 %v1100
    %v4852 = vunpack.c.h.b16 %v1100
    %v4853 = vunpack.c.l.b16 %v1101
    %v4854 = vunpack.c.h.b16 %v1101
    %v4855 = vunpack.c.l.b16 %v1102
    %v4856 = vunpack.c.h.b16 %v1102
    %v4857 = vunpack.c.l.b16 %v1103
    %v4858 = vunpack.c.h.b16 %v1103
    %v4859 = vunpack.c.l.b16 %v1104
    %v4860 = vunpack.c.h.b16 %v1104
    %v4861 = vunpack.c.l.b16 %v1105
    %v4862 = vunpack.c.h.b16 %v1105
    %v4863 = vunpack.c.l.b16 %v1106
    %v4864 = vunpack.c.h.b16 %v1106
    %v4865 = vunpack.c.l.b16 %v1107
    %v4866 = vunpack.c.h.b16 %v1107
    %v4867 = vunpack.c.l.b16 %v1108
    %v4868 = vunpack.c.h.b16 %v1108
    %v4869 = vunpack.c.l.b16 %v1109
    %v4870 = vunpack.c.h.b16 %v1109
    %v4871 = vunpack.c.l.b16 %v1110
    %v4872 = vunpack.c.h.b16 %v1110
    %v4873 = vunpack.c.l.b16 %v1111
    %v4874 = vunpack.c.h.b16 %v1111
    %v4875 = vunpack.c.l.b16 %v1112
    %v4876 = vunpack.c.h.b16 %v1112
    %v4877 = vunpack.c.l.b16 %v1113
    %v4878 = vunpack.c.h.b16 %v1113
    %v4879 = vunpack.c.l.b16 %v1114
    %v4880 = vunpack.c.h.b16 %v1114
    %v4881 = vunpack.c.l.b16 %v1115
    %v4882 = vunpack.c.h.b16 %v1115
    %v4883 = vunpack.c.l.b16 %v1116
    %v4884 = vunpack.c.h.b16 %v1116
    %v4885 = vunpack.c.l.b16 %v1117
    %v4886 = vunpack.c.h.b16 %v1117
    %v4887 = vunpack.c.l.b16 %v1118
    %v4888 = vunpack.c.h.b16 %v1118
    %v4889 = vunpack.c.l.b16 %v1119
    %v4890 = vunpack.c.h.b16 %v1119
    %v4891 = vunpack.c.l.b16 %v1120
    %v4892 = vunpack.c.h.b16 %v1120
    %v4893 = vunpack.c.l.b16 %v1121
    %v4894 = vunpack.c.h.b16 %v1121
    %v4895 = vunpack.c.l.b16 %v1122
    %v4896 = vunpack.c.h.b16 %v1122
    %v4897 = vunpack.c.l.b16 %v1123
    %v4898 = vunpack.c.h.b16 %v1123
    %v4899 = vunpack.c.l.b16 %v1124
    %v4900 = vunpack.c.h.b16 %v1124
    %v4901 = vunpack.c.l.b16 %v1125
    %v4902 = vunpack.c.h.b16 %v1125
    %v4903 = vunpack.c.l.b16 %v1126
    %v4904 = vunpack.c.h.b16 %v1126
    %v4905 = vunpack.c.l.b16 %v1127
    %v4906 = vunpack.c.h.b16 %v1127
    %v4907 = vunpack.c.l.b16 %v1128
    %v4908 = vunpack.c.h.b16 %v1128
    %v4909 = vunpack.c.l.b16 %v1129
    %v4910 = vunpack.c.h.b16 %v1129
    %v4911 = vunpack.c.l.b16 %v1130
    %v4912 = vunpack.c.h.b16 %v1130
    %v4913 = vunpack.c.l.b16 %v1131
    %v4914 = vunpack.c.h.b16 %v1131
    %v4915 = vunpack.c.l.b16 %v1132
    %v4916 = vunpack.c.h.b16 %v1132
    %v4917 = vunpack.c.l.b16 %v1133
    %v4918 = vunpack.c.h.b16 %v1133
    %v4919 = vunpack.c.l.b16 %v1134
    %v4920 = vunpack.c.h.b16 %v1134
    %v4921 = vunpack.c.l.b16 %v1135
    %v4922 = vunpack.c.h.b16 %v1135
    %v4923 = vunpack.c.l.b16 %v1136
    %v4924 = vunpack.c.h.b16 %v1136
    %v4925 = vunpack.c.l.b16 %v1137
    %v4926 = vunpack.c.h.b16 %v1137
    %v4927 = vunpack.c.l.b16 %v1138
    %v4928 = vunpack.c.h.b16 %v1138
    %v4929 = vunpack.c.l.b16 %v1139
    %v4930 = vunpack.c.h.b16 %v1139
    %v4931 = vunpack.c.l.b16 %v1140
    %v4932 = vunpack.c.h.b16 %v1140
    %v4933 = vunpack.c.l.b16 %v1141
    %v4934 = vunpack.c.h.b16 %v1141
    %v4935 = vunpack.c.l.b16 %v1142
    %v4936 = vunpack.c.h.b16 %v1142
    %v4937 = vunpack.c.l.b16 %v1143
    %v4938 = vunpack.c.h.b16 %v1143
    %v4939 = vunpack.c.l.b16 %v1144
    %v4940 = vunpack.c.h.b16 %v1144
    %v4941 = vunpack.c.l.b16 %v1145
    %v4942 = vunpack.c.h.b16 %v1145
    %v4943 = vunpack.c.l.b16 %v1146
    %v4944 = vunpack.c.h.b16 %v1146
    %v4945 = vunpack.c.l.b16 %v1147
    %v4946 = vunpack.c.h.b16 %v1147
    %v4947 = vunpack.c.l.b16 %v1148
    %v4948 = vunpack.c.h.b16 %v1148
    %v4949 = vunpack.c.l.b16 %v1149
    %v4950 = vunpack.c.h.b16 %v1149
    %v4951 = vunpack.c.l.b16 %v1150
    %v4952 = vunpack.c.h.b16 %v1150
    %v4953 = vunpack.c.l.b16 %v1151
    %v4954 = vunpack.c.h.b16 %v1151
    %v4955 = vunpack.c.l.b16 %v1152
    %v4956 = vunpack.c.h.b16 %v1152
    %v4957 = vunpack.c.l.b16 %v1153
    %v4958 = vunpack.c.h.b16 %v1153
    %v4959 = vunpack.c.l.b16 %v1154
    %v4960 = vunpack.c.h.b16 %v1154
    %v4961 = vunpack.c.l.b16 %v1155
    %v4962 = vunpack.c.h.b16 %v1155
    %v4963 = vunpack.c.l.b16 %v1156
    %v4964 = vunpack.c.h.b16 %v1156
    %v4965 = vunpack.c.l.b16 %v1157
    %v4966 = vunpack.c.h.b16 %v1157
    %v4967 = vunpack.c.l.b16 %v1158
    %v4968 = vunpack.c.h.b16 %v1158
    %v4969 = vunpack.c.l.b16 %v1159
    %v4970 = vunpack.c.h.b16 %v1159
    %v4971 = vunpack.c.l.b16 %v1160
    %v4972 = vunpack.c.h.b16 %v1160
    %v4973 = vunpack.c.l.b16 %v1161
    %v4974 = vunpack.c.h.b16 %v1161
    %v4975 = vunpack.c.l.b16 %v1162
    %v4976 = vunpack.c.h.b16 %v1162
    %v4977 = vunpack.c.l.b16 %v1163
    %v4978 = vunpack.c.h.b16 %v1163
    %v4979 = vunpack.c.l.b16 %v1164
    %v4980 = vunpack.c.h.b16 %v1164
    %v4981 = vunpack.c.l.b16 %v1165
    %v4982 = vunpack.c.h.b16 %v1165
    %v4983 = vunpack.c.l.b16 %v1166
    %v4984 = vunpack.c.h.b16 %v1166
    %v4985 = vunpack.c.l.b16 %v1167
    %v4986 = vunpack.c.h.b16 %v1167
    %v4987 = vunpack.c.l.b16 %v1168
    %v4988 = vunpack.c.h.b16 %v1168
    %v4989 = vunpack.c.l.b16 %v1169
    %v4990 = vunpack.c.h.b16 %v1169
    %v4991 = vunpack.c.l.b16 %v1170
    %v4992 = vunpack.c.h.b16 %v1170
    %v4993 = vunpack.c.l.b16 %v1171
    %v4994 = vunpack.c.h.b16 %v1171
    %v4995 = vunpack.c.l.b16 %v1172
    %v4996 = vunpack.c.h.b16 %v1172
    %v4997 = vunpack.c.l.b16 %v1173
    %v4998 = vunpack.c.h.b16 %v1173
    %v4999 = vunpack.c.l.b16 %v1174
    %v5000 = vunpack.c.h.b16 %v1174
    %v5001 = vunpack.c.l.b16 %v1175
    %v5002 = vunpack.c.h.b16 %v1175
    %v5003 = vunpack.c.l.b16 %v1176
    %v5004 = vunpack.c.h.b16 %v1176
    %v5005 = vunpack.c.l.b16 %v1177
    %v5006 = vunpack.c.h.b16 %v1177
    %v5007 = vunpack.c.l.b16 %v1178
    %v5008 = vunpack.c.h.b16 %v1178
    %v5009 = vunpack.c.l.b16 %v1179
    %v5010 = vunpack.c.h.b16 %v1179
    %v5011 = vunpack.c.l.b16 %v1180
    %v5012 = vunpack.c.h.b16 %v1180
    %v5013 = vunpack.c.l.b16 %v1181
    %v5014 = vunpack.c.h.b16 %v1181
    %v5015 = vunpack.c.l.b16 %v1182
    %v5016 = vunpack.c.h.b16 %v1182
    %v5017 = vunpack.c.l.b16 %v1183
    %v5018 = vunpack.c.h.b16 %v1183
    %v5019 = vunpack.c.l.b16 %v1184
    %v5020 = vunpack.c.h.b16 %v1184
    %v5021 = vunpack.c.l.b16 %v1185
    %v5022 = vunpack.c.h.b16 %v1185
    %v5023 = vunpack.c.l.b16 %v1186
    %v5024 = vunpack.c.h.b16 %v1186
    %v5025 = vunpack.c.l.b16 %v1187
    %v5026 = vunpack.c.h.b16 %v1187
    %v5027 = vunpack.c.l.b16 %v1188
    %v5028 = vunpack.c.h.b16 %v1188
    %v5029 = vunpack.c.l.b16 %v1189
    %v5030 = vunpack.c.h.b16 %v1189
    %v5031 = vunpack.c.l.b16 %v1190
    %v5032 = vunpack.c.h.b16 %v1190
    %v5033 = vunpack.c.l.b16 %v1191
    %v5034 = vunpack.c.h.b16 %v1191
    %v5035 = vunpack.c.l.b16 %v1192
    %v5036 = vunpack.c.h.b16 %v1192
    %v5037 = vunpack.c.l.b16 %v1193
    %v5038 = vunpack.c.h.b16 %v1193
    %v5039 = vunpack.c.l.b16 %v1194
    %v5040 = vunpack.c.h.b16 %v1194
    %v5041 = vunpack.c.l.b16 %v1195
    %v5042 = vunpack.c.h.b16 %v1195
    %v5043 = vunpack.c.l.b16 %v1196
    %v5044 = vunpack.c.h.b16 %v1196
    %v5045 = vunpack.c.l.b16 %v1197
    %v5046 = vunpack.c.h.b16 %v1197
    %v5047 = vunpack.c.l.b16 %v1198
    %v5048 = vunpack.c.h.b16 %v1198
    %v5049 = vunpack.c.l.b16 %v1199
    %v5050 = vunpack.c.h.b16 %v1199
    %v5051 = vunpack.c.l.b16 %v1200
    %v5052 = vunpack.c.h.b16 %v1200
    %v5053 = vunpack.c.l.b16 %v1201
    %v5054 = vunpack.c.h.b16 %v1201
    %v5055 = vunpack.c.l.b16 %v1202
    %v5056 = vunpack.c.h.b16 %v1202
    %v5057 = vunpack.c.l.b16 %v1203
    %v5058 = vunpack.c.h.b16 %v1203
    %v5059 = vunpack.c.l.b16 %v1204
    %v5060 = vunpack.c.h.b16 %v1204
    %v5061 = vunpack.c.l.b16 %v1205
    %v5062 = vunpack.c.h.b16 %v1205
    %v5063 = vunpack.c.l.b16 %v1206
    %v5064 = vunpack.c.h.b16 %v1206
    %v5065 = vunpack.c.l.b16 %v1207
    %v5066 = vunpack.c.h.b16 %v1207
    %v5067 = vunpack.c.l.b16 %v1208
    %v5068 = vunpack.c.h.b16 %v1208
    %v5069 = vunpack.c.l.b16 %v1209
    %v5070 = vunpack.c.h.b16 %v1209
    %v5071 = vunpack.c.l.b16 %v1210
    %v5072 = vunpack.c.h.b16 %v1210
    %v5073 = vunpack.c.l.b16 %v1211
    %v5074 = vunpack.c.h.b16 %v1211
    %v5075 = vunpack.c.l.b16 %v1212
    %v5076 = vunpack.c.h.b16 %v1212
    %v5077 = vunpack.c.l.b16 %v1213
    %v5078 = vunpack.c.h.b16 %v1213
    %v5079 = vunpack.c.l.b16 %v1214
    %v5080 = vunpack.c.h.b16 %v1214
    %v5081 = vunpack.c.l.b16 %v1215
    %v5082 = vunpack.c.h.b16 %v1215
    %v5083 = vunpack.c.l.b16 %v1216
    %v5084 = vunpack.c.h.b16 %v1216
    %v5085 = vunpack.c.l.b16 %v1217
    %v5086 = vunpack.c.h.b16 %v1217
    %v5087 = vunpack.c.l.b16 %v1218
    %v5088 = vunpack.c.h.b16 %v1218
    %v5089 = vunpack.c.l.b16 %v1219
    %v5090 = vunpack.c.h.b16 %v1219
    %v5091 = vunpack.c.l.b16 %v1220
    %v5092 = vunpack.c.h.b16 %v1220
    %v5093 = vunpack.c.l.b16 %v1221
    %v5094 = vunpack.c.h.b16 %v1221
    %v5095 = vunpack.c.l.b16 %v1222
    %v5096 = vunpack.c.h.b16 %v1222
    %v5097 = vunpack.c.l.b16 %v1223
    %v5098 = vunpack.c.h.b16 %v1223
    %v5099 = vunpack.c.l.b16 %v1224
    %v5100 = vunpack.c.h.b16 %v1224
    %v5101 = vunpack.c.l.b16 %v1225
    %v5102 = vunpack.c.h.b16 %v1225
    %v5103 = vunpack.c.l.b16 %v1226
    %v5104 = vunpack.c.h.b16 %v1226
    %v5105 = vunpack.c.l.b16 %v1227
    %v5106 = vunpack.c.h.b16 %v1227
    %v5107 = vunpack.c.l.b16 %v1228
    %v5108 = vunpack.c.h.b16 %v1228
    %v5109 = vunpack.c.l.b16 %v1229
    %v5110 = vunpack.c.h.b16 %v1229
    %v5111 = vunpack.c.l.b16 %v1230
    %v5112 = vunpack.c.h.b16 %v1230
    %v5113 = vunpack.c.l.b16 %v1231
    %v5114 = vunpack.c.h.b16 %v1231
    %v5115 = vunpack.c.l.b16 %v1232
    %v5116 = vunpack.c.h.b16 %v1232
    %v5117 = vunpack.c.l.b16 %v1233
    %v5118 = vunpack.c.h.b16 %v1233
    %v5119 = vunpack.c.l.b16 %v1234
    %v5120 = vunpack.c.h.b16 %v1234
    %v5121 = vunpack.c.l.b16 %v1235
    %v5122 = vunpack.c.h.b16 %v1235
    %v5123 = vunpack.c.l.b16 %v1236
    %v5124 = vunpack.c.h.b16 %v1236
    %v5125 = vunpack.c.l.b16 %v1237
    %v5126 = vunpack.c.h.b16 %v1237
    %v5127 = vunpack.c.l.b16 %v1238
    %v5128 = vunpack.c.h.b16 %v1238
    %v5129 = vunpack.c.l.b16 %v1239
    %v5130 = vunpack.c.h.b16 %v1239
    %v5131 = vunpack.c.l.b16 %v1240
    %v5132 = vunpack.c.h.b16 %v1240
    %v5133 = vunpack.c.l.b16 %v1241
    %v5134 = vunpack.c.h.b16 %v1241
    %v5135 = vunpack.c.l.b16 %v1242
    %v5136 = vunpack.c.h.b16 %v1242
    %v5137 = vunpack.c.l.b16 %v1243
    %v5138 = vunpack.c.h.b16 %v1243
    %v5139 = vunpack.c.l.b16 %v1244
    %v5140 = vunpack.c.h.b16 %v1244
    %v5141 = vunpack.c.l.b16 %v1245
    %v5142 = vunpack.c.h.b16 %v1245
    %v5143 = vunpack.c.l.b16 %v1246
    %v5144 = vunpack.c.h.b16 %v1246
    %v5145 = vunpack.c.l.b16 %v1247
    %v5146 = vunpack.c.h.b16 %v1247
    %v5147 = vunpack.c.l.b16 %v1248
    %v5148 = vunpack.c.h.b16 %v1248
    %v5149 = vunpack.c.l.b16 %v1249
    %v5150 = vunpack.c.h.b16 %v1249
    %v5151 = vunpack.c.l.b16 %v1250
    %v5152 = vunpack.c.h.b16 %v1250
    %v5153 = vunpack.c.l.b16 %v1251
    %v5154 = vunpack.c.h.b16 %v1251
    %v5155 = vunpack.c.l.b16 %v1252
    %v5156 = vunpack.c.h.b16 %v1252
    %v5157 = vunpack.c.l.b16 %v1253
    %v5158 = vunpack.c.h.b16 %v1253
    %v5159 = vunpack.c.l.b16 %v1254
    %v5160 = vunpack.c.h.b16 %v1254
    %v5161 = vunpack.c.l.b16 %v1255
    %v5162 = vunpack.c.h.b16 %v1255
    %v5163 = vunpack.c.l.b16 %v1256
    %v5164 = vunpack.c.h.b16 %v1256
    %v5165 = vunpack.c.l.b16 %v1257
    %v5166 = vunpack.c.h.b16 %v1257
    %v5167 = vunpack.c.l.b16 %v1258
    %v5168 = vunpack.c.h.b16 %v1258
    %v5169 = vunpack.c.l.b16 %v1259
    %v5170 = vunpack.c.h.b16 %v1259
    %v5171 = vunpack.c.l.b16 %v1260
    %v5172 = vunpack.c.h.b16 %v1260
    %v5173 = vunpack.c.l.b16 %v1261
    %v5174 = vunpack.c.h.b16 %v1261
    %v5175 = vunpack.c.l.b16 %v1262
    %v5176 = vunpack.c.h.b16 %v1262
    %v5177 = vunpack.c.l.b16 %v1263
    %v5178 = vunpack.c.h.b16 %v1263
    %v5179 = vunpack.c.l.b16 %v1264
    %v5180 = vunpack.c.h.b16 %v1264
    %v5181 = vunpack.c.l.b16 %v1265
    %v5182 = vunpack.c.h.b16 %v1265
    %v5183 = vunpack.c.l.b16 %v1266
    %v5184 = vunpack.c.h.b16 %v1266
    %v5185 = vunpack.c.l.b16 %v1267
    %v5186 = vunpack.c.h.b16 %v1267
    %v5187 = vunpack.c.l.b16 %v1268
    %v5188 = vunpack.c.h.b16 %v1268
    %v5189 = vunpack.c.l.b16 %v1269
    %v5190 = vunpack.c.h.b16 %v1269
    %v5191 = vunpack.c.l.b16 %v1270
    %v5192 = vunpack.c.h.b16 %v1270
    %v5193 = vunpack.c.l.b16 %v1271
    %v5194 = vunpack.c.h.b16 %v1271
    %v5195 = vunpack.c.l.b16 %v1272
    %v5196 = vunpack.c.h.b16 %v1272
    %v5197 = vunpack.c.l.b16 %v1273
    %v5198 = vunpack.c.h.b16 %v1273
    %v5199 = vunpack.c.l.b16 %v1274
    %v5200 = vunpack.c.h.b16 %v1274
    %v5201 = vunpack.c.l.b16 %v1275
    %v5202 = vunpack.c.h.b16 %v1275
    %v5203 = vunpack.c.l.b16 %v1276
    %v5204 = vunpack.c.h.b16 %v1276
    %v5205 = vunpack.c.l.b16 %v1277
    %v5206 = vunpack.c.h.b16 %v1277
    %v5207 = vunpack.c.l.b16 %v1278
    %v5208 = vunpack.c.h.b16 %v1278
    %v5209 = vunpack.c.l.b16 %v1279
    %v5210 = vunpack.c.h.b16 %v1279
    %v5211 = vunpack.c.l.b16 %v1280
    %v5212 = vunpack.c.h.b16 %v1280
    %v5213 = vunpack.c.l.b16 %v1281
    %v5214 = vunpack.c.h.b16 %v1281
    %v5215 = vunpack.c.l.b16 %v1282
    %v5216 = vunpack.c.h.b16 %v1282
    %v5217 = vunpack.c.l.b16 %v1283
    %v5218 = vunpack.c.h.b16 %v1283
    %v5219 = vunpack.c.l.b16 %v1284
    %v5220 = vunpack.c.h.b16 %v1284
    %v5221 = vunpack.c.l.b16 %v1285
    %v5222 = vunpack.c.h.b16 %v1285
    %v5223 = vunpack.c.l.b16 %v1286
    %v5224 = vunpack.c.h.b16 %v1286
    %v5225 = vunpack.c.l.b16 %v1287
    %v5226 = vunpack.c.h.b16 %v1287
    %v5227 = vunpack.c.l.b16 %v1288
    %v5228 = vunpack.c.h.b16 %v1288
    %v5229 = vunpack.c.l.b16 %v1289
    %v5230 = vunpack.c.h.b16 %v1289
    %v5231 = vunpack.c.l.b16 %v1290
    %v5232 = vunpack.c.h.b16 %v1290
    %v5233 = vunpack.c.l.b16 %v1291
    %v5234 = vunpack.c.h.b16 %v1291
    %v5235 = vunpack.c.l.b16 %v1292
    %v5236 = vunpack.c.h.b16 %v1292
    %v5237 = vunpack.c.l.b16 %v1293
    %v5238 = vunpack.c.h.b16 %v1293
    %v5239 = vunpack.c.l.b16 %v1294
    %v5240 = vunpack.c.h.b16 %v1294
    %v5241 = vunpack.c.l.b16 %v1295
    %v5242 = vunpack.c.h.b16 %v1295
    %v5243 = vunpack.c.l.b16 %v1296
    %v5244 = vunpack.c.h.b16 %v1296
    %v5245 = vunpack.c.l.b16 %v1297
    %v5246 = vunpack.c.h.b16 %v1297
    %v5247 = vunpack.c.l.b16 %v1298
    %v5248 = vunpack.c.h.b16 %v1298
    %v5249 = vunpack.c.l.b16 %v1299
    %v5250 = vunpack.c.h.b16 %v1299
    %v5251 = vunpack.c.l.b16 %v1300
    %v5252 = vunpack.c.h.b16 %v1300
    %v5253 = vunpack.c.l.b16 %v1301
    %v5254 = vunpack.c.h.b16 %v1301
    %v5255 = vunpack.c.l.b16 %v1302
    %v5256 = vunpack.c.h.b16 %v1302
    %v5257 = vunpack.c.l.b16 %v1303
    %v5258 = vunpack.c.h.b16 %v1303
    %v5259 = vunpack.c.l.b16 %v1304
    %v5260 = vunpack.c.h.b16 %v1304
    %v5261 = vunpack.c.l.b16 %v1305
    %v5262 = vunpack.c.h.b16 %v1305
    %v5263 = vunpack.c.l.b16 %v1306
    %v5264 = vunpack.c.h.b16 %v1306
    %v5265 = vunpack.c.l.b16 %v1307
    %v5266 = vunpack.c.h.b16 %v1307
    %v5267 = vunpack.c.l.b16 %v1308
    %v5268 = vunpack.c.h.b16 %v1308
    %v5269 = vunpack.c.l.b16 %v1309
    %v5270 = vunpack.c.h.b16 %v1309
    %v5271 = vunpack.c.l.b16 %v1310
    %v5272 = vunpack.c.h.b16 %v1310
    %v5273 = vunpack.c.l.b16 %v1311
    %v5274 = vunpack.c.h.b16 %v1311
    %v5275 = vunpack.c.l.b16 %v1312
    %v5276 = vunpack.c.h.b16 %v1312
    %v5277 = vunpack.c.l.b16 %v1313
    %v5278 = vunpack.c.h.b16 %v1313
    %v5279 = vunpack.c.l.b16 %v1314
    %v5280 = vunpack.c.h.b16 %v1314
    %v5281 = vunpack.c.l.b16 %v1315
    %v5282 = vunpack.c.h.b16 %v1315
    %v5283 = vunpack.c.l.b16 %v1316
    %v5284 = vunpack.c.h.b16 %v1316
    %v5285 = vunpack.c.l.b16 %v1317
    %v5286 = vunpack.c.h.b16 %v1317
    %v5287 = vunpack.c.l.b16 %v1318
    %v5288 = vunpack.c.h.b16 %v1318
    %v5289 = vunpack.c.l.b16 %v1319
    %v5290 = vunpack.c.h.b16 %v1319
    %v5291 = vunpack.c.l.b16 %v1320
    %v5292 = vunpack.c.h.b16 %v1320
    %v5293 = vunpack.c.l.b16 %v1321
    %v5294 = vunpack.c.h.b16 %v1321
    %v5295 = vunpack.c.l.b16 %v1322
    %v5296 = vunpack.c.h.b16 %v1322
    %v5297 = vunpack.c.l.b16 %v1323
    %v5298 = vunpack.c.h.b16 %v1323
    %v5299 = vunpack.c.l.b16 %v1324
    %v5300 = vunpack.c.h.b16 %v1324
    %v5301 = vunpack.c.l.b16 %v1325
    %v5302 = vunpack.c.h.b16 %v1325
    %v5303 = vunpack.c.l.b16 %v1326
    %v5304 = vunpack.c.h.b16 %v1326
    %v5305 = vunpack.c.l.b16 %v1327
    %v5306 = vunpack.c.h.b16 %v1327
    %v5307 = vunpack.c.l.b16 %v1328
    %v5308 = vunpack.c.h.b16 %v1328
    %v5309 = vunpack.c.l.b16 %v1329
    %v5310 = vunpack.c.h.b16 %v1329
    %v5311 = vunpack.c.l.b16 %v1330
    %v5312 = vunpack.c.h.b16 %v1330
    %v5313 = vunpack.c.l.b16 %v1331
    %v5314 = vunpack.c.h.b16 %v1331
    %v5315 = vunpack.c.l.b16 %v1332
    %v5316 = vunpack.c.h.b16 %v1332
    %v5317 = vunpack.c.l.b16 %v1333
    %v5318 = vunpack.c.h.b16 %v1333
    %v5319 = vunpack.c.l.b16 %v1334
    %v5320 = vunpack.c.h.b16 %v1334
    %v5321 = vunpack.c.l.b16 %v1335
    %v5322 = vunpack.c.h.b16 %v1335
    %v5323 = vunpack.c.l.b16 %v1336
    %v5324 = vunpack.c.h.b16 %v1336
    %v5325 = vunpack.c.l.b16 %v1337
    %v5326 = vunpack.c.h.b16 %v1337
    %v5327 = vunpack.c.l.b16 %v1338
    %v5328 = vunpack.c.h.b16 %v1338
    %v5329 = vunpack.c.l.b16 %v1339
    %v5330 = vunpack.c.h.b16 %v1339
    %v5331 = vunpack.c.l.b16 %v1340
    %v5332 = vunpack.c.h.b16 %v1340
    %v5333 = vunpack.c.l.b16 %v1341
    %v5334 = vunpack.c.h.b16 %v1341
    %v5335 = vunpack.c.l.b16 %v1342
    %v5336 = vunpack.c.h.b16 %v1342
    %v5337 = vunpack.c.l.b16 %v1343
    %v5338 = vunpack.c.h.b16 %v1343
    %v5339 = vunpack.c.l.b16 %v1344
    %v5340 = vunpack.c.h.b16 %v1344
    %v5341 = vunpack.c.l.b16 %v1345
    %v5342 = vunpack.c.h.b16 %v1345
    %v5343 = vunpack.c.l.b16 %v1346
    %v5344 = vunpack.c.h.b16 %v1346
    %v5345 = vunpack.c.l.b16 %v1347
    %v5346 = vunpack.c.h.b16 %v1347
    %v5347 = vunpack.c.l.b16 %v1348
    %v5348 = vunpack.c.h.b16 %v1348
    %v5349 = vunpack.c.l.b16 %v1349
    %v5350 = vunpack.c.h.b16 %v1349
    %v5351 = vunpack.c.l.b16 %v1350
    %v5352 = vunpack.c.h.b16 %v1350
    %v5353 = vunpack.c.l.b16 %v1351
    %v5354 = vunpack.c.h.b16 %v1351
    %v5355 = vunpack.c.l.b16 %v1352
    %v5356 = vunpack.c.h.b16 %v1352
    %v5357 = vunpack.c.l.b16 %v1353
    %v5358 = vunpack.c.h.b16 %v1353
    %v5359 = vunpack.c.l.b16 %v1354
    %v5360 = vunpack.c.h.b16 %v1354
    %v5361 = vunpack.c.l.b16 %v1355
    %v5362 = vunpack.c.h.b16 %v1355
    %v5363 = vunpack.c.l.b16 %v1356
    %v5364 = vunpack.c.h.b16 %v1356
    %v5365 = vunpack.c.l.b16 %v1357
    %v5366 = vunpack.c.h.b16 %v1357
    %v5367 = vunpack.c.l.b16 %v1358
    %v5368 = vunpack.c.h.b16 %v1358
    %v5369 = vunpack.c.l.b16 %v1359
    %v5370 = vunpack.c.h.b16 %v1359
    %v5371 = vunpack.c.l.b16 %v1360
    %v5372 = vunpack.c.h.b16 %v1360
    %v5373 = vunpack.c.l.b16 %v1361
    %v5374 = vunpack.c.h.b16 %v1361
    %v5375 = vunpack.c.l.b16 %v1362
    %v5376 = vunpack.c.h.b16 %v1362
    %v5377 = vunpack.c.l.b16 %v1363
    %v5378 = vunpack.c.h.b16 %v1363
    %v5379 = vunpack.c.l.b16 %v1364
    %v5380 = vunpack.c.h.b16 %v1364
    %v5381 = vunpack.c.l.b16 %v1365
    %v5382 = vunpack.c.h.b16 %v1365
    %v5383 = vunpack.c.l.b16 %v1366
    %v5384 = vunpack.c.h.b16 %v1366
    %v5385 = vunpack.c.l.b16 %v1367
    %v5386 = vunpack.c.h.b16 %v1367
    %v5387 = vunpack.c.l.b16 %v1368
    %v5388 = vunpack.c.h.b16 %v1368
    %v5389 = vunpack.c.l.b16 %v1369
    %v5390 = vunpack.c.h.b16 %v1369
    %v5391 = vunpack.c.l.b16 %v1370
    %v5392 = vunpack.c.h.b16 %v1370
    %v5393 = vunpack.c.l.b16 %v1371
    %v5394 = vunpack.c.h.b16 %v1371
    %v5395 = vunpack.c.l.b16 %v1372
    %v5396 = vunpack.c.h.b16 %v1372
    %v5397 = vunpack.c.l.b16 %v1373
    %v5398 = vunpack.c.h.b16 %v1373
    %v5399 = vunpack.c.l.b16 %v1374
    %v5400 = vunpack.c.h.b16 %v1374
    %v5401 = vunpack.c.l.b16 %v1375
    %v5402 = vunpack.c.h.b16 %v1375
    %v5403 = vunpack.c.l.b16 %v1376
    %v5404 = vunpack.c.h.b16 %v1376
    %v5405 = vunpack.c.l.b16 %v1377
    %v5406 = vunpack.c.h.b16 %v1377
    %v5407 = vunpack.c.l.b16 %v1378
    %v5408 = vunpack.c.h.b16 %v1378
    %v5409 = vunpack.c.l.b16 %v1379
    %v5410 = vunpack.c.h.b16 %v1379
    %v5411 = vunpack.c.l.b16 %v1380
    %v5412 = vunpack.c.h.b16 %v1380
    %v5413 = vunpack.c.l.b16 %v1381
    %v5414 = vunpack.c.h.b16 %v1381
    %v5415 = vunpack.c.l.b16 %v1382
    %v5416 = vunpack.c.h.b16 %v1382
    %v5417 = vunpack.c.l.b16 %v1383
    %v5418 = vunpack.c.h.b16 %v1383
    %v5419 = vpack.c.b16 %v2899, %v2891
    %v5420 = vpack.c.b16 %v2900, %v2892
    %v5421 = vpack.c.b16 %v2901, %v2893
    %v5422 = vpack.c.b16 %v2902, %v2894
    %v5423 = vpack.c.b16 %v2903, %v2895
    %v5424 = vpack.c.b16 %v2904, %v2896
    %v5425 = vpack.c.b16 %v2905, %v2897
    %v5426 = vpack.c.b16 %v2906, %v2898
    %v5427 = vpack.c.b16 %v2915, %v2907
    %v5428 = vpack.c.b16 %v2916, %v2908
    %v5429 = vpack.c.b16 %v2917, %v2909
    %v5430 = vpack.c.b16 %v2918, %v2910
    %v5431 = vpack.c.b16 %v2919, %v2911
    %v5432 = vpack.c.b16 %v2920, %v2912
    %v5433 = vpack.c.b16 %v2921, %v2913
    %v5434 = vpack.c.b16 %v2922, %v2914
    %v5435 = vpack.c.b16 %v2931, %v2923
    %v5436 = vpack.c.b16 %v2932, %v2924
    %v5437 = vpack.c.b16 %v2933, %v2925
    %v5438 = vpack.c.b16 %v2934, %v2926
    %v5439 = vpack.c.b16 %v2935, %v2927
    %v5440 = vpack.c.b16 %v2936, %v2928
    %v5441 = vpack.c.b16 %v2937, %v2929
    %v5442 = vpack.c.b16 %v2938, %v2930
    %v5443 = vpack.c.b16 %v2947, %v2939
    %v5444 = vpack.c.b16 %v2948, %v2940
    %v5445 = vpack.c.b16 %v2949, %v2941
    %v5446 = vpack.c.b16 %v2950, %v2942
    %v5447 = vpack.c.b16 %v2951, %v2943
    %v5448 = vpack.c.b16 %v2952, %v2944
    %v5449 = vpack.c.b16 %v2953, %v2945
    %v5450 = vpack.c.b16 %v2954, %v2946
    %v5451 = vpack.c.b16 %v2963, %v2955
    %v5452 = vpack.c.b16 %v2964, %v2956
    %v5453 = vpack.c.b16 %v2965, %v2957
    %v5454 = vpack.c.b16 %v2966, %v2958
    %v5455 = vpack.c.b16 %v2967, %v2959
    %v5456 = vpack.c.b16 %v2968, %v2960
    %v5457 = vpack.c.b16 %v2969, %v2961
    %v5458 = vpack.c.b16 %v2970, %v2962
    %v5459 = vpack.c.b16 %v2979, %v2971
    %v5460 = vpack.c.b16 %v2980, %v2972
    %v5461 = vpack.c.b16 %v2981, %v2973
    %v5462 = vpack.c.b16 %v2982, %v2974
    %v5463 = vpack.c.b16 %v2983, %v2975
    %v5464 = vpack.c.b16 %v2984, %v2976
    %v5465 = vpack.c.b16 %v2985, %v2977
    %v5466 = vpack.c.b16 %v2986, %v2978
    %v5467 = vpack.c.b16 %v2995, %v2987
    %v5468 = vpack.c.b16 %v2996, %v2988
    %v5469 = vpack.c.b16 %v2997, %v2989
    %v5470 = vpack.c.b16 %v2998, %v2990
    %v5471 = vpack.c.b16 %v2999, %v2991
    %v5472 = vpack.c.b16 %v3000, %v2992
    %v5473 = vpack.c.b16 %v3001, %v2993
    %v5474 = vpack.c.b16 %v3002, %v2994
    %v5475 = vpack.c.b16 %v3011, %v3003
    %v5476 = vpack.c.b16 %v3012, %v3004
    %v5477 = vpack.c.b16 %v3013, %v3005
    %v5478 = vpack.c.b16 %v3014, %v3006
    %v5479 = vpack.c.b16 %v3015, %v3007
    %v5480 = vpack.c.b16 %v3016, %v3008
    %v5481 = vpack.c.b16 %v3017, %v3009
    %v5482 = vpack.c.b16 %v3018, %v3010
    %v5483 = vpack.c.b16 %v3027, %v3019
    %v5484 = vpack.c.b16 %v3028, %v3020
    %v5485 = vpack.c.b16 %v3029, %v3021
    %v5486 = vpack.c.b16 %v3030, %v3022
    %v5487 = vpack.c.b16 %v3031, %v3023
    %v5488 = vpack.c.b16 %v3032, %v3024
    %v5489 = vpack.c.b16 %v3033, %v3025
    %v5490 = vpack.c.b16 %v3034, %v3026
    %v5491 = vpack.c.b16 %v3043, %v3035
    %v5492 = vpack.c.b16 %v3044, %v3036
    %v5493 = vpack.c.b16 %v3045, %v3037
    %v5494 = vpack.c.b16 %v3046, %v3038
    %v5495 = vpack.c.b16 %v3047, %v3039
    %v5496 = vpack.c.b16 %v3048, %v3040
    %v5497 = vpack.c.b16 %v3049, %v3041
    %v5498 = vpack.c.b16 %v3050, %v3042
    %v5499 = vpack.c.b16 %v3059, %v3051
    %v5500 = vpack.c.b16 %v3060, %v3052
    %v5501 = vpack.c.b16 %v3061, %v3053
    %v5502 = vpack.c.b16 %v3062, %v3054
    %v5503 = vpack.c.b16 %v3063, %v3055
    %v5504 = vpack.c.b16 %v3064, %v3056
    %v5505 = vpack.c.b16 %v3065, %v3057
    %v5506 = vpack.c.b16 %v3066, %v3058
    %v5507 = vpack.c.b16 %v3075, %v3067
    %v5508 = vpack.c.b16 %v3076, %v3068
    %v5509 = vpack.c.b16 %v3077, %v3069
    %v5510 = vpack.c.b16 %v3078, %v3070
    %v5511 = vpack.c.b16 %v3079, %v3071
    %v5512 = vpack.c.b16 %v3080, %v3072
    %v5513 = vpack.c.b16 %v3081, %v3073
    %v5514 = vpack.c.b16 %v3082, %v3074
    %v5515 = vpack.c.b16 %v3091, %v3083
    %v5516 = vpack.c.b16 %v3092, %v3084
    %v5517 = vpack.c.b16 %v3093, %v3085
    %v5518 = vpack.c.b16 %v3094, %v3086
    %v5519 = vpack.c.b16 %v3095, %v3087
    %v5520 = vpack.c.b16 %v3096, %v3088
    %v5521 = vpack.c.b16 %v3097, %v3089
    %v5522 = vpack.c.b16 %v3098, %v3090
    %v5523 = vpack.c.b16 %v3107, %v3099
    %v5524 = vpack.c.b16 %v3108, %v3100
    %v5525 = vpack.c.b16 %v3109, %v3101
    %v5526 = vpack.c.b16 %v3110, %v3102
    %v5527 = vpack.c.b16 %v3111, %v3103
    %v5528 = vpack.c.b16 %v3112, %v3104
    %v5529 = vpack.c.b16 %v3113, %v3105
    %v5530 = vpack.c.b16 %v3114, %v3106
    %v5531 = vpack.c.b16 %v3123, %v3115
    %v5532 = vpack.c.b16 %v3124, %v3116
    %v5533 = vpack.c.b16 %v3125, %v3117
    %v5534 = vpack.c.b16 %v3126, %v3118
    %v5535 = vpack.c.b16 %v3127, %v3119
    %v5536 = vpack.c.b16 %v3128, %v3120
    %v5537 = vpack.c.b16 %v3129, %v3121
    %v5538 = vpack.c.b16 %v3130, %v3122
    %v5539 = vpack.c.b16 %v3139, %v3131
    %v5540 = vpack.c.b16 %v3140, %v3132
    %v5541 = vpack.c.b16 %v3141, %v3133
    %v5542 = vpack.c.b16 %v3142, %v3134
    %v5543 = vpack.c.b16 %v3143, %v3135
    %v5544 = vpack.c.b16 %v3144, %v3136
    %v5545 = vpack.c.b16 %v3145, %v3137
    %v5546 = vpack.c.b16 %v3146, %v3138
    %v5547 = vpack.c.b16 %v3155, %v3147
    %v5548 = vpack.c.b16 %v3156, %v3148
    %v5549 = vpack.c.b16 %v3157, %v3149
    %v5550 = vpack.c.b16 %v3158, %v3150
    %v5551 = vpack.c.b16 %v3159, %v3151
    %v5552 = vpack.c.b16 %v3160, %v3152
    %v5553 = vpack.c.b16 %v3161, %v3153
    %v5554 = vpack.c.b16 %v3162, %v3154
    %v5555 = vpack.c.b16 %v3171, %v3163
    %v5556 = vpack.c.b16 %v3172, %v3164
    %v5557 = vpack.c.b16 %v3173, %v3165
    %v5558 = vpack.c.b16 %v3174, %v3166
    %v5559 = vpack.c.b16 %v3175, %v3167
    %v5560 = vpack.c.b16 %v3176, %v3168
    %v5561 = vpack.c.b16 %v3177, %v3169
    %v5562 = vpack.c.b16 %v3178, %v3170
    %v5563 = vpack.c.b16 %v3187, %v3179
    %v5564 = vpack.c.b16 %v3188, %v3180
    %v5565 = vpack.c.b16 %v3189, %v3181
    %v5566 = vpack.c.b16 %v3190, %v3182
    %v5567 = vpack.c.b16 %v3191, %v3183
    %v5568 = vpack.c.b16 %v3192, %v3184
    %v5569 = vpack.c.b16 %v3193, %v3185
    %v5570 = vpack.c.b16 %v3194, %v3186
    %v5571 = vpack.c.b16 %v3203, %v3195
    %v5572 = vpack.c.b16 %v3204, %v3196
    %v5573 = vpack.c.b16 %v3205, %v3197
    %v5574 = vpack.c.b16 %v3206, %v3198
    %v5575 = vpack.c.b16 %v3207, %v3199
    %v5576 = vpack.c.b16 %v3208, %v3200
    %v5577 = vpack.c.b16 %v3209, %v3201
    %v5578 = vpack.c.b16 %v3210, %v3202
    %v5579 = vpack.c.b16 %v3219, %v3211
    %v5580 = vpack.c.b16 %v3220, %v3212
    %v5581 = vpack.c.b16 %v3221, %v3213
    %v5582 = vpack.c.b16 %v3222, %v3214
    %v5583 = vpack.c.b16 %v3223, %v3215
    %v5584 = vpack.c.b16 %v3224, %v3216
    %v5585 = vpack.c.b16 %v3225, %v3217
    %v5586 = vpack.c.b16 %v3226, %v3218
    %v5587 = vpack.c.b16 %v3235, %v3227
    %v5588 = vpack.c.b16 %v3236, %v3228
    %v5589 = vpack.c.b16 %v3237, %v3229
    %v5590 = vpack.c.b16 %v3238, %v3230
    %v5591 = vpack.c.b16 %v3239, %v3231
    %v5592 = vpack.c.b16 %v3240, %v3232
    %v5593 = vpack.c.b16 %v3241, %v3233
    %v5594 = vpack.c.b16 %v3242, %v3234
    %v5595 = vpack.c.b16 %v3251, %v3243
    %v5596 = vpack.c.b16 %v3252, %v3244
    %v5597 = vpack.c.b16 %v3253, %v3245
    %v5598 = vpack.c.b16 %v3254, %v3246
    %v5599 = vpack.c.b16 %v3255, %v3247
    %v5600 = vpack.c.b16 %v3256, %v3248
    %v5601 = vpack.c.b16 %v3257, %v3249
    %v5602 = vpack.c.b16 %v3258, %v3250
    %v5603 = vpack.c.b16 %v3267, %v3259
    %v5604 = vpack.c.b16 %v3268, %v3260
    %v5605 = vpack.c.b16 %v3269, %v3261
    %v5606 = vpack.c.b16 %v3270, %v3262
    %v5607 = vpack.c.b16 %v3271, %v3263
    %v5608 = vpack.c.b16 %v3272, %v3264
    %v5609 = vpack.c.b16 %v3273, %v3265
    %v5610 = vpack.c.b16 %v3274, %v3266
    %v5611 = vpack.c.b16 %v3283, %v3275
    %v5612 = vpack.c.b16 %v3284, %v3276
    %v5613 = vpack.c.b16 %v3285, %v3277
    %v5614 = vpack.c.b16 %v3286, %v3278
    %v5615 = vpack.c.b16 %v3287, %v3279
    %v5616 = vpack.c.b16 %v3288, %v3280
    %v5617 = vpack.c.b16 %v3289, %v3281
    %v5618 = vpack.c.b16 %v3290, %v3282
    %v5619 = vpack.c.b16 %v3299, %v3291
    %v5620 = vpack.c.b16 %v3300, %v3292
    %v5621 = vpack.c.b16 %v3301, %v3293
    %v5622 = vpack.c.b16 %v3302, %v3294
    %v5623 = vpack.c.b16 %v3303, %v3295
    %v5624 = vpack.c.b16 %v3304, %v3296
    %v5625 = vpack.c.b16 %v3305, %v3297
    %v5626 = vpack.c.b16 %v3306, %v3298
    %v5627 = vpack.c.b16 %v3315, %v3307
    %v5628 = vpack.c.b16 %v3316, %v3308
    %v5629 = vpack.c.b16 %v3317, %v3309
    %v5630 = vpack.c.b16 %v3318, %v3310
    %v5631 = vpack.c.b16 %v3319, %v3311
    %v5632 = vpack.c.b16 %v3320, %v3312
    %v5633 = vpack.c.b16 %v3321, %v3313
    %v5634 = vpack.c.b16 %v3322, %v3314
    %v5635 = vpack.c.b16 %v3331, %v3323
    %v5636 = vpack.c.b16 %v3332, %v3324
    %v5637 = vpack.c.b16 %v3333, %v3325
    %v5638 = vpack.c.b16 %v3334, %v3326
    %v5639 = vpack.c.b16 %v3335, %v3327
    %v5640 = vpack.c.b16 %v3336, %v3328
    %v5641 = vpack.c.b16 %v3337, %v3329
    %v5642 = vpack.c.b16 %v3338, %v3330
    %v5643 = vpack.c.b16 %v3347, %v3339
    %v5644 = vpack.c.b16 %v3348, %v3340
    %v5645 = vpack.c.b16 %v3349, %v3341
    %v5646 = vpack.c.b16 %v3350, %v3342
    %v5647 = vpack.c.b16 %v3351, %v3343
    %v5648 = vpack.c.b16 %v3352, %v3344
    %v5649 = vpack.c.b16 %v3353, %v3345
    %v5650 = vpack.c.b16 %v3354, %v3346
    %v5651 = vpack.c.b16 %v3363, %v3355
    %v5652 = vpack.c.b16 %v3364, %v3356
    %v5653 = vpack.c.b16 %v3365, %v3357
    %v5654 = vpack.c.b16 %v3366, %v3358
    %v5655 = vpack.c.b16 %v3367, %v3359
    %v5656 = vpack.c.b16 %v3368, %v3360
    %v5657 = vpack.c.b16 %v3369, %v3361
    %v5658 = vpack.c.b16 %v3370, %v3362
    %v5659 = vpack.c.b16 %v3379, %v3371
    %v5660 = vpack.c.b16 %v3380, %v3372
    %v5661 = vpack.c.b16 %v3381, %v3373
    %v5662 = vpack.c.b16 %v3382, %v3374
    %v5663 = vpack.c.b16 %v3383, %v3375
    %v5664 = vpack.c.b16 %v3384, %v3376
    %v5665 = vpack.c.b16 %v3385, %v3377
    %v5666 = vpack.c.b16 %v3386, %v3378
    %v5667 = vpack.c.b16 %v3395, %v3387
    %v5668 = vpack.c.b16 %v3396, %v3388
    %v5669 = vpack.c.b16 %v3397, %v3389
    %v5670 = vpack.c.b16 %v3398, %v3390
    %v5671 = vpack.c.b16 %v3399, %v3391
    %v5672 = vpack.c.b16 %v3400, %v3392
    %v5673 = vpack.c.b16 %v3401, %v3393
    %v5674 = vpack.c.b16 %v3402, %v3394
    %v5675 = vpack.c.b16 %v3411, %v3403
    %v5676 = vpack.c.b16 %v3412, %v3404
    %v5677 = vpack.c.b16 %v3413, %v3405
    %v5678 = vpack.c.b16 %v3414, %v3406
    %v5679 = vpack.c.b16 %v3415, %v3407
    %v5680 = vpack.c.b16 %v3416, %v3408
    %v5681 = vpack.c.b16 %v3417, %v3409
    %v5682 = vpack.c.b16 %v3418, %v3410
    %v5683 = vpack.c.b16 %v3427, %v3419
    %v5684 = vpack.c.b16 %v3428, %v3420
    %v5685 = vpack.c.b16 %v3429, %v3421
    %v5686 = vpack.c.b16 %v3430, %v3422
    %v5687 = vpack.c.b16 %v3431, %v3423
    %v5688 = vpack.c.b16 %v3432, %v3424
    %v5689 = vpack.c.b16 %v3433, %v3425
    %v5690 = vpack.c.b16 %v3434, %v3426
    %v5691 = vpack.c.b16 %v3443, %v3435
    %v5692 = vpack.c.b16 %v3444, %v3436
    %v5693 = vpack.c.b16 %v3445, %v3437
    %v5694 = vpack.c.b16 %v3446, %v3438
    %v5695 = vpack.c.b16 %v3447, %v3439
    %v5696 = vpack.c.b16 %v3448, %v3440
    %v5697 = vpack.c.b16 %v3449, %v3441
    %v5698 = vpack.c.b16 %v3450, %v3442
    %v5699 = vpack.c.b16 %v3459, %v3451
    %v5700 = vpack.c.b16 %v3460, %v3452
    %v5701 = vpack.c.b16 %v3461, %v3453
    %v5702 = vpack.c.b16 %v3462, %v3454
    %v5703 = vpack.c.b16 %v3463, %v3455
    %v5704 = vpack.c.b16 %v3464, %v3456
    %v5705 = vpack.c.b16 %v3465, %v3457
    %v5706 = vpack.c.b16 %v3466, %v3458
    %v5707 = vpack.c.b16 %v3475, %v3467
    %v5708 = vpack.c.b16 %v3476, %v3468
    %v5709 = vpack.c.b16 %v3477, %v3469
    %v5710 = vpack.c.b16 %v3478, %v3470
    %v5711 = vpack.c.b16 %v3479, %v3471
    %v5712 = vpack.c.b16 %v3480, %v3472
    %v5713 = vpack.c.b16 %v3481, %v3473
    %v5714 = vpack.c.b16 %v3482, %v3474
    %v5715 = vpack.c.b16 %v3491, %v3483
    %v5716 = vpack.c.b16 %v3492, %v3484
    %v5717 = vpack.c.b16 %v3493, %v3485
    %v5718 = vpack.c.b16 %v3494, %v3486
    %v5719 = vpack.c.b16 %v3495, %v3487
    %v5720 = vpack.c.b16 %v3496, %v3488
    %v5721 = vpack.c.b16 %v3497, %v3489
    %v5722 = vpack.c.b16 %v3498, %v3490
    %v5723 = vpack.c.b16 %v3507, %v3499
    %v5724 = vpack.c.b16 %v3508, %v3500
    %v5725 = vpack.c.b16 %v3509, %v3501
    %v5726 = vpack.c.b16 %v3510, %v3502
    %v5727 = vpack.c.b16 %v3511, %v3503
    %v5728 = vpack.c.b16 %v3512, %v3504
    %v5729 = vpack.c.b16 %v3513, %v3505
    %v5730 = vpack.c.b16 %v3514, %v3506
    %v5731 = vpack.c.b16 %v3523, %v3515
    %v5732 = vpack.c.b16 %v3524, %v3516
    %v5733 = vpack.c.b16 %v3525, %v3517
    %v5734 = vpack.c.b16 %v3526, %v3518
    %v5735 = vpack.c.b16 %v3527, %v3519
    %v5736 = vpack.c.b16 %v3528, %v3520
    %v5737 = vpack.c.b16 %v3529, %v3521
    %v5738 = vpack.c.b16 %v3530, %v3522
    %v5739 = vpack.c.b16 %v3539, %v3531
    %v5740 = vpack.c.b16 %v3540, %v3532
    %v5741 = vpack.c.b16 %v3541, %v3533
    %v5742 = vpack.c.b16 %v3542, %v3534
    %v5743 = vpack.c.b16 %v3543, %v3535
    %v5744 = vpack.c.b16 %v3544, %v3536
    %v5745 = vpack.c.b16 %v3545, %v3537
    %v5746 = vpack.c.b16 %v3546, %v3538
    %v5747 = vpack.c.b16 %v3555, %v3547
    %v5748 = vpack.c.b16 %v3556, %v3548
    %v5749 = vpack.c.b16 %v3557, %v3549
    %v5750 = vpack.c.b16 %v3558, %v3550
    %v5751 = vpack.c.b16 %v3559, %v3551
    %v5752 = vpack.c.b16 %v3560, %v3552
    %v5753 = vpack.c.b16 %v3561, %v3553
    %v5754 = vpack.c.b16 %v3562, %v3554
    %v5755 = vpack.c.b16 %v3571, %v3563
    %v5756 = vpack.c.b16 %v3572, %v3564
    %v5757 = vpack.c.b16 %v3573, %v3565
    %v5758 = vpack.c.b16 %v3574, %v3566
    %v5759 = vpack.c.b16 %v3575, %v3567
    %v5760 = vpack.c.b16 %v3576, %v3568
    %v5761 = vpack.c.b16 %v3577, %v3569
    %v5762 = vpack.c.b16 %v3578, %v3570
    %v5763 = vpack.c.b16 %v3587, %v3579
    %v5764 = vpack.c.b16 %v3588, %v3580
    %v5765 = vpack.c.b16 %v3589, %v3581
    %v5766 = vpack.c.b16 %v3590, %v3582
    %v5767 = vpack.c.b16 %v3591, %v3583
    %v5768 = vpack.c.b16 %v3592, %v3584
    %v5769 = vpack.c.b16 %v3593, %v3585
    %v5770 = vpack.c.b16 %v3594, %v3586
    %v5771 = vpack.c.b16 %v3603, %v3595
    %v5772 = vpack.c.b16 %v3604, %v3596
    %v5773 = vpack.c.b16 %v3605, %v3597
    %v5774 = vpack.c.b16 %v3606, %v3598
    %v5775 = vpack.c.b16 %v3607, %v3599
    %v5776 = vpack.c.b16 %v3608, %v3600
    %v5777 = vpack.c.b16 %v3609, %v3601
    %v5778 = vpack.c.b16 %v3610, %v3602
    %v5779 = vpack.c.b16 %v3619, %v3611
    %v5780 = vpack.c.b16 %v3620, %v3612
    %v5781 = vpack.c.b16 %v3621, %v3613
    %v5782 = vpack.c.b16 %v3622, %v3614
    %v5783 = vpack.c.b16 %v3623, %v3615
    %v5784 = vpack.c.b16 %v3624, %v3616
    %v5785 = vpack.c.b16 %v3625, %v3617
    %v5786 = vpack.c.b16 %v3626, %v3618
    %v5787 = vpack.c.b16 %v3635, %v3627
    %v5788 = vpack.c.b16 %v3636, %v3628
    %v5789 = vpack.c.b16 %v3637, %v3629
    %v5790 = vpack.c.b16 %v3638, %v3630
    %v5791 = vpack.c.b16 %v3639, %v3631
    %v5792 = vpack.c.b16 %v3640, %v3632
    %v5793 = vpack.c.b16 %v3641, %v3633
    %v5794 = vpack.c.b16 %v3642, %v3634
    %v5795 = vpack.c.b16 %v3651, %v3643
    %v5796 = vpack.c.b16 %v3652, %v3644
    %v5797 = vpack.c.b16 %v3653, %v3645
    %v5798 = vpack.c.b16 %v3654, %v3646
    %v5799 = vpack.c.b16 %v3655, %v3647
    %v5800 = vpack.c.b16 %v3656, %v3648
    %v5801 = vpack.c.b16 %v3657, %v3649
    %v5802 = vpack.c.b16 %v3658, %v3650
    %v5803 = vpack.c.b16 %v3667, %v3659
    %v5804 = vpack.c.b16 %v3668, %v3660
    %v5805 = vpack.c.b16 %v3669, %v3661
    %v5806 = vpack.c.b16 %v3670, %v3662
    %v5807 = vpack.c.b16 %v3671, %v3663
    %v5808 = vpack.c.b16 %v3672, %v3664
    %v5809 = vpack.c.b16 %v3673, %v3665
    %v5810 = vpack.c.b16 %v3674, %v3666
    %v5811 = vpack.c.b16 %v3683, %v3675
    %v5812 = vpack.c.b16 %v3684, %v3676
    %v5813 = vpack.c.b16 %v3685, %v3677
    %v5814 = vpack.c.b16 %v3686, %v3678
    %v5815 = vpack.c.b16 %v3687, %v3679
    %v5816 = vpack.c.b16 %v3688, %v3680
    %v5817 = vpack.c.b16 %v3689, %v3681
    %v5818 = vpack.c.b16 %v3690, %v3682
    %v5819 = vpack.c.b16 %v3699, %v3691
    %v5820 = vpack.c.b16 %v3700, %v3692
    %v5821 = vpack.c.b16 %v3701, %v3693
    %v5822 = vpack.c.b16 %v3702, %v3694
    %v5823 = vpack.c.b16 %v3703, %v3695
    %v5824 = vpack.c.b16 %v3704, %v3696
    %v5825 = vpack.c.b16 %v3705, %v3697
    %v5826 = vpack.c.b16 %v3706, %v3698
    %v5827 = vpack.c.b16 %v3715, %v3707
    %v5828 = vpack.c.b16 %v3716, %v3708
    %v5829 = vpack.c.b16 %v3717, %v3709
    %v5830 = vpack.c.b16 %v3718, %v3710
    %v5831 = vpack.c.b16 %v3719, %v3711
    %v5832 = vpack.c.b16 %v3720, %v3712
    %v5833 = vpack.c.b16 %v3721, %v3713
    %v5834 = vpack.c.b16 %v3722, %v3714
    %v5835 = vpack.c.b16 %v3731, %v3723
    %v5836 = vpack.c.b16 %v3732, %v3724
    %v5837 = vpack.c.b16 %v3733, %v3725
    %v5838 = vpack.c.b16 %v3734, %v3726
    %v5839 = vpack.c.b16 %v3735, %v3727
    %v5840 = vpack.c.b16 %v3736, %v3728
    %v5841 = vpack.c.b16 %v3737, %v3729
    %v5842 = vpack.c.b16 %v3738, %v3730
    %v5843 = vpack.c.b16 %v3747, %v3739
    %v5844 = vpack.c.b16 %v3748, %v3740
    %v5845 = vpack.c.b16 %v3749, %v3741
    %v5846 = vpack.c.b16 %v3750, %v3742
    %v5847 = vpack.c.b16 %v3751, %v3743
    %v5848 = vpack.c.b16 %v3752, %v3744
    %v5849 = vpack.c.b16 %v3753, %v3745
    %v5850 = vpack.c.b16 %v3754, %v3746
    %v5851 = vpack.c.b16 %v3763, %v3755
    %v5852 = vpack.c.b16 %v3764, %v3756
    %v5853 = vpack.c.b16 %v3765, %v3757
    %v5854 = vpack.c.b16 %v3766, %v3758
    %v5855 = vpack.c.b16 %v3767, %v3759
    %v5856 = vpack.c.b16 %v3768, %v3760
    %v5857 = vpack.c.b16 %v3769, %v3761
    %v5858 = vpack.c.b16 %v3770, %v3762
    %v5859 = vpack.c.b16 %v3779, %v3771
    %v5860 = vpack.c.b16 %v3780, %v3772
    %v5861 = vpack.c.b16 %v3781, %v3773
    %v5862 = vpack.c.b16 %v3782, %v3774
    %v5863 = vpack.c.b16 %v3783, %v3775
    %v5864 = vpack.c.b16 %v3784, %v3776
    %v5865 = vpack.c.b16 %v3785, %v3777
    %v5866 = vpack.c.b16 %v3786, %v3778
    %v5867 = vpack.c.b16 %v3795, %v3787
    %v5868 = vpack.c.b16 %v3796, %v3788
    %v5869 = vpack.c.b16 %v3797, %v3789
    %v5870 = vpack.c.b16 %v3798, %v3790
    %v5871 = vpack.c.b16 %v3799, %v3791
    %v5872 = vpack.c.b16 %v3800, %v3792
    %v5873 = vpack.c.b16 %v3801, %v3793
    %v5874 = vpack.c.b16 %v3802, %v3794
    %v5875 = vpack.c.b16 %v3811, %v3803
    %v5876 = vpack.c.b16 %v3812, %v3804
    %v5877 = vpack.c.b16 %v3813, %v3805
    %v5878 = vpack.c.b16 %v3814, %v3806
    %v5879 = vpack.c.b16 %v3815, %v3807
    %v5880 = vpack.c.b16 %v3816, %v3808
    %v5881 = vpack.c.b16 %v3817, %v3809
    %v5882 = vpack.c.b16 %v3818, %v3810
    %v5883 = vpack.c.b16 %v3827, %v3819
    %v5884 = vpack.c.b16 %v3828, %v3820
    %v5885 = vpack.c.b16 %v3829, %v3821
    %v5886 = vpack.c.b16 %v3830, %v3822
    %v5887 = vpack.c.b16 %v3831, %v3823
    %v5888 = vpack.c.b16 %v3832, %v3824
    %v5889 = vpack.c.b16 %v3833, %v3825
    %v5890 = vpack.c.b16 %v3834, %v3826
    %v5891 = vpack.c.b16 %v3843, %v3835
    %v5892 = vpack.c.b16 %v3844, %v3836
    %v5893 = vpack.c.b16 %v3845, %v3837
    %v5894 = vpack.c.b16 %v3846, %v3838
    %v5895 = vpack.c.b16 %v3847, %v3839
    %v5896 = vpack.c.b16 %v3848, %v3840
    %v5897 = vpack.c.b16 %v3849, %v3841
    %v5898 = vpack.c.b16 %v3850, %v3842
    %v5899 = vpack.c.b16 %v3859, %v3851
    %v5900 = vpack.c.b16 %v3860, %v3852
    %v5901 = vpack.c.b16 %v3861, %v3853
    %v5902 = vpack.c.b16 %v3862, %v3854
    %v5903 = vpack.c.b16 %v3863, %v3855
    %v5904 = vpack.c.b16 %v3864, %v3856
    %v5905 = vpack.c.b16 %v3865, %v3857
    %v5906 = vpack.c.b16 %v3866, %v3858
    %v5907 = vpack.c.b16 %v3875, %v3867
    %v5908 = vpack.c.b16 %v3876, %v3868
    %v5909 = vpack.c.b16 %v3877, %v3869
    %v5910 = vpack.c.b16 %v3878, %v3870
    %v5911 = vpack.c.b16 %v3879, %v3871
    %v5912 = vpack.c.b16 %v3880, %v3872
    %v5913 = vpack.c.b16 %v3881, %v3873
    %v5914 = vpack.c.b16 %v3882, %v3874
    %v5915 = vpack.c.b16 %v3891, %v3883
    %v5916 = vpack.c.b16 %v3892, %v3884
    %v5917 = vpack.c.b16 %v3893, %v3885
    %v5918 = vpack.c.b16 %v3894, %v3886
    %v5919 = vpack.c.b16 %v3895, %v3887
    %v5920 = vpack.c.b16 %v3896, %v3888
    %v5921 = vpack.c.b16 %v3897, %v3889
    %v5922 = vpack.c.b16 %v3898, %v3890
    %v5923 = vpack.c.b16 %v3907, %v3899
    %v5924 = vpack.c.b16 %v3908, %v3900
    %v5925 = vpack.c.b16 %v3909, %v3901
    %v5926 = vpack.c.b16 %v3910, %v3902
    %v5927 = vpack.c.b16 %v3911, %v3903
    %v5928 = vpack.c.b16 %v3912, %v3904
    %v5929 = vpack.c.b16 %v3913, %v3905
    %v5930 = vpack.c.b16 %v3914, %v3906
    %v5931 = vpack.c.b16 %v3923, %v3915
    %v5932 = vpack.c.b16 %v3924, %v3916
    %v5933 = vpack.c.b16 %v3925, %v3917
    %v5934 = vpack.c.b16 %v3926, %v3918
    %v5935 = vpack.c.b16 %v3927, %v3919
    %v5936 = vpack.c.b16 %v3928, %v3920
    %v5937 = vpack.c.b16 %v3929, %v3921
    %v5938 = vpack.c.b16 %v3930, %v3922
    %v5939 = vpack.c.b16 %v3939, %v3931
    %v5940 = vpack.c.b16 %v3940, %v3932
    %v5941 = vpack.c.b16 %v3941, %v3933
    %v5942 = vpack.c.b16 %v3942, %v3934
    %v5943 = vpack.c.b16 %v3943, %v3935
    %v5944 = vpack.c.b16 %v3944, %v3936
    %v5945 = vpack.c.b16 %v3945, %v3937
    %v5946 = vpack.c.b16 %v3946, %v3938
    %v5947 = vpack.c.b16 %v3955, %v3947
    %v5948 = vpack.c.b16 %v3956, %v3948
    %v5949 = vpack.c.b16 %v3957, %v3949
    %v5950 = vpack.c.b16 %v3958, %v3950
    %v5951 = vpack.c.b16 %v3959, %v3951
    %v5952 = vpack.c.b16 %v3960, %v3952
    %v5953 = vpack.c.b16 %v3961, %v3953
    %v5954 = vpack.c.b16 %v3962, %v3954
    %v5955 = vpack.c.b16 %v3971, %v3963
    %v5956 = vpack.c.b16 %v3972, %v3964
    %v5957 = vpack.c.b16 %v3973, %v3965
    %v5958 = vpack.c.b16 %v3974, %v3966
    %v5959 = vpack.c.b16 %v3975, %v3967
    %v5960 = vpack.c.b16 %v3976, %v3968
    %v5961 = vpack.c.b16 %v3977, %v3969
    %v5962 = vpack.c.b16 %v3978, %v3970
    %v5963 = vpack.c.b16 %v3987, %v3979
    %v5964 = vpack.c.b16 %v3988, %v3980
    %v5965 = vpack.c.b16 %v3989, %v3981
    %v5966 = vpack.c.b16 %v3990, %v3982
    %v5967 = vpack.c.b16 %v3991, %v3983
    %v5968 = vpack.c.b16 %v3992, %v3984
    %v5969 = vpack.c.b16 %v3993, %v3985
    %v5970 = vpack.c.b16 %v3994, %v3986
    %v5971 = vpack.c.b16 %v4003, %v3995
    %v5972 = vpack.c.b16 %v4004, %v3996
    %v5973 = vpack.c.b16 %v4005, %v3997
    %v5974 = vpack.c.b16 %v4006, %v3998
    %v5975 = vpack.c.b16 %v4007, %v3999
    %v5976 = vpack.c.b16 %v4008, %v4000
    %v5977 = vpack.c.b16 %v4009, %v4001
    %v5978 = vpack.c.b16 %v4010, %v4002
    %v5979 = vpack.c.b16 %v4019, %v4011
    %v5980 = vpack.c.b16 %v4020, %v4012
    %v5981 = vpack.c.b16 %v4021, %v4013
    %v5982 = vpack.c.b16 %v4022, %v4014
    %v5983 = vpack.c.b16 %v4023, %v4015
    %v5984 = vpack.c.b16 %v4024, %v4016
    %v5985 = vpack.c.b16 %v4025, %v4017
    %v5986 = vpack.c.b16 %v4026, %v4018
    %v5987 = vpack.c.b16 %v4035, %v4027
    %v5988 = vpack.c.b16 %v4036, %v4028
    %v5989 = vpack.c.b16 %v4037, %v4029
    %v5990 = vpack.c.b16 %v4038, %v4030
    %v5991 = vpack.c.b16 %v4039, %v4031
    %v5992 = vpack.c.b16 %v4040, %v4032
    %v5993 = vpack.c.b16 %v4041, %v4033
    %v5994 = vpack.c.b16 %v4042, %v4034
    %v5995 = vpack.c.b16 %v4051, %v4043
    %v5996 = vpack.c.b16 %v4052, %v4044
    %v5997 = vpack.c.b16 %v4053, %v4045
    %v5998 = vpack.c.b16 %v4054, %v4046
    %v5999 = vpack.c.b16 %v4055, %v4047
    %v6000 = vpack.c.b16 %v4056, %v4048
    %v6001 = vpack.c.b16 %v4057, %v4049
    %v6002 = vpack.c.b16 %v4058, %v4050
    %v6003 = vpack.c.b16 %v4067, %v4059
    %v6004 = vpack.c.b16 %v4068, %v4060
    %v6005 = vpack.c.b16 %v4069, %v4061
    %v6006 = vpack.c.b16 %v4070, %v4062
    %v6007 = vpack.c.b16 %v4071, %v4063
    %v6008 = vpack.c.b16 %v4072, %v4064
    %v6009 = vpack.c.b16 %v4073, %v4065
    %v6010 = vpack.c.b16 %v4074, %v4066
    %v6011 = vpack.c.b16 %v4083, %v4075
    %v6012 = vpack.c.b16 %v4084, %v4076
    %v6013 = vpack.c.b16 %v4085, %v4077
    %v6014 = vpack.c.b16 %v4086, %v4078
    %v6015 = vpack.c.b16 %v4087, %v4079
    %v6016 = vpack.c.b16 %v4088, %v4080
    %v6017 = vpack.c.b16 %v4089, %v4081
    %v6018 = vpack.c.b16 %v4090, %v4082
    %v6019 = vpack.c.b16 %v4099, %v4091
    %v6020 = vpack.c.b16 %v4100, %v4092
    %v6021 = vpack.c.b16 %v4101, %v4093
    %v6022 = vpack.c.b16 %v4102, %v4094
    %v6023 = vpack.c.b16 %v4103, %v4095
    %v6024 = vpack.c.b16 %v4104, %v4096
    %v6025 = vpack.c.b16 %v4105, %v4097
    %v6026 = vpack.c.b16 %v4106, %v4098
    %v6027 = vpack.c.b16 %v4115, %v4107
    %v6028 = vpack.c.b16 %v4116, %v4108
    %v6029 = vpack.c.b16 %v4117, %v4109
    %v6030 = vpack.c.b16 %v4118, %v4110
    %v6031 = vpack.c.b16 %v4119, %v4111
    %v6032 = vpack.c.b16 %v4120, %v4112
    %v6033 = vpack.c.b16 %v4121, %v4113
    %v6034 = vpack.c.b16 %v4122, %v4114
    %v6035 = vpack.c.b16 %v4131, %v4123
    %v6036 = vpack.c.b16 %v4132, %v4124
    %v6037 = vpack.c.b16 %v4133, %v4125
    %v6038 = vpack.c.b16 %v4134, %v4126
    %v6039 = vpack.c.b16 %v4135, %v4127
    %v6040 = vpack.c.b16 %v4136, %v4128
    %v6041 = vpack.c.b16 %v4137, %v4129
    %v6042 = vpack.c.b16 %v4138, %v4130
    %v6043 = vpack.c.b16 %v4147, %v4139
    %v6044 = vpack.c.b16 %v4148, %v4140
    %v6045 = vpack.c.b16 %v4149, %v4141
    %v6046 = vpack.c.b16 %v4150, %v4142
    %v6047 = vpack.c.b16 %v4151, %v4143
    %v6048 = vpack.c.b16 %v4152, %v4144
    %v6049 = vpack.c.b16 %v4153, %v4145
    %v6050 = vpack.c.b16 %v4154, %v4146
    %v6051 = vpack.c.b16 %v4163, %v4155
    %v6052 = vpack.c.b16 %v4164, %v4156
    %v6053 = vpack.c.b16 %v4165, %v4157
    %v6054 = vpack.c.b16 %v4166, %v4158
    %v6055 = vpack.c.b16 %v4167, %v4159
    %v6056 = vpack.c.b16 %v4168, %v4160
    %v6057 = vpack.c.b16 %v4169, %v4161
    %v6058 = vpack.c.b16 %v4170, %v4162
    %v6059 = vpack.c.b16 %v4179, %v4171
    %v6060 = vpack.c.b16 %v4180, %v4172
    %v6061 = vpack.c.b16 %v4181, %v4173
    %v6062 = vpack.c.b16 %v4182, %v4174
    %v6063 = vpack.c.b16 %v4183, %v4175
    %v6064 = vpack.c.b16 %v4184, %v4176
    %v6065 = vpack.c.b16 %v4185, %v4177
    %v6066 = vpack.c.b16 %v4186, %v4178
    %v6067 = vpack.c.b16 %v4195, %v4187
    %v6068 = vpack.c.b16 %v4196, %v4188
    %v6069 = vpack.c.b16 %v4197, %v4189
    %v6070 = vpack.c.b16 %v4198, %v4190
    %v6071 = vpack.c.b16 %v4199, %v4191
    %v6072 = vpack.c.b16 %v4200, %v4192
    %v6073 = vpack.c.b16 %v4201, %v4193
    %v6074 = vpack.c.b16 %v4202, %v4194
    %v6075 = vpack.c.b16 %v4211, %v4203
    %v6076 = vpack.c.b16 %v4212, %v4204
    %v6077 = vpack.c.b16 %v4213, %v4205
    %v6078 = vpack.c.b16 %v4214, %v4206
    %v6079 = vpack.c.b16 %v4215, %v4207
    %v6080 = vpack.c.b16 %v4216, %v4208
    %v6081 = vpack.c.b16 %v4217, %v4209
    %v6082 = vpack.c.b16 %v4218, %v4210
    %v6083 = vpack.c.b16 %v4227, %v4219
    %v6084 = vpack.c.b16 %v4228, %v4220
    %v6085 = vpack.c.b16 %v4229, %v4221
    %v6086 = vpack.c.b16 %v4230, %v4222
    %v6087 = vpack.c.b16 %v4231, %v4223
    %v6088 = vpack.c.b16 %v4232, %v4224
    %v6089 = vpack.c.b16 %v4233, %v4225
    %v6090 = vpack.c.b16 %v4234, %v4226
    %v6091 = vpack.c.b16 %v4243, %v4235
    %v6092 = vpack.c.b16 %v4244, %v4236
    %v6093 = vpack.c.b16 %v4245, %v4237
    %v6094 = vpack.c.b16 %v4246, %v4238
    %v6095 = vpack.c.b16 %v4247, %v4239
    %v6096 = vpack.c.b16 %v4248, %v4240
    %v6097 = vpack.c.b16 %v4249, %v4241
    %v6098 = vpack.c.b16 %v4250, %v4242
    %v6099 = vpack.c.b16 %v4259, %v4251
    %v6100 = vpack.c.b16 %v4260, %v4252
    %v6101 = vpack.c.b16 %v4261, %v4253
    %v6102 = vpack.c.b16 %v4262, %v4254
    %v6103 = vpack.c.b16 %v4263, %v4255
    %v6104 = vpack.c.b16 %v4264, %v4256
    %v6105 = vpack.c.b16 %v4265, %v4257
    %v6106 = vpack.c.b16 %v4266, %v4258
    %v6107 = vpack.c.b16 %v4275, %v4267
    %v6108 = vpack.c.b16 %v4276, %v4268
    %v6109 = vpack.c.b16 %v4277, %v4269
    %v6110 = vpack.c.b16 %v4278, %v4270
    %v6111 = vpack.c.b16 %v4279, %v4271
    %v6112 = vpack.c.b16 %v4280, %v4272
    %v6113 = vpack.c.b16 %v4281, %v4273
    %v6114 = vpack.c.b16 %v4282, %v4274
    %v6115 = vpack.c.b16 %v4291, %v4283
    %v6116 = vpack.c.b16 %v4292, %v4284
    %v6117 = vpack.c.b16 %v4293, %v4285
    %v6118 = vpack.c.b16 %v4294, %v4286
    %v6119 = vpack.c.b16 %v4295, %v4287
    %v6120 = vpack.c.b16 %v4296, %v4288
    %v6121 = vpack.c.b16 %v4297, %v4289
    %v6122 = vpack.c.b16 %v4298, %v4290
    %v6123 = vpack.c.b16 %v4307, %v4299
    %v6124 = vpack.c.b16 %v4308, %v4300
    %v6125 = vpack.c.b16 %v4309, %v4301
    %v6126 = vpack.c.b16 %v4310, %v4302
    %v6127 = vpack.c.b16 %v4311, %v4303
    %v6128 = vpack.c.b16 %v4312, %v4304
    %v6129 = vpack.c.b16 %v4313, %v4305
    %v6130 = vpack.c.b16 %v4314, %v4306
    %v6131 = vpack.c.b16 %v4323, %v4315
    %v6132 = vpack.c.b16 %v4324, %v4316
    %v6133 = vpack.c.b16 %v4325, %v4317
    %v6134 = vpack.c.b16 %v4326, %v4318
    %v6135 = vpack.c.b16 %v4327, %v4319
    %v6136 = vpack.c.b16 %v4328, %v4320
    %v6137 = vpack.c.b16 %v4329, %v4321
    %v6138 = vpack.c.b16 %v4330, %v4322
    %v6139 = vpack.c.b16 %v4339, %v4331
    %v6140 = vpack.c.b16 %v4340, %v4332
    %v6141 = vpack.c.b16 %v4341, %v4333
    %v6142 = vpack.c.b16 %v4342, %v4334
    %v6143 = vpack.c.b16 %v4343, %v4335
    %v6144 = vpack.c.b16 %v4344, %v4336
    %v6145 = vpack.c.b16 %v4345, %v4337
    %v6146 = vpack.c.b16 %v4346, %v4338
    %v6147 = vpack.c.b16 %v4355, %v4347
    %v6148 = vpack.c.b16 %v4356, %v4348
    %v6149 = vpack.c.b16 %v4357, %v4349
    %v6150 = vpack.c.b16 %v4358, %v4350
    %v6151 = vpack.c.b16 %v4359, %v4351
    %v6152 = vpack.c.b16 %v4360, %v4352
    %v6153 = vpack.c.b16 %v4361, %v4353
    %v6154 = vpack.c.b16 %v4362, %v4354
    %v6155 = vpack.c.b16 %v4371, %v4363
    %v6156 = vpack.c.b16 %v4372, %v4364
    %v6157 = vpack.c.b16 %v4373, %v4365
    %v6158 = vpack.c.b16 %v4374, %v4366
    %v6159 = vpack.c.b16 %v4375, %v4367
    %v6160 = vpack.c.b16 %v4376, %v4368
    %v6161 = vpack.c.b16 %v4377, %v4369
    %v6162 = vpack.c.b16 %v4378, %v4370
    %v6163 = vpack.c.b16 %v4387, %v4379
    %v6164 = vpack.c.b16 %v4388, %v4380
    %v6165 = vpack.c.b16 %v4389, %v4381
    %v6166 = vpack.c.b16 %v4390, %v4382
    %v6167 = vpack.c.b16 %v4391, %v4383
    %v6168 = vpack.c.b16 %v4392, %v4384
    %v6169 = vpack.c.b16 %v4393, %v4385
    %v6170 = vpack.c.b16 %v4394, %v4386
    %v6171 = vpack.c.b16 %v4403, %v4395
    %v6172 = vpack.c.b16 %v4404, %v4396
    %v6173 = vpack.c.b16 %v4405, %v4397
    %v6174 = vpack.c.b16 %v4406, %v4398
    %v6175 = vpack.c.b16 %v4407, %v4399
    %v6176 = vpack.c.b16 %v4408, %v4400
    %v6177 = vpack.c.b16 %v4409, %v4401
    %v6178 = vpack.c.b16 %v4410, %v4402
    %v6179 = vpack.c.b16 %v4419, %v4411
    %v6180 = vpack.c.b16 %v4420, %v4412
    %v6181 = vpack.c.b16 %v4421, %v4413
    %v6182 = vpack.c.b16 %v4422, %v4414
    %v6183 = vpack.c.b16 %v4423, %v4415
    %v6184 = vpack.c.b16 %v4424, %v4416
    %v6185 = vpack.c.b16 %v4425, %v4417
    %v6186 = vpack.c.b16 %v4426, %v4418
    %v6187 = vpack.c.b16 %v4435, %v4427
    %v6188 = vpack.c.b16 %v4436, %v4428
    %v6189 = vpack.c.b16 %v4437, %v4429
    %v6190 = vpack.c.b16 %v4438, %v4430
    %v6191 = vpack.c.b16 %v4439, %v4431
    %v6192 = vpack.c.b16 %v4440, %v4432
    %v6193 = vpack.c.b16 %v4441, %v4433
    %v6194 = vpack.c.b16 %v4442, %v4434
    %v6195 = vpack.c.b16 %v4451, %v4443
    %v6196 = vpack.c.b16 %v4452, %v4444
    %v6197 = vpack.c.b16 %v4453, %v4445
    %v6198 = vpack.c.b16 %v4454, %v4446
    %v6199 = vpack.c.b16 %v4455, %v4447
    %v6200 = vpack.c.b16 %v4456, %v4448
    %v6201 = vpack.c.b16 %v4457, %v4449
    %v6202 = vpack.c.b16 %v4458, %v4450
    %v6203 = vpack.c.b16 %v4467, %v4459
    %v6204 = vpack.c.b16 %v4468, %v4460
    %v6205 = vpack.c.b16 %v4469, %v4461
    %v6206 = vpack.c.b16 %v4470, %v4462
    %v6207 = vpack.c.b16 %v4471, %v4463
    %v6208 = vpack.c.b16 %v4472, %v4464
    %v6209 = vpack.c.b16 %v4473, %v4465
    %v6210 = vpack.c.b16 %v4474, %v4466
    %v6211 = vpack.c.b16 %v4483, %v4475
    %v6212 = vpack.c.b16 %v4484, %v4476
    %v6213 = vpack.c.b16 %v4485, %v4477
    %v6214 = vpack.c.b16 %v4486, %v4478
    %v6215 = vpack.c.b16 %v4487, %v4479
    %v6216 = vpack.c.b16 %v4488, %v4480
    %v6217 = vpack.c.b16 %v4489, %v4481
    %v6218 = vpack.c.b16 %v4490, %v4482
    %v6219 = vpack.c.b16 %v4499, %v4491
    %v6220 = vpack.c.b16 %v4500, %v4492
    %v6221 = vpack.c.b16 %v4501, %v4493
    %v6222 = vpack.c.b16 %v4502, %v4494
    %v6223 = vpack.c.b16 %v4503, %v4495
    %v6224 = vpack.c.b16 %v4504, %v4496
    %v6225 = vpack.c.b16 %v4505, %v4497
    %v6226 = vpack.c.b16 %v4506, %v4498
    %v6227 = vpack.c.b16 %v4515, %v4507
    %v6228 = vpack.c.b16 %v4516, %v4508
    %v6229 = vpack.c.b16 %v4517, %v4509
    %v6230 = vpack.c.b16 %v4518, %v4510
    %v6231 = vpack.c.b16 %v4519, %v4511
    %v6232 = vpack.c.b16 %v4520, %v4512
    %v6233 = vpack.c.b16 %v4521, %v4513
    %v6234 = vpack.c.b16 %v4522, %v4514
    %v6235 = vpack.c.b16 %v4531, %v4523
    %v6236 = vpack.c.b16 %v4532, %v4524
    %v6237 = vpack.c.b16 %v4533, %v4525
    %v6238 = vpack.c.b16 %v4534, %v4526
    %v6239 = vpack.c.b16 %v4535, %v4527
    %v6240 = vpack.c.b16 %v4536, %v4528
    %v6241 = vpack.c.b16 %v4537, %v4529
    %v6242 = vpack.c.b16 %v4538, %v4530
    %v6243 = vpack.c.b16 %v4547, %v4539
    %v6244 = vpack.c.b16 %v4548, %v4540
    %v6245 = vpack.c.b16 %v4549, %v4541
    %v6246 = vpack.c.b16 %v4550, %v4542
    %v6247 = vpack.c.b16 %v4551, %v4543
    %v6248 = vpack.c.b16 %v4552, %v4544
    %v6249 = vpack.c.b16 %v4553, %v4545
    %v6250 = vpack.c.b16 %v4554, %v4546
    %v6251 = vpack.c.b16 %v4563, %v4555
    %v6252 = vpack.c.b16 %v4564, %v4556
    %v6253 = vpack.c.b16 %v4565, %v4557
    %v6254 = vpack.c.b16 %v4566, %v4558
    %v6255 = vpack.c.b16 %v4567, %v4559
    %v6256 = vpack.c.b16 %v4568, %v4560
    %v6257 = vpack.c.b16 %v4569, %v4561
    %v6258 = vpack.c.b16 %v4570, %v4562
    %v6259 = vpack.c.b16 %v4579, %v4571
    %v6260 = vpack.c.b16 %v4580, %v4572
    %v6261 = vpack.c.b16 %v4581, %v4573
    %v6262 = vpack.c.b16 %v4582, %v4574
    %v6263 = vpack.c.b16 %v4583, %v4575
    %v6264 = vpack.c.b16 %v4584, %v4576
    %v6265 = vpack.c.b16 %v4585, %v4577
    %v6266 = vpack.c.b16 %v4586, %v4578
    %v6267 = vpack.c.b16 %v4595, %v4587
    %v6268 = vpack.c.b16 %v4596, %v4588
    %v6269 = vpack.c.b16 %v4597, %v4589
    %v6270 = vpack.c.b16 %v4598, %v4590
    %v6271 = vpack.c.b16 %v4599, %v4591
    %v6272 = vpack.c.b16 %v4600, %v4592
    %v6273 = vpack.c.b16 %v4601, %v4593
    %v6274 = vpack.c.b16 %v4602, %v4594
    %v6275 = vpack.c.b16 %v4611, %v4603
    %v6276 = vpack.c.b16 %v4612, %v4604
    %v6277 = vpack.c.b16 %v4613, %v4605
    %v6278 = vpack.c.b16 %v4614, %v4606
    %v6279 = vpack.c.b16 %v4615, %v4607
    %v6280 = vpack.c.b16 %v4616, %v4608
    %v6281 = vpack.c.b16 %v4617, %v4609
    %v6282 = vpack.c.b16 %v4618, %v4610
    %v6283 = vpack.c.b16 %v4627, %v4619
    %v6284 = vpack.c.b16 %v4628, %v4620
    %v6285 = vpack.c.b16 %v4629, %v4621
    %v6286 = vpack.c.b16 %v4630, %v4622
    %v6287 = vpack.c.b16 %v4631, %v4623
    %v6288 = vpack.c.b16 %v4632, %v4624
    %v6289 = vpack.c.b16 %v4633, %v4625
    %v6290 = vpack.c.b16 %v4634, %v4626
    %v6291 = vpack.c.b16 %v4643, %v4635
    %v6292 = vpack.c.b16 %v4644, %v4636
    %v6293 = vpack.c.b16 %v4645, %v4637
    %v6294 = vpack.c.b16 %v4646, %v4638
    %v6295 = vpack.c.b16 %v4647, %v4639
    %v6296 = vpack.c.b16 %v4648, %v4640
    %v6297 = vpack.c.b16 %v4649, %v4641
    %v6298 = vpack.c.b16 %v4650, %v4642
    %v6299 = vpack.c.b16 %v4659, %v4651
    %v6300 = vpack.c.b16 %v4660, %v4652
    %v6301 = vpack.c.b16 %v4661, %v4653
    %v6302 = vpack.c.b16 %v4662, %v4654
    %v6303 = vpack.c.b16 %v4663, %v4655
    %v6304 = vpack.c.b16 %v4664, %v4656
    %v6305 = vpack.c.b16 %v4665, %v4657
    %v6306 = vpack.c.b16 %v4666, %v4658
    %v6307 = vpack.c.b16 %v4675, %v4667
    %v6308 = vpack.c.b16 %v4676, %v4668
    %v6309 = vpack.c.b16 %v4677, %v4669
    %v6310 = vpack.c.b16 %v4678, %v4670
    %v6311 = vpack.c.b16 %v4679, %v4671
    %v6312 = vpack.c.b16 %v4680, %v4672
    %v6313 = vpack.c.b16 %v4681, %v4673
    %v6314 = vpack.c.b16 %v4682, %v4674
    %v6315 = vpack.c.b16 %v4691, %v4683
    %v6316 = vpack.c.b16 %v4692, %v4684
    %v6317 = vpack.c.b16 %v4693, %v4685
    %v6318 = vpack.c.b16 %v4694, %v4686
    %v6319 = vpack.c.b16 %v4695, %v4687
    %v6320 = vpack.c.b16 %v4696, %v4688
    %v6321 = vpack.c.b16 %v4697, %v4689
    %v6322 = vpack.c.b16 %v4698, %v4690
    %v6323 = vpack.c.b16 %v4707, %v4699
    %v6324 = vpack.c.b16 %v4708, %v4700
    %v6325 = vpack.c.b16 %v4709, %v4701
    %v6326 = vpack.c.b16 %v4710, %v4702
    %v6327 = vpack.c.b16 %v4711, %v4703
    %v6328 = vpack.c.b16 %v4712, %v4704
    %v6329 = vpack.c.b16 %v4713, %v4705
    %v6330 = vpack.c.b16 %v4714, %v4706
    %v6331 = vpack.c.b16 %v4723, %v4715
    %v6332 = vpack.c.b16 %v4724, %v4716
    %v6333 = vpack.c.b16 %v4725, %v4717
    %v6334 = vpack.c.b16 %v4726, %v4718
    %v6335 = vpack.c.b16 %v4727, %v4719
    %v6336 = vpack.c.b16 %v4728, %v4720
    %v6337 = vpack.c.b16 %v4729, %v4721
    %v6338 = vpack.c.b16 %v4730, %v4722
    %v6339 = vpack.c.b16 %v4739, %v4731
    %v6340 = vpack.c.b16 %v4740, %v4732
    %v6341 = vpack.c.b16 %v4741, %v4733
    %v6342 = vpack.c.b16 %v4742, %v4734
    %v6343 = vpack.c.b16 %v4743, %v4735
    %v6344 = vpack.c.b16 %v4744, %v4736
    %v6345 = vpack.c.b16 %v4745, %v4737
    %v6346 = vpack.c.b16 %v4746, %v4738
    %v6347 = vpack.c.b16 %v4755, %v4747
    %v6348 = vpack.c.b16 %v4756, %v4748
    %v6349 = vpack.c.b16 %v4757, %v4749
    %v6350 = vpack.c.b16 %v4758, %v4750
    %v6351 = vpack.c.b16 %v4759, %v4751
    %v6352 = vpack.c.b16 %v4760, %v4752
    %v6353 = vpack.c.b16 %v4761, %v4753
    %v6354 = vpack.c.b16 %v4762, %v4754
    %v6355 = vpack.c.b16 %v4771, %v4763
    %v6356 = vpack.c.b16 %v4772, %v4764
    %v6357 = vpack.c.b16 %v4773, %v4765
    %v6358 = vpack.c.b16 %v4774, %v4766
    %v6359 = vpack.c.b16 %v4775, %v4767
    %v6360 = vpack.c.b16 %v4776, %v4768
    %v6361 = vpack.c.b16 %v4777, %v4769
    %v6362 = vpack.c.b16 %v4778, %v4770
    %v6363 = vpack.c.b16 %v4787, %v4779
    %v6364 = vpack.c.b16 %v4788, %v4780
    %v6365 = vpack.c.b16 %v4789, %v4781
    %v6366 = vpack.c.b16 %v4790, %v4782
    %v6367 = vpack.c.b16 %v4791, %v4783
    %v6368 = vpack.c.b16 %v4792, %v4784
    %v6369 = vpack.c.b16 %v4793, %v4785
    %v6370 = vpack.c.b16 %v4794, %v4786
    %v6371 = vpack.c.b16 %v4803, %v4795
    %v6372 = vpack.c.b16 %v4804, %v4796
    %v6373 = vpack.c.b16 %v4805, %v4797
    %v6374 = vpack.c.b16 %v4806, %v4798
    %v6375 = vpack.c.b16 %v4807, %v4799
    %v6376 = vpack.c.b16 %v4808, %v4800
    %v6377 = vpack.c.b16 %v4809, %v4801
    %v6378 = vpack.c.b16 %v4810, %v4802
    %v6379 = vpack.c.b16 %v4819, %v4811
    %v6380 = vpack.c.b16 %v4820, %v4812
    %v6381 = vpack.c.b16 %v4821, %v4813
    %v6382 = vpack.c.b16 %v4822, %v4814
    %v6383 = vpack.c.b16 %v4823, %v4815
    %v6384 = vpack.c.b16 %v4824, %v4816
    %v6385 = vpack.c.b16 %v4825, %v4817
    %v6386 = vpack.c.b16 %v4826, %v4818
    %v6387 = vpack.c.b16 %v4835, %v4827
    %v6388 = vpack.c.b16 %v4836, %v4828
    %v6389 = vpack.c.b16 %v4837, %v4829
    %v6390 = vpack.c.b16 %v4838, %v4830
    %v6391 = vpack.c.b16 %v4839, %v4831
    %v6392 = vpack.c.b16 %v4840, %v4832
    %v6393 = vpack.c.b16 %v4841, %v4833
    %v6394 = vpack.c.b16 %v4842, %v4834
    %v6395 = vpack.c.b16 %v4851, %v4843
    %v6396 = vpack.c.b16 %v4852, %v4844
    %v6397 = vpack.c.b16 %v4853, %v4845
    %v6398 = vpack.c.b16 %v4854, %v4846
    %v6399 = vpack.c.b16 %v4855, %v4847
    %v6400 = vpack.c.b16 %v4856, %v4848
    %v6401 = vpack.c.b16 %v4857, %v4849
    %v6402 = vpack.c.b16 %v4858, %v4850
    %v6403 = vpack.c.b16 %v4867, %v4859
    %v6404 = vpack.c.b16 %v4868, %v4860
    %v6405 = vpack.c.b16 %v4869, %v4861
    %v6406 = vpack.c.b16 %v4870, %v4862
    %v6407 = vpack.c.b16 %v4871, %v4863
    %v6408 = vpack.c.b16 %v4872, %v4864
    %v6409 = vpack.c.b16 %v4873, %v4865
    %v6410 = vpack.c.b16 %v4874, %v4866
    %v6411 = vpack.c.b16 %v4883, %v4875
    %v6412 = vpack.c.b16 %v4884, %v4876
    %v6413 = vpack.c.b16 %v4885, %v4877
    %v6414 = vpack.c.b16 %v4886, %v4878
    %v6415 = vpack.c.b16 %v4887, %v4879
    %v6416 = vpack.c.b16 %v4888, %v4880
    %v6417 = vpack.c.b16 %v4889, %v4881
    %v6418 = vpack.c.b16 %v4890, %v4882
    %v6419 = vpack.c.b16 %v4899, %v4891
    %v6420 = vpack.c.b16 %v4900, %v4892
    %v6421 = vpack.c.b16 %v4901, %v4893
    %v6422 = vpack.c.b16 %v4902, %v4894
    %v6423 = vpack.c.b16 %v4903, %v4895
    %v6424 = vpack.c.b16 %v4904, %v4896
    %v6425 = vpack.c.b16 %v4905, %v4897
    %v6426 = vpack.c.b16 %v4906, %v4898
    %v6427 = vpack.c.b16 %v4915, %v4907
    %v6428 = vpack.c.b16 %v4916, %v4908
    %v6429 = vpack.c.b16 %v4917, %v4909
    %v6430 = vpack.c.b16 %v4918, %v4910
    %v6431 = vpack.c.b16 %v4919, %v4911
    %v6432 = vpack.c.b16 %v4920, %v4912
    %v6433 = vpack.c.b16 %v4921, %v4913
    %v6434 = vpack.c.b16 %v4922, %v4914
    %v6435 = vpack.c.b16 %v4931, %v4923
    %v6436 = vpack.c.b16 %v4932, %v4924
    %v6437 = vpack.c.b16 %v4933, %v4925
    %v6438 = vpack.c.b16 %v4934, %v4926
    %v6439 = vpack.c.b16 %v4935, %v4927
    %v6440 = vpack.c.b16 %v4936, %v4928
    %v6441 = vpack.c.b16 %v4937, %v4929
    %v6442 = vpack.c.b16 %v4938, %v4930
    %v6443 = vpack.c.b16 %v4947, %v4939
    %v6444 = vpack.c.b16 %v4948, %v4940
    %v6445 = vpack.c.b16 %v4949, %v4941
    %v6446 = vpack.c.b16 %v4950, %v4942
    %v6447 = vpack.c.b16 %v4951, %v4943
    %v6448 = vpack.c.b16 %v4952, %v4944
    %v6449 = vpack.c.b16 %v4953, %v4945
    %v6450 = vpack.c.b16 %v4954, %v4946
    %v6451 = vpack.c.b16 %v4963, %v4955
    %v6452 = vpack.c.b16 %v4964, %v4956
    %v6453 = vpack.c.b16 %v4965, %v4957
    %v6454 = vpack.c.b16 %v4966, %v4958
    %v6455 = vpack.c.b16 %v4967, %v4959
    %v6456 = vpack.c.b16 %v4968, %v4960
    %v6457 = vpack.c.b16 %v4969, %v4961
    %v6458 = vpack.c.b16 %v4970, %v4962
    %v6459 = vpack.c.b16 %v4979, %v4971
    %v6460 = vpack.c.b16 %v4980, %v4972
    %v6461 = vpack.c.b16 %v4981, %v4973
    %v6462 = vpack.c.b16 %v4982, %v4974
    %v6463 = vpack.c.b16 %v4983, %v4975
    %v6464 = vpack.c.b16 %v4984, %v4976
    %v6465 = vpack.c.b16 %v4985, %v4977
    %v6466 = vpack.c.b16 %v4986, %v4978
    %v6467 = vpack.c.b16 %v4995, %v4987
    %v6468 = vpack.c.b16 %v4996, %v4988
    %v6469 = vpack.c.b16 %v4997, %v4989
    %v6470 = vpack.c.b16 %v4998, %v4990
    %v6471 = vpack.c.b16 %v4999, %v4991
    %v6472 = vpack.c.b16 %v5000, %v4992
    %v6473 = vpack.c.b16 %v5001, %v4993
    %v6474 = vpack.c.b16 %v5002, %v4994
    %v6475 = vpack.c.b16 %v5011, %v5003
    %v6476 = vpack.c.b16 %v5012, %v5004
    %v6477 = vpack.c.b16 %v5013, %v5005
    %v6478 = vpack.c.b16 %v5014, %v5006
    %v6479 = vpack.c.b16 %v5015, %v5007
    %v6480 = vpack.c.b16 %v5016, %v5008
    %v6481 = vpack.c.b16 %v5017, %v5009
    %v6482 = vpack.c.b16 %v5018, %v5010
    %v6483 = vpack.c.b16 %v5027, %v5019
    %v6484 = vpack.c.b16 %v5028, %v5020
    %v6485 = vpack.c.b16 %v5029, %v5021
    %v6486 = vpack.c.b16 %v5030, %v5022
    %v6487 = vpack.c.b16 %v5031, %v5023
    %v6488 = vpack.c.b16 %v5032, %v5024
    %v6489 = vpack.c.b16 %v5033, %v5025
    %v6490 = vpack.c.b16 %v5034, %v5026
    %v6491 = vpack.c.b16 %v5043, %v5035
    %v6492 = vpack.c.b16 %v5044, %v5036
    %v6493 = vpack.c.b16 %v5045, %v5037
    %v6494 = vpack.c.b16 %v5046, %v5038
    %v6495 = vpack.c.b16 %v5047, %v5039
    %v6496 = vpack.c.b16 %v5048, %v5040
    %v6497 = vpack.c.b16 %v5049, %v5041
    %v6498 = vpack.c.b16 %v5050, %v5042
    %v6499 = vpack.c.b16 %v5059, %v5051
    %v6500 = vpack.c.b16 %v5060, %v5052
    %v6501 = vpack.c.b16 %v5061, %v5053
    %v6502 = vpack.c.b16 %v5062, %v5054
    %v6503 = vpack.c.b16 %v5063, %v5055
    %v6504 = vpack.c.b16 %v5064, %v5056
    %v6505 = vpack.c.b16 %v5065, %v5057
    %v6506 = vpack.c.b16 %v5066, %v5058
    %v6507 = vpack.c.b16 %v5075, %v5067
    %v6508 = vpack.c.b16 %v5076, %v5068
    %v6509 = vpack.c.b16 %v5077, %v5069
    %v6510 = vpack.c.b16 %v5078, %v5070
    %v6511 = vpack.c.b16 %v5079, %v5071
    %v6512 = vpack.c.b16 %v5080, %v5072
    %v6513 = vpack.c.b16 %v5081, %v5073
    %v6514 = vpack.c.b16 %v5082, %v5074
    %v6515 = vpack.c.b16 %v5091, %v5083
    %v6516 = vpack.c.b16 %v5092, %v5084
    %v6517 = vpack.c.b16 %v5093, %v5085
    %v6518 = vpack.c.b16 %v5094, %v5086
    %v6519 = vpack.c.b16 %v5095, %v5087
    %v6520 = vpack.c.b16 %v5096, %v5088
    %v6521 = vpack.c.b16 %v5097, %v5089
    %v6522 = vpack.c.b16 %v5098, %v5090
    %v6523 = vpack.c.b16 %v5107, %v5099
    %v6524 = vpack.c.b16 %v5108, %v5100
    %v6525 = vpack.c.b16 %v5109, %v5101
    %v6526 = vpack.c.b16 %v5110, %v5102
    %v6527 = vpack.c.b16 %v5111, %v5103
    %v6528 = vpack.c.b16 %v5112, %v5104
    %v6529 = vpack.c.b16 %v5113, %v5105
    %v6530 = vpack.c.b16 %v5114, %v5106
    %v6531 = vpack.c.b16 %v5123, %v5115
    %v6532 = vpack.c.b16 %v5124, %v5116
    %v6533 = vpack.c.b16 %v5125, %v5117
    %v6534 = vpack.c.b16 %v5126, %v5118
    %v6535 = vpack.c.b16 %v5127, %v5119
    %v6536 = vpack.c.b16 %v5128, %v5120
    %v6537 = vpack.c.b16 %v5129, %v5121
    %v6538 = vpack.c.b16 %v5130, %v5122
    %v6539 = vpack.c.b16 %v5139, %v5131
    %v6540 = vpack.c.b16 %v5140, %v5132
    %v6541 = vpack.c.b16 %v5141, %v5133
    %v6542 = vpack.c.b16 %v5142, %v5134
    %v6543 = vpack.c.b16 %v5143, %v5135
    %v6544 = vpack.c.b16 %v5144, %v5136
    %v6545 = vpack.c.b16 %v5145, %v5137
    %v6546 = vpack.c.b16 %v5146, %v5138
    %v6547 = vpack.c.b16 %v5155, %v5147
    %v6548 = vpack.c.b16 %v5156, %v5148
    %v6549 = vpack.c.b16 %v5157, %v5149
    %v6550 = vpack.c.b16 %v5158, %v5150
    %v6551 = vpack.c.b16 %v5159, %v5151
    %v6552 = vpack.c.b16 %v5160, %v5152
    %v6553 = vpack.c.b16 %v5161, %v5153
    %v6554 = vpack.c.b16 %v5162, %v5154
    %v6555 = vpack.c.b16 %v5171, %v5163
    %v6556 = vpack.c.b16 %v5172, %v5164
    %v6557 = vpack.c.b16 %v5173, %v5165
    %v6558 = vpack.c.b16 %v5174, %v5166
    %v6559 = vpack.c.b16 %v5175, %v5167
    %v6560 = vpack.c.b16 %v5176, %v5168
    %v6561 = vpack.c.b16 %v5177, %v5169
    %v6562 = vpack.c.b16 %v5178, %v5170
    %v6563 = vpack.c.b16 %v5187, %v5179
    %v6564 = vpack.c.b16 %v5188, %v5180
    %v6565 = vpack.c.b16 %v5189, %v5181
    %v6566 = vpack.c.b16 %v5190, %v5182
    %v6567 = vpack.c.b16 %v5191, %v5183
    %v6568 = vpack.c.b16 %v5192, %v5184
    %v6569 = vpack.c.b16 %v5193, %v5185
    %v6570 = vpack.c.b16 %v5194, %v5186
    %v6571 = vpack.c.b16 %v5203, %v5195
    %v6572 = vpack.c.b16 %v5204, %v5196
    %v6573 = vpack.c.b16 %v5205, %v5197
    %v6574 = vpack.c.b16 %v5206, %v5198
    %v6575 = vpack.c.b16 %v5207, %v5199
    %v6576 = vpack.c.b16 %v5208, %v5200
    %v6577 = vpack.c.b16 %v5209, %v5201
    %v6578 = vpack.c.b16 %v5210, %v5202
    %v6579 = vpack.c.b16 %v5219, %v5211
    %v6580 = vpack.c.b16 %v5220, %v5212
    %v6581 = vpack.c.b16 %v5221, %v5213
    %v6582 = vpack.c.b16 %v5222, %v5214
    %v6583 = vpack.c.b16 %v5223, %v5215
    %v6584 = vpack.c.b16 %v5224, %v5216
    %v6585 = vpack.c.b16 %v5225, %v5217
    %v6586 = vpack.c.b16 %v5226, %v5218
    %v6587 = vpack.c.b16 %v5235, %v5227
    %v6588 = vpack.c.b16 %v5236, %v5228
    %v6589 = vpack.c.b16 %v5237, %v5229
    %v6590 = vpack.c.b16 %v5238, %v5230
    %v6591 = vpack.c.b16 %v5239, %v5231
    %v6592 = vpack.c.b16 %v5240, %v5232
    %v6593 = vpack.c.b16 %v5241, %v5233
    %v6594 = vpack.c.b16 %v5242, %v5234
    %v6595 = vpack.c.b16 %v5251, %v5243
    %v6596 = vpack.c.b16 %v5252, %v5244
    %v6597 = vpack.c.b16 %v5253, %v5245
    %v6598 = vpack.c.b16 %v5254, %v5246
    %v6599 = vpack.c.b16 %v5255, %v5247
    %v6600 = vpack.c.b16 %v5256, %v5248
    %v6601 = vpack.c.b16 %v5257, %v5249
    %v6602 = vpack.c.b16 %v5258, %v5250
    %v6603 = vpack.c.b16 %v5267, %v5259
    %v6604 = vpack.c.b16 %v5268, %v5260
    %v6605 = vpack.c.b16 %v5269, %v5261
    %v6606 = vpack.c.b16 %v5270, %v5262
    %v6607 = vpack.c.b16 %v5271, %v5263
    %v6608 = vpack.c.b16 %v5272, %v5264
    %v6609 = vpack.c.b16 %v5273, %v5265
    %v6610 = vpack.c.b16 %v5274, %v5266
    %v6611 = vpack.c.b16 %v5283, %v5275
    %v6612 = vpack.c.b16 %v5284, %v5276
    %v6613 = vpack.c.b16 %v5285, %v5277
    %v6614 = vpack.c.b16 %v5286, %v5278
    %v6615 = vpack.c.b16 %v5287, %v5279
    %v6616 = vpack.c.b16 %v5288, %v5280
    %v6617 = vpack.c.b16 %v5289, %v5281
    %v6618 = vpack.c.b16 %v5290, %v5282
    %v6619 = vpack.c.b16 %v5299, %v5291
    %v6620 = vpack.c.b16 %v5300, %v5292
    %v6621 = vpack.c.b16 %v5301, %v5293
    %v6622 = vpack.c.b16 %v5302, %v5294
    %v6623 = vpack.c.b16 %v5303, %v5295
    %v6624 = vpack.c.b16 %v5304, %v5296
    %v6625 = vpack.c.b16 %v5305, %v5297
    %v6626 = vpack.c.b16 %v5306, %v5298
    %v6627 = vpack.c.b16 %v5315, %v5307
    %v6628 = vpack.c.b16 %v5316, %v5308
    %v6629 = vpack.c.b16 %v5317, %v5309
    %v6630 = vpack.c.b16 %v5318, %v5310
    %v6631 = vpack.c.b16 %v5319, %v5311
    %v6632 = vpack.c.b16 %v5320, %v5312
    %v6633 = vpack.c.b16 %v5321, %v5313
    %v6634 = vpack.c.b16 %v5322, %v5314
    %v6635 = vpack.c.b16 %v5331, %v5323
    %v6636 = vpack.c.b16 %v5332, %v5324
    %v6637 = vpack.c.b16 %v5333, %v5325
    %v6638 = vpack.c.b16 %v5334, %v5326
    %v6639 = vpack.c.b16 %v5335, %v5327
    %v6640 = vpack.c.b16 %v5336, %v5328
    %v6641 = vpack.c.b16 %v5337, %v5329
    %v6642 = vpack.c.b16 %v5338, %v5330
    %v6643 = vpack.c.b16 %v5347, %v5339
    %v6644 = vpack.c.b16 %v5348, %v5340
    %v6645 = vpack.c.b16 %v5349, %v5341
    %v6646 = vpack.c.b16 %v5350, %v5342
    %v6647 = vpack.c.b16 %v5351, %v5343
    %v6648 = vpack.c.b16 %v5352, %v5344
    %v6649 = vpack.c.b16 %v5353, %v5345
    %v6650 = vpack.c.b16 %v5354, %v5346
    %v6651 = vpack.c.b16 %v5363, %v5355
    %v6652 = vpack.c.b16 %v5364, %v5356
    %v6653 = vpack.c.b16 %v5365, %v5357
    %v6654 = vpack.c.b16 %v5366, %v5358
    %v6655 = vpack.c.b16 %v5367, %v5359
    %v6656 = vpack.c.b16 %v5368, %v5360
    %v6657 = vpack.c.b16 %v5369, %v5361
    %v6658 = vpack.c.b16 %v5370, %v5362
    %v6659 = vpack.c.b16 %v5379, %v5371
    %v6660 = vpack.c.b16 %v5380, %v5372
    %v6661 = vpack.c.b16 %v5381, %v5373
    %v6662 = vpack.c.b16 %v5382, %v5374
    %v6663 = vpack.c.b16 %v5383, %v5375
    %v6664 = vpack.c.b16 %v5384, %v5376
    %v6665 = vpack.c.b16 %v5385, %v5377
    %v6666 = vpack.c.b16 %v5386, %v5378
    %v6667 = vpack.c.b16 %v5395, %v5387
    %v6668 = vpack.c.b16 %v5396, %v5388
    %v6669 = vpack.c.b16 %v5397, %v5389
    %v6670 = vpack.c.b16 %v5398, %v5390
    %v6671 = vpack.c.b16 %v5399, %v5391
    %v6672 = vpack.c.b16 %v5400, %v5392
    %v6673 = vpack.c.b16 %v5401, %v5393
    %v6674 = vpack.c.b16 %v5402, %v5394
    %v6675 = vpack.c.b16 %v5411, %v5403
    %v6676 = vpack.c.b16 %v5412, %v5404
    %v6677 = vpack.c.b16 %v5413, %v5405
    %v6678 = vpack.c.b16 %v5414, %v5406
    %v6679 = vpack.c.b16 %v5415, %v5407
    %v6680 = vpack.c.b16 %v5416, %v5408
    %v6681 = vpack.c.b16 %v5417, %v5409
    %v6682 = vpack.c.b16 %v5418, %v5410
    %vm7939 = vcmask 744448
    %v7941 = vsel %vm7939, %v1607, 0
    %vm7943 = vcmask 1044480
    %vm7944 = vcmask 1045504
    %v7945 = vsel %vm7943, 4294967295, 65535
    %v7946 = vsel %vm7944, %v7945, 0
    %v7948 = vand.u32 %v6675, %v7946
    %v7951 = vand.u32 %v6676, %v7946
    %v7954 = vand.u32 %v6677, %v7946
    %v7957 = vand.u32 %v6678, %v7946
    %v7960 = vand.u32 %v6679, %v7946
    %v7963 = vand.u32 %v6680, %v7946
    %v7966 = vand.u32 %v6681, %v7946
    %v7969 = vand.u32 %v6682, %v7946
    %7971 = vmatprep.subr.bf16.mxu0 %v5476
    %7972 = vmatpush1.bf16.msra.mxu0 %v5475
    %7973 = vmatprep.subr.bf16.mxu0 %v5468
    %7974 = vmatpush1.bf16.msra.mxu0 %v5467
    %7975 = vmatprep.subr.bf16.mxu0 %v5460
    %7976 = vmatpush1.bf16.msra.mxu0 %v5459
    %7977 = vmatprep.subr.bf16.mxu0 %v5452
    %7978 = vmatpush1.bf16.msra.mxu0 %v5451
    %7979 = vmatprep.subr.bf16.mxu0 %v5444
    %7980 = vmatpush1.bf16.msra.mxu0 %v5443
    %7981 = vmatprep.subr.bf16.mxu0 %v5436
    %7982 = vmatpush1.bf16.msra.mxu0 %v5435
    %7983 = vmatprep.subr.bf16.mxu0 %v5428
    %7984 = vmatpush1.bf16.msra.mxu0 %v5427
    %7985 = vmatprep.subr.bf16.mxu0 %v5420
    %7986 = vmatpush1.bf16.msra.mxu0 %v5419
    %7987 = vmatprep.subr.bf16.mxu0 %v5540
    %7988 = vmatpush2.bf16.msra.mxu0 %v5539
    %7989 = vmatprep.subr.bf16.mxu0 %v5532
    %7990 = vmatpush2.bf16.msra.mxu0 %v5531
    %7991 = vmatprep.subr.bf16.mxu0 %v5524
    %7992 = vmatpush2.bf16.msra.mxu0 %v5523
    %7993 = vmatprep.subr.bf16.mxu0 %v5516
    %7994 = vmatpush2.bf16.msra.mxu0 %v5515
    %7995 = vmatprep.subr.bf16.mxu0 %v5508
    %7996 = vmatpush2.bf16.msra.mxu0 %v5507
    %7997 = vmatprep.subr.bf16.mxu0 %v5500
    %7998 = vmatpush2.bf16.msra.mxu0 %v5499
    %7999 = vmatprep.subr.bf16.mxu0 %v5492
    %8000 = vmatpush2.bf16.msra.mxu0 %v5491
    %8001 = vmatprep.subr.bf16.mxu0 %v5484
    %8002 = vmatpush2.bf16.msra.mxu0 %v5483
    %8003 = vmatprep.mubr.bf16.mxu0 %v1494
    %8004 = vmatmul.mubr.bf16.gmra.mxu0 %v1480
    %v8005 = vpop.f32.mrf.mxu0
    %v8006 = vadd.f32 %v1389, %v8005
    %v8007 = vpop.f32.mrf.mxu0
    %v8008 = vadd.f32 %v1393, %v8007
    %v8009 = vpop.f32.mrf.mxu0
    %v8010 = vpop.f32.mrf.mxu0
    %8011 = vdwg.mxu0
    %8012 = vmatprep.subr.bf16.mxu0 %v5604
    %8013 = vmatpush1.bf16.msra.mxu0 %v5603
    %8014 = vmatprep.subr.bf16.mxu0 %v5596
    %8015 = vmatpush1.bf16.msra.mxu0 %v5595
    %8016 = vmatprep.subr.bf16.mxu0 %v5588
    %8017 = vmatpush1.bf16.msra.mxu0 %v5587
    %8018 = vmatprep.subr.bf16.mxu0 %v5580
    %8019 = vmatpush1.bf16.msra.mxu0 %v5579
    %8020 = vmatprep.subr.bf16.mxu0 %v5572
    %8021 = vmatpush1.bf16.msra.mxu0 %v5571
    %8022 = vmatprep.subr.bf16.mxu0 %v5564
    %8023 = vmatpush1.bf16.msra.mxu0 %v5563
    %8024 = vmatprep.subr.bf16.mxu0 %v5556
    %8025 = vmatpush1.bf16.msra.mxu0 %v5555
    %8026 = vmatprep.subr.bf16.mxu0 %v5548
    %8027 = vmatpush1.bf16.msra.mxu0 %v5547
    %8028 = vmatprep.subr.bf16.mxu0 %v5668
    %8029 = vmatpush2.bf16.msra.mxu0 %v5667
    %8030 = vmatprep.subr.bf16.mxu0 %v5660
    %8031 = vmatpush2.bf16.msra.mxu0 %v5659
    %8032 = vmatprep.subr.bf16.mxu0 %v5652
    %8033 = vmatpush2.bf16.msra.mxu0 %v5651
    %8034 = vmatprep.subr.bf16.mxu0 %v5644
    %8035 = vmatpush2.bf16.msra.mxu0 %v5643
    %8036 = vmatprep.subr.bf16.mxu0 %v5636
    %8037 = vmatpush2.bf16.msra.mxu0 %v5635
    %8038 = vmatprep.subr.bf16.mxu0 %v5628
    %8039 = vmatpush2.bf16.msra.mxu0 %v5627
    %8040 = vmatprep.subr.bf16.mxu0 %v5620
    %8041 = vmatpush2.bf16.msra.mxu0 %v5619
    %8042 = vmatprep.subr.bf16.mxu0 %v5612
    %8043 = vmatpush2.bf16.msra.mxu0 %v5611
    %8044 = vmatprep.mubr.bf16.mxu0 %v1504
    %8045 = vmatmul.mubr.bf16.gmra.mxu0 %v1502
    %v8046 = vpop.f32.mrf.mxu0
    %v8047 = vadd.f32 %v8006, %v8046
    %v8048 = vpop.f32.mrf.mxu0
    %v8049 = vadd.f32 %v8008, %v8048
    %v8050 = vpop.f32.mrf.mxu0
    %v8051 = vpop.f32.mrf.mxu0
    %8052 = vdwg.mxu0
    %8053 = vmatprep.subr.bf16.mxu0 %v5732
    %8054 = vmatpush1.bf16.msra.mxu0 %v5731
    %8055 = vmatprep.subr.bf16.mxu0 %v5724
    %8056 = vmatpush1.bf16.msra.mxu0 %v5723
    %8057 = vmatprep.subr.bf16.mxu0 %v5716
    %8058 = vmatpush1.bf16.msra.mxu0 %v5715
    %8059 = vmatprep.subr.bf16.mxu0 %v5708
    %8060 = vmatpush1.bf16.msra.mxu0 %v5707
    %8061 = vmatprep.subr.bf16.mxu0 %v5700
    %8062 = vmatpush1.bf16.msra.mxu0 %v5699
    %8063 = vmatprep.subr.bf16.mxu0 %v5692
    %8064 = vmatpush1.bf16.msra.mxu0 %v5691
    %8065 = vmatprep.subr.bf16.mxu0 %v5684
    %8066 = vmatpush1.bf16.msra.mxu0 %v5683
    %8067 = vmatprep.subr.bf16.mxu0 %v5676
    %8068 = vmatpush1.bf16.msra.mxu0 %v5675
    %8069 = vmatprep.subr.bf16.mxu0 %v5796
    %8070 = vmatpush2.bf16.msra.mxu0 %v5795
    %8071 = vmatprep.subr.bf16.mxu0 %v5788
    %8072 = vmatpush2.bf16.msra.mxu0 %v5787
    %8073 = vmatprep.subr.bf16.mxu0 %v5780
    %8074 = vmatpush2.bf16.msra.mxu0 %v5779
    %8075 = vmatprep.subr.bf16.mxu0 %v5772
    %8076 = vmatpush2.bf16.msra.mxu0 %v5771
    %8077 = vmatprep.subr.bf16.mxu0 %v5764
    %8078 = vmatpush2.bf16.msra.mxu0 %v5763
    %8079 = vmatprep.subr.bf16.mxu0 %v5756
    %8080 = vmatpush2.bf16.msra.mxu0 %v5755
    %8081 = vmatprep.subr.bf16.mxu0 %v5748
    %8082 = vmatpush2.bf16.msra.mxu0 %v5747
    %8083 = vmatprep.subr.bf16.mxu0 %v5740
    %8084 = vmatpush2.bf16.msra.mxu0 %v5739
    %8085 = vmatprep.mubr.bf16.mxu0 %v1501
    %8086 = vmatmul.mubr.bf16.gmra.mxu0 %v1487
    %v8087 = vpop.f32.mrf.mxu0
    %v8088 = vadd.f32 %v8047, %v8087
    %v8089 = vpop.f32.mrf.mxu0
    %v8090 = vadd.f32 %v8049, %v8089
    %v8091 = vpop.f32.mrf.mxu0
    %v8092 = vpop.f32.mrf.mxu0
    %8093 = vdwg.mxu0
    %8094 = vmatprep.subr.bf16.mxu0 %v5860
    %8095 = vmatpush1.bf16.msra.mxu0 %v5859
    %8096 = vmatprep.subr.bf16.mxu0 %v5852
    %8097 = vmatpush1.bf16.msra.mxu0 %v5851
    %8098 = vmatprep.subr.bf16.mxu0 %v5844
    %8099 = vmatpush1.bf16.msra.mxu0 %v5843
    %8100 = vmatprep.subr.bf16.mxu0 %v5836
    %8101 = vmatpush1.bf16.msra.mxu0 %v5835
    %8102 = vmatprep.subr.bf16.mxu0 %v5828
    %8103 = vmatpush1.bf16.msra.mxu0 %v5827
    %8104 = vmatprep.subr.bf16.mxu0 %v5820
    %8105 = vmatpush1.bf16.msra.mxu0 %v5819
    %8106 = vmatprep.subr.bf16.mxu0 %v5812
    %8107 = vmatpush1.bf16.msra.mxu0 %v5811
    %8108 = vmatprep.subr.bf16.mxu0 %v5804
    %8109 = vmatpush1.bf16.msra.mxu0 %v5803
    %8110 = vmatprep.subr.bf16.mxu0 %v5924
    %8111 = vmatpush2.bf16.msra.mxu0 %v5923
    %8112 = vmatprep.subr.bf16.mxu0 %v5916
    %8113 = vmatpush2.bf16.msra.mxu0 %v5915
    %8114 = vmatprep.subr.bf16.mxu0 %v5908
    %8115 = vmatpush2.bf16.msra.mxu0 %v5907
    %8116 = vmatprep.subr.bf16.mxu0 %v5900
    %8117 = vmatpush2.bf16.msra.mxu0 %v5899
    %8118 = vmatprep.subr.bf16.mxu0 %v5892
    %8119 = vmatpush2.bf16.msra.mxu0 %v5891
    %8120 = vmatprep.subr.bf16.mxu0 %v5884
    %8121 = vmatpush2.bf16.msra.mxu0 %v5883
    %8122 = vmatprep.subr.bf16.mxu0 %v5876
    %8123 = vmatpush2.bf16.msra.mxu0 %v5875
    %8124 = vmatprep.subr.bf16.mxu0 %v5868
    %8125 = vmatpush2.bf16.msra.mxu0 %v5867
    %8126 = vmatprep.mubr.bf16.mxu0 %v1505
    %8127 = vmatmul.mubr.bf16.gmra.mxu0 %v1503
    %v8128 = vpop.f32.mrf.mxu0
    %v8129 = vadd.f32 %v8088, %v8128
    %v8130 = vpop.f32.mrf.mxu0
    %v8131 = vadd.f32 %v8090, %v8130
    %v8132 = vpop.f32.mrf.mxu0
    %v8133 = vpop.f32.mrf.mxu0
    %8134 = vdwg.mxu0
    %8135 = vmatprep.subr.bf16.mxu0 %v5988
    %8136 = vmatpush1.bf16.msra.mxu0 %v5987
    %8137 = vmatprep.subr.bf16.mxu0 %v5980
    %8138 = vmatpush1.bf16.msra.mxu0 %v5979
    %8139 = vmatprep.subr.bf16.mxu0 %v5972
    %8140 = vmatpush1.bf16.msra.mxu0 %v5971
    %8141 = vmatprep.subr.bf16.mxu0 %v5964
    %8142 = vmatpush1.bf16.msra.mxu0 %v5963
    %8143 = vmatprep.subr.bf16.mxu0 %v5956
    %8144 = vmatpush1.bf16.msra.mxu0 %v5955
    %8145 = vmatprep.subr.bf16.mxu0 %v5948
    %8146 = vmatpush1.bf16.msra.mxu0 %v5947
    %8147 = vmatprep.subr.bf16.mxu0 %v5940
    %8148 = vmatpush1.bf16.msra.mxu0 %v5939
    %8149 = vmatprep.subr.bf16.mxu0 %v5932
    %8150 = vmatpush1.bf16.msra.mxu0 %v5931
    %8151 = vmatprep.subr.bf16.mxu0 %v6052
    %8152 = vmatpush2.bf16.msra.mxu0 %v6051
    %8153 = vmatprep.subr.bf16.mxu0 %v6044
    %8154 = vmatpush2.bf16.msra.mxu0 %v6043
    %8155 = vmatprep.subr.bf16.mxu0 %v6036
    %8156 = vmatpush2.bf16.msra.mxu0 %v6035
    %8157 = vmatprep.subr.bf16.mxu0 %v6028
    %8158 = vmatpush2.bf16.msra.mxu0 %v6027
    %8159 = vmatprep.subr.bf16.mxu0 %v6020
    %8160 = vmatpush2.bf16.msra.mxu0 %v6019
    %8161 = vmatprep.subr.bf16.mxu0 %v6012
    %8162 = vmatpush2.bf16.msra.mxu0 %v6011
    %8163 = vmatprep.subr.bf16.mxu0 %v6004
    %8164 = vmatpush2.bf16.msra.mxu0 %v6003
    %8165 = vmatprep.subr.bf16.mxu0 %v5996
    %8166 = vmatpush2.bf16.msra.mxu0 %v5995
    %8167 = vmatprep.mubr.bf16.mxu0 %v1562
    %8168 = vmatmul.mubr.bf16.gmra.mxu0 %v1548
    %v8169 = vpop.f32.mrf.mxu0
    %v8170 = vadd.f32 %v8129, %v8169
    %v8171 = vpop.f32.mrf.mxu0
    %v8172 = vadd.f32 %v8131, %v8171
    %v8173 = vpop.f32.mrf.mxu0
    %v8174 = vpop.f32.mrf.mxu0
    %8175 = vdwg.mxu0
    %8176 = vmatprep.subr.bf16.mxu0 %v6116
    %8177 = vmatpush1.bf16.msra.mxu0 %v6115
    %8178 = vmatprep.subr.bf16.mxu0 %v6108
    %8179 = vmatpush1.bf16.msra.mxu0 %v6107
    %8180 = vmatprep.subr.bf16.mxu0 %v6100
    %8181 = vmatpush1.bf16.msra.mxu0 %v6099
    %8182 = vmatprep.subr.bf16.mxu0 %v6092
    %8183 = vmatpush1.bf16.msra.mxu0 %v6091
    %8184 = vmatprep.subr.bf16.mxu0 %v6084
    %8185 = vmatpush1.bf16.msra.mxu0 %v6083
    %8186 = vmatprep.subr.bf16.mxu0 %v6076
    %8187 = vmatpush1.bf16.msra.mxu0 %v6075
    %8188 = vmatprep.subr.bf16.mxu0 %v6068
    %8189 = vmatpush1.bf16.msra.mxu0 %v6067
    %8190 = vmatprep.subr.bf16.mxu0 %v6060
    %8191 = vmatpush1.bf16.msra.mxu0 %v6059
    %8192 = vmatprep.subr.bf16.mxu0 %v6180
    %8193 = vmatpush2.bf16.msra.mxu0 %v6179
    %8194 = vmatprep.subr.bf16.mxu0 %v6172
    %8195 = vmatpush2.bf16.msra.mxu0 %v6171
    %8196 = vmatprep.subr.bf16.mxu0 %v6164
    %8197 = vmatpush2.bf16.msra.mxu0 %v6163
    %8198 = vmatprep.subr.bf16.mxu0 %v6156
    %8199 = vmatpush2.bf16.msra.mxu0 %v6155
    %8200 = vmatprep.subr.bf16.mxu0 %v6148
    %8201 = vmatpush2.bf16.msra.mxu0 %v6147
    %8202 = vmatprep.subr.bf16.mxu0 %v6140
    %8203 = vmatpush2.bf16.msra.mxu0 %v6139
    %8204 = vmatprep.subr.bf16.mxu0 %v6132
    %8205 = vmatpush2.bf16.msra.mxu0 %v6131
    %8206 = vmatprep.subr.bf16.mxu0 %v6124
    %8207 = vmatpush2.bf16.msra.mxu0 %v6123
    %8208 = vmatprep.mubr.bf16.mxu0 %v1572
    %8209 = vmatmul.mubr.bf16.gmra.mxu0 %v1570
    %v8210 = vpop.f32.mrf.mxu0
    %v8211 = vadd.f32 %v8170, %v8210
    %v8212 = vpop.f32.mrf.mxu0
    %v8213 = vadd.f32 %v8172, %v8212
    %v8214 = vpop.f32.mrf.mxu0
    %v8215 = vpop.f32.mrf.mxu0
    %8216 = vdwg.mxu0
    %8217 = vmatprep.subr.bf16.mxu0 %v6244
    %8218 = vmatpush1.bf16.msra.mxu0 %v6243
    %8219 = vmatprep.subr.bf16.mxu0 %v6236
    %8220 = vmatpush1.bf16.msra.mxu0 %v6235
    %8221 = vmatprep.subr.bf16.mxu0 %v6228
    %8222 = vmatpush1.bf16.msra.mxu0 %v6227
    %8223 = vmatprep.subr.bf16.mxu0 %v6220
    %8224 = vmatpush1.bf16.msra.mxu0 %v6219
    %8225 = vmatprep.subr.bf16.mxu0 %v6212
    %8226 = vmatpush1.bf16.msra.mxu0 %v6211
    %8227 = vmatprep.subr.bf16.mxu0 %v6204
    %8228 = vmatpush1.bf16.msra.mxu0 %v6203
    %8229 = vmatprep.subr.bf16.mxu0 %v6196
    %8230 = vmatpush1.bf16.msra.mxu0 %v6195
    %8231 = vmatprep.subr.bf16.mxu0 %v6188
    %8232 = vmatpush1.bf16.msra.mxu0 %v6187
    %8233 = vmatprep.subr.bf16.mxu0 %v6308
    %8234 = vmatpush2.bf16.msra.mxu0 %v6307
    %8235 = vmatprep.subr.bf16.mxu0 %v6300
    %8236 = vmatpush2.bf16.msra.mxu0 %v6299
    %8237 = vmatprep.subr.bf16.mxu0 %v6292
    %8238 = vmatpush2.bf16.msra.mxu0 %v6291
    %8239 = vmatprep.subr.bf16.mxu0 %v6284
    %8240 = vmatpush2.bf16.msra.mxu0 %v6283
    %8241 = vmatprep.subr.bf16.mxu0 %v6276
    %8242 = vmatpush2.bf16.msra.mxu0 %v6275
    %8243 = vmatprep.subr.bf16.mxu0 %v6268
    %8244 = vmatpush2.bf16.msra.mxu0 %v6267
    %8245 = vmatprep.subr.bf16.mxu0 %v6260
    %8246 = vmatpush2.bf16.msra.mxu0 %v6259
    %8247 = vmatprep.subr.bf16.mxu0 %v6252
    %8248 = vmatpush2.bf16.msra.mxu0 %v6251
    %8249 = vmatprep.mubr.bf16.mxu0 %v1569
    %8250 = vmatmul.mubr.bf16.gmra.mxu0 %v1555
    %v8251 = vpop.f32.mrf.mxu0
    %v8252 = vadd.f32 %v8211, %v8251
    %v8253 = vpop.f32.mrf.mxu0
    %v8254 = vadd.f32 %v8213, %v8253
    %v8255 = vpop.f32.mrf.mxu0
    %v8256 = vpop.f32.mrf.mxu0
    %8257 = vdwg.mxu0
    %8258 = vmatprep.subr.bf16.mxu0 %v6372
    %8259 = vmatpush1.bf16.msra.mxu0 %v6371
    %8260 = vmatprep.subr.bf16.mxu0 %v6364
    %8261 = vmatpush1.bf16.msra.mxu0 %v6363
    %8262 = vmatprep.subr.bf16.mxu0 %v6356
    %8263 = vmatpush1.bf16.msra.mxu0 %v6355
    %8264 = vmatprep.subr.bf16.mxu0 %v6348
    %8265 = vmatpush1.bf16.msra.mxu0 %v6347
    %8266 = vmatprep.subr.bf16.mxu0 %v6340
    %8267 = vmatpush1.bf16.msra.mxu0 %v6339
    %8268 = vmatprep.subr.bf16.mxu0 %v6332
    %8269 = vmatpush1.bf16.msra.mxu0 %v6331
    %8270 = vmatprep.subr.bf16.mxu0 %v6324
    %8271 = vmatpush1.bf16.msra.mxu0 %v6323
    %8272 = vmatprep.subr.bf16.mxu0 %v6316
    %8273 = vmatpush1.bf16.msra.mxu0 %v6315
    %8274 = vmatprep.subr.bf16.mxu0 %v6436
    %8275 = vmatpush2.bf16.msra.mxu0 %v6435
    %8276 = vmatprep.subr.bf16.mxu0 %v6428
    %8277 = vmatpush2.bf16.msra.mxu0 %v6427
    %8278 = vmatprep.subr.bf16.mxu0 %v6420
    %8279 = vmatpush2.bf16.msra.mxu0 %v6419
    %8280 = vmatprep.subr.bf16.mxu0 %v6412
    %8281 = vmatpush2.bf16.msra.mxu0 %v6411
    %8282 = vmatprep.subr.bf16.mxu0 %v6404
    %8283 = vmatpush2.bf16.msra.mxu0 %v6403
    %8284 = vmatprep.subr.bf16.mxu0 %v6396
    %8285 = vmatpush2.bf16.msra.mxu0 %v6395
    %8286 = vmatprep.subr.bf16.mxu0 %v6388
    %8287 = vmatpush2.bf16.msra.mxu0 %v6387
    %8288 = vmatprep.subr.bf16.mxu0 %v6380
    %8289 = vmatpush2.bf16.msra.mxu0 %v6379
    %8290 = vmatprep.mubr.bf16.mxu0 %v1573
    %8291 = vmatmul.mubr.bf16.gmra.mxu0 %v1571
    %v8292 = vpop.f32.mrf.mxu0
    %v8293 = vadd.f32 %v8252, %v8292
    %v8294 = vpop.f32.mrf.mxu0
    %v8295 = vadd.f32 %v8254, %v8294
    %v8296 = vpop.f32.mrf.mxu0
    %v8297 = vpop.f32.mrf.mxu0
    %8298 = vdwg.mxu0
    %8299 = vmatprep.subr.bf16.mxu0 %v6500
    %8300 = vmatpush1.bf16.msra.mxu0 %v6499
    %8301 = vmatprep.subr.bf16.mxu0 %v6492
    %8302 = vmatpush1.bf16.msra.mxu0 %v6491
    %8303 = vmatprep.subr.bf16.mxu0 %v6484
    %8304 = vmatpush1.bf16.msra.mxu0 %v6483
    %8305 = vmatprep.subr.bf16.mxu0 %v6476
    %8306 = vmatpush1.bf16.msra.mxu0 %v6475
    %8307 = vmatprep.subr.bf16.mxu0 %v6468
    %8308 = vmatpush1.bf16.msra.mxu0 %v6467
    %8309 = vmatprep.subr.bf16.mxu0 %v6460
    %8310 = vmatpush1.bf16.msra.mxu0 %v6459
    %8311 = vmatprep.subr.bf16.mxu0 %v6452
    %8312 = vmatpush1.bf16.msra.mxu0 %v6451
    %8313 = vmatprep.subr.bf16.mxu0 %v6444
    %8314 = vmatpush1.bf16.msra.mxu0 %v6443
    %8315 = vmatprep.subr.bf16.mxu0 %v6564
    %8316 = vmatpush2.bf16.msra.mxu0 %v6563
    %8317 = vmatprep.subr.bf16.mxu0 %v6556
    %8318 = vmatpush2.bf16.msra.mxu0 %v6555
    %8319 = vmatprep.subr.bf16.mxu0 %v6548
    %8320 = vmatpush2.bf16.msra.mxu0 %v6547
    %8321 = vmatprep.subr.bf16.mxu0 %v6540
    %8322 = vmatpush2.bf16.msra.mxu0 %v6539
    %8323 = vmatprep.subr.bf16.mxu0 %v6532
    %8324 = vmatpush2.bf16.msra.mxu0 %v6531
    %8325 = vmatprep.subr.bf16.mxu0 %v6524
    %8326 = vmatpush2.bf16.msra.mxu0 %v6523
    %8327 = vmatprep.subr.bf16.mxu0 %v6516
    %8328 = vmatpush2.bf16.msra.mxu0 %v6515
    %8329 = vmatprep.subr.bf16.mxu0 %v6508
    %8330 = vmatpush2.bf16.msra.mxu0 %v6507
    %8331 = vmatprep.mubr.bf16.mxu0 %v1605
    %8332 = vmatmul.mubr.bf16.gmra.mxu0 %v1598
    %v8333 = vpop.f32.mrf.mxu0
    %v8334 = vadd.f32 %v8293, %v8333
    %v8335 = vpop.f32.mrf.mxu0
    %v8336 = vadd.f32 %v8295, %v8335
    %v8337 = vpop.f32.mrf.mxu0
    %v8338 = vpop.f32.mrf.mxu0
    %8339 = vdwg.mxu0
    %8340 = vmatprep.subr.bf16.mxu0 %v6628
    %8341 = vmatpush1.bf16.msra.mxu0 %v6627
    %8342 = vmatprep.subr.bf16.mxu0 %v6620
    %8343 = vmatpush1.bf16.msra.mxu0 %v6619
    %8344 = vmatprep.subr.bf16.mxu0 %v6612
    %8345 = vmatpush1.bf16.msra.mxu0 %v6611
    %8346 = vmatprep.subr.bf16.mxu0 %v6604
    %8347 = vmatpush1.bf16.msra.mxu0 %v6603
    %8348 = vmatprep.subr.bf16.mxu0 %v6596
    %8349 = vmatpush1.bf16.msra.mxu0 %v6595
    %8350 = vmatprep.subr.bf16.mxu0 %v6588
    %8351 = vmatpush1.bf16.msra.mxu0 %v6587
    %8352 = vmatprep.subr.bf16.mxu0 %v6580
    %8353 = vmatpush1.bf16.msra.mxu0 %v6579
    %8354 = vmatprep.subr.bf16.mxu0 %v6572
    %8355 = vmatpush1.bf16.msra.mxu0 %v6571
    %8356 = vmatprep.subr.bf16.mxu0 0
    %8357 = vmatpush2.bf16.msra.mxu0 0
    %8358 = vmatprep.subr.bf16.mxu0 0
    %8359 = vmatpush2.bf16.msra.mxu0 0
    %8360 = vmatprep.subr.bf16.mxu0 %v7951
    %8361 = vmatpush2.bf16.msra.mxu0 %v7948
    %8362 = vmatprep.subr.bf16.mxu0 %v6668
    %8363 = vmatpush2.bf16.msra.mxu0 %v6667
    %8364 = vmatprep.subr.bf16.mxu0 %v6660
    %8365 = vmatpush2.bf16.msra.mxu0 %v6659
    %8366 = vmatprep.subr.bf16.mxu0 %v6652
    %8367 = vmatpush2.bf16.msra.mxu0 %v6651
    %8368 = vmatprep.subr.bf16.mxu0 %v6644
    %8369 = vmatpush2.bf16.msra.mxu0 %v6643
    %8370 = vmatprep.subr.bf16.mxu0 %v6636
    %8371 = vmatpush2.bf16.msra.mxu0 %v6635
    %8372 = vmatprep.mubr.bf16.mxu0 %v7941
    %8373 = vmatmul.mubr.bf16.gmra.mxu0 %v1606
    %v8374 = vpop.f32.mrf.mxu0
    %v8375 = vadd.f32 %v8334, %v8374
    %v8376 = vpop.f32.mrf.mxu0
    %v8377 = vadd.f32 %v8336, %v8376
    %v8378 = vpop.f32.mrf.mxu0
    %v8379 = vpop.f32.mrf.mxu0
    %8380 = vdwg.mxu0
    %8381 = vmatprep.subr.bf16.mxu0 %v5478
    %8382 = vmatpush1.bf16.msra.mxu0 %v5477
    %8383 = vmatprep.subr.bf16.mxu0 %v5470
    %8384 = vmatpush1.bf16.msra.mxu0 %v5469
    %8385 = vmatprep.subr.bf16.mxu0 %v5462
    %8386 = vmatpush1.bf16.msra.mxu0 %v5461
    %8387 = vmatprep.subr.bf16.mxu0 %v5454
    %8388 = vmatpush1.bf16.msra.mxu0 %v5453
    %8389 = vmatprep.subr.bf16.mxu0 %v5446
    %8390 = vmatpush1.bf16.msra.mxu0 %v5445
    %8391 = vmatprep.subr.bf16.mxu0 %v5438
    %8392 = vmatpush1.bf16.msra.mxu0 %v5437
    %8393 = vmatprep.subr.bf16.mxu0 %v5430
    %8394 = vmatpush1.bf16.msra.mxu0 %v5429
    %8395 = vmatprep.subr.bf16.mxu0 %v5422
    %8396 = vmatpush1.bf16.msra.mxu0 %v5421
    %8397 = vmatprep.subr.bf16.mxu0 %v5542
    %8398 = vmatpush2.bf16.msra.mxu0 %v5541
    %8399 = vmatprep.subr.bf16.mxu0 %v5534
    %8400 = vmatpush2.bf16.msra.mxu0 %v5533
    %8401 = vmatprep.subr.bf16.mxu0 %v5526
    %8402 = vmatpush2.bf16.msra.mxu0 %v5525
    %8403 = vmatprep.subr.bf16.mxu0 %v5518
    %8404 = vmatpush2.bf16.msra.mxu0 %v5517
    %8405 = vmatprep.subr.bf16.mxu0 %v5510
    %8406 = vmatpush2.bf16.msra.mxu0 %v5509
    %8407 = vmatprep.subr.bf16.mxu0 %v5502
    %8408 = vmatpush2.bf16.msra.mxu0 %v5501
    %8409 = vmatprep.subr.bf16.mxu0 %v5494
    %8410 = vmatpush2.bf16.msra.mxu0 %v5493
    %8411 = vmatprep.subr.bf16.mxu0 %v5486
    %8412 = vmatpush2.bf16.msra.mxu0 %v5485
    %8413 = vmatprep.mubr.bf16.mxu0 %v1494
    %8414 = vmatmul.mubr.bf16.gmra.mxu0 %v1480
    %v8415 = vpop.f32.mrf.mxu0
    %v8416 = vadd.f32 %v1397, %v8415
    %v8417 = vpop.f32.mrf.mxu0
    %v8418 = vadd.f32 %v1401, %v8417
    %v8419 = vpop.f32.mrf.mxu0
    %v8420 = vpop.f32.mrf.mxu0
    %8421 = vdwg.mxu0
    %8422 = vmatprep.subr.bf16.mxu0 %v5606
    %8423 = vmatpush1.bf16.msra.mxu0 %v5605
    %8424 = vmatprep.subr.bf16.mxu0 %v5598
    %8425 = vmatpush1.bf16.msra.mxu0 %v5597
    %8426 = vmatprep.subr.bf16.mxu0 %v5590
    %8427 = vmatpush1.bf16.msra.mxu0 %v5589
    %8428 = vmatprep.subr.bf16.mxu0 %v5582
    %8429 = vmatpush1.bf16.msra.mxu0 %v5581
    %8430 = vmatprep.subr.bf16.mxu0 %v5574
    %8431 = vmatpush1.bf16.msra.mxu0 %v5573
    %8432 = vmatprep.subr.bf16.mxu0 %v5566
    %8433 = vmatpush1.bf16.msra.mxu0 %v5565
    %8434 = vmatprep.subr.bf16.mxu0 %v5558
    %8435 = vmatpush1.bf16.msra.mxu0 %v5557
    %8436 = vmatprep.subr.bf16.mxu0 %v5550
    %8437 = vmatpush1.bf16.msra.mxu0 %v5549
    %8438 = vmatprep.subr.bf16.mxu0 %v5670
    %8439 = vmatpush2.bf16.msra.mxu0 %v5669
    %8440 = vmatprep.subr.bf16.mxu0 %v5662
    %8441 = vmatpush2.bf16.msra.mxu0 %v5661
    %8442 = vmatprep.subr.bf16.mxu0 %v5654
    %8443 = vmatpush2.bf16.msra.mxu0 %v5653
    %8444 = vmatprep.subr.bf16.mxu0 %v5646
    %8445 = vmatpush2.bf16.msra.mxu0 %v5645
    %8446 = vmatprep.subr.bf16.mxu0 %v5638
    %8447 = vmatpush2.bf16.msra.mxu0 %v5637
    %8448 = vmatprep.subr.bf16.mxu0 %v5630
    %8449 = vmatpush2.bf16.msra.mxu0 %v5629
    %8450 = vmatprep.subr.bf16.mxu0 %v5622
    %8451 = vmatpush2.bf16.msra.mxu0 %v5621
    %8452 = vmatprep.subr.bf16.mxu0 %v5614
    %8453 = vmatpush2.bf16.msra.mxu0 %v5613
    %8454 = vmatprep.mubr.bf16.mxu0 %v1504
    %8455 = vmatmul.mubr.bf16.gmra.mxu0 %v1502
    %v8456 = vpop.f32.mrf.mxu0
    %v8457 = vadd.f32 %v8416, %v8456
    %v8458 = vpop.f32.mrf.mxu0
    %v8459 = vadd.f32 %v8418, %v8458
    %v8460 = vpop.f32.mrf.mxu0
    %v8461 = vpop.f32.mrf.mxu0
    %8462 = vdwg.mxu0
    %8463 = vmatprep.subr.bf16.mxu0 %v5734
    %8464 = vmatpush1.bf16.msra.mxu0 %v5733
    %8465 = vmatprep.subr.bf16.mxu0 %v5726
    %8466 = vmatpush1.bf16.msra.mxu0 %v5725
    %8467 = vmatprep.subr.bf16.mxu0 %v5718
    %8468 = vmatpush1.bf16.msra.mxu0 %v5717
    %8469 = vmatprep.subr.bf16.mxu0 %v5710
    %8470 = vmatpush1.bf16.msra.mxu0 %v5709
    %8471 = vmatprep.subr.bf16.mxu0 %v5702
    %8472 = vmatpush1.bf16.msra.mxu0 %v5701
    %8473 = vmatprep.subr.bf16.mxu0 %v5694
    %8474 = vmatpush1.bf16.msra.mxu0 %v5693
    %8475 = vmatprep.subr.bf16.mxu0 %v5686
    %8476 = vmatpush1.bf16.msra.mxu0 %v5685
    %8477 = vmatprep.subr.bf16.mxu0 %v5678
    %8478 = vmatpush1.bf16.msra.mxu0 %v5677
    %8479 = vmatprep.subr.bf16.mxu0 %v5798
    %8480 = vmatpush2.bf16.msra.mxu0 %v5797
    %8481 = vmatprep.subr.bf16.mxu0 %v5790
    %8482 = vmatpush2.bf16.msra.mxu0 %v5789
    %8483 = vmatprep.subr.bf16.mxu0 %v5782
    %8484 = vmatpush2.bf16.msra.mxu0 %v5781
    %8485 = vmatprep.subr.bf16.mxu0 %v5774
    %8486 = vmatpush2.bf16.msra.mxu0 %v5773
    %8487 = vmatprep.subr.bf16.mxu0 %v5766
    %8488 = vmatpush2.bf16.msra.mxu0 %v5765
    %8489 = vmatprep.subr.bf16.mxu0 %v5758
    %8490 = vmatpush2.bf16.msra.mxu0 %v5757
    %8491 = vmatprep.subr.bf16.mxu0 %v5750
    %8492 = vmatpush2.bf16.msra.mxu0 %v5749
    %8493 = vmatprep.subr.bf16.mxu0 %v5742
    %8494 = vmatpush2.bf16.msra.mxu0 %v5741
    %8495 = vmatprep.mubr.bf16.mxu0 %v1501
    %8496 = vmatmul.mubr.bf16.gmra.mxu0 %v1487
    %v8497 = vpop.f32.mrf.mxu0
    %v8498 = vadd.f32 %v8457, %v8497
    %v8499 = vpop.f32.mrf.mxu0
    %v8500 = vadd.f32 %v8459, %v8499
    %v8501 = vpop.f32.mrf.mxu0
    %v8502 = vpop.f32.mrf.mxu0
    %8503 = vdwg.mxu0
    %8504 = vmatprep.subr.bf16.mxu0 %v5862
    %8505 = vmatpush1.bf16.msra.mxu0 %v5861
    %8506 = vmatprep.subr.bf16.mxu0 %v5854
    %8507 = vmatpush1.bf16.msra.mxu0 %v5853
    %8508 = vmatprep.subr.bf16.mxu0 %v5846
    %8509 = vmatpush1.bf16.msra.mxu0 %v5845
    %8510 = vmatprep.subr.bf16.mxu0 %v5838
    %8511 = vmatpush1.bf16.msra.mxu0 %v5837
    %8512 = vmatprep.subr.bf16.mxu0 %v5830
    %8513 = vmatpush1.bf16.msra.mxu0 %v5829
    %8514 = vmatprep.subr.bf16.mxu0 %v5822
    %8515 = vmatpush1.bf16.msra.mxu0 %v5821
    %8516 = vmatprep.subr.bf16.mxu0 %v5814
    %8517 = vmatpush1.bf16.msra.mxu0 %v5813
    %8518 = vmatprep.subr.bf16.mxu0 %v5806
    %8519 = vmatpush1.bf16.msra.mxu0 %v5805
    %8520 = vmatprep.subr.bf16.mxu0 %v5926
    %8521 = vmatpush2.bf16.msra.mxu0 %v5925
    %8522 = vmatprep.subr.bf16.mxu0 %v5918
    %8523 = vmatpush2.bf16.msra.mxu0 %v5917
    %8524 = vmatprep.subr.bf16.mxu0 %v5910
    %8525 = vmatpush2.bf16.msra.mxu0 %v5909
    %8526 = vmatprep.subr.bf16.mxu0 %v5902
    %8527 = vmatpush2.bf16.msra.mxu0 %v5901
    %8528 = vmatprep.subr.bf16.mxu0 %v5894
    %8529 = vmatpush2.bf16.msra.mxu0 %v5893
    %8530 = vmatprep.subr.bf16.mxu0 %v5886
    %8531 = vmatpush2.bf16.msra.mxu0 %v5885
    %8532 = vmatprep.subr.bf16.mxu0 %v5878
    %8533 = vmatpush2.bf16.msra.mxu0 %v5877
    %8534 = vmatprep.subr.bf16.mxu0 %v5870
    %8535 = vmatpush2.bf16.msra.mxu0 %v5869
    %8536 = vmatprep.mubr.bf16.mxu0 %v1505
    %8537 = vmatmul.mubr.bf16.gmra.mxu0 %v1503
    %v8538 = vpop.f32.mrf.mxu0
    %v8539 = vadd.f32 %v8498, %v8538
    %v8540 = vpop.f32.mrf.mxu0
    %v8541 = vadd.f32 %v8500, %v8540
    %v8542 = vpop.f32.mrf.mxu0
    %v8543 = vpop.f32.mrf.mxu0
    %8544 = vdwg.mxu0
    %8545 = vmatprep.subr.bf16.mxu0 %v5990
    %8546 = vmatpush1.bf16.msra.mxu0 %v5989
    %8547 = vmatprep.subr.bf16.mxu0 %v5982
    %8548 = vmatpush1.bf16.msra.mxu0 %v5981
    %8549 = vmatprep.subr.bf16.mxu0 %v5974
    %8550 = vmatpush1.bf16.msra.mxu0 %v5973
    %8551 = vmatprep.subr.bf16.mxu0 %v5966
    %8552 = vmatpush1.bf16.msra.mxu0 %v5965
    %8553 = vmatprep.subr.bf16.mxu0 %v5958
    %8554 = vmatpush1.bf16.msra.mxu0 %v5957
    %8555 = vmatprep.subr.bf16.mxu0 %v5950
    %8556 = vmatpush1.bf16.msra.mxu0 %v5949
    %8557 = vmatprep.subr.bf16.mxu0 %v5942
    %8558 = vmatpush1.bf16.msra.mxu0 %v5941
    %8559 = vmatprep.subr.bf16.mxu0 %v5934
    %8560 = vmatpush1.bf16.msra.mxu0 %v5933
    %8561 = vmatprep.subr.bf16.mxu0 %v6054
    %8562 = vmatpush2.bf16.msra.mxu0 %v6053
    %8563 = vmatprep.subr.bf16.mxu0 %v6046
    %8564 = vmatpush2.bf16.msra.mxu0 %v6045
    %8565 = vmatprep.subr.bf16.mxu0 %v6038
    %8566 = vmatpush2.bf16.msra.mxu0 %v6037
    %8567 = vmatprep.subr.bf16.mxu0 %v6030
    %8568 = vmatpush2.bf16.msra.mxu0 %v6029
    %8569 = vmatprep.subr.bf16.mxu0 %v6022
    %8570 = vmatpush2.bf16.msra.mxu0 %v6021
    %8571 = vmatprep.subr.bf16.mxu0 %v6014
    %8572 = vmatpush2.bf16.msra.mxu0 %v6013
    %8573 = vmatprep.subr.bf16.mxu0 %v6006
    %8574 = vmatpush2.bf16.msra.mxu0 %v6005
    %8575 = vmatprep.subr.bf16.mxu0 %v5998
    %8576 = vmatpush2.bf16.msra.mxu0 %v5997
    %8577 = vmatprep.mubr.bf16.mxu0 %v1562
    %8578 = vmatmul.mubr.bf16.gmra.mxu0 %v1548
    %v8579 = vpop.f32.mrf.mxu0
    %v8580 = vadd.f32 %v8539, %v8579
    %v8581 = vpop.f32.mrf.mxu0
    %v8582 = vadd.f32 %v8541, %v8581
    %v8583 = vpop.f32.mrf.mxu0
    %v8584 = vpop.f32.mrf.mxu0
    %8585 = vdwg.mxu0
    %8586 = vmatprep.subr.bf16.mxu0 %v6118
    %8587 = vmatpush1.bf16.msra.mxu0 %v6117
    %8588 = vmatprep.subr.bf16.mxu0 %v6110
    %8589 = vmatpush1.bf16.msra.mxu0 %v6109
    %8590 = vmatprep.subr.bf16.mxu0 %v6102
    %8591 = vmatpush1.bf16.msra.mxu0 %v6101
    %8592 = vmatprep.subr.bf16.mxu0 %v6094
    %8593 = vmatpush1.bf16.msra.mxu0 %v6093
    %8594 = vmatprep.subr.bf16.mxu0 %v6086
    %8595 = vmatpush1.bf16.msra.mxu0 %v6085
    %8596 = vmatprep.subr.bf16.mxu0 %v6078
    %8597 = vmatpush1.bf16.msra.mxu0 %v6077
    %8598 = vmatprep.subr.bf16.mxu0 %v6070
    %8599 = vmatpush1.bf16.msra.mxu0 %v6069
    %8600 = vmatprep.subr.bf16.mxu0 %v6062
    %8601 = vmatpush1.bf16.msra.mxu0 %v6061
    %8602 = vmatprep.subr.bf16.mxu0 %v6182
    %8603 = vmatpush2.bf16.msra.mxu0 %v6181
    %8604 = vmatprep.subr.bf16.mxu0 %v6174
    %8605 = vmatpush2.bf16.msra.mxu0 %v6173
    %8606 = vmatprep.subr.bf16.mxu0 %v6166
    %8607 = vmatpush2.bf16.msra.mxu0 %v6165
    %8608 = vmatprep.subr.bf16.mxu0 %v6158
    %8609 = vmatpush2.bf16.msra.mxu0 %v6157
    %8610 = vmatprep.subr.bf16.mxu0 %v6150
    %8611 = vmatpush2.bf16.msra.mxu0 %v6149
    %8612 = vmatprep.subr.bf16.mxu0 %v6142
    %8613 = vmatpush2.bf16.msra.mxu0 %v6141
    %8614 = vmatprep.subr.bf16.mxu0 %v6134
    %8615 = vmatpush2.bf16.msra.mxu0 %v6133
    %8616 = vmatprep.subr.bf16.mxu0 %v6126
    %8617 = vmatpush2.bf16.msra.mxu0 %v6125
    %8618 = vmatprep.mubr.bf16.mxu0 %v1572
    %8619 = vmatmul.mubr.bf16.gmra.mxu0 %v1570
    %v8620 = vpop.f32.mrf.mxu0
    %v8621 = vadd.f32 %v8580, %v8620
    %v8622 = vpop.f32.mrf.mxu0
    %v8623 = vadd.f32 %v8582, %v8622
    %v8624 = vpop.f32.mrf.mxu0
    %v8625 = vpop.f32.mrf.mxu0
    %8626 = vdwg.mxu0
    %8627 = vmatprep.subr.bf16.mxu0 %v6246
    %8628 = vmatpush1.bf16.msra.mxu0 %v6245
    %8629 = vmatprep.subr.bf16.mxu0 %v6238
    %8630 = vmatpush1.bf16.msra.mxu0 %v6237
    %8631 = vmatprep.subr.bf16.mxu0 %v6230
    %8632 = vmatpush1.bf16.msra.mxu0 %v6229
    %8633 = vmatprep.subr.bf16.mxu0 %v6222
    %8634 = vmatpush1.bf16.msra.mxu0 %v6221
    %8635 = vmatprep.subr.bf16.mxu0 %v6214
    %8636 = vmatpush1.bf16.msra.mxu0 %v6213
    %8637 = vmatprep.subr.bf16.mxu0 %v6206
    %8638 = vmatpush1.bf16.msra.mxu0 %v6205
    %8639 = vmatprep.subr.bf16.mxu0 %v6198
    %8640 = vmatpush1.bf16.msra.mxu0 %v6197
    %8641 = vmatprep.subr.bf16.mxu0 %v6190
    %8642 = vmatpush1.bf16.msra.mxu0 %v6189
    %8643 = vmatprep.subr.bf16.mxu0 %v6310
    %8644 = vmatpush2.bf16.msra.mxu0 %v6309
    %8645 = vmatprep.subr.bf16.mxu0 %v6302
    %8646 = vmatpush2.bf16.msra.mxu0 %v6301
    %8647 = vmatprep.subr.bf16.mxu0 %v6294
    %8648 = vmatpush2.bf16.msra.mxu0 %v6293
    %8649 = vmatprep.subr.bf16.mxu0 %v6286
    %8650 = vmatpush2.bf16.msra.mxu0 %v6285
    %8651 = vmatprep.subr.bf16.mxu0 %v6278
    %8652 = vmatpush2.bf16.msra.mxu0 %v6277
    %8653 = vmatprep.subr.bf16.mxu0 %v6270
    %8654 = vmatpush2.bf16.msra.mxu0 %v6269
    %8655 = vmatprep.subr.bf16.mxu0 %v6262
    %8656 = vmatpush2.bf16.msra.mxu0 %v6261
    %8657 = vmatprep.subr.bf16.mxu0 %v6254
    %8658 = vmatpush2.bf16.msra.mxu0 %v6253
    %8659 = vmatprep.mubr.bf16.mxu0 %v1569
    %8660 = vmatmul.mubr.bf16.gmra.mxu0 %v1555
    %v8661 = vpop.f32.mrf.mxu0
    %v8662 = vadd.f32 %v8621, %v8661
    %v8663 = vpop.f32.mrf.mxu0
    %v8664 = vadd.f32 %v8623, %v8663
    %v8665 = vpop.f32.mrf.mxu0
    %v8666 = vpop.f32.mrf.mxu0
    %8667 = vdwg.mxu0
    %8668 = vmatprep.subr.bf16.mxu0 %v6374
    %8669 = vmatpush1.bf16.msra.mxu0 %v6373
    %8670 = vmatprep.subr.bf16.mxu0 %v6366
    %8671 = vmatpush1.bf16.msra.mxu0 %v6365
    %8672 = vmatprep.subr.bf16.mxu0 %v6358
    %8673 = vmatpush1.bf16.msra.mxu0 %v6357
    %8674 = vmatprep.subr.bf16.mxu0 %v6350
    %8675 = vmatpush1.bf16.msra.mxu0 %v6349
    %8676 = vmatprep.subr.bf16.mxu0 %v6342
    %8677 = vmatpush1.bf16.msra.mxu0 %v6341
    %8678 = vmatprep.subr.bf16.mxu0 %v6334
    %8679 = vmatpush1.bf16.msra.mxu0 %v6333
    %8680 = vmatprep.subr.bf16.mxu0 %v6326
    %8681 = vmatpush1.bf16.msra.mxu0 %v6325
    %8682 = vmatprep.subr.bf16.mxu0 %v6318
    %8683 = vmatpush1.bf16.msra.mxu0 %v6317
    %8684 = vmatprep.subr.bf16.mxu0 %v6438
    %8685 = vmatpush2.bf16.msra.mxu0 %v6437
    %8686 = vmatprep.subr.bf16.mxu0 %v6430
    %8687 = vmatpush2.bf16.msra.mxu0 %v6429
    %8688 = vmatprep.subr.bf16.mxu0 %v6422
    %8689 = vmatpush2.bf16.msra.mxu0 %v6421
    %8690 = vmatprep.subr.bf16.mxu0 %v6414
    %8691 = vmatpush2.bf16.msra.mxu0 %v6413
    %8692 = vmatprep.subr.bf16.mxu0 %v6406
    %8693 = vmatpush2.bf16.msra.mxu0 %v6405
    %8694 = vmatprep.subr.bf16.mxu0 %v6398
    %8695 = vmatpush2.bf16.msra.mxu0 %v6397
    %8696 = vmatprep.subr.bf16.mxu0 %v6390
    %8697 = vmatpush2.bf16.msra.mxu0 %v6389
    %8698 = vmatprep.subr.bf16.mxu0 %v6382
    %8699 = vmatpush2.bf16.msra.mxu0 %v6381
    %8700 = vmatprep.mubr.bf16.mxu0 %v1573
    %8701 = vmatmul.mubr.bf16.gmra.mxu0 %v1571
    %v8702 = vpop.f32.mrf.mxu0
    %v8703 = vadd.f32 %v8662, %v8702
    %v8704 = vpop.f32.mrf.mxu0
    %v8705 = vadd.f32 %v8664, %v8704
    %v8706 = vpop.f32.mrf.mxu0
    %v8707 = vpop.f32.mrf.mxu0
    %8708 = vdwg.mxu0
    %8709 = vmatprep.subr.bf16.mxu0 %v6502
    %8710 = vmatpush1.bf16.msra.mxu0 %v6501
    %8711 = vmatprep.subr.bf16.mxu0 %v6494
    %8712 = vmatpush1.bf16.msra.mxu0 %v6493
    %8713 = vmatprep.subr.bf16.mxu0 %v6486
    %8714 = vmatpush1.bf16.msra.mxu0 %v6485
    %8715 = vmatprep.subr.bf16.mxu0 %v6478
    %8716 = vmatpush1.bf16.msra.mxu0 %v6477
    %8717 = vmatprep.subr.bf16.mxu0 %v6470
    %8718 = vmatpush1.bf16.msra.mxu0 %v6469
    %8719 = vmatprep.subr.bf16.mxu0 %v6462
    %8720 = vmatpush1.bf16.msra.mxu0 %v6461
    %8721 = vmatprep.subr.bf16.mxu0 %v6454
    %8722 = vmatpush1.bf16.msra.mxu0 %v6453
    %8723 = vmatprep.subr.bf16.mxu0 %v6446
    %8724 = vmatpush1.bf16.msra.mxu0 %v6445
    %8725 = vmatprep.subr.bf16.mxu0 %v6566
    %8726 = vmatpush2.bf16.msra.mxu0 %v6565
    %8727 = vmatprep.subr.bf16.mxu0 %v6558
    %8728 = vmatpush2.bf16.msra.mxu0 %v6557
    %8729 = vmatprep.subr.bf16.mxu0 %v6550
    %8730 = vmatpush2.bf16.msra.mxu0 %v6549
    %8731 = vmatprep.subr.bf16.mxu0 %v6542
    %8732 = vmatpush2.bf16.msra.mxu0 %v6541
    %8733 = vmatprep.subr.bf16.mxu0 %v6534
    %8734 = vmatpush2.bf16.msra.mxu0 %v6533
    %8735 = vmatprep.subr.bf16.mxu0 %v6526
    %8736 = vmatpush2.bf16.msra.mxu0 %v6525
    %8737 = vmatprep.subr.bf16.mxu0 %v6518
    %8738 = vmatpush2.bf16.msra.mxu0 %v6517
    %8739 = vmatprep.subr.bf16.mxu0 %v6510
    %8740 = vmatpush2.bf16.msra.mxu0 %v6509
    %8741 = vmatprep.mubr.bf16.mxu0 %v1605
    %8742 = vmatmul.mubr.bf16.gmra.mxu0 %v1598
    %v8743 = vpop.f32.mrf.mxu0
    %v8744 = vadd.f32 %v8703, %v8743
    %v8745 = vpop.f32.mrf.mxu0
    %v8746 = vadd.f32 %v8705, %v8745
    %v8747 = vpop.f32.mrf.mxu0
    %v8748 = vpop.f32.mrf.mxu0
    %8749 = vdwg.mxu0
    %8750 = vmatprep.subr.bf16.mxu0 %v6630
    %8751 = vmatpush1.bf16.msra.mxu0 %v6629
    %8752 = vmatprep.subr.bf16.mxu0 %v6622
    %8753 = vmatpush1.bf16.msra.mxu0 %v6621
    %8754 = vmatprep.subr.bf16.mxu0 %v6614
    %8755 = vmatpush1.bf16.msra.mxu0 %v6613
    %8756 = vmatprep.subr.bf16.mxu0 %v6606
    %8757 = vmatpush1.bf16.msra.mxu0 %v6605
    %8758 = vmatprep.subr.bf16.mxu0 %v6598
    %8759 = vmatpush1.bf16.msra.mxu0 %v6597
    %8760 = vmatprep.subr.bf16.mxu0 %v6590
    %8761 = vmatpush1.bf16.msra.mxu0 %v6589
    %8762 = vmatprep.subr.bf16.mxu0 %v6582
    %8763 = vmatpush1.bf16.msra.mxu0 %v6581
    %8764 = vmatprep.subr.bf16.mxu0 %v6574
    %8765 = vmatpush1.bf16.msra.mxu0 %v6573
    %8766 = vmatprep.subr.bf16.mxu0 0
    %8767 = vmatpush2.bf16.msra.mxu0 0
    %8768 = vmatprep.subr.bf16.mxu0 0
    %8769 = vmatpush2.bf16.msra.mxu0 0
    %8770 = vmatprep.subr.bf16.mxu0 %v7957
    %8771 = vmatpush2.bf16.msra.mxu0 %v7954
    %8772 = vmatprep.subr.bf16.mxu0 %v6670
    %8773 = vmatpush2.bf16.msra.mxu0 %v6669
    %8774 = vmatprep.subr.bf16.mxu0 %v6662
    %8775 = vmatpush2.bf16.msra.mxu0 %v6661
    %8776 = vmatprep.subr.bf16.mxu0 %v6654
    %8777 = vmatpush2.bf16.msra.mxu0 %v6653
    %8778 = vmatprep.subr.bf16.mxu0 %v6646
    %8779 = vmatpush2.bf16.msra.mxu0 %v6645
    %8780 = vmatprep.subr.bf16.mxu0 %v6638
    %8781 = vmatpush2.bf16.msra.mxu0 %v6637
    %8782 = vmatprep.mubr.bf16.mxu0 %v7941
    %8783 = vmatmul.mubr.bf16.gmra.mxu0 %v1606
    %v8784 = vpop.f32.mrf.mxu0
    %v8785 = vadd.f32 %v8744, %v8784
    %v8786 = vpop.f32.mrf.mxu0
    %v8787 = vadd.f32 %v8746, %v8786
    %v8788 = vpop.f32.mrf.mxu0
    %v8789 = vpop.f32.mrf.mxu0
    %8790 = vdwg.mxu0
    %8791 = vmatprep.subr.bf16.mxu0 %v5480
    %8792 = vmatpush1.bf16.msra.mxu0 %v5479
    %8793 = vmatprep.subr.bf16.mxu0 %v5472
    %8794 = vmatpush1.bf16.msra.mxu0 %v5471
    %8795 = vmatprep.subr.bf16.mxu0 %v5464
    %8796 = vmatpush1.bf16.msra.mxu0 %v5463
    %8797 = vmatprep.subr.bf16.mxu0 %v5456
    %8798 = vmatpush1.bf16.msra.mxu0 %v5455
    %8799 = vmatprep.subr.bf16.mxu0 %v5448
    %8800 = vmatpush1.bf16.msra.mxu0 %v5447
    %8801 = vmatprep.subr.bf16.mxu0 %v5440
    %8802 = vmatpush1.bf16.msra.mxu0 %v5439
    %8803 = vmatprep.subr.bf16.mxu0 %v5432
    %8804 = vmatpush1.bf16.msra.mxu0 %v5431
    %8805 = vmatprep.subr.bf16.mxu0 %v5424
    %8806 = vmatpush1.bf16.msra.mxu0 %v5423
    %8807 = vmatprep.subr.bf16.mxu0 %v5544
    %8808 = vmatpush2.bf16.msra.mxu0 %v5543
    %8809 = vmatprep.subr.bf16.mxu0 %v5536
    %8810 = vmatpush2.bf16.msra.mxu0 %v5535
    %8811 = vmatprep.subr.bf16.mxu0 %v5528
    %8812 = vmatpush2.bf16.msra.mxu0 %v5527
    %8813 = vmatprep.subr.bf16.mxu0 %v5520
    %8814 = vmatpush2.bf16.msra.mxu0 %v5519
    %8815 = vmatprep.subr.bf16.mxu0 %v5512
    %8816 = vmatpush2.bf16.msra.mxu0 %v5511
    %8817 = vmatprep.subr.bf16.mxu0 %v5504
    %8818 = vmatpush2.bf16.msra.mxu0 %v5503
    %8819 = vmatprep.subr.bf16.mxu0 %v5496
    %8820 = vmatpush2.bf16.msra.mxu0 %v5495
    %8821 = vmatprep.subr.bf16.mxu0 %v5488
    %8822 = vmatpush2.bf16.msra.mxu0 %v5487
    %8823 = vmatprep.mubr.bf16.mxu0 %v1494
    %8824 = vmatmul.mubr.bf16.gmra.mxu0 %v1480
    %v8825 = vpop.f32.mrf.mxu0
    %v8826 = vadd.f32 %v1405, %v8825
    %v8827 = vpop.f32.mrf.mxu0
    %v8828 = vadd.f32 %v1409, %v8827
    %v8829 = vpop.f32.mrf.mxu0
    %v8830 = vpop.f32.mrf.mxu0
    %8831 = vdwg.mxu0
    %8832 = vmatprep.subr.bf16.mxu0 %v5608
    %8833 = vmatpush1.bf16.msra.mxu0 %v5607
    %8834 = vmatprep.subr.bf16.mxu0 %v5600
    %8835 = vmatpush1.bf16.msra.mxu0 %v5599
    %8836 = vmatprep.subr.bf16.mxu0 %v5592
    %8837 = vmatpush1.bf16.msra.mxu0 %v5591
    %8838 = vmatprep.subr.bf16.mxu0 %v5584
    %8839 = vmatpush1.bf16.msra.mxu0 %v5583
    %8840 = vmatprep.subr.bf16.mxu0 %v5576
    %8841 = vmatpush1.bf16.msra.mxu0 %v5575
    %8842 = vmatprep.subr.bf16.mxu0 %v5568
    %8843 = vmatpush1.bf16.msra.mxu0 %v5567
    %8844 = vmatprep.subr.bf16.mxu0 %v5560
    %8845 = vmatpush1.bf16.msra.mxu0 %v5559
    %8846 = vmatprep.subr.bf16.mxu0 %v5552
    %8847 = vmatpush1.bf16.msra.mxu0 %v5551
    %8848 = vmatprep.subr.bf16.mxu0 %v5672
    %8849 = vmatpush2.bf16.msra.mxu0 %v5671
    %8850 = vmatprep.subr.bf16.mxu0 %v5664
    %8851 = vmatpush2.bf16.msra.mxu0 %v5663
    %8852 = vmatprep.subr.bf16.mxu0 %v5656
    %8853 = vmatpush2.bf16.msra.mxu0 %v5655
    %8854 = vmatprep.subr.bf16.mxu0 %v5648
    %8855 = vmatpush2.bf16.msra.mxu0 %v5647
    %8856 = vmatprep.subr.bf16.mxu0 %v5640
    %8857 = vmatpush2.bf16.msra.mxu0 %v5639
    %8858 = vmatprep.subr.bf16.mxu0 %v5632
    %8859 = vmatpush2.bf16.msra.mxu0 %v5631
    %8860 = vmatprep.subr.bf16.mxu0 %v5624
    %8861 = vmatpush2.bf16.msra.mxu0 %v5623
    %8862 = vmatprep.subr.bf16.mxu0 %v5616
    %8863 = vmatpush2.bf16.msra.mxu0 %v5615
    %8864 = vmatprep.mubr.bf16.mxu0 %v1504
    %8865 = vmatmul.mubr.bf16.gmra.mxu0 %v1502
    %v8866 = vpop.f32.mrf.mxu0
    %v8867 = vadd.f32 %v8826, %v8866
    %v8868 = vpop.f32.mrf.mxu0
    %v8869 = vadd.f32 %v8828, %v8868
    %v8870 = vpop.f32.mrf.mxu0
    %v8871 = vpop.f32.mrf.mxu0
    %8872 = vdwg.mxu0
    %8873 = vmatprep.subr.bf16.mxu0 %v5736
    %8874 = vmatpush1.bf16.msra.mxu0 %v5735
    %8875 = vmatprep.subr.bf16.mxu0 %v5728
    %8876 = vmatpush1.bf16.msra.mxu0 %v5727
    %8877 = vmatprep.subr.bf16.mxu0 %v5720
    %8878 = vmatpush1.bf16.msra.mxu0 %v5719
    %8879 = vmatprep.subr.bf16.mxu0 %v5712
    %8880 = vmatpush1.bf16.msra.mxu0 %v5711
    %8881 = vmatprep.subr.bf16.mxu0 %v5704
    %8882 = vmatpush1.bf16.msra.mxu0 %v5703
    %8883 = vmatprep.subr.bf16.mxu0 %v5696
    %8884 = vmatpush1.bf16.msra.mxu0 %v5695
    %8885 = vmatprep.subr.bf16.mxu0 %v5688
    %8886 = vmatpush1.bf16.msra.mxu0 %v5687
    %8887 = vmatprep.subr.bf16.mxu0 %v5680
    %8888 = vmatpush1.bf16.msra.mxu0 %v5679
    %8889 = vmatprep.subr.bf16.mxu0 %v5800
    %8890 = vmatpush2.bf16.msra.mxu0 %v5799
    %8891 = vmatprep.subr.bf16.mxu0 %v5792
    %8892 = vmatpush2.bf16.msra.mxu0 %v5791
    %8893 = vmatprep.subr.bf16.mxu0 %v5784
    %8894 = vmatpush2.bf16.msra.mxu0 %v5783
    %8895 = vmatprep.subr.bf16.mxu0 %v5776
    %8896 = vmatpush2.bf16.msra.mxu0 %v5775
    %8897 = vmatprep.subr.bf16.mxu0 %v5768
    %8898 = vmatpush2.bf16.msra.mxu0 %v5767
    %8899 = vmatprep.subr.bf16.mxu0 %v5760
    %8900 = vmatpush2.bf16.msra.mxu0 %v5759
    %8901 = vmatprep.subr.bf16.mxu0 %v5752
    %8902 = vmatpush2.bf16.msra.mxu0 %v5751
    %8903 = vmatprep.subr.bf16.mxu0 %v5744
    %8904 = vmatpush2.bf16.msra.mxu0 %v5743
    %8905 = vmatprep.mubr.bf16.mxu0 %v1501
    %8906 = vmatmul.mubr.bf16.gmra.mxu0 %v1487
    %v8907 = vpop.f32.mrf.mxu0
    %v8908 = vadd.f32 %v8867, %v8907
    %v8909 = vpop.f32.mrf.mxu0
    %v8910 = vadd.f32 %v8869, %v8909
    %v8911 = vpop.f32.mrf.mxu0
    %v8912 = vpop.f32.mrf.mxu0
    %8913 = vdwg.mxu0
    %8914 = vmatprep.subr.bf16.mxu0 %v5864
    %8915 = vmatpush1.bf16.msra.mxu0 %v5863
    %8916 = vmatprep.subr.bf16.mxu0 %v5856
    %8917 = vmatpush1.bf16.msra.mxu0 %v5855
    %8918 = vmatprep.subr.bf16.mxu0 %v5848
    %8919 = vmatpush1.bf16.msra.mxu0 %v5847
    %8920 = vmatprep.subr.bf16.mxu0 %v5840
    %8921 = vmatpush1.bf16.msra.mxu0 %v5839
    %8922 = vmatprep.subr.bf16.mxu0 %v5832
    %8923 = vmatpush1.bf16.msra.mxu0 %v5831
    %8924 = vmatprep.subr.bf16.mxu0 %v5824
    %8925 = vmatpush1.bf16.msra.mxu0 %v5823
    %8926 = vmatprep.subr.bf16.mxu0 %v5816
    %8927 = vmatpush1.bf16.msra.mxu0 %v5815
    %8928 = vmatprep.subr.bf16.mxu0 %v5808
    %8929 = vmatpush1.bf16.msra.mxu0 %v5807
    %8930 = vmatprep.subr.bf16.mxu0 %v5928
    %8931 = vmatpush2.bf16.msra.mxu0 %v5927
    %8932 = vmatprep.subr.bf16.mxu0 %v5920
    %8933 = vmatpush2.bf16.msra.mxu0 %v5919
    %8934 = vmatprep.subr.bf16.mxu0 %v5912
    %8935 = vmatpush2.bf16.msra.mxu0 %v5911
    %8936 = vmatprep.subr.bf16.mxu0 %v5904
    %8937 = vmatpush2.bf16.msra.mxu0 %v5903
    %8938 = vmatprep.subr.bf16.mxu0 %v5896
    %8939 = vmatpush2.bf16.msra.mxu0 %v5895
    %8940 = vmatprep.subr.bf16.mxu0 %v5888
    %8941 = vmatpush2.bf16.msra.mxu0 %v5887
    %8942 = vmatprep.subr.bf16.mxu0 %v5880
    %8943 = vmatpush2.bf16.msra.mxu0 %v5879
    %8944 = vmatprep.subr.bf16.mxu0 %v5872
    %8945 = vmatpush2.bf16.msra.mxu0 %v5871
    %8946 = vmatprep.mubr.bf16.mxu0 %v1505
    %8947 = vmatmul.mubr.bf16.gmra.mxu0 %v1503
    %v8948 = vpop.f32.mrf.mxu0
    %v8949 = vadd.f32 %v8908, %v8948
    %v8950 = vpop.f32.mrf.mxu0
    %v8951 = vadd.f32 %v8910, %v8950
    %v8952 = vpop.f32.mrf.mxu0
    %v8953 = vpop.f32.mrf.mxu0
    %8954 = vdwg.mxu0
    %8955 = vmatprep.subr.bf16.mxu0 %v5992
    %8956 = vmatpush1.bf16.msra.mxu0 %v5991
    %8957 = vmatprep.subr.bf16.mxu0 %v5984
    %8958 = vmatpush1.bf16.msra.mxu0 %v5983
    %8959 = vmatprep.subr.bf16.mxu0 %v5976
    %8960 = vmatpush1.bf16.msra.mxu0 %v5975
    %8961 = vmatprep.subr.bf16.mxu0 %v5968
    %8962 = vmatpush1.bf16.msra.mxu0 %v5967
    %8963 = vmatprep.subr.bf16.mxu0 %v5960
    %8964 = vmatpush1.bf16.msra.mxu0 %v5959
    %8965 = vmatprep.subr.bf16.mxu0 %v5952
    %8966 = vmatpush1.bf16.msra.mxu0 %v5951
    %8967 = vmatprep.subr.bf16.mxu0 %v5944
    %8968 = vmatpush1.bf16.msra.mxu0 %v5943
    %8969 = vmatprep.subr.bf16.mxu0 %v5936
    %8970 = vmatpush1.bf16.msra.mxu0 %v5935
    %8971 = vmatprep.subr.bf16.mxu0 %v6056
    %8972 = vmatpush2.bf16.msra.mxu0 %v6055
    %8973 = vmatprep.subr.bf16.mxu0 %v6048
    %8974 = vmatpush2.bf16.msra.mxu0 %v6047
    %8975 = vmatprep.subr.bf16.mxu0 %v6040
    %8976 = vmatpush2.bf16.msra.mxu0 %v6039
    %8977 = vmatprep.subr.bf16.mxu0 %v6032
    %8978 = vmatpush2.bf16.msra.mxu0 %v6031
    %8979 = vmatprep.subr.bf16.mxu0 %v6024
    %8980 = vmatpush2.bf16.msra.mxu0 %v6023
    %8981 = vmatprep.subr.bf16.mxu0 %v6016
    %8982 = vmatpush2.bf16.msra.mxu0 %v6015
    %8983 = vmatprep.subr.bf16.mxu0 %v6008
    %8984 = vmatpush2.bf16.msra.mxu0 %v6007
    %8985 = vmatprep.subr.bf16.mxu0 %v6000
    %8986 = vmatpush2.bf16.msra.mxu0 %v5999
    %8987 = vmatprep.mubr.bf16.mxu0 %v1562
    %8988 = vmatmul.mubr.bf16.gmra.mxu0 %v1548
    %v8989 = vpop.f32.mrf.mxu0
    %v8990 = vadd.f32 %v8949, %v8989
    %v8991 = vpop.f32.mrf.mxu0
    %v8992 = vadd.f32 %v8951, %v8991
    %v8993 = vpop.f32.mrf.mxu0
    %v8994 = vpop.f32.mrf.mxu0
    %8995 = vdwg.mxu0
    %8996 = vmatprep.subr.bf16.mxu0 %v6120
    %8997 = vmatpush1.bf16.msra.mxu0 %v6119
    %8998 = vmatprep.subr.bf16.mxu0 %v6112
    %8999 = vmatpush1.bf16.msra.mxu0 %v6111
    %9000 = vmatprep.subr.bf16.mxu0 %v6104
    %9001 = vmatpush1.bf16.msra.mxu0 %v6103
    %9002 = vmatprep.subr.bf16.mxu0 %v6096
    %9003 = vmatpush1.bf16.msra.mxu0 %v6095
    %9004 = vmatprep.subr.bf16.mxu0 %v6088
    %9005 = vmatpush1.bf16.msra.mxu0 %v6087
    %9006 = vmatprep.subr.bf16.mxu0 %v6080
    %9007 = vmatpush1.bf16.msra.mxu0 %v6079
    %9008 = vmatprep.subr.bf16.mxu0 %v6072
    %9009 = vmatpush1.bf16.msra.mxu0 %v6071
    %9010 = vmatprep.subr.bf16.mxu0 %v6064
    %9011 = vmatpush1.bf16.msra.mxu0 %v6063
    %9012 = vmatprep.subr.bf16.mxu0 %v6184
    %9013 = vmatpush2.bf16.msra.mxu0 %v6183
    %9014 = vmatprep.subr.bf16.mxu0 %v6176
    %9015 = vmatpush2.bf16.msra.mxu0 %v6175
    %9016 = vmatprep.subr.bf16.mxu0 %v6168
    %9017 = vmatpush2.bf16.msra.mxu0 %v6167
    %9018 = vmatprep.subr.bf16.mxu0 %v6160
    %9019 = vmatpush2.bf16.msra.mxu0 %v6159
    %9020 = vmatprep.subr.bf16.mxu0 %v6152
    %9021 = vmatpush2.bf16.msra.mxu0 %v6151
    %9022 = vmatprep.subr.bf16.mxu0 %v6144
    %9023 = vmatpush2.bf16.msra.mxu0 %v6143
    %9024 = vmatprep.subr.bf16.mxu0 %v6136
    %9025 = vmatpush2.bf16.msra.mxu0 %v6135
    %9026 = vmatprep.subr.bf16.mxu0 %v6128
    %9027 = vmatpush2.bf16.msra.mxu0 %v6127
    %9028 = vmatprep.mubr.bf16.mxu0 %v1572
    %9029 = vmatmul.mubr.bf16.gmra.mxu0 %v1570
    %v9030 = vpop.f32.mrf.mxu0
    %v9031 = vadd.f32 %v8990, %v9030
    %v9032 = vpop.f32.mrf.mxu0
    %v9033 = vadd.f32 %v8992, %v9032
    %v9034 = vpop.f32.mrf.mxu0
    %v9035 = vpop.f32.mrf.mxu0
    %9036 = vdwg.mxu0
    %9037 = vmatprep.subr.bf16.mxu0 %v6248
    %9038 = vmatpush1.bf16.msra.mxu0 %v6247
    %9039 = vmatprep.subr.bf16.mxu0 %v6240
    %9040 = vmatpush1.bf16.msra.mxu0 %v6239
    %9041 = vmatprep.subr.bf16.mxu0 %v6232
    %9042 = vmatpush1.bf16.msra.mxu0 %v6231
    %9043 = vmatprep.subr.bf16.mxu0 %v6224
    %9044 = vmatpush1.bf16.msra.mxu0 %v6223
    %9045 = vmatprep.subr.bf16.mxu0 %v6216
    %9046 = vmatpush1.bf16.msra.mxu0 %v6215
    %9047 = vmatprep.subr.bf16.mxu0 %v6208
    %9048 = vmatpush1.bf16.msra.mxu0 %v6207
    %9049 = vmatprep.subr.bf16.mxu0 %v6200
    %9050 = vmatpush1.bf16.msra.mxu0 %v6199
    %9051 = vmatprep.subr.bf16.mxu0 %v6192
    %9052 = vmatpush1.bf16.msra.mxu0 %v6191
    %9053 = vmatprep.subr.bf16.mxu0 %v6312
    %9054 = vmatpush2.bf16.msra.mxu0 %v6311
    %9055 = vmatprep.subr.bf16.mxu0 %v6304
    %9056 = vmatpush2.bf16.msra.mxu0 %v6303
    %9057 = vmatprep.subr.bf16.mxu0 %v6296
    %9058 = vmatpush2.bf16.msra.mxu0 %v6295
    %9059 = vmatprep.subr.bf16.mxu0 %v6288
    %9060 = vmatpush2.bf16.msra.mxu0 %v6287
    %9061 = vmatprep.subr.bf16.mxu0 %v6280
    %9062 = vmatpush2.bf16.msra.mxu0 %v6279
    %9063 = vmatprep.subr.bf16.mxu0 %v6272
    %9064 = vmatpush2.bf16.msra.mxu0 %v6271
    %9065 = vmatprep.subr.bf16.mxu0 %v6264
    %9066 = vmatpush2.bf16.msra.mxu0 %v6263
    %9067 = vmatprep.subr.bf16.mxu0 %v6256
    %9068 = vmatpush2.bf16.msra.mxu0 %v6255
    %9069 = vmatprep.mubr.bf16.mxu0 %v1569
    %9070 = vmatmul.mubr.bf16.gmra.mxu0 %v1555
    %v9071 = vpop.f32.mrf.mxu0
    %v9072 = vadd.f32 %v9031, %v9071
    %v9073 = vpop.f32.mrf.mxu0
    %v9074 = vadd.f32 %v9033, %v9073
    %v9075 = vpop.f32.mrf.mxu0
    %v9076 = vpop.f32.mrf.mxu0
    %9077 = vdwg.mxu0
    %9078 = vmatprep.subr.bf16.mxu0 %v6376
    %9079 = vmatpush1.bf16.msra.mxu0 %v6375
    %9080 = vmatprep.subr.bf16.mxu0 %v6368
    %9081 = vmatpush1.bf16.msra.mxu0 %v6367
    %9082 = vmatprep.subr.bf16.mxu0 %v6360
    %9083 = vmatpush1.bf16.msra.mxu0 %v6359
    %9084 = vmatprep.subr.bf16.mxu0 %v6352
    %9085 = vmatpush1.bf16.msra.mxu0 %v6351
    %9086 = vmatprep.subr.bf16.mxu0 %v6344
    %9087 = vmatpush1.bf16.msra.mxu0 %v6343
    %9088 = vmatprep.subr.bf16.mxu0 %v6336
    %9089 = vmatpush1.bf16.msra.mxu0 %v6335
    %9090 = vmatprep.subr.bf16.mxu0 %v6328
    %9091 = vmatpush1.bf16.msra.mxu0 %v6327
    %9092 = vmatprep.subr.bf16.mxu0 %v6320
    %9093 = vmatpush1.bf16.msra.mxu0 %v6319
    %9094 = vmatprep.subr.bf16.mxu0 %v6440
    %9095 = vmatpush2.bf16.msra.mxu0 %v6439
    %9096 = vmatprep.subr.bf16.mxu0 %v6432
    %9097 = vmatpush2.bf16.msra.mxu0 %v6431
    %9098 = vmatprep.subr.bf16.mxu0 %v6424
    %9099 = vmatpush2.bf16.msra.mxu0 %v6423
    %9100 = vmatprep.subr.bf16.mxu0 %v6416
    %9101 = vmatpush2.bf16.msra.mxu0 %v6415
    %9102 = vmatprep.subr.bf16.mxu0 %v6408
    %9103 = vmatpush2.bf16.msra.mxu0 %v6407
    %9104 = vmatprep.subr.bf16.mxu0 %v6400
    %9105 = vmatpush2.bf16.msra.mxu0 %v6399
    %9106 = vmatprep.subr.bf16.mxu0 %v6392
    %9107 = vmatpush2.bf16.msra.mxu0 %v6391
    %9108 = vmatprep.subr.bf16.mxu0 %v6384
    %9109 = vmatpush2.bf16.msra.mxu0 %v6383
    %9110 = vmatprep.mubr.bf16.mxu0 %v1573
    %9111 = vmatmul.mubr.bf16.gmra.mxu0 %v1571
    %v9112 = vpop.f32.mrf.mxu0
    %v9113 = vadd.f32 %v9072, %v9112
    %v9114 = vpop.f32.mrf.mxu0
    %v9115 = vadd.f32 %v9074, %v9114
    %v9116 = vpop.f32.mrf.mxu0
    %v9117 = vpop.f32.mrf.mxu0
    %9118 = vdwg.mxu0
    %9119 = vmatprep.subr.bf16.mxu0 %v6504
    %9120 = vmatpush1.bf16.msra.mxu0 %v6503
    %9121 = vmatprep.subr.bf16.mxu0 %v6496
    %9122 = vmatpush1.bf16.msra.mxu0 %v6495
    %9123 = vmatprep.subr.bf16.mxu0 %v6488
    %9124 = vmatpush1.bf16.msra.mxu0 %v6487
    %9125 = vmatprep.subr.bf16.mxu0 %v6480
    %9126 = vmatpush1.bf16.msra.mxu0 %v6479
    %9127 = vmatprep.subr.bf16.mxu0 %v6472
    %9128 = vmatpush1.bf16.msra.mxu0 %v6471
    %9129 = vmatprep.subr.bf16.mxu0 %v6464
    %9130 = vmatpush1.bf16.msra.mxu0 %v6463
    %9131 = vmatprep.subr.bf16.mxu0 %v6456
    %9132 = vmatpush1.bf16.msra.mxu0 %v6455
    %9133 = vmatprep.subr.bf16.mxu0 %v6448
    %9134 = vmatpush1.bf16.msra.mxu0 %v6447
    %9135 = vmatprep.subr.bf16.mxu0 %v6568
    %9136 = vmatpush2.bf16.msra.mxu0 %v6567
    %9137 = vmatprep.subr.bf16.mxu0 %v6560
    %9138 = vmatpush2.bf16.msra.mxu0 %v6559
    %9139 = vmatprep.subr.bf16.mxu0 %v6552
    %9140 = vmatpush2.bf16.msra.mxu0 %v6551
    %9141 = vmatprep.subr.bf16.mxu0 %v6544
    %9142 = vmatpush2.bf16.msra.mxu0 %v6543
    %9143 = vmatprep.subr.bf16.mxu0 %v6536
    %9144 = vmatpush2.bf16.msra.mxu0 %v6535
    %9145 = vmatprep.subr.bf16.mxu0 %v6528
    %9146 = vmatpush2.bf16.msra.mxu0 %v6527
    %9147 = vmatprep.subr.bf16.mxu0 %v6520
    %9148 = vmatpush2.bf16.msra.mxu0 %v6519
    %9149 = vmatprep.subr.bf16.mxu0 %v6512
    %9150 = vmatpush2.bf16.msra.mxu0 %v6511
    %9151 = vmatprep.mubr.bf16.mxu0 %v1605
    %9152 = vmatmul.mubr.bf16.gmra.mxu0 %v1598
    %v9153 = vpop.f32.mrf.mxu0
    %v9154 = vadd.f32 %v9113, %v9153
    %v9155 = vpop.f32.mrf.mxu0
    %v9156 = vadd.f32 %v9115, %v9155
    %v9157 = vpop.f32.mrf.mxu0
    %v9158 = vpop.f32.mrf.mxu0
    %9159 = vdwg.mxu0
    %9160 = vmatprep.subr.bf16.mxu0 %v6632
    %9161 = vmatpush1.bf16.msra.mxu0 %v6631
    %9162 = vmatprep.subr.bf16.mxu0 %v6624
    %9163 = vmatpush1.bf16.msra.mxu0 %v6623
    %9164 = vmatprep.subr.bf16.mxu0 %v6616
    %9165 = vmatpush1.bf16.msra.mxu0 %v6615
    %9166 = vmatprep.subr.bf16.mxu0 %v6608
    %9167 = vmatpush1.bf16.msra.mxu0 %v6607
    %9168 = vmatprep.subr.bf16.mxu0 %v6600
    %9169 = vmatpush1.bf16.msra.mxu0 %v6599
    %9170 = vmatprep.subr.bf16.mxu0 %v6592
    %9171 = vmatpush1.bf16.msra.mxu0 %v6591
    %9172 = vmatprep.subr.bf16.mxu0 %v6584
    %9173 = vmatpush1.bf16.msra.mxu0 %v6583
    %9174 = vmatprep.subr.bf16.mxu0 %v6576
    %9175 = vmatpush1.bf16.msra.mxu0 %v6575
    %9176 = vmatprep.subr.bf16.mxu0 0
    %9177 = vmatpush2.bf16.msra.mxu0 0
    %9178 = vmatprep.subr.bf16.mxu0 0
    %9179 = vmatpush2.bf16.msra.mxu0 0
    %9180 = vmatprep.subr.bf16.mxu0 %v7963
    %9181 = vmatpush2.bf16.msra.mxu0 %v7960
    %9182 = vmatprep.subr.bf16.mxu0 %v6672
    %9183 = vmatpush2.bf16.msra.mxu0 %v6671
    %9184 = vmatprep.subr.bf16.mxu0 %v6664
    %9185 = vmatpush2.bf16.msra.mxu0 %v6663
    %9186 = vmatprep.subr.bf16.mxu0 %v6656
    %9187 = vmatpush2.bf16.msra.mxu0 %v6655
    %9188 = vmatprep.subr.bf16.mxu0 %v6648
    %9189 = vmatpush2.bf16.msra.mxu0 %v6647
    %9190 = vmatprep.subr.bf16.mxu0 %v6640
    %9191 = vmatpush2.bf16.msra.mxu0 %v6639
    %9192 = vmatprep.mubr.bf16.mxu0 %v7941
    %9193 = vmatmul.mubr.bf16.gmra.mxu0 %v1606
    %v9194 = vpop.f32.mrf.mxu0
    %v9195 = vadd.f32 %v9154, %v9194
    %v9196 = vpop.f32.mrf.mxu0
    %v9197 = vadd.f32 %v9156, %v9196
    %v9198 = vpop.f32.mrf.mxu0
    %v9199 = vpop.f32.mrf.mxu0
    %9200 = vdwg.mxu0
    %9201 = vmatprep.subr.bf16.mxu0 %v5482
    %9202 = vmatpush1.bf16.msra.mxu0 %v5481
    %9203 = vmatprep.subr.bf16.mxu0 %v5474
    %9204 = vmatpush1.bf16.msra.mxu0 %v5473
    %9205 = vmatprep.subr.bf16.mxu0 %v5466
    %9206 = vmatpush1.bf16.msra.mxu0 %v5465
    %9207 = vmatprep.subr.bf16.mxu0 %v5458
    %9208 = vmatpush1.bf16.msra.mxu0 %v5457
    %9209 = vmatprep.subr.bf16.mxu0 %v5450
    %9210 = vmatpush1.bf16.msra.mxu0 %v5449
    %9211 = vmatprep.subr.bf16.mxu0 %v5442
    %9212 = vmatpush1.bf16.msra.mxu0 %v5441
    %9213 = vmatprep.subr.bf16.mxu0 %v5434
    %9214 = vmatpush1.bf16.msra.mxu0 %v5433
    %9215 = vmatprep.subr.bf16.mxu0 %v5426
    %9216 = vmatpush1.bf16.msra.mxu0 %v5425
    %9217 = vmatprep.subr.bf16.mxu0 %v5546
    %9218 = vmatpush2.bf16.msra.mxu0 %v5545
    %9219 = vmatprep.subr.bf16.mxu0 %v5538
    %9220 = vmatpush2.bf16.msra.mxu0 %v5537
    %9221 = vmatprep.subr.bf16.mxu0 %v5530
    %9222 = vmatpush2.bf16.msra.mxu0 %v5529
    %9223 = vmatprep.subr.bf16.mxu0 %v5522
    %9224 = vmatpush2.bf16.msra.mxu0 %v5521
    %9225 = vmatprep.subr.bf16.mxu0 %v5514
    %9226 = vmatpush2.bf16.msra.mxu0 %v5513
    %9227 = vmatprep.subr.bf16.mxu0 %v5506
    %9228 = vmatpush2.bf16.msra.mxu0 %v5505
    %9229 = vmatprep.subr.bf16.mxu0 %v5498
    %9230 = vmatpush2.bf16.msra.mxu0 %v5497
    %9231 = vmatprep.subr.bf16.mxu0 %v5490
    %9232 = vmatpush2.bf16.msra.mxu0 %v5489
    %9233 = vmatprep.mubr.bf16.mxu0 %v1494
    %9234 = vmatmul.mubr.bf16.gmra.mxu0 %v1480
    %v9235 = vpop.f32.mrf.mxu0
    %v9236 = vadd.f32 %v1413, %v9235
    %v9237 = vpop.f32.mrf.mxu0
    %v9238 = vadd.f32 %v1417, %v9237
    %v9239 = vpop.f32.mrf.mxu0
    %v9240 = vpop.f32.mrf.mxu0
    %9241 = vdwg.mxu0
    %9242 = vmatprep.subr.bf16.mxu0 %v5610
    %9243 = vmatpush1.bf16.msra.mxu0 %v5609
    %9244 = vmatprep.subr.bf16.mxu0 %v5602
    %9245 = vmatpush1.bf16.msra.mxu0 %v5601
    %9246 = vmatprep.subr.bf16.mxu0 %v5594
    %9247 = vmatpush1.bf16.msra.mxu0 %v5593
    %9248 = vmatprep.subr.bf16.mxu0 %v5586
    %9249 = vmatpush1.bf16.msra.mxu0 %v5585
    %9250 = vmatprep.subr.bf16.mxu0 %v5578
    %9251 = vmatpush1.bf16.msra.mxu0 %v5577
    %9252 = vmatprep.subr.bf16.mxu0 %v5570
    %9253 = vmatpush1.bf16.msra.mxu0 %v5569
    %9254 = vmatprep.subr.bf16.mxu0 %v5562
    %9255 = vmatpush1.bf16.msra.mxu0 %v5561
    %9256 = vmatprep.subr.bf16.mxu0 %v5554
    %9257 = vmatpush1.bf16.msra.mxu0 %v5553
    %9258 = vmatprep.subr.bf16.mxu0 %v5674
    %9259 = vmatpush2.bf16.msra.mxu0 %v5673
    %9260 = vmatprep.subr.bf16.mxu0 %v5666
    %9261 = vmatpush2.bf16.msra.mxu0 %v5665
    %9262 = vmatprep.subr.bf16.mxu0 %v5658
    %9263 = vmatpush2.bf16.msra.mxu0 %v5657
    %9264 = vmatprep.subr.bf16.mxu0 %v5650
    %9265 = vmatpush2.bf16.msra.mxu0 %v5649
    %9266 = vmatprep.subr.bf16.mxu0 %v5642
    %9267 = vmatpush2.bf16.msra.mxu0 %v5641
    %9268 = vmatprep.subr.bf16.mxu0 %v5634
    %9269 = vmatpush2.bf16.msra.mxu0 %v5633
    %9270 = vmatprep.subr.bf16.mxu0 %v5626
    %9271 = vmatpush2.bf16.msra.mxu0 %v5625
    %9272 = vmatprep.subr.bf16.mxu0 %v5618
    %9273 = vmatpush2.bf16.msra.mxu0 %v5617
    %9274 = vmatprep.mubr.bf16.mxu0 %v1504
    %9275 = vmatmul.mubr.bf16.gmra.mxu0 %v1502
    %v9276 = vpop.f32.mrf.mxu0
    %v9277 = vadd.f32 %v9236, %v9276
    %v9278 = vpop.f32.mrf.mxu0
    %v9279 = vadd.f32 %v9238, %v9278
    %v9280 = vpop.f32.mrf.mxu0
    %v9281 = vpop.f32.mrf.mxu0
    %9282 = vdwg.mxu0
    %9283 = vmatprep.subr.bf16.mxu0 %v5738
    %9284 = vmatpush1.bf16.msra.mxu0 %v5737
    %9285 = vmatprep.subr.bf16.mxu0 %v5730
    %9286 = vmatpush1.bf16.msra.mxu0 %v5729
    %9287 = vmatprep.subr.bf16.mxu0 %v5722
    %9288 = vmatpush1.bf16.msra.mxu0 %v5721
    %9289 = vmatprep.subr.bf16.mxu0 %v5714
    %9290 = vmatpush1.bf16.msra.mxu0 %v5713
    %9291 = vmatprep.subr.bf16.mxu0 %v5706
    %9292 = vmatpush1.bf16.msra.mxu0 %v5705
    %9293 = vmatprep.subr.bf16.mxu0 %v5698
    %9294 = vmatpush1.bf16.msra.mxu0 %v5697
    %9295 = vmatprep.subr.bf16.mxu0 %v5690
    %9296 = vmatpush1.bf16.msra.mxu0 %v5689
    %9297 = vmatprep.subr.bf16.mxu0 %v5682
    %9298 = vmatpush1.bf16.msra.mxu0 %v5681
    %9299 = vmatprep.subr.bf16.mxu0 %v5802
    %9300 = vmatpush2.bf16.msra.mxu0 %v5801
    %9301 = vmatprep.subr.bf16.mxu0 %v5794
    %9302 = vmatpush2.bf16.msra.mxu0 %v5793
    %9303 = vmatprep.subr.bf16.mxu0 %v5786
    %9304 = vmatpush2.bf16.msra.mxu0 %v5785
    %9305 = vmatprep.subr.bf16.mxu0 %v5778
    %9306 = vmatpush2.bf16.msra.mxu0 %v5777
    %9307 = vmatprep.subr.bf16.mxu0 %v5770
    %9308 = vmatpush2.bf16.msra.mxu0 %v5769
    %9309 = vmatprep.subr.bf16.mxu0 %v5762
    %9310 = vmatpush2.bf16.msra.mxu0 %v5761
    %9311 = vmatprep.subr.bf16.mxu0 %v5754
    %9312 = vmatpush2.bf16.msra.mxu0 %v5753
    %9313 = vmatprep.subr.bf16.mxu0 %v5746
    %9314 = vmatpush2.bf16.msra.mxu0 %v5745
    %9315 = vmatprep.mubr.bf16.mxu0 %v1501
    %9316 = vmatmul.mubr.bf16.gmra.mxu0 %v1487
    %v9317 = vpop.f32.mrf.mxu0
    %v9318 = vadd.f32 %v9277, %v9317
    %v9319 = vpop.f32.mrf.mxu0
    %v9320 = vadd.f32 %v9279, %v9319
    %v9321 = vpop.f32.mrf.mxu0
    %v9322 = vpop.f32.mrf.mxu0
    %9323 = vdwg.mxu0
    %9324 = vmatprep.subr.bf16.mxu0 %v5866
    %9325 = vmatpush1.bf16.msra.mxu0 %v5865
    %9326 = vmatprep.subr.bf16.mxu0 %v5858
    %9327 = vmatpush1.bf16.msra.mxu0 %v5857
    %9328 = vmatprep.subr.bf16.mxu0 %v5850
    %9329 = vmatpush1.bf16.msra.mxu0 %v5849
    %9330 = vmatprep.subr.bf16.mxu0 %v5842
    %9331 = vmatpush1.bf16.msra.mxu0 %v5841
    %9332 = vmatprep.subr.bf16.mxu0 %v5834
    %9333 = vmatpush1.bf16.msra.mxu0 %v5833
    %9334 = vmatprep.subr.bf16.mxu0 %v5826
    %9335 = vmatpush1.bf16.msra.mxu0 %v5825
    %9336 = vmatprep.subr.bf16.mxu0 %v5818
    %9337 = vmatpush1.bf16.msra.mxu0 %v5817
    %9338 = vmatprep.subr.bf16.mxu0 %v5810
    %9339 = vmatpush1.bf16.msra.mxu0 %v5809
    %9340 = vmatprep.subr.bf16.mxu0 %v5930
    %9341 = vmatpush2.bf16.msra.mxu0 %v5929
    %9342 = vmatprep.subr.bf16.mxu0 %v5922
    %9343 = vmatpush2.bf16.msra.mxu0 %v5921
    %9344 = vmatprep.subr.bf16.mxu0 %v5914
    %9345 = vmatpush2.bf16.msra.mxu0 %v5913
    %9346 = vmatprep.subr.bf16.mxu0 %v5906
    %9347 = vmatpush2.bf16.msra.mxu0 %v5905
    %9348 = vmatprep.subr.bf16.mxu0 %v5898
    %9349 = vmatpush2.bf16.msra.mxu0 %v5897
    %9350 = vmatprep.subr.bf16.mxu0 %v5890
    %9351 = vmatpush2.bf16.msra.mxu0 %v5889
    %9352 = vmatprep.subr.bf16.mxu0 %v5882
    %9353 = vmatpush2.bf16.msra.mxu0 %v5881
    %9354 = vmatprep.subr.bf16.mxu0 %v5874
    %9355 = vmatpush2.bf16.msra.mxu0 %v5873
    %9356 = vmatprep.mubr.bf16.mxu0 %v1505
    %9357 = vmatmul.mubr.bf16.gmra.mxu0 %v1503
    %v9358 = vpop.f32.mrf.mxu0
    %v9359 = vadd.f32 %v9318, %v9358
    %v9360 = vpop.f32.mrf.mxu0
    %v9361 = vadd.f32 %v9320, %v9360
    %v9362 = vpop.f32.mrf.mxu0
    %v9363 = vpop.f32.mrf.mxu0
    %9364 = vdwg.mxu0
    %9365 = vmatprep.subr.bf16.mxu0 %v5994
    %9366 = vmatpush1.bf16.msra.mxu0 %v5993
    %9367 = vmatprep.subr.bf16.mxu0 %v5986
    %9368 = vmatpush1.bf16.msra.mxu0 %v5985
    %9369 = vmatprep.subr.bf16.mxu0 %v5978
    %9370 = vmatpush1.bf16.msra.mxu0 %v5977
    %9371 = vmatprep.subr.bf16.mxu0 %v5970
    %9372 = vmatpush1.bf16.msra.mxu0 %v5969
    %9373 = vmatprep.subr.bf16.mxu0 %v5962
    %9374 = vmatpush1.bf16.msra.mxu0 %v5961
    %9375 = vmatprep.subr.bf16.mxu0 %v5954
    %9376 = vmatpush1.bf16.msra.mxu0 %v5953
    %9377 = vmatprep.subr.bf16.mxu0 %v5946
    %9378 = vmatpush1.bf16.msra.mxu0 %v5945
    %9379 = vmatprep.subr.bf16.mxu0 %v5938
    %9380 = vmatpush1.bf16.msra.mxu0 %v5937
    %9381 = vmatprep.subr.bf16.mxu0 %v6058
    %9382 = vmatpush2.bf16.msra.mxu0 %v6057
    %9383 = vmatprep.subr.bf16.mxu0 %v6050
    %9384 = vmatpush2.bf16.msra.mxu0 %v6049
    %9385 = vmatprep.subr.bf16.mxu0 %v6042
    %9386 = vmatpush2.bf16.msra.mxu0 %v6041
    %9387 = vmatprep.subr.bf16.mxu0 %v6034
    %9388 = vmatpush2.bf16.msra.mxu0 %v6033
    %9389 = vmatprep.subr.bf16.mxu0 %v6026
    %9390 = vmatpush2.bf16.msra.mxu0 %v6025
    %9391 = vmatprep.subr.bf16.mxu0 %v6018
    %9392 = vmatpush2.bf16.msra.mxu0 %v6017
    %9393 = vmatprep.subr.bf16.mxu0 %v6010
    %9394 = vmatpush2.bf16.msra.mxu0 %v6009
    %9395 = vmatprep.subr.bf16.mxu0 %v6002
    %9396 = vmatpush2.bf16.msra.mxu0 %v6001
    %9397 = vmatprep.mubr.bf16.mxu0 %v1562
    %9398 = vmatmul.mubr.bf16.gmra.mxu0 %v1548
    %v9399 = vpop.f32.mrf.mxu0
    %v9400 = vadd.f32 %v9359, %v9399
    %v9401 = vpop.f32.mrf.mxu0
    %v9402 = vadd.f32 %v9361, %v9401
    %v9403 = vpop.f32.mrf.mxu0
    %v9404 = vpop.f32.mrf.mxu0
    %9405 = vdwg.mxu0
    %9406 = vmatprep.subr.bf16.mxu0 %v6122
    %9407 = vmatpush1.bf16.msra.mxu0 %v6121
    %9408 = vmatprep.subr.bf16.mxu0 %v6114
    %9409 = vmatpush1.bf16.msra.mxu0 %v6113
    %9410 = vmatprep.subr.bf16.mxu0 %v6106
    %9411 = vmatpush1.bf16.msra.mxu0 %v6105
    %9412 = vmatprep.subr.bf16.mxu0 %v6098
    %9413 = vmatpush1.bf16.msra.mxu0 %v6097
    %9414 = vmatprep.subr.bf16.mxu0 %v6090
    %9415 = vmatpush1.bf16.msra.mxu0 %v6089
    %9416 = vmatprep.subr.bf16.mxu0 %v6082
    %9417 = vmatpush1.bf16.msra.mxu0 %v6081
    %9418 = vmatprep.subr.bf16.mxu0 %v6074
    %9419 = vmatpush1.bf16.msra.mxu0 %v6073
    %9420 = vmatprep.subr.bf16.mxu0 %v6066
    %9421 = vmatpush1.bf16.msra.mxu0 %v6065
    %9422 = vmatprep.subr.bf16.mxu0 %v6186
    %9423 = vmatpush2.bf16.msra.mxu0 %v6185
    %9424 = vmatprep.subr.bf16.mxu0 %v6178
    %9425 = vmatpush2.bf16.msra.mxu0 %v6177
    %9426 = vmatprep.subr.bf16.mxu0 %v6170
    %9427 = vmatpush2.bf16.msra.mxu0 %v6169
    %9428 = vmatprep.subr.bf16.mxu0 %v6162
    %9429 = vmatpush2.bf16.msra.mxu0 %v6161
    %9430 = vmatprep.subr.bf16.mxu0 %v6154
    %9431 = vmatpush2.bf16.msra.mxu0 %v6153
    %9432 = vmatprep.subr.bf16.mxu0 %v6146
    %9433 = vmatpush2.bf16.msra.mxu0 %v6145
    %9434 = vmatprep.subr.bf16.mxu0 %v6138
    %9435 = vmatpush2.bf16.msra.mxu0 %v6137
    %9436 = vmatprep.subr.bf16.mxu0 %v6130
    %9437 = vmatpush2.bf16.msra.mxu0 %v6129
    %9438 = vmatprep.mubr.bf16.mxu0 %v1572
    %9439 = vmatmul.mubr.bf16.gmra.mxu0 %v1570
    %v9440 = vpop.f32.mrf.mxu0
    %v9441 = vadd.f32 %v9400, %v9440
    %v9442 = vpop.f32.mrf.mxu0
    %v9443 = vadd.f32 %v9402, %v9442
    %v9444 = vpop.f32.mrf.mxu0
    %v9445 = vpop.f32.mrf.mxu0
    %9446 = vdwg.mxu0
    %9447 = vmatprep.subr.bf16.mxu0 %v6250
    %9448 = vmatpush1.bf16.msra.mxu0 %v6249
    %9449 = vmatprep.subr.bf16.mxu0 %v6242
    %9450 = vmatpush1.bf16.msra.mxu0 %v6241
    %9451 = vmatprep.subr.bf16.mxu0 %v6234
    %9452 = vmatpush1.bf16.msra.mxu0 %v6233
    %9453 = vmatprep.subr.bf16.mxu0 %v6226
    %9454 = vmatpush1.bf16.msra.mxu0 %v6225
    %9455 = vmatprep.subr.bf16.mxu0 %v6218
    %9456 = vmatpush1.bf16.msra.mxu0 %v6217
    %9457 = vmatprep.subr.bf16.mxu0 %v6210
    %9458 = vmatpush1.bf16.msra.mxu0 %v6209
    %9459 = vmatprep.subr.bf16.mxu0 %v6202
    %9460 = vmatpush1.bf16.msra.mxu0 %v6201
    %9461 = vmatprep.subr.bf16.mxu0 %v6194
    %9462 = vmatpush1.bf16.msra.mxu0 %v6193
    %9463 = vmatprep.subr.bf16.mxu0 %v6314
    %9464 = vmatpush2.bf16.msra.mxu0 %v6313
    %9465 = vmatprep.subr.bf16.mxu0 %v6306
    %9466 = vmatpush2.bf16.msra.mxu0 %v6305
    %9467 = vmatprep.subr.bf16.mxu0 %v6298
    %9468 = vmatpush2.bf16.msra.mxu0 %v6297
    %9469 = vmatprep.subr.bf16.mxu0 %v6290
    %9470 = vmatpush2.bf16.msra.mxu0 %v6289
    %9471 = vmatprep.subr.bf16.mxu0 %v6282
    %9472 = vmatpush2.bf16.msra.mxu0 %v6281
    %9473 = vmatprep.subr.bf16.mxu0 %v6274
    %9474 = vmatpush2.bf16.msra.mxu0 %v6273
    %9475 = vmatprep.subr.bf16.mxu0 %v6266
    %9476 = vmatpush2.bf16.msra.mxu0 %v6265
    %9477 = vmatprep.subr.bf16.mxu0 %v6258
    %9478 = vmatpush2.bf16.msra.mxu0 %v6257
    %9479 = vmatprep.mubr.bf16.mxu0 %v1569
    %9480 = vmatmul.mubr.bf16.gmra.mxu0 %v1555
    %v9481 = vpop.f32.mrf.mxu0
    %v9482 = vadd.f32 %v9441, %v9481
    %v9483 = vpop.f32.mrf.mxu0
    %v9484 = vadd.f32 %v9443, %v9483
    %v9485 = vpop.f32.mrf.mxu0
    %v9486 = vpop.f32.mrf.mxu0
    %9487 = vdwg.mxu0
    %9488 = vmatprep.subr.bf16.mxu0 %v6378
    %9489 = vmatpush1.bf16.msra.mxu0 %v6377
    %9490 = vmatprep.subr.bf16.mxu0 %v6370
    %9491 = vmatpush1.bf16.msra.mxu0 %v6369
    %9492 = vmatprep.subr.bf16.mxu0 %v6362
    %9493 = vmatpush1.bf16.msra.mxu0 %v6361
    %9494 = vmatprep.subr.bf16.mxu0 %v6354
    %9495 = vmatpush1.bf16.msra.mxu0 %v6353
    %9496 = vmatprep.subr.bf16.mxu0 %v6346
    %9497 = vmatpush1.bf16.msra.mxu0 %v6345
    %9498 = vmatprep.subr.bf16.mxu0 %v6338
    %9499 = vmatpush1.bf16.msra.mxu0 %v6337
    %9500 = vmatprep.subr.bf16.mxu0 %v6330
    %9501 = vmatpush1.bf16.msra.mxu0 %v6329
    %9502 = vmatprep.subr.bf16.mxu0 %v6322
    %9503 = vmatpush1.bf16.msra.mxu0 %v6321
    %9504 = vmatprep.subr.bf16.mxu0 %v6442
    %9505 = vmatpush2.bf16.msra.mxu0 %v6441
    %9506 = vmatprep.subr.bf16.mxu0 %v6434
    %9507 = vmatpush2.bf16.msra.mxu0 %v6433
    %9508 = vmatprep.subr.bf16.mxu0 %v6426
    %9509 = vmatpush2.bf16.msra.mxu0 %v6425
    %9510 = vmatprep.subr.bf16.mxu0 %v6418
    %9511 = vmatpush2.bf16.msra.mxu0 %v6417
    %9512 = vmatprep.subr.bf16.mxu0 %v6410
    %9513 = vmatpush2.bf16.msra.mxu0 %v6409
    %9514 = vmatprep.subr.bf16.mxu0 %v6402
    %9515 = vmatpush2.bf16.msra.mxu0 %v6401
    %9516 = vmatprep.subr.bf16.mxu0 %v6394
    %9517 = vmatpush2.bf16.msra.mxu0 %v6393
    %9518 = vmatprep.subr.bf16.mxu0 %v6386
    %9519 = vmatpush2.bf16.msra.mxu0 %v6385
    %9520 = vmatprep.mubr.bf16.mxu0 %v1573
    %9521 = vmatmul.mubr.bf16.gmra.mxu0 %v1571
    %v9522 = vpop.f32.mrf.mxu0
    %v9523 = vadd.f32 %v9482, %v9522
    %v9524 = vpop.f32.mrf.mxu0
    %v9525 = vadd.f32 %v9484, %v9524
    %v9526 = vpop.f32.mrf.mxu0
    %v9527 = vpop.f32.mrf.mxu0
    %9528 = vdwg.mxu0
    %9529 = vmatprep.subr.bf16.mxu0 %v6506
    %9530 = vmatpush1.bf16.msra.mxu0 %v6505
    %9531 = vmatprep.subr.bf16.mxu0 %v6498
    %9532 = vmatpush1.bf16.msra.mxu0 %v6497
    %9533 = vmatprep.subr.bf16.mxu0 %v6490
    %9534 = vmatpush1.bf16.msra.mxu0 %v6489
    %9535 = vmatprep.subr.bf16.mxu0 %v6482
    %9536 = vmatpush1.bf16.msra.mxu0 %v6481
    %9537 = vmatprep.subr.bf16.mxu0 %v6474
    %9538 = vmatpush1.bf16.msra.mxu0 %v6473
    %9539 = vmatprep.subr.bf16.mxu0 %v6466
    %9540 = vmatpush1.bf16.msra.mxu0 %v6465
    %9541 = vmatprep.subr.bf16.mxu0 %v6458
    %9542 = vmatpush1.bf16.msra.mxu0 %v6457
    %9543 = vmatprep.subr.bf16.mxu0 %v6450
    %9544 = vmatpush1.bf16.msra.mxu0 %v6449
    %9545 = vmatprep.subr.bf16.mxu0 %v6570
    %9546 = vmatpush2.bf16.msra.mxu0 %v6569
    %9547 = vmatprep.subr.bf16.mxu0 %v6562
    %9548 = vmatpush2.bf16.msra.mxu0 %v6561
    %9549 = vmatprep.subr.bf16.mxu0 %v6554
    %9550 = vmatpush2.bf16.msra.mxu0 %v6553
    %9551 = vmatprep.subr.bf16.mxu0 %v6546
    %9552 = vmatpush2.bf16.msra.mxu0 %v6545
    %9553 = vmatprep.subr.bf16.mxu0 %v6538
    %9554 = vmatpush2.bf16.msra.mxu0 %v6537
    %9555 = vmatprep.subr.bf16.mxu0 %v6530
    %9556 = vmatpush2.bf16.msra.mxu0 %v6529
    %9557 = vmatprep.subr.bf16.mxu0 %v6522
    %9558 = vmatpush2.bf16.msra.mxu0 %v6521
    %9559 = vmatprep.subr.bf16.mxu0 %v6514
    %9560 = vmatpush2.bf16.msra.mxu0 %v6513
    %9561 = vmatprep.mubr.bf16.mxu0 %v1605
    %9562 = vmatmul.mubr.bf16.gmra.mxu0 %v1598
    %v9563 = vpop.f32.mrf.mxu0
    %v9564 = vadd.f32 %v9523, %v9563
    %v9565 = vpop.f32.mrf.mxu0
    %v9566 = vadd.f32 %v9525, %v9565
    %v9567 = vpop.f32.mrf.mxu0
    %v9568 = vpop.f32.mrf.mxu0
    %9569 = vdwg.mxu0
    %9570 = vmatprep.subr.bf16.mxu0 %v6634
    %9571 = vmatpush1.bf16.msra.mxu0 %v6633
    %9572 = vmatprep.subr.bf16.mxu0 %v6626
    %9573 = vmatpush1.bf16.msra.mxu0 %v6625
    %9574 = vmatprep.subr.bf16.mxu0 %v6618
    %9575 = vmatpush1.bf16.msra.mxu0 %v6617
    %9576 = vmatprep.subr.bf16.mxu0 %v6610
    %9577 = vmatpush1.bf16.msra.mxu0 %v6609
    %9578 = vmatprep.subr.bf16.mxu0 %v6602
    %9579 = vmatpush1.bf16.msra.mxu0 %v6601
    %9580 = vmatprep.subr.bf16.mxu0 %v6594
    %9581 = vmatpush1.bf16.msra.mxu0 %v6593
    %9582 = vmatprep.subr.bf16.mxu0 %v6586
    %9583 = vmatpush1.bf16.msra.mxu0 %v6585
    %9584 = vmatprep.subr.bf16.mxu0 %v6578
    %9585 = vmatpush1.bf16.msra.mxu0 %v6577
    %9586 = vmatprep.subr.bf16.mxu0 0
    %9587 = vmatpush2.bf16.msra.mxu0 0
    %9588 = vmatprep.subr.bf16.mxu0 0
    %9589 = vmatpush2.bf16.msra.mxu0 0
    %9590 = vmatprep.subr.bf16.mxu0 %v7969
    %9591 = vmatpush2.bf16.msra.mxu0 %v7966
    %9592 = vmatprep.subr.bf16.mxu0 %v6674
    %9593 = vmatpush2.bf16.msra.mxu0 %v6673
    %9594 = vmatprep.subr.bf16.mxu0 %v6666
    %9595 = vmatpush2.bf16.msra.mxu0 %v6665
    %9596 = vmatprep.subr.bf16.mxu0 %v6658
    %9597 = vmatpush2.bf16.msra.mxu0 %v6657
    %9598 = vmatprep.subr.bf16.mxu0 %v6650
    %9599 = vmatpush2.bf16.msra.mxu0 %v6649
    %9600 = vmatprep.subr.bf16.mxu0 %v6642
    %9601 = vmatpush2.bf16.msra.mxu0 %v6641
    %9602 = vmatprep.mubr.bf16.mxu0 %v7941
    %9603 = vmatmul.mubr.bf16.gmra.mxu0 %v1606
    %v9604 = vpop.f32.mrf.mxu0
    %v9605 = vadd.f32 %v9564, %v9604
    %v9606 = vpop.f32.mrf.mxu0
    %v9607 = vadd.f32 %v9566, %v9606
    %v9608 = vpop.f32.mrf.mxu0
    %v9609 = vpop.f32.mrf.mxu0
    %9610 = vdwg.mxu0
    %v9611 = vmax.f32 %v8375, 0.0
    %v9612 = vmax.f32 %v8377, 0.0
    %v9613 = vmax.f32 %v8785, 0.0
    %v9614 = vmax.f32 %v8787, 0.0
    %v9615 = vmax.f32 %v9195, 0.0
    %v9616 = vmax.f32 %v9197, 0.0
    %v9617 = vmax.f32 %v9605, 0.0
    %v9618 = vmax.f32 %v9607, 0.0
    %v9619 = vpack.c.bf16 %v9611, %v9611
    %v9620 = vpack.c.bf16 %v9612, %v9612
    %v9621 = vpack.c.bf16 %v9613, %v9613
    %v9622 = vpack.c.bf16 %v9614, %v9614
    %v9623 = vpack.c.bf16 %v9615, %v9615
    %v9624 = vpack.c.bf16 %v9616, %v9616
    %v9625 = vpack.c.bf16 %v9617, %v9617
    %v9626 = vpack.c.bf16 %v9618, %v9618
    %v9627 = vld [vmem:[%s3] sm:$0xff]
    %v9628 = vld [vmem:[%s3 + $0x8] sm:$0xff]
    %v9629 = vld [vmem:[%s3 + $0x10] sm:$0xff]
    %v9630 = vld [vmem:[%s3 + $0x18] sm:$0xff]
    %v9631 = vld [vmem:[%s3 + $0x20] sm:$0xff]
    %v9632 = vld [vmem:[%s3 + $0x28] sm:$0xff]
    %v9633 = vld [vmem:[%s3 + $0x30] sm:$0xff]
    %v9634 = vld [vmem:[%s3 + $0x38] sm:$0xff]
    %v9635 = vld [vmem:[%s3 + $0x40] sm:$0xff]
    %v9636 = vld [vmem:[%s3 + $0x48] sm:$0xff]
    %v9637 = vld [vmem:[%s3 + $0x50] sm:$0xff]
    %v9638 = vld [vmem:[%s3 + $0x58] sm:$0xff]
    %v9639 = vld [vmem:[%s3 + $0x60] sm:$0xff]
    %v9640 = vld [vmem:[%s3 + $0x68] sm:$0xff]
    %v9641 = vld [vmem:[%s3 + $0x70] sm:$0xff]
    %v9642 = vld [vmem:[%s3 + $0x78] sm:$0xff]
    %v9643 = vld [vmem:[%s3 + $0x80] sm:$0xff]
    %v9644 = vld [vmem:[%s3 + $0x88] sm:$0xff]
    %v9645 = vld [vmem:[%s3 + $0x90] sm:$0xff]
    %v9646 = vld [vmem:[%s3 + $0x98] sm:$0xff]
    %v9647 = vld [vmem:[%s3 + $0xa0] sm:$0xff]
    %v9648 = vld [vmem:[%s3 + $0xa8] sm:$0xff]
    %v9649 = vld [vmem:[%s3 + $0xb0] sm:$0xff]
    %v9650 = vld [vmem:[%s3 + $0xb8] sm:$0xff]
    %v9651 = vld [vmem:[%s3 + $0xc0] sm:$0xff]
    %v9652 = vld [vmem:[%s3 + $0xc8] sm:$0xff]
    %v9653 = vld [vmem:[%s3 + $0xd0] sm:$0xff]
    %v9654 = vld [vmem:[%s3 + $0xd8] sm:$0xff]
    %v9655 = vld [vmem:[%s3 + $0xe0] sm:$0xff]
    %v9656 = vld [vmem:[%s3 + $0xe8] sm:$0xff]
    %v9657 = vld [vmem:[%s3 + $0xf0] sm:$0xff]
    %v9658 = vld [vmem:[%s3 + $0xf8] sm:$0xff]
    %v9659 = vld [vmem:[%s3 + $0x100] sm:$0xff]
    %v9660 = vld [vmem:[%s3 + $0x108] sm:$0xff]
    %v9661 = vld [vmem:[%s3 + $0x110] sm:$0xff]
    %v9662 = vld [vmem:[%s3 + $0x118] sm:$0xff]
    %v9663 = vld [vmem:[%s3 + $0x120] sm:$0xff]
    %v9664 = vld [vmem:[%s3 + $0x128] sm:$0xff]
    %v9665 = vld [vmem:[%s3 + $0x130] sm:$0xff]
    %v9666 = vld [vmem:[%s3 + $0x138] sm:$0xff]
    %v9667 = vld [vmem:[%s3 + $0x140] sm:$0xff]
    %v9668 = vld [vmem:[%s3 + $0x148] sm:$0xff]
    %v9669 = vld [vmem:[%s3 + $0x150] sm:$0xff]
    %v9670 = vld [vmem:[%s3 + $0x158] sm:$0xff]
    %v9671 = vld [vmem:[%s3 + $0x160] sm:$0xff]
    %v9672 = vld [vmem:[%s3 + $0x168] sm:$0xff]
    %v9673 = vld [vmem:[%s3 + $0x170] sm:$0xff]
    %v9674 = vld [vmem:[%s3 + $0x178] sm:$0xff]
    %v9675 = vld [vmem:[%s3 + $0x180] sm:$0xff]
    %v9676 = vld [vmem:[%s3 + $0x188] sm:$0xff]
    %v9677 = vld [vmem:[%s3 + $0x190] sm:$0xff]
    %v9678 = vld [vmem:[%s3 + $0x198] sm:$0xff]
    %v9679 = vld [vmem:[%s3 + $0x1a0] sm:$0xff]
    %v9680 = vld [vmem:[%s3 + $0x1a8] sm:$0xff]
    %v9681 = vld [vmem:[%s3 + $0x1b0] sm:$0xff]
    %v9682 = vld [vmem:[%s3 + $0x1b8] sm:$0xff]
    %v9683 = vld [vmem:[%s3 + $0x1c0] sm:$0xff]
    %v9684 = vld [vmem:[%s3 + $0x1c8] sm:$0xff]
    %v9685 = vld [vmem:[%s3 + $0x1d0] sm:$0xff]
    %v9686 = vld [vmem:[%s3 + $0x1d8] sm:$0xff]
    %v9687 = vld [vmem:[%s3 + $0x1e0] sm:$0xff]
    %v9688 = vld [vmem:[%s3 + $0x1e8] sm:$0xff]
    %v9689 = vld [vmem:[%s3 + $0x1f0] sm:$0xff]
    %v9690 = vld [vmem:[%s3 + $0x1f8] sm:$0xff]
    %v9691 = vld [vmem:[%s3 + $0x200] sm:$0xff]
    %v9692 = vld [vmem:[%s3 + $0x208] sm:$0xff]
    %v9693 = vld [vmem:[%s3 + $0x210] sm:$0xff]
    %v9694 = vld [vmem:[%s3 + $0x218] sm:$0xff]
    %v9695 = vld [vmem:[%s3 + $0x220] sm:$0xff]
    %v9696 = vld [vmem:[%s3 + $0x228] sm:$0xff]
    %v9697 = vld [vmem:[%s3 + $0x230] sm:$0xff]
    %v9698 = vld [vmem:[%s3 + $0x238] sm:$0xff]
    %v9699 = vld [vmem:[%s3 + $0x240] sm:$0xff]
    %v9700 = vld [vmem:[%s3 + $0x248] sm:$0xff]
    %v9701 = vld [vmem:[%s3 + $0x250] sm:$0xff]
    %v9702 = vld [vmem:[%s3 + $0x258] sm:$0xff]
    %v9703 = vld [vmem:[%s3 + $0x260] sm:$0xff]
    %v9704 = vld [vmem:[%s3 + $0x268] sm:$0xff]
    %v9705 = vld [vmem:[%s3 + $0x270] sm:$0xff]
    %v9706 = vld [vmem:[%s3 + $0x278] sm:$0xff]
    %v9707 = vld [vmem:[%s3 + $0x280] sm:$0xff]
    %v9708 = vld [vmem:[%s3 + $0x288] sm:$0xff]
    %v9709 = vld [vmem:[%s3 + $0x290] sm:$0xff]
    %v9710 = vld [vmem:[%s3 + $0x298] sm:$0xff]
    %v9711 = vld [vmem:[%s3 + $0x2a0] sm:$0xff]
    %v9712 = vld [vmem:[%s3 + $0x2a8] sm:$0xff]
    %v9713 = vld [vmem:[%s3 + $0x2b0] sm:$0xff]
    %v9714 = vld [vmem:[%s3 + $0x2b8] sm:$0xff]
    %v9715 = vld [vmem:[%s3 + $0x2c0] sm:$0xff]
    %v9716 = vld [vmem:[%s3 + $0x2c8] sm:$0xff]
    %v9717 = vld [vmem:[%s3 + $0x2d0] sm:$0xff]
    %v9718 = vld [vmem:[%s3 + $0x2d8] sm:$0xff]
    %v9719 = vld [vmem:[%s3 + $0x2e0] sm:$0xff]
    %v9720 = vld [vmem:[%s3 + $0x2e8] sm:$0xff]
    %v9721 = vld [vmem:[%s3 + $0x2f0] sm:$0xff]
    %v9722 = vld [vmem:[%s3 + $0x2f8] sm:$0xff]
    %v9723 = vld [vmem:[%s3 + $0x300] sm:$0xff]
    %v9724 = vld [vmem:[%s3 + $0x308] sm:$0xff]
    %v9725 = vld [vmem:[%s3 + $0x310] sm:$0xff]
    %v9726 = vld [vmem:[%s3 + $0x318] sm:$0xff]
    %v9727 = vld [vmem:[%s3 + $0x320] sm:$0xff]
    %v9728 = vld [vmem:[%s3 + $0x328] sm:$0xff]
    %v9729 = vld [vmem:[%s3 + $0x330] sm:$0xff]
    %v9730 = vld [vmem:[%s3 + $0x338] sm:$0xff]
    %v9731 = vld [vmem:[%s3 + $0x340] sm:$0xff]
    %v9732 = vld [vmem:[%s3 + $0x348] sm:$0xff]
    %v9733 = vld [vmem:[%s3 + $0x350] sm:$0xff]
    %v9734 = vld [vmem:[%s3 + $0x358] sm:$0xff]
    %v9735 = vld [vmem:[%s3 + $0x360] sm:$0xff]
    %v9736 = vld [vmem:[%s3 + $0x368] sm:$0xff]
    %v9737 = vld [vmem:[%s3 + $0x370] sm:$0xff]
    %v9738 = vld [vmem:[%s3 + $0x378] sm:$0xff]
    %v9739 = vld [vmem:[%s3 + $0x380] sm:$0xff]
    %v9740 = vld [vmem:[%s3 + $0x388] sm:$0xff]
    %v9741 = vld [vmem:[%s3 + $0x390] sm:$0xff]
    %v9742 = vld [vmem:[%s3 + $0x398] sm:$0xff]
    %v9743 = vld [vmem:[%s3 + $0x3a0] sm:$0xff]
    %v9744 = vld [vmem:[%s3 + $0x3a8] sm:$0xff]
    %v9745 = vld [vmem:[%s3 + $0x3b0] sm:$0xff]
    %v9746 = vld [vmem:[%s3 + $0x3b8] sm:$0xff]
    %v9747 = vld [vmem:[%s3 + $0x3c0] sm:$0xff]
    %v9748 = vld [vmem:[%s3 + $0x3c8] sm:$0xff]
    %v9749 = vld [vmem:[%s3 + $0x3d0] sm:$0xff]
    %v9750 = vld [vmem:[%s3 + $0x3d8] sm:$0xff]
    %v9751 = vld [vmem:[%s3 + $0x3e0] sm:$0xff]
    %v9752 = vld [vmem:[%s3 + $0x3e8] sm:$0xff]
    %v9753 = vld [vmem:[%s3 + $0x3f0] sm:$0xff]
    %v9754 = vld [vmem:[%s3 + $0x3f8] sm:$0xff]
    %v9755 = vld [vmem:[%s3 + $0x400] sm:$0xff]
    %v9756 = vld [vmem:[%s3 + $0x408] sm:$0xff]
    %v9757 = vld [vmem:[%s3 + $0x410] sm:$0xff]
    %v9758 = vld [vmem:[%s3 + $0x418] sm:$0xff]
    %v9759 = vld [vmem:[%s3 + $0x420] sm:$0xff]
    %v9760 = vld [vmem:[%s3 + $0x428] sm:$0xff]
    %v9761 = vld [vmem:[%s3 + $0x430] sm:$0xff]
    %v9762 = vld [vmem:[%s3 + $0x438] sm:$0xff]
    %v9763 = vld [vmem:[%s3 + $0x440] sm:$0xff]
    %v9764 = vld [vmem:[%s3 + $0x448] sm:$0xff]
    %v9765 = vld [vmem:[%s3 + $0x450] sm:$0xff]
    %v9766 = vld [vmem:[%s3 + $0x458] sm:$0xff]
    %v9767 = vld [vmem:[%s3 + $0x460] sm:$0xff]
    %v9768 = vld [vmem:[%s3 + $0x468] sm:$0xff]
    %v9769 = vld [vmem:[%s3 + $0x470] sm:$0xff]
    %v9770 = vld [vmem:[%s3 + $0x478] sm:$0xff]
    %v9771 = vld [vmem:[%s3 + $0x480] sm:$0xff]
    %v9772 = vld [vmem:[%s3 + $0x488] sm:$0xff]
    %v9773 = vld [vmem:[%s3 + $0x490] sm:$0xff]
    %v9774 = vld [vmem:[%s3 + $0x498] sm:$0xff]
    %v9775 = vld [vmem:[%s3 + $0x4a0] sm:$0xff]
    %v9776 = vld [vmem:[%s3 + $0x4a8] sm:$0xff]
    %v9777 = vld [vmem:[%s3 + $0x4b0] sm:$0xff]
    %v9778 = vld [vmem:[%s3 + $0x4b8] sm:$0xff]
    %v9779 = vld [vmem:[%s3 + $0x4c0] sm:$0xff]
    %v9780 = vld [vmem:[%s3 + $0x4c8] sm:$0xff]
    %v9781 = vld [vmem:[%s3 + $0x4d0] sm:$0xff]
    %v9782 = vld [vmem:[%s3 + $0x4d8] sm:$0xff]
    %v9783 = vld [vmem:[%s3 + $0x4e0] sm:$0xff]
    %v9784 = vld [vmem:[%s3 + $0x4e8] sm:$0xff]
    %v9785 = vld [vmem:[%s3 + $0x4f0] sm:$0xff]
    %v9786 = vld [vmem:[%s3 + $0x4f8] sm:$0xff]
    %v9787 = vld [vmem:[%s3 + $0x500] sm:$0xff]
    %v9788 = vld [vmem:[%s3 + $0x508] sm:$0xff]
    %v9789 = vld [vmem:[%s3 + $0x510] sm:$0xff]
    %v9790 = vld [vmem:[%s3 + $0x518] sm:$0xff]
    %v9791 = vld [vmem:[%s3 + $0x520] sm:$0xff]
    %v9792 = vld [vmem:[%s3 + $0x528] sm:$0xff]
    %v9793 = vld [vmem:[%s3 + $0x530] sm:$0xff]
    %v9794 = vld [vmem:[%s3 + $0x538] sm:$0xff]
    %v9795 = vld [vmem:[%s3 + $0x540] sm:$0xff]
    %v9796 = vld [vmem:[%s3 + $0x548] sm:$0xff]
    %v9797 = vld [vmem:[%s3 + $0x550] sm:$0xff]
    %v9798 = vld [vmem:[%s3 + $0x558] sm:$0xff]
    %v9799 = vld [vmem:[%s3 + $0x560] sm:$0xff]
    %v9800 = vld [vmem:[%s3 + $0x568] sm:$0xff]
    %v9801 = vld [vmem:[%s3 + $0x570] sm:$0xff]
    %v9802 = vld [vmem:[%s3 + $0x578] sm:$0xff]
    %v9803 = vld [vmem:[%s3 + $0x580] sm:$0xff]
    %v9804 = vld [vmem:[%s3 + $0x588] sm:$0xff]
    %v9805 = vld [vmem:[%s3 + $0x590] sm:$0xff]
    %v9806 = vld [vmem:[%s3 + $0x598] sm:$0xff]
    %v9807 = vld [vmem:[%s3 + $0x5a0] sm:$0xff]
    %v9808 = vld [vmem:[%s3 + $0x5a8] sm:$0xff]
    %v9809 = vld [vmem:[%s3 + $0x5b0] sm:$0xff]
    %v9810 = vld [vmem:[%s3 + $0x5b8] sm:$0xff]
    %v9811 = vld [vmem:[%s3 + $0x5c0] sm:$0xff]
    %v9812 = vld [vmem:[%s3 + $0x5c8] sm:$0xff]
    %v9813 = vld [vmem:[%s3 + $0x5d0] sm:$0xff]
    %v9814 = vld [vmem:[%s3 + $0x5d8] sm:$0xff]
    %v9815 = vld [vmem:[%s3 + $0x5e0] sm:$0xff]
    %v9816 = vld [vmem:[%s3 + $0x5e8] sm:$0xff]
    %v9817 = vld [vmem:[%s3 + $0x5f0] sm:$0xff]
    %v9818 = vld [vmem:[%s3 + $0x5f8] sm:$0xff]
    %v9819 = vld [vmem:[%s3 + $0x600] sm:$0xff]
    %v9820 = vld [vmem:[%s3 + $0x608] sm:$0xff]
    %v9821 = vld [vmem:[%s3 + $0x610] sm:$0xff]
    %v9822 = vld [vmem:[%s3 + $0x618] sm:$0xff]
    %v9823 = vld [vmem:[%s3 + $0x620] sm:$0xff]
    %v9824 = vld [vmem:[%s3 + $0x628] sm:$0xff]
    %v9825 = vld [vmem:[%s3 + $0x630] sm:$0xff]
    %v9826 = vld [vmem:[%s3 + $0x638] sm:$0xff]
    %v9827 = vld [vmem:[%s3 + $0x640] sm:$0xff]
    %v9828 = vld [vmem:[%s3 + $0x648] sm:$0xff]
    %v9829 = vld [vmem:[%s3 + $0x650] sm:$0xff]
    %v9830 = vld [vmem:[%s3 + $0x658] sm:$0xff]
    %v9831 = vld [vmem:[%s3 + $0x660] sm:$0xff]
    %v9832 = vld [vmem:[%s3 + $0x668] sm:$0xff]
    %v9833 = vld [vmem:[%s3 + $0x670] sm:$0xff]
    %v9834 = vld [vmem:[%s3 + $0x678] sm:$0xff]
    %v9835 = vld [vmem:[%s3 + $0x680] sm:$0xff]
    %v9836 = vld [vmem:[%s3 + $0x688] sm:$0xff]
    %v9837 = vld [vmem:[%s3 + $0x690] sm:$0xff]
    %v9838 = vld [vmem:[%s3 + $0x698] sm:$0xff]
    %v9839 = vld [vmem:[%s3 + $0x6a0] sm:$0xff]
    %v9840 = vld [vmem:[%s3 + $0x6a8] sm:$0xff]
    %v9841 = vld [vmem:[%s3 + $0x6b0] sm:$0xff]
    %v9842 = vld [vmem:[%s3 + $0x6b8] sm:$0xff]
    %v9843 = vld [vmem:[%s3 + $0x6c0] sm:$0xff]
    %v9844 = vld [vmem:[%s3 + $0x6c8] sm:$0xff]
    %v9845 = vld [vmem:[%s3 + $0x6d0] sm:$0xff]
    %v9846 = vld [vmem:[%s3 + $0x6d8] sm:$0xff]
    %v9847 = vld [vmem:[%s3 + $0x6e0] sm:$0xff]
    %v9848 = vld [vmem:[%s3 + $0x6e8] sm:$0xff]
    %v9849 = vld [vmem:[%s3 + $0x6f0] sm:$0xff]
    %v9850 = vld [vmem:[%s3 + $0x6f8] sm:$0xff]
    %v9851 = vld [vmem:[%s3 + $0x700] sm:$0xff]
    %v9852 = vld [vmem:[%s3 + $0x708] sm:$0xff]
    %v9853 = vld [vmem:[%s3 + $0x710] sm:$0xff]
    %v9854 = vld [vmem:[%s3 + $0x718] sm:$0xff]
    %v9855 = vld [vmem:[%s3 + $0x720] sm:$0xff]
    %v9856 = vld [vmem:[%s3 + $0x728] sm:$0xff]
    %v9857 = vld [vmem:[%s3 + $0x730] sm:$0xff]
    %v9858 = vld [vmem:[%s3 + $0x738] sm:$0xff]
    %v9859 = vld [vmem:[%s3 + $0x740] sm:$0xff]
    %v9860 = vld [vmem:[%s3 + $0x748] sm:$0xff]
    %v9861 = vld [vmem:[%s3 + $0x750] sm:$0xff]
    %v9862 = vld [vmem:[%s3 + $0x758] sm:$0xff]
    %v9863 = vld [vmem:[%s3 + $0x760] sm:$0xff]
    %v9864 = vld [vmem:[%s3 + $0x768] sm:$0xff]
    %v9865 = vld [vmem:[%s3 + $0x770] sm:$0xff]
    %v9866 = vld [vmem:[%s3 + $0x778] sm:$0xff]
    %v9867 = vld [vmem:[%s3 + $0x780] sm:$0xff]
    %v9868 = vld [vmem:[%s3 + $0x788] sm:$0xff]
    %v9869 = vld [vmem:[%s3 + $0x790] sm:$0xff]
    %v9870 = vld [vmem:[%s3 + $0x798] sm:$0xff]
    %v9871 = vld [vmem:[%s3 + $0x7a0] sm:$0xff]
    %v9872 = vld [vmem:[%s3 + $0x7a8] sm:$0xff]
    %v9873 = vld [vmem:[%s3 + $0x7b0] sm:$0xff]
    %v9874 = vld [vmem:[%s3 + $0x7b8] sm:$0xff]
    %v9875 = vld [vmem:[%s3 + $0x7c0] sm:$0xff]
    %v9876 = vld [vmem:[%s3 + $0x7c8] sm:$0xff]
    %v9877 = vld [vmem:[%s3 + $0x7d0] sm:$0xff]
    %v9878 = vld [vmem:[%s3 + $0x7d8] sm:$0xff]
    %v9879 = vld [vmem:[%s3 + $0x7e0] sm:$0x77]
    %v9880 = vld [vmem:[%s3 + $0x7e8] sm:$0x77]
    %v9881 = vld [vmem:[#allocation7] sm:$0xf]
    %v9883 = vlaneseq
    %v9884 = vshrl.u32 %v9883, 7
    %v9885 = vsub.s32 0, %v9884
    %v9886 = vrot.slane %v9881, %v9885
    %v9887 = vlaneseq
    %v9888 = vshrl.u32 %v9887, 7
    %v9889 = vsub.s32 1, %v9888
    %v9890 = vrot.slane %v9881, %v9889
    %v9891 = vlaneseq
    %v9892 = vshrl.u32 %v9891, 7
    %v9893 = vsub.s32 2, %v9892
    %v9894 = vrot.slane %v9881, %v9893
    %v9895 = vlaneseq
    %v9896 = vshrl.u32 %v9895, 7
    %v9897 = vsub.s32 3, %v9896
    %v9898 = vrot.slane %v9881, %v9897
    %v10157 = vunpack.c.l.b16 %v9627
    %v10158 = vunpack.c.h.b16 %v9627
    %v10159 = vunpack.c.l.b16 %v9628
    %v10160 = vunpack.c.h.b16 %v9628
    %v10161 = vunpack.c.l.b16 %v9629
    %v10162 = vunpack.c.h.b16 %v9629
    %v10163 = vunpack.c.l.b16 %v9630
    %v10164 = vunpack.c.h.b16 %v9630
    %v10165 = vunpack.c.l.b16 %v9631
    %v10166 = vunpack.c.h.b16 %v9631
    %v10167 = vunpack.c.l.b16 %v9632
    %v10168 = vunpack.c.h.b16 %v9632
    %v10169 = vunpack.c.l.b16 %v9633
    %v10170 = vunpack.c.h.b16 %v9633
    %v10171 = vunpack.c.l.b16 %v9634
    %v10172 = vunpack.c.h.b16 %v9634
    %v10173 = vunpack.c.l.b16 %v9635
    %v10174 = vunpack.c.h.b16 %v9635
    %v10175 = vunpack.c.l.b16 %v9636
    %v10176 = vunpack.c.h.b16 %v9636
    %v10177 = vunpack.c.l.b16 %v9637
    %v10178 = vunpack.c.h.b16 %v9637
    %v10179 = vunpack.c.l.b16 %v9638
    %v10180 = vunpack.c.h.b16 %v9638
    %v10181 = vunpack.c.l.b16 %v9639
    %v10182 = vunpack.c.h.b16 %v9639
    %v10183 = vunpack.c.l.b16 %v9640
    %v10184 = vunpack.c.h.b16 %v9640
    %v10185 = vunpack.c.l.b16 %v9641
    %v10186 = vunpack.c.h.b16 %v9641
    %v10187 = vunpack.c.l.b16 %v9642
    %v10188 = vunpack.c.h.b16 %v9642
    %v10189 = vunpack.c.l.b16 %v9643
    %v10190 = vunpack.c.h.b16 %v9643
    %v10191 = vunpack.c.l.b16 %v9644
    %v10192 = vunpack.c.h.b16 %v9644
    %v10193 = vunpack.c.l.b16 %v9645
    %v10194 = vunpack.c.h.b16 %v9645
    %v10195 = vunpack.c.l.b16 %v9646
    %v10196 = vunpack.c.h.b16 %v9646
    %v10197 = vunpack.c.l.b16 %v9647
    %v10198 = vunpack.c.h.b16 %v9647
    %v10199 = vunpack.c.l.b16 %v9648
    %v10200 = vunpack.c.h.b16 %v9648
    %v10201 = vunpack.c.l.b16 %v9649
    %v10202 = vunpack.c.h.b16 %v9649
    %v10203 = vunpack.c.l.b16 %v9650
    %v10204 = vunpack.c.h.b16 %v9650
    %v10205 = vunpack.c.l.b16 %v9651
    %v10206 = vunpack.c.h.b16 %v9651
    %v10207 = vunpack.c.l.b16 %v9652
    %v10208 = vunpack.c.h.b16 %v9652
    %v10209 = vunpack.c.l.b16 %v9653
    %v10210 = vunpack.c.h.b16 %v9653
    %v10211 = vunpack.c.l.b16 %v9654
    %v10212 = vunpack.c.h.b16 %v9654
    %v10213 = vunpack.c.l.b16 %v9655
    %v10214 = vunpack.c.h.b16 %v9655
    %v10215 = vunpack.c.l.b16 %v9656
    %v10216 = vunpack.c.h.b16 %v9656
    %v10217 = vunpack.c.l.b16 %v9657
    %v10218 = vunpack.c.h.b16 %v9657
    %v10219 = vunpack.c.l.b16 %v9658
    %v10220 = vunpack.c.h.b16 %v9658
    %v10221 = vunpack.c.l.b16 %v9659
    %v10222 = vunpack.c.h.b16 %v9659
    %v10223 = vunpack.c.l.b16 %v9660
    %v10224 = vunpack.c.h.b16 %v9660
    %v10225 = vunpack.c.l.b16 %v9661
    %v10226 = vunpack.c.h.b16 %v9661
    %v10227 = vunpack.c.l.b16 %v9662
    %v10228 = vunpack.c.h.b16 %v9662
    %v10229 = vunpack.c.l.b16 %v9663
    %v10230 = vunpack.c.h.b16 %v9663
    %v10231 = vunpack.c.l.b16 %v9664
    %v10232 = vunpack.c.h.b16 %v9664
    %v10233 = vunpack.c.l.b16 %v9665
    %v10234 = vunpack.c.h.b16 %v9665
    %v10235 = vunpack.c.l.b16 %v9666
    %v10236 = vunpack.c.h.b16 %v9666
    %v10237 = vunpack.c.l.b16 %v9667
    %v10238 = vunpack.c.h.b16 %v9667
    %v10239 = vunpack.c.l.b16 %v9668
    %v10240 = vunpack.c.h.b16 %v9668
    %v10241 = vunpack.c.l.b16 %v9669
    %v10242 = vunpack.c.h.b16 %v9669
    %v10243 = vunpack.c.l.b16 %v9670
    %v10244 = vunpack.c.h.b16 %v9670
    %v10245 = vunpack.c.l.b16 %v9671
    %v10246 = vunpack.c.h.b16 %v9671
    %v10247 = vunpack.c.l.b16 %v9672
    %v10248 = vunpack.c.h.b16 %v9672
    %v10249 = vunpack.c.l.b16 %v9673
    %v10250 = vunpack.c.h.b16 %v9673
    %v10251 = vunpack.c.l.b16 %v9674
    %v10252 = vunpack.c.h.b16 %v9674
    %v10253 = vunpack.c.l.b16 %v9675
    %v10254 = vunpack.c.h.b16 %v9675
    %v10255 = vunpack.c.l.b16 %v9676
    %v10256 = vunpack.c.h.b16 %v9676
    %v10257 = vunpack.c.l.b16 %v9677
    %v10258 = vunpack.c.h.b16 %v9677
    %v10259 = vunpack.c.l.b16 %v9678
    %v10260 = vunpack.c.h.b16 %v9678
    %v10261 = vunpack.c.l.b16 %v9679
    %v10262 = vunpack.c.h.b16 %v9679
    %v10263 = vunpack.c.l.b16 %v9680
    %v10264 = vunpack.c.h.b16 %v9680
    %v10265 = vunpack.c.l.b16 %v9681
    %v10266 = vunpack.c.h.b16 %v9681
    %v10267 = vunpack.c.l.b16 %v9682
    %v10268 = vunpack.c.h.b16 %v9682
    %v10269 = vunpack.c.l.b16 %v9683
    %v10270 = vunpack.c.h.b16 %v9683
    %v10271 = vunpack.c.l.b16 %v9684
    %v10272 = vunpack.c.h.b16 %v9684
    %v10273 = vunpack.c.l.b16 %v9685
    %v10274 = vunpack.c.h.b16 %v9685
    %v10275 = vunpack.c.l.b16 %v9686
    %v10276 = vunpack.c.h.b16 %v9686
    %v10277 = vunpack.c.l.b16 %v9687
    %v10278 = vunpack.c.h.b16 %v9687
    %v10279 = vunpack.c.l.b16 %v9688
    %v10280 = vunpack.c.h.b16 %v9688
    %v10281 = vunpack.c.l.b16 %v9689
    %v10282 = vunpack.c.h.b16 %v9689
    %v10283 = vunpack.c.l.b16 %v9690
    %v10284 = vunpack.c.h.b16 %v9690
    %v10285 = vunpack.c.l.b16 %v9691
    %v10286 = vunpack.c.h.b16 %v9691
    %v10287 = vunpack.c.l.b16 %v9692
    %v10288 = vunpack.c.h.b16 %v9692
    %v10289 = vunpack.c.l.b16 %v9693
    %v10290 = vunpack.c.h.b16 %v9693
    %v10291 = vunpack.c.l.b16 %v9694
    %v10292 = vunpack.c.h.b16 %v9694
    %v10293 = vunpack.c.l.b16 %v9695
    %v10294 = vunpack.c.h.b16 %v9695
    %v10295 = vunpack.c.l.b16 %v9696
    %v10296 = vunpack.c.h.b16 %v9696
    %v10297 = vunpack.c.l.b16 %v9697
    %v10298 = vunpack.c.h.b16 %v9697
    %v10299 = vunpack.c.l.b16 %v9698
    %v10300 = vunpack.c.h.b16 %v9698
    %v10301 = vunpack.c.l.b16 %v9699
    %v10302 = vunpack.c.h.b16 %v9699
    %v10303 = vunpack.c.l.b16 %v9700
    %v10304 = vunpack.c.h.b16 %v9700
    %v10305 = vunpack.c.l.b16 %v9701
    %v10306 = vunpack.c.h.b16 %v9701
    %v10307 = vunpack.c.l.b16 %v9702
    %v10308 = vunpack.c.h.b16 %v9702
    %v10309 = vunpack.c.l.b16 %v9703
    %v10310 = vunpack.c.h.b16 %v9703
    %v10311 = vunpack.c.l.b16 %v9704
    %v10312 = vunpack.c.h.b16 %v9704
    %v10313 = vunpack.c.l.b16 %v9705
    %v10314 = vunpack.c.h.b16 %v9705
    %v10315 = vunpack.c.l.b16 %v9706
    %v10316 = vunpack.c.h.b16 %v9706
    %v10317 = vunpack.c.l.b16 %v9707
    %v10318 = vunpack.c.h.b16 %v9707
    %v10319 = vunpack.c.l.b16 %v9708
    %v10320 = vunpack.c.h.b16 %v9708
    %v10321 = vunpack.c.l.b16 %v9709
    %v10322 = vunpack.c.h.b16 %v9709
    %v10323 = vunpack.c.l.b16 %v9710
    %v10324 = vunpack.c.h.b16 %v9710
    %v10325 = vunpack.c.l.b16 %v9711
    %v10326 = vunpack.c.h.b16 %v9711
    %v10327 = vunpack.c.l.b16 %v9712
    %v10328 = vunpack.c.h.b16 %v9712
    %v10329 = vunpack.c.l.b16 %v9713
    %v10330 = vunpack.c.h.b16 %v9713
    %v10331 = vunpack.c.l.b16 %v9714
    %v10332 = vunpack.c.h.b16 %v9714
    %v10333 = vunpack.c.l.b16 %v9715
    %v10334 = vunpack.c.h.b16 %v9715
    %v10335 = vunpack.c.l.b16 %v9716
    %v10336 = vunpack.c.h.b16 %v9716
    %v10337 = vunpack.c.l.b16 %v9717
    %v10338 = vunpack.c.h.b16 %v9717
    %v10339 = vunpack.c.l.b16 %v9718
    %v10340 = vunpack.c.h.b16 %v9718
    %v10341 = vunpack.c.l.b16 %v9719
    %v10342 = vunpack.c.h.b16 %v9719
    %v10343 = vunpack.c.l.b16 %v9720
    %v10344 = vunpack.c.h.b16 %v9720
    %v10345 = vunpack.c.l.b16 %v9721
    %v10346 = vunpack.c.h.b16 %v9721
    %v10347 = vunpack.c.l.b16 %v9722
    %v10348 = vunpack.c.h.b16 %v9722
    %v10349 = vunpack.c.l.b16 %v9723
    %v10350 = vunpack.c.h.b16 %v9723
    %v10351 = vunpack.c.l.b16 %v9724
    %v10352 = vunpack.c.h.b16 %v9724
    %v10353 = vunpack.c.l.b16 %v9725
    %v10354 = vunpack.c.h.b16 %v9725
    %v10355 = vunpack.c.l.b16 %v9726
    %v10356 = vunpack.c.h.b16 %v9726
    %v10357 = vunpack.c.l.b16 %v9727
    %v10358 = vunpack.c.h.b16 %v9727
    %v10359 = vunpack.c.l.b16 %v9728
    %v10360 = vunpack.c.h.b16 %v9728
    %v10361 = vunpack.c.l.b16 %v9729
    %v10362 = vunpack.c.h.b16 %v9729
    %v10363 = vunpack.c.l.b16 %v9730
    %v10364 = vunpack.c.h.b16 %v9730
    %v10365 = vunpack.c.l.b16 %v9731
    %v10366 = vunpack.c.h.b16 %v9731
    %v10367 = vunpack.c.l.b16 %v9732
    %v10368 = vunpack.c.h.b16 %v9732
    %v10369 = vunpack.c.l.b16 %v9733
    %v10370 = vunpack.c.h.b16 %v9733
    %v10371 = vunpack.c.l.b16 %v9734
    %v10372 = vunpack.c.h.b16 %v9734
    %v10373 = vunpack.c.l.b16 %v9735
    %v10374 = vunpack.c.h.b16 %v9735
    %v10375 = vunpack.c.l.b16 %v9736
    %v10376 = vunpack.c.h.b16 %v9736
    %v10377 = vunpack.c.l.b16 %v9737
    %v10378 = vunpack.c.h.b16 %v9737
    %v10379 = vunpack.c.l.b16 %v9738
    %v10380 = vunpack.c.h.b16 %v9738
    %v10381 = vunpack.c.l.b16 %v9739
    %v10382 = vunpack.c.h.b16 %v9739
    %v10383 = vunpack.c.l.b16 %v9740
    %v10384 = vunpack.c.h.b16 %v9740
    %v10385 = vunpack.c.l.b16 %v9741
    %v10386 = vunpack.c.h.b16 %v9741
    %v10387 = vunpack.c.l.b16 %v9742
    %v10388 = vunpack.c.h.b16 %v9742
    %v10389 = vunpack.c.l.b16 %v9743
    %v10390 = vunpack.c.h.b16 %v9743
    %v10391 = vunpack.c.l.b16 %v9744
    %v10392 = vunpack.c.h.b16 %v9744
    %v10393 = vunpack.c.l.b16 %v9745
    %v10394 = vunpack.c.h.b16 %v9745
    %v10395 = vunpack.c.l.b16 %v9746
    %v10396 = vunpack.c.h.b16 %v9746
    %v10397 = vunpack.c.l.b16 %v9747
    %v10398 = vunpack.c.h.b16 %v9747
    %v10399 = vunpack.c.l.b16 %v9748
    %v10400 = vunpack.c.h.b16 %v9748
    %v10401 = vunpack.c.l.b16 %v9749
    %v10402 = vunpack.c.h.b16 %v9749
    %v10403 = vunpack.c.l.b16 %v9750
    %v10404 = vunpack.c.h.b16 %v9750
    %v10405 = vunpack.c.l.b16 %v9751
    %v10406 = vunpack.c.h.b16 %v9751
    %v10407 = vunpack.c.l.b16 %v9752
    %v10408 = vunpack.c.h.b16 %v9752
    %v10409 = vunpack.c.l.b16 %v9753
    %v10410 = vunpack.c.h.b16 %v9753
    %v10411 = vunpack.c.l.b16 %v9754
    %v10412 = vunpack.c.h.b16 %v9754
    %v10413 = vunpack.c.l.b16 %v9755
    %v10414 = vunpack.c.h.b16 %v9755
    %v10415 = vunpack.c.l.b16 %v9756
    %v10416 = vunpack.c.h.b16 %v9756
    %v10417 = vunpack.c.l.b16 %v9757
    %v10418 = vunpack.c.h.b16 %v9757
    %v10419 = vunpack.c.l.b16 %v9758
    %v10420 = vunpack.c.h.b16 %v9758
    %v10421 = vunpack.c.l.b16 %v9759
    %v10422 = vunpack.c.h.b16 %v9759
    %v10423 = vunpack.c.l.b16 %v9760
    %v10424 = vunpack.c.h.b16 %v9760
    %v10425 = vunpack.c.l.b16 %v9761
    %v10426 = vunpack.c.h.b16 %v9761
    %v10427 = vunpack.c.l.b16 %v9762
    %v10428 = vunpack.c.h.b16 %v9762
    %v10429 = vunpack.c.l.b16 %v9763
    %v10430 = vunpack.c.h.b16 %v9763
    %v10431 = vunpack.c.l.b16 %v9764
    %v10432 = vunpack.c.h.b16 %v9764
    %v10433 = vunpack.c.l.b16 %v9765
    %v10434 = vunpack.c.h.b16 %v9765
    %v10435 = vunpack.c.l.b16 %v9766
    %v10436 = vunpack.c.h.b16 %v9766
    %v10437 = vunpack.c.l.b16 %v9767
    %v10438 = vunpack.c.h.b16 %v9767
    %v10439 = vunpack.c.l.b16 %v9768
    %v10440 = vunpack.c.h.b16 %v9768
    %v10441 = vunpack.c.l.b16 %v9769
    %v10442 = vunpack.c.h.b16 %v9769
    %v10443 = vunpack.c.l.b16 %v9770
    %v10444 = vunpack.c.h.b16 %v9770
    %v10445 = vunpack.c.l.b16 %v9771
    %v10446 = vunpack.c.h.b16 %v9771
    %v10447 = vunpack.c.l.b16 %v9772
    %v10448 = vunpack.c.h.b16 %v9772
    %v10449 = vunpack.c.l.b16 %v9773
    %v10450 = vunpack.c.h.b16 %v9773
    %v10451 = vunpack.c.l.b16 %v9774
    %v10452 = vunpack.c.h.b16 %v9774
    %v10453 = vunpack.c.l.b16 %v9775
    %v10454 = vunpack.c.h.b16 %v9775
    %v10455 = vunpack.c.l.b16 %v9776
    %v10456 = vunpack.c.h.b16 %v9776
    %v10457 = vunpack.c.l.b16 %v9777
    %v10458 = vunpack.c.h.b16 %v9777
    %v10459 = vunpack.c.l.b16 %v9778
    %v10460 = vunpack.c.h.b16 %v9778
    %v10461 = vunpack.c.l.b16 %v9779
    %v10462 = vunpack.c.h.b16 %v9779
    %v10463 = vunpack.c.l.b16 %v9780
    %v10464 = vunpack.c.h.b16 %v9780
    %v10465 = vunpack.c.l.b16 %v9781
    %v10466 = vunpack.c.h.b16 %v9781
    %v10467 = vunpack.c.l.b16 %v9782
    %v10468 = vunpack.c.h.b16 %v9782
    %v10469 = vunpack.c.l.b16 %v9783
    %v10470 = vunpack.c.h.b16 %v9783
    %v10471 = vunpack.c.l.b16 %v9784
    %v10472 = vunpack.c.h.b16 %v9784
    %v10473 = vunpack.c.l.b16 %v9785
    %v10474 = vunpack.c.h.b16 %v9785
    %v10475 = vunpack.c.l.b16 %v9786
    %v10476 = vunpack.c.h.b16 %v9786
    %v10477 = vunpack.c.l.b16 %v9787
    %v10478 = vunpack.c.h.b16 %v9787
    %v10479 = vunpack.c.l.b16 %v9788
    %v10480 = vunpack.c.h.b16 %v9788
    %v10481 = vunpack.c.l.b16 %v9789
    %v10482 = vunpack.c.h.b16 %v9789
    %v10483 = vunpack.c.l.b16 %v9790
    %v10484 = vunpack.c.h.b16 %v9790
    %v10485 = vunpack.c.l.b16 %v9791
    %v10486 = vunpack.c.h.b16 %v9791
    %v10487 = vunpack.c.l.b16 %v9792
    %v10488 = vunpack.c.h.b16 %v9792
    %v10489 = vunpack.c.l.b16 %v9793
    %v10490 = vunpack.c.h.b16 %v9793
    %v10491 = vunpack.c.l.b16 %v9794
    %v10492 = vunpack.c.h.b16 %v9794
    %v10493 = vunpack.c.l.b16 %v9795
    %v10494 = vunpack.c.h.b16 %v9795
    %v10495 = vunpack.c.l.b16 %v9796
    %v10496 = vunpack.c.h.b16 %v9796
    %v10497 = vunpack.c.l.b16 %v9797
    %v10498 = vunpack.c.h.b16 %v9797
    %v10499 = vunpack.c.l.b16 %v9798
    %v10500 = vunpack.c.h.b16 %v9798
    %v10501 = vunpack.c.l.b16 %v9799
    %v10502 = vunpack.c.h.b16 %v9799
    %v10503 = vunpack.c.l.b16 %v9800
    %v10504 = vunpack.c.h.b16 %v9800
    %v10505 = vunpack.c.l.b16 %v9801
    %v10506 = vunpack.c.h.b16 %v9801
    %v10507 = vunpack.c.l.b16 %v9802
    %v10508 = vunpack.c.h.b16 %v9802
    %v10509 = vunpack.c.l.b16 %v9803
    %v10510 = vunpack.c.h.b16 %v9803
    %v10511 = vunpack.c.l.b16 %v9804
    %v10512 = vunpack.c.h.b16 %v9804
    %v10513 = vunpack.c.l.b16 %v9805
    %v10514 = vunpack.c.h.b16 %v9805
    %v10515 = vunpack.c.l.b16 %v9806
    %v10516 = vunpack.c.h.b16 %v9806
    %v10517 = vunpack.c.l.b16 %v9807
    %v10518 = vunpack.c.h.b16 %v9807
    %v10519 = vunpack.c.l.b16 %v9808
    %v10520 = vunpack.c.h.b16 %v9808
    %v10521 = vunpack.c.l.b16 %v9809
    %v10522 = vunpack.c.h.b16 %v9809
    %v10523 = vunpack.c.l.b16 %v9810
    %v10524 = vunpack.c.h.b16 %v9810
    %v10525 = vunpack.c.l.b16 %v9811
    %v10526 = vunpack.c.h.b16 %v9811
    %v10527 = vunpack.c.l.b16 %v9812
    %v10528 = vunpack.c.h.b16 %v9812
    %v10529 = vunpack.c.l.b16 %v9813
    %v10530 = vunpack.c.h.b16 %v9813
    %v10531 = vunpack.c.l.b16 %v9814
    %v10532 = vunpack.c.h.b16 %v9814
    %v10533 = vunpack.c.l.b16 %v9815
    %v10534 = vunpack.c.h.b16 %v9815
    %v10535 = vunpack.c.l.b16 %v9816
    %v10536 = vunpack.c.h.b16 %v9816
    %v10537 = vunpack.c.l.b16 %v9817
    %v10538 = vunpack.c.h.b16 %v9817
    %v10539 = vunpack.c.l.b16 %v9818
    %v10540 = vunpack.c.h.b16 %v9818
    %v10541 = vunpack.c.l.b16 %v9819
    %v10542 = vunpack.c.h.b16 %v9819
    %v10543 = vunpack.c.l.b16 %v9820
    %v10544 = vunpack.c.h.b16 %v9820
    %v10545 = vunpack.c.l.b16 %v9821
    %v10546 = vunpack.c.h.b16 %v9821
    %v10547 = vunpack.c.l.b16 %v9822
    %v10548 = vunpack.c.h.b16 %v9822
    %v10549 = vunpack.c.l.b16 %v9823
    %v10550 = vunpack.c.h.b16 %v9823
    %v10551 = vunpack.c.l.b16 %v9824
    %v10552 = vunpack.c.h.b16 %v9824
    %v10553 = vunpack.c.l.b16 %v9825
    %v10554 = vunpack.c.h.b16 %v9825
    %v10555 = vunpack.c.l.b16 %v9826
    %v10556 = vunpack.c.h.b16 %v9826
    %v10557 = vunpack.c.l.b16 %v9827
    %v10558 = vunpack.c.h.b16 %v9827
    %v10559 = vunpack.c.l.b16 %v9828
    %v10560 = vunpack.c.h.b16 %v9828
    %v10561 = vunpack.c.l.b16 %v9829
    %v10562 = vunpack.c.h.b16 %v9829
    %v10563 = vunpack.c.l.b16 %v9830
    %v10564 = vunpack.c.h.b16 %v9830
    %v10565 = vunpack.c.l.b16 %v9831
    %v10566 = vunpack.c.h.b16 %v9831
    %v10567 = vunpack.c.l.b16 %v9832
    %v10568 = vunpack.c.h.b16 %v9832
    %v10569 = vunpack.c.l.b16 %v9833
    %v10570 = vunpack.c.h.b16 %v9833
    %v10571 = vunpack.c.l.b16 %v9834
    %v10572 = vunpack.c.h.b16 %v9834
    %v10573 = vunpack.c.l.b16 %v9835
    %v10574 = vunpack.c.h.b16 %v9835
    %v10575 = vunpack.c.l.b16 %v9836
    %v10576 = vunpack.c.h.b16 %v9836
    %v10577 = vunpack.c.l.b16 %v9837
    %v10578 = vunpack.c.h.b16 %v9837
    %v10579 = vunpack.c.l.b16 %v9838
    %v10580 = vunpack.c.h.b16 %v9838
    %v10581 = vunpack.c.l.b16 %v9839
    %v10582 = vunpack.c.h.b16 %v9839
    %v10583 = vunpack.c.l.b16 %v9840
    %v10584 = vunpack.c.h.b16 %v9840
    %v10585 = vunpack.c.l.b16 %v9841
    %v10586 = vunpack.c.h.b16 %v9841
    %v10587 = vunpack.c.l.b16 %v9842
    %v10588 = vunpack.c.h.b16 %v9842
    %v10589 = vunpack.c.l.b16 %v9843
    %v10590 = vunpack.c.h.b16 %v9843
    %v10591 = vunpack.c.l.b16 %v9844
    %v10592 = vunpack.c.h.b16 %v9844
    %v10593 = vunpack.c.l.b16 %v9845
    %v10594 = vunpack.c.h.b16 %v9845
    %v10595 = vunpack.c.l.b16 %v9846
    %v10596 = vunpack.c.h.b16 %v9846
    %v10597 = vunpack.c.l.b16 %v9847
    %v10598 = vunpack.c.h.b16 %v9847
    %v10599 = vunpack.c.l.b16 %v9848
    %v10600 = vunpack.c.h.b16 %v9848
    %v10601 = vunpack.c.l.b16 %v9849
    %v10602 = vunpack.c.h.b16 %v9849
    %v10603 = vunpack.c.l.b16 %v9850
    %v10604 = vunpack.c.h.b16 %v9850
    %v10605 = vunpack.c.l.b16 %v9851
    %v10606 = vunpack.c.h.b16 %v9851
    %v10607 = vunpack.c.l.b16 %v9852
    %v10608 = vunpack.c.h.b16 %v9852
    %v10609 = vunpack.c.l.b16 %v9853
    %v10610 = vunpack.c.h.b16 %v9853
    %v10611 = vunpack.c.l.b16 %v9854
    %v10612 = vunpack.c.h.b16 %v9854
    %v10613 = vunpack.c.l.b16 %v9855
    %v10614 = vunpack.c.h.b16 %v9855
    %v10615 = vunpack.c.l.b16 %v9856
    %v10616 = vunpack.c.h.b16 %v9856
    %v10617 = vunpack.c.l.b16 %v9857
    %v10618 = vunpack.c.h.b16 %v9857
    %v10619 = vunpack.c.l.b16 %v9858
    %v10620 = vunpack.c.h.b16 %v9858
    %v10621 = vunpack.c.l.b16 %v9859
    %v10622 = vunpack.c.h.b16 %v9859
    %v10623 = vunpack.c.l.b16 %v9860
    %v10624 = vunpack.c.h.b16 %v9860
    %v10625 = vunpack.c.l.b16 %v9861
    %v10626 = vunpack.c.h.b16 %v9861
    %v10627 = vunpack.c.l.b16 %v9862
    %v10628 = vunpack.c.h.b16 %v9862
    %v10629 = vunpack.c.l.b16 %v9863
    %v10630 = vunpack.c.h.b16 %v9863
    %v10631 = vunpack.c.l.b16 %v9864
    %v10632 = vunpack.c.h.b16 %v9864
    %v10633 = vunpack.c.l.b16 %v9865
    %v10634 = vunpack.c.h.b16 %v9865
    %v10635 = vunpack.c.l.b16 %v9866
    %v10636 = vunpack.c.h.b16 %v9866
    %v10637 = vunpack.c.l.b16 %v9867
    %v10638 = vunpack.c.h.b16 %v9867
    %v10639 = vunpack.c.l.b16 %v9868
    %v10640 = vunpack.c.h.b16 %v9868
    %v10641 = vunpack.c.l.b16 %v9869
    %v10642 = vunpack.c.h.b16 %v9869
    %v10643 = vunpack.c.l.b16 %v9870
    %v10644 = vunpack.c.h.b16 %v9870
    %v10645 = vunpack.c.l.b16 %v9871
    %v10646 = vunpack.c.h.b16 %v9871
    %v10647 = vunpack.c.l.b16 %v9872
    %v10648 = vunpack.c.h.b16 %v9872
    %v10649 = vunpack.c.l.b16 %v9873
    %v10650 = vunpack.c.h.b16 %v9873
    %v10651 = vunpack.c.l.b16 %v9874
    %v10652 = vunpack.c.h.b16 %v9874
    %v10653 = vunpack.c.l.b16 %v9875
    %v10654 = vunpack.c.h.b16 %v9875
    %v10655 = vunpack.c.l.b16 %v9876
    %v10656 = vunpack.c.h.b16 %v9876
    %v10657 = vunpack.c.l.b16 %v9877
    %v10658 = vunpack.c.h.b16 %v9877
    %v10659 = vunpack.c.l.b16 %v9878
    %v10660 = vunpack.c.h.b16 %v9878
    %v10661 = vunpack.c.l.b16 %v9879
    %v10662 = vunpack.c.h.b16 %v9879
    %v10663 = vunpack.c.l.b16 %v9880
    %v10664 = vunpack.c.h.b16 %v9880
    %v10665 = vpack.c.b16 %v10161, %v10157
    %v10666 = vpack.c.b16 %v10162, %v10158
    %v10667 = vpack.c.b16 %v10163, %v10159
    %v10668 = vpack.c.b16 %v10164, %v10160
    %v10669 = vpack.c.b16 %v10169, %v10165
    %v10670 = vpack.c.b16 %v10170, %v10166
    %v10671 = vpack.c.b16 %v10171, %v10167
    %v10672 = vpack.c.b16 %v10172, %v10168
    %v10673 = vpack.c.b16 %v10177, %v10173
    %v10674 = vpack.c.b16 %v10178, %v10174
    %v10675 = vpack.c.b16 %v10179, %v10175
    %v10676 = vpack.c.b16 %v10180, %v10176
    %v10677 = vpack.c.b16 %v10185, %v10181
    %v10678 = vpack.c.b16 %v10186, %v10182
    %v10679 = vpack.c.b16 %v10187, %v10183
    %v10680 = vpack.c.b16 %v10188, %v10184
    %v10681 = vpack.c.b16 %v10193, %v10189
    %v10682 = vpack.c.b16 %v10194, %v10190
    %v10683 = vpack.c.b16 %v10195, %v10191
    %v10684 = vpack.c.b16 %v10196, %v10192
    %v10685 = vpack.c.b16 %v10201, %v10197
    %v10686 = vpack.c.b16 %v10202, %v10198
    %v10687 = vpack.c.b16 %v10203, %v10199
    %v10688 = vpack.c.b16 %v10204, %v10200
    %v10689 = vpack.c.b16 %v10209, %v10205
    %v10690 = vpack.c.b16 %v10210, %v10206
    %v10691 = vpack.c.b16 %v10211, %v10207
    %v10692 = vpack.c.b16 %v10212, %v10208
    %v10693 = vpack.c.b16 %v10217, %v10213
    %v10694 = vpack.c.b16 %v10218, %v10214
    %v10695 = vpack.c.b16 %v10219, %v10215
    %v10696 = vpack.c.b16 %v10220, %v10216
    %v10697 = vpack.c.b16 %v10225, %v10221
    %v10698 = vpack.c.b16 %v10226, %v10222
    %v10699 = vpack.c.b16 %v10227, %v10223
    %v10700 = vpack.c.b16 %v10228, %v10224
    %v10701 = vpack.c.b16 %v10233, %v10229
    %v10702 = vpack.c.b16 %v10234, %v10230
    %v10703 = vpack.c.b16 %v10235, %v10231
    %v10704 = vpack.c.b16 %v10236, %v10232
    %v10705 = vpack.c.b16 %v10241, %v10237
    %v10706 = vpack.c.b16 %v10242, %v10238
    %v10707 = vpack.c.b16 %v10243, %v10239
    %v10708 = vpack.c.b16 %v10244, %v10240
    %v10709 = vpack.c.b16 %v10249, %v10245
    %v10710 = vpack.c.b16 %v10250, %v10246
    %v10711 = vpack.c.b16 %v10251, %v10247
    %v10712 = vpack.c.b16 %v10252, %v10248
    %v10713 = vpack.c.b16 %v10257, %v10253
    %v10714 = vpack.c.b16 %v10258, %v10254
    %v10715 = vpack.c.b16 %v10259, %v10255
    %v10716 = vpack.c.b16 %v10260, %v10256
    %v10717 = vpack.c.b16 %v10265, %v10261
    %v10718 = vpack.c.b16 %v10266, %v10262
    %v10719 = vpack.c.b16 %v10267, %v10263
    %v10720 = vpack.c.b16 %v10268, %v10264
    %v10721 = vpack.c.b16 %v10273, %v10269
    %v10722 = vpack.c.b16 %v10274, %v10270
    %v10723 = vpack.c.b16 %v10275, %v10271
    %v10724 = vpack.c.b16 %v10276, %v10272
    %v10725 = vpack.c.b16 %v10281, %v10277
    %v10726 = vpack.c.b16 %v10282, %v10278
    %v10727 = vpack.c.b16 %v10283, %v10279
    %v10728 = vpack.c.b16 %v10284, %v10280
    %v10729 = vpack.c.b16 %v10289, %v10285
    %v10730 = vpack.c.b16 %v10290, %v10286
    %v10731 = vpack.c.b16 %v10291, %v10287
    %v10732 = vpack.c.b16 %v10292, %v10288
    %v10733 = vpack.c.b16 %v10297, %v10293
    %v10734 = vpack.c.b16 %v10298, %v10294
    %v10735 = vpack.c.b16 %v10299, %v10295
    %v10736 = vpack.c.b16 %v10300, %v10296
    %v10737 = vpack.c.b16 %v10305, %v10301
    %v10738 = vpack.c.b16 %v10306, %v10302
    %v10739 = vpack.c.b16 %v10307, %v10303
    %v10740 = vpack.c.b16 %v10308, %v10304
    %v10741 = vpack.c.b16 %v10313, %v10309
    %v10742 = vpack.c.b16 %v10314, %v10310
    %v10743 = vpack.c.b16 %v10315, %v10311
    %v10744 = vpack.c.b16 %v10316, %v10312
    %v10745 = vpack.c.b16 %v10321, %v10317
    %v10746 = vpack.c.b16 %v10322, %v10318
    %v10747 = vpack.c.b16 %v10323, %v10319
    %v10748 = vpack.c.b16 %v10324, %v10320
    %v10749 = vpack.c.b16 %v10329, %v10325
    %v10750 = vpack.c.b16 %v10330, %v10326
    %v10751 = vpack.c.b16 %v10331, %v10327
    %v10752 = vpack.c.b16 %v10332, %v10328
    %v10753 = vpack.c.b16 %v10337, %v10333
    %v10754 = vpack.c.b16 %v10338, %v10334
    %v10755 = vpack.c.b16 %v10339, %v10335
    %v10756 = vpack.c.b16 %v10340, %v10336
    %v10757 = vpack.c.b16 %v10345, %v10341
    %v10758 = vpack.c.b16 %v10346, %v10342
    %v10759 = vpack.c.b16 %v10347, %v10343
    %v10760 = vpack.c.b16 %v10348, %v10344
    %v10761 = vpack.c.b16 %v10353, %v10349
    %v10762 = vpack.c.b16 %v10354, %v10350
    %v10763 = vpack.c.b16 %v10355, %v10351
    %v10764 = vpack.c.b16 %v10356, %v10352
    %v10765 = vpack.c.b16 %v10361, %v10357
    %v10766 = vpack.c.b16 %v10362, %v10358
    %v10767 = vpack.c.b16 %v10363, %v10359
    %v10768 = vpack.c.b16 %v10364, %v10360
    %v10769 = vpack.c.b16 %v10369, %v10365
    %v10770 = vpack.c.b16 %v10370, %v10366
    %v10771 = vpack.c.b16 %v10371, %v10367
    %v10772 = vpack.c.b16 %v10372, %v10368
    %v10773 = vpack.c.b16 %v10377, %v10373
    %v10774 = vpack.c.b16 %v10378, %v10374
    %v10775 = vpack.c.b16 %v10379, %v10375
    %v10776 = vpack.c.b16 %v10380, %v10376
    %v10777 = vpack.c.b16 %v10385, %v10381
    %v10778 = vpack.c.b16 %v10386, %v10382
    %v10779 = vpack.c.b16 %v10387, %v10383
    %v10780 = vpack.c.b16 %v10388, %v10384
    %v10781 = vpack.c.b16 %v10393, %v10389
    %v10782 = vpack.c.b16 %v10394, %v10390
    %v10783 = vpack.c.b16 %v10395, %v10391
    %v10784 = vpack.c.b16 %v10396, %v10392
    %v10785 = vpack.c.b16 %v10401, %v10397
    %v10786 = vpack.c.b16 %v10402, %v10398
    %v10787 = vpack.c.b16 %v10403, %v10399
    %v10788 = vpack.c.b16 %v10404, %v10400
    %v10789 = vpack.c.b16 %v10409, %v10405
    %v10790 = vpack.c.b16 %v10410, %v10406
    %v10791 = vpack.c.b16 %v10411, %v10407
    %v10792 = vpack.c.b16 %v10412, %v10408
    %v10793 = vpack.c.b16 %v10417, %v10413
    %v10794 = vpack.c.b16 %v10418, %v10414
    %v10795 = vpack.c.b16 %v10419, %v10415
    %v10796 = vpack.c.b16 %v10420, %v10416
    %v10797 = vpack.c.b16 %v10425, %v10421
    %v10798 = vpack.c.b16 %v10426, %v10422
    %v10799 = vpack.c.b16 %v10427, %v10423
    %v10800 = vpack.c.b16 %v10428, %v10424
    %v10801 = vpack.c.b16 %v10433, %v10429
    %v10802 = vpack.c.b16 %v10434, %v10430
    %v10803 = vpack.c.b16 %v10435, %v10431
    %v10804 = vpack.c.b16 %v10436, %v10432
    %v10805 = vpack.c.b16 %v10441, %v10437
    %v10806 = vpack.c.b16 %v10442, %v10438
    %v10807 = vpack.c.b16 %v10443, %v10439
    %v10808 = vpack.c.b16 %v10444, %v10440
    %v10809 = vpack.c.b16 %v10449, %v10445
    %v10810 = vpack.c.b16 %v10450, %v10446
    %v10811 = vpack.c.b16 %v10451, %v10447
    %v10812 = vpack.c.b16 %v10452, %v10448
    %v10813 = vpack.c.b16 %v10457, %v10453
    %v10814 = vpack.c.b16 %v10458, %v10454
    %v10815 = vpack.c.b16 %v10459, %v10455
    %v10816 = vpack.c.b16 %v10460, %v10456
    %v10817 = vpack.c.b16 %v10465, %v10461
    %v10818 = vpack.c.b16 %v10466, %v10462
    %v10819 = vpack.c.b16 %v10467, %v10463
    %v10820 = vpack.c.b16 %v10468, %v10464
    %v10821 = vpack.c.b16 %v10473, %v10469
    %v10822 = vpack.c.b16 %v10474, %v10470
    %v10823 = vpack.c.b16 %v10475, %v10471
    %v10824 = vpack.c.b16 %v10476, %v10472
    %v10825 = vpack.c.b16 %v10481, %v10477
    %v10826 = vpack.c.b16 %v10482, %v10478
    %v10827 = vpack.c.b16 %v10483, %v10479
    %v10828 = vpack.c.b16 %v10484, %v10480
    %v10829 = vpack.c.b16 %v10489, %v10485
    %v10830 = vpack.c.b16 %v10490, %v10486
    %v10831 = vpack.c.b16 %v10491, %v10487
    %v10832 = vpack.c.b16 %v10492, %v10488
    %v10833 = vpack.c.b16 %v10497, %v10493
    %v10834 = vpack.c.b16 %v10498, %v10494
    %v10835 = vpack.c.b16 %v10499, %v10495
    %v10836 = vpack.c.b16 %v10500, %v10496
    %v10837 = vpack.c.b16 %v10505, %v10501
    %v10838 = vpack.c.b16 %v10506, %v10502
    %v10839 = vpack.c.b16 %v10507, %v10503
    %v10840 = vpack.c.b16 %v10508, %v10504
    %v10841 = vpack.c.b16 %v10513, %v10509
    %v10842 = vpack.c.b16 %v10514, %v10510
    %v10843 = vpack.c.b16 %v10515, %v10511
    %v10844 = vpack.c.b16 %v10516, %v10512
    %v10845 = vpack.c.b16 %v10521, %v10517
    %v10846 = vpack.c.b16 %v10522, %v10518
    %v10847 = vpack.c.b16 %v10523, %v10519
    %v10848 = vpack.c.b16 %v10524, %v10520
    %v10849 = vpack.c.b16 %v10529, %v10525
    %v10850 = vpack.c.b16 %v10530, %v10526
    %v10851 = vpack.c.b16 %v10531, %v10527
    %v10852 = vpack.c.b16 %v10532, %v10528
    %v10853 = vpack.c.b16 %v10537, %v10533
    %v10854 = vpack.c.b16 %v10538, %v10534
    %v10855 = vpack.c.b16 %v10539, %v10535
    %v10856 = vpack.c.b16 %v10540, %v10536
    %v10857 = vpack.c.b16 %v10545, %v10541
    %v10858 = vpack.c.b16 %v10546, %v10542
    %v10859 = vpack.c.b16 %v10547, %v10543
    %v10860 = vpack.c.b16 %v10548, %v10544
    %v10861 = vpack.c.b16 %v10553, %v10549
    %v10862 = vpack.c.b16 %v10554, %v10550
    %v10863 = vpack.c.b16 %v10555, %v10551
    %v10864 = vpack.c.b16 %v10556, %v10552
    %v10865 = vpack.c.b16 %v10561, %v10557
    %v10866 = vpack.c.b16 %v10562, %v10558
    %v10867 = vpack.c.b16 %v10563, %v10559
    %v10868 = vpack.c.b16 %v10564, %v10560
    %v10869 = vpack.c.b16 %v10569, %v10565
    %v10870 = vpack.c.b16 %v10570, %v10566
    %v10871 = vpack.c.b16 %v10571, %v10567
    %v10872 = vpack.c.b16 %v10572, %v10568
    %v10873 = vpack.c.b16 %v10577, %v10573
    %v10874 = vpack.c.b16 %v10578, %v10574
    %v10875 = vpack.c.b16 %v10579, %v10575
    %v10876 = vpack.c.b16 %v10580, %v10576
    %v10877 = vpack.c.b16 %v10585, %v10581
    %v10878 = vpack.c.b16 %v10586, %v10582
    %v10879 = vpack.c.b16 %v10587, %v10583
    %v10880 = vpack.c.b16 %v10588, %v10584
    %v10881 = vpack.c.b16 %v10593, %v10589
    %v10882 = vpack.c.b16 %v10594, %v10590
    %v10883 = vpack.c.b16 %v10595, %v10591
    %v10884 = vpack.c.b16 %v10596, %v10592
    %v10885 = vpack.c.b16 %v10601, %v10597
    %v10886 = vpack.c.b16 %v10602, %v10598
    %v10887 = vpack.c.b16 %v10603, %v10599
    %v10888 = vpack.c.b16 %v10604, %v10600
    %v10889 = vpack.c.b16 %v10609, %v10605
    %v10890 = vpack.c.b16 %v10610, %v10606
    %v10891 = vpack.c.b16 %v10611, %v10607
    %v10892 = vpack.c.b16 %v10612, %v10608
    %v10893 = vpack.c.b16 %v10617, %v10613
    %v10894 = vpack.c.b16 %v10618, %v10614
    %v10895 = vpack.c.b16 %v10619, %v10615
    %v10896 = vpack.c.b16 %v10620, %v10616
    %v10897 = vpack.c.b16 %v10625, %v10621
    %v10898 = vpack.c.b16 %v10626, %v10622
    %v10899 = vpack.c.b16 %v10627, %v10623
    %v10900 = vpack.c.b16 %v10628, %v10624
    %v10901 = vpack.c.b16 %v10633, %v10629
    %v10902 = vpack.c.b16 %v10634, %v10630
    %v10903 = vpack.c.b16 %v10635, %v10631
    %v10904 = vpack.c.b16 %v10636, %v10632
    %v10905 = vpack.c.b16 %v10641, %v10637
    %v10906 = vpack.c.b16 %v10642, %v10638
    %v10907 = vpack.c.b16 %v10643, %v10639
    %v10908 = vpack.c.b16 %v10644, %v10640
    %v10909 = vpack.c.b16 %v10649, %v10645
    %v10910 = vpack.c.b16 %v10650, %v10646
    %v10911 = vpack.c.b16 %v10651, %v10647
    %v10912 = vpack.c.b16 %v10652, %v10648
    %v10913 = vpack.c.b16 %v10657, %v10653
    %v10914 = vpack.c.b16 %v10658, %v10654
    %v10915 = vpack.c.b16 %v10659, %v10655
    %v10916 = vpack.c.b16 %v10660, %v10656
    %v10917 = vpack.c.b16 %v10661, %v10661
    %v10918 = vpack.c.b16 %v10662, %v10662
    %v10919 = vpack.c.b16 %v10663, %v10663
    %v10920 = vpack.c.b16 %v10664, %v10664
    %vm11173 = vcmask 965632
    %v11175 = vsel %vm11173, %v9626, 0
    %vm11177 = vcmask 1042432
    %v11179 = vsel %vm11177, %v10917, 0
    %v11182 = vsel %vm11177, %v10918, 0
    %v11185 = vsel %vm11177, %v10919, 0
    %v11188 = vsel %vm11177, %v10920, 0
    %11190 = vmatprep.subr.bf16.mxu0 %v10694
    %11191 = vmatpush1.bf16.msra.mxu0 %v10693
    %11192 = vmatprep.subr.bf16.mxu0 %v10690
    %11193 = vmatpush1.bf16.msra.mxu0 %v10689
    %11194 = vmatprep.subr.bf16.mxu0 %v10686
    %11195 = vmatpush1.bf16.msra.mxu0 %v10685
    %11196 = vmatprep.subr.bf16.mxu0 %v10682
    %11197 = vmatpush1.bf16.msra.mxu0 %v10681
    %11198 = vmatprep.subr.bf16.mxu0 %v10678
    %11199 = vmatpush1.bf16.msra.mxu0 %v10677
    %11200 = vmatprep.subr.bf16.mxu0 %v10674
    %11201 = vmatpush1.bf16.msra.mxu0 %v10673
    %11202 = vmatprep.subr.bf16.mxu0 %v10670
    %11203 = vmatpush1.bf16.msra.mxu0 %v10669
    %11204 = vmatprep.subr.bf16.mxu0 %v10666
    %11205 = vmatpush1.bf16.msra.mxu0 %v10665
    %11206 = vmatprep.subr.bf16.mxu0 %v10726
    %11207 = vmatpush2.bf16.msra.mxu0 %v10725
    %11208 = vmatprep.subr.bf16.mxu0 %v10722
    %11209 = vmatpush2.bf16.msra.mxu0 %v10721
    %11210 = vmatprep.subr.bf16.mxu0 %v10718
    %11211 = vmatpush2.bf16.msra.mxu0 %v10717
    %11212 = vmatprep.subr.bf16.mxu0 %v10714
    %11213 = vmatpush2.bf16.msra.mxu0 %v10713
    %11214 = vmatprep.subr.bf16.mxu0 %v10710
    %11215 = vmatpush2.bf16.msra.mxu0 %v10709
    %11216 = vmatprep.subr.bf16.mxu0 %v10706
    %11217 = vmatpush2.bf16.msra.mxu0 %v10705
    %11218 = vmatprep.subr.bf16.mxu0 %v10702
    %11219 = vmatpush2.bf16.msra.mxu0 %v10701
    %11220 = vmatprep.subr.bf16.mxu0 %v10698
    %11221 = vmatpush2.bf16.msra.mxu0 %v10697
    %11222 = vmatprep.mubr.bf16.mxu0 %v9620
    %11223 = vmatmul.mubr.bf16.gmra.mxu0 %v9619
    %v11224 = vpop.f32.mrf.mxu0
    %v11225 = vadd.f32 %v9886, %v11224
    %v11226 = vpop.f32.mrf.mxu0
    %v11227 = vadd.f32 %v9890, %v11226
    %v11228 = vpop.f32.mrf.mxu0
    %v11229 = vpop.f32.mrf.mxu0
    %11230 = vdwg.mxu0
    %11231 = vmatprep.subr.bf16.mxu0 %v10758
    %11232 = vmatpush1.bf16.msra.mxu0 %v10757
    %11233 = vmatprep.subr.bf16.mxu0 %v10754
    %11234 = vmatpush1.bf16.msra.mxu0 %v10753
    %11235 = vmatprep.subr.bf16.mxu0 %v10750
    %11236 = vmatpush1.bf16.msra.mxu0 %v10749
    %11237 = vmatprep.subr.bf16.mxu0 %v10746
    %11238 = vmatpush1.bf16.msra.mxu0 %v10745
    %11239 = vmatprep.subr.bf16.mxu0 %v10742
    %11240 = vmatpush1.bf16.msra.mxu0 %v10741
    %11241 = vmatprep.subr.bf16.mxu0 %v10738
    %11242 = vmatpush1.bf16.msra.mxu0 %v10737
    %11243 = vmatprep.subr.bf16.mxu0 %v10734
    %11244 = vmatpush1.bf16.msra.mxu0 %v10733
    %11245 = vmatprep.subr.bf16.mxu0 %v10730
    %11246 = vmatpush1.bf16.msra.mxu0 %v10729
    %11247 = vmatprep.subr.bf16.mxu0 %v10790
    %11248 = vmatpush2.bf16.msra.mxu0 %v10789
    %11249 = vmatprep.subr.bf16.mxu0 %v10786
    %11250 = vmatpush2.bf16.msra.mxu0 %v10785
    %11251 = vmatprep.subr.bf16.mxu0 %v10782
    %11252 = vmatpush2.bf16.msra.mxu0 %v10781
    %11253 = vmatprep.subr.bf16.mxu0 %v10778
    %11254 = vmatpush2.bf16.msra.mxu0 %v10777
    %11255 = vmatprep.subr.bf16.mxu0 %v10774
    %11256 = vmatpush2.bf16.msra.mxu0 %v10773
    %11257 = vmatprep.subr.bf16.mxu0 %v10770
    %11258 = vmatpush2.bf16.msra.mxu0 %v10769
    %11259 = vmatprep.subr.bf16.mxu0 %v10766
    %11260 = vmatpush2.bf16.msra.mxu0 %v10765
    %11261 = vmatprep.subr.bf16.mxu0 %v10762
    %11262 = vmatpush2.bf16.msra.mxu0 %v10761
    %11263 = vmatprep.mubr.bf16.mxu0 %v9622
    %11264 = vmatmul.mubr.bf16.gmra.mxu0 %v9621
    %v11265 = vpop.f32.mrf.mxu0
    %v11266 = vadd.f32 %v11225, %v11265
    %v11267 = vpop.f32.mrf.mxu0
    %v11268 = vadd.f32 %v11227, %v11267
    %v11269 = vpop.f32.mrf.mxu0
    %v11270 = vpop.f32.mrf.mxu0
    %11271 = vdwg.mxu0
    %11272 = vmatprep.subr.bf16.mxu0 %v10822
    %11273 = vmatpush1.bf16.msra.mxu0 %v10821
    %11274 = vmatprep.subr.bf16.mxu0 %v10818
    %11275 = vmatpush1.bf16.msra.mxu0 %v10817
    %11276 = vmatprep.subr.bf16.mxu0 %v10814
    %11277 = vmatpush1.bf16.msra.mxu0 %v10813
    %11278 = vmatprep.subr.bf16.mxu0 %v10810
    %11279 = vmatpush1.bf16.msra.mxu0 %v10809
    %11280 = vmatprep.subr.bf16.mxu0 %v10806
    %11281 = vmatpush1.bf16.msra.mxu0 %v10805
    %11282 = vmatprep.subr.bf16.mxu0 %v10802
    %11283 = vmatpush1.bf16.msra.mxu0 %v10801
    %11284 = vmatprep.subr.bf16.mxu0 %v10798
    %11285 = vmatpush1.bf16.msra.mxu0 %v10797
    %11286 = vmatprep.subr.bf16.mxu0 %v10794
    %11287 = vmatpush1.bf16.msra.mxu0 %v10793
    %11288 = vmatprep.subr.bf16.mxu0 %v10854
    %11289 = vmatpush2.bf16.msra.mxu0 %v10853
    %11290 = vmatprep.subr.bf16.mxu0 %v10850
    %11291 = vmatpush2.bf16.msra.mxu0 %v10849
    %11292 = vmatprep.subr.bf16.mxu0 %v10846
    %11293 = vmatpush2.bf16.msra.mxu0 %v10845
    %11294 = vmatprep.subr.bf16.mxu0 %v10842
    %11295 = vmatpush2.bf16.msra.mxu0 %v10841
    %11296 = vmatprep.subr.bf16.mxu0 %v10838
    %11297 = vmatpush2.bf16.msra.mxu0 %v10837
    %11298 = vmatprep.subr.bf16.mxu0 %v10834
    %11299 = vmatpush2.bf16.msra.mxu0 %v10833
    %11300 = vmatprep.subr.bf16.mxu0 %v10830
    %11301 = vmatpush2.bf16.msra.mxu0 %v10829
    %11302 = vmatprep.subr.bf16.mxu0 %v10826
    %11303 = vmatpush2.bf16.msra.mxu0 %v10825
    %11304 = vmatprep.mubr.bf16.mxu0 %v9624
    %11305 = vmatmul.mubr.bf16.gmra.mxu0 %v9623
    %v11306 = vpop.f32.mrf.mxu0
    %v11307 = vadd.f32 %v11266, %v11306
    %v11308 = vpop.f32.mrf.mxu0
    %v11309 = vadd.f32 %v11268, %v11308
    %v11310 = vpop.f32.mrf.mxu0
    %v11311 = vpop.f32.mrf.mxu0
    %11312 = vdwg.mxu0
    %11313 = vmatprep.subr.bf16.mxu0 %v10886
    %11314 = vmatpush1.bf16.msra.mxu0 %v10885
    %11315 = vmatprep.subr.bf16.mxu0 %v10882
    %11316 = vmatpush1.bf16.msra.mxu0 %v10881
    %11317 = vmatprep.subr.bf16.mxu0 %v10878
    %11318 = vmatpush1.bf16.msra.mxu0 %v10877
    %11319 = vmatprep.subr.bf16.mxu0 %v10874
    %11320 = vmatpush1.bf16.msra.mxu0 %v10873
    %11321 = vmatprep.subr.bf16.mxu0 %v10870
    %11322 = vmatpush1.bf16.msra.mxu0 %v10869
    %11323 = vmatprep.subr.bf16.mxu0 %v10866
    %11324 = vmatpush1.bf16.msra.mxu0 %v10865
    %11325 = vmatprep.subr.bf16.mxu0 %v10862
    %11326 = vmatpush1.bf16.msra.mxu0 %v10861
    %11327 = vmatprep.subr.bf16.mxu0 %v10858
    %11328 = vmatpush1.bf16.msra.mxu0 %v10857
    %11329 = vmatprep.subr.bf16.mxu0 %v11182
    %11330 = vmatpush2.bf16.msra.mxu0 %v11179
    %11331 = vmatprep.subr.bf16.mxu0 %v10914
    %11332 = vmatpush2.bf16.msra.mxu0 %v10913
    %11333 = vmatprep.subr.bf16.mxu0 %v10910
    %11334 = vmatpush2.bf16.msra.mxu0 %v10909
    %11335 = vmatprep.subr.bf16.mxu0 %v10906
    %11336 = vmatpush2.bf16.msra.mxu0 %v10905
    %11337 = vmatprep.subr.bf16.mxu0 %v10902
    %11338 = vmatpush2.bf16.msra.mxu0 %v10901
    %11339 = vmatprep.subr.bf16.mxu0 %v10898
    %11340 = vmatpush2.bf16.msra.mxu0 %v10897
    %11341 = vmatprep.subr.bf16.mxu0 %v10894
    %11342 = vmatpush2.bf16.msra.mxu0 %v10893
    %11343 = vmatprep.subr.bf16.mxu0 %v10890
    %11344 = vmatpush2.bf16.msra.mxu0 %v10889
    %11345 = vmatprep.mubr.bf16.mxu0 %v11175
    %11346 = vmatmul.mubr.bf16.gmra.mxu0 %v9625
    %v11347 = vpop.f32.mrf.mxu0
    %v11348 = vadd.f32 %v11307, %v11347
    %v11349 = vpop.f32.mrf.mxu0
    %v11350 = vadd.f32 %v11309, %v11349
    %v11351 = vpop.f32.mrf.mxu0
    %v11352 = vpop.f32.mrf.mxu0
    %11353 = vdwg.mxu0
    %11354 = vmatprep.subr.bf16.mxu0 %v10696
    %11355 = vmatpush1.bf16.msra.mxu0 %v10695
    %11356 = vmatprep.subr.bf16.mxu0 %v10692
    %11357 = vmatpush1.bf16.msra.mxu0 %v10691
    %11358 = vmatprep.subr.bf16.mxu0 %v10688
    %11359 = vmatpush1.bf16.msra.mxu0 %v10687
    %11360 = vmatprep.subr.bf16.mxu0 %v10684
    %11361 = vmatpush1.bf16.msra.mxu0 %v10683
    %11362 = vmatprep.subr.bf16.mxu0 %v10680
    %11363 = vmatpush1.bf16.msra.mxu0 %v10679
    %11364 = vmatprep.subr.bf16.mxu0 %v10676
    %11365 = vmatpush1.bf16.msra.mxu0 %v10675
    %11366 = vmatprep.subr.bf16.mxu0 %v10672
    %11367 = vmatpush1.bf16.msra.mxu0 %v10671
    %11368 = vmatprep.subr.bf16.mxu0 %v10668
    %11369 = vmatpush1.bf16.msra.mxu0 %v10667
    %11370 = vmatprep.subr.bf16.mxu0 %v10728
    %11371 = vmatpush2.bf16.msra.mxu0 %v10727
    %11372 = vmatprep.subr.bf16.mxu0 %v10724
    %11373 = vmatpush2.bf16.msra.mxu0 %v10723
    %11374 = vmatprep.subr.bf16.mxu0 %v10720
    %11375 = vmatpush2.bf16.msra.mxu0 %v10719
    %11376 = vmatprep.subr.bf16.mxu0 %v10716
    %11377 = vmatpush2.bf16.msra.mxu0 %v10715
    %11378 = vmatprep.subr.bf16.mxu0 %v10712
    %11379 = vmatpush2.bf16.msra.mxu0 %v10711
    %11380 = vmatprep.subr.bf16.mxu0 %v10708
    %11381 = vmatpush2.bf16.msra.mxu0 %v10707
    %11382 = vmatprep.subr.bf16.mxu0 %v10704
    %11383 = vmatpush2.bf16.msra.mxu0 %v10703
    %11384 = vmatprep.subr.bf16.mxu0 %v10700
    %11385 = vmatpush2.bf16.msra.mxu0 %v10699
    %11386 = vmatprep.mubr.bf16.mxu0 %v9620
    %11387 = vmatmul.mubr.bf16.gmra.mxu0 %v9619
    %v11388 = vpop.f32.mrf.mxu0
    %v11389 = vadd.f32 %v9894, %v11388
    %v11390 = vpop.f32.mrf.mxu0
    %v11391 = vadd.f32 %v9898, %v11390
    %v11392 = vpop.f32.mrf.mxu0
    %v11393 = vpop.f32.mrf.mxu0
    %11394 = vdwg.mxu0
    %11395 = vmatprep.subr.bf16.mxu0 %v10760
    %11396 = vmatpush1.bf16.msra.mxu0 %v10759
    %11397 = vmatprep.subr.bf16.mxu0 %v10756
    %11398 = vmatpush1.bf16.msra.mxu0 %v10755
    %11399 = vmatprep.subr.bf16.mxu0 %v10752
    %11400 = vmatpush1.bf16.msra.mxu0 %v10751
    %11401 = vmatprep.subr.bf16.mxu0 %v10748
    %11402 = vmatpush1.bf16.msra.mxu0 %v10747
    %11403 = vmatprep.subr.bf16.mxu0 %v10744
    %11404 = vmatpush1.bf16.msra.mxu0 %v10743
    %11405 = vmatprep.subr.bf16.mxu0 %v10740
    %11406 = vmatpush1.bf16.msra.mxu0 %v10739
    %11407 = vmatprep.subr.bf16.mxu0 %v10736
    %11408 = vmatpush1.bf16.msra.mxu0 %v10735
    %11409 = vmatprep.subr.bf16.mxu0 %v10732
    %11410 = vmatpush1.bf16.msra.mxu0 %v10731
    %11411 = vmatprep.subr.bf16.mxu0 %v10792
    %11412 = vmatpush2.bf16.msra.mxu0 %v10791
    %11413 = vmatprep.subr.bf16.mxu0 %v10788
    %11414 = vmatpush2.bf16.msra.mxu0 %v10787
    %11415 = vmatprep.subr.bf16.mxu0 %v10784
    %11416 = vmatpush2.bf16.msra.mxu0 %v10783
    %11417 = vmatprep.subr.bf16.mxu0 %v10780
    %11418 = vmatpush2.bf16.msra.mxu0 %v10779
    %11419 = vmatprep.subr.bf16.mxu0 %v10776
    %11420 = vmatpush2.bf16.msra.mxu0 %v10775
    %11421 = vmatprep.subr.bf16.mxu0 %v10772
    %11422 = vmatpush2.bf16.msra.mxu0 %v10771
    %11423 = vmatprep.subr.bf16.mxu0 %v10768
    %11424 = vmatpush2.bf16.msra.mxu0 %v10767
    %11425 = vmatprep.subr.bf16.mxu0 %v10764
    %11426 = vmatpush2.bf16.msra.mxu0 %v10763
    %11427 = vmatprep.mubr.bf16.mxu0 %v9622
    %11428 = vmatmul.mubr.bf16.gmra.mxu0 %v9621
    %v11429 = vpop.f32.mrf.mxu0
    %v11430 = vadd.f32 %v11389, %v11429
    %v11431 = vpop.f32.mrf.mxu0
    %v11432 = vadd.f32 %v11391, %v11431
    %v11433 = vpop.f32.mrf.mxu0
    %v11434 = vpop.f32.mrf.mxu0
    %11435 = vdwg.mxu0
    %11436 = vmatprep.subr.bf16.mxu0 %v10824
    %11437 = vmatpush1.bf16.msra.mxu0 %v10823
    %11438 = vmatprep.subr.bf16.mxu0 %v10820
    %11439 = vmatpush1.bf16.msra.mxu0 %v10819
    %11440 = vmatprep.subr.bf16.mxu0 %v10816
    %11441 = vmatpush1.bf16.msra.mxu0 %v10815
    %11442 = vmatprep.subr.bf16.mxu0 %v10812
    %11443 = vmatpush1.bf16.msra.mxu0 %v10811
    %11444 = vmatprep.subr.bf16.mxu0 %v10808
    %11445 = vmatpush1.bf16.msra.mxu0 %v10807
    %11446 = vmatprep.subr.bf16.mxu0 %v10804
    %11447 = vmatpush1.bf16.msra.mxu0 %v10803
    %11448 = vmatprep.subr.bf16.mxu0 %v10800
    %11449 = vmatpush1.bf16.msra.mxu0 %v10799
    %11450 = vmatprep.subr.bf16.mxu0 %v10796
    %11451 = vmatpush1.bf16.msra.mxu0 %v10795
    %11452 = vmatprep.subr.bf16.mxu0 %v10856
    %11453 = vmatpush2.bf16.msra.mxu0 %v10855
    %11454 = vmatprep.subr.bf16.mxu0 %v10852
    %11455 = vmatpush2.bf16.msra.mxu0 %v10851
    %11456 = vmatprep.subr.bf16.mxu0 %v10848
    %11457 = vmatpush2.bf16.msra.mxu0 %v10847
    %11458 = vmatprep.subr.bf16.mxu0 %v10844
    %11459 = vmatpush2.bf16.msra.mxu0 %v10843
    %11460 = vmatprep.subr.bf16.mxu0 %v10840
    %11461 = vmatpush2.bf16.msra.mxu0 %v10839
    %11462 = vmatprep.subr.bf16.mxu0 %v10836
    %11463 = vmatpush2.bf16.msra.mxu0 %v10835
    %11464 = vmatprep.subr.bf16.mxu0 %v10832
    %11465 = vmatpush2.bf16.msra.mxu0 %v10831
    %11466 = vmatprep.subr.bf16.mxu0 %v10828
    %11467 = vmatpush2.bf16.msra.mxu0 %v10827
    %11468 = vmatprep.mubr.bf16.mxu0 %v9624
    %11469 = vmatmul.mubr.bf16.gmra.mxu0 %v9623
    %v11470 = vpop.f32.mrf.mxu0
    %v11471 = vadd.f32 %v11430, %v11470
    %v11472 = vpop.f32.mrf.mxu0
    %v11473 = vadd.f32 %v11432, %v11472
    %v11474 = vpop.f32.mrf.mxu0
    %v11475 = vpop.f32.mrf.mxu0
    %11476 = vdwg.mxu0
    %11477 = vmatprep.subr.bf16.mxu0 %v10888
    %11478 = vmatpush1.bf16.msra.mxu0 %v10887
    %11479 = vmatprep.subr.bf16.mxu0 %v10884
    %11480 = vmatpush1.bf16.msra.mxu0 %v10883
    %11481 = vmatprep.subr.bf16.mxu0 %v10880
    %11482 = vmatpush1.bf16.msra.mxu0 %v10879
    %11483 = vmatprep.subr.bf16.mxu0 %v10876
    %11484 = vmatpush1.bf16.msra.mxu0 %v10875
    %11485 = vmatprep.subr.bf16.mxu0 %v10872
    %11486 = vmatpush1.bf16.msra.mxu0 %v10871
    %11487 = vmatprep.subr.bf16.mxu0 %v10868
    %11488 = vmatpush1.bf16.msra.mxu0 %v10867
    %11489 = vmatprep.subr.bf16.mxu0 %v10864
    %11490 = vmatpush1.bf16.msra.mxu0 %v10863
    %11491 = vmatprep.subr.bf16.mxu0 %v10860
    %11492 = vmatpush1.bf16.msra.mxu0 %v10859
    %11493 = vmatprep.subr.bf16.mxu0 %v11188
    %11494 = vmatpush2.bf16.msra.mxu0 %v11185
    %11495 = vmatprep.subr.bf16.mxu0 %v10916
    %11496 = vmatpush2.bf16.msra.mxu0 %v10915
    %11497 = vmatprep.subr.bf16.mxu0 %v10912
    %11498 = vmatpush2.bf16.msra.mxu0 %v10911
    %11499 = vmatprep.subr.bf16.mxu0 %v10908
    %11500 = vmatpush2.bf16.msra.mxu0 %v10907
    %11501 = vmatprep.subr.bf16.mxu0 %v10904
    %11502 = vmatpush2.bf16.msra.mxu0 %v10903
    %11503 = vmatprep.subr.bf16.mxu0 %v10900
    %11504 = vmatpush2.bf16.msra.mxu0 %v10899
    %11505 = vmatprep.subr.bf16.mxu0 %v10896
    %11506 = vmatpush2.bf16.msra.mxu0 %v10895
    %11507 = vmatprep.subr.bf16.mxu0 %v10892
    %11508 = vmatpush2.bf16.msra.mxu0 %v10891
    %11509 = vmatprep.mubr.bf16.mxu0 %v11175
    %11510 = vmatmul.mubr.bf16.gmra.mxu0 %v9625
    %v11511 = vpop.f32.mrf.mxu0
    %v11512 = vadd.f32 %v11471, %v11511
    %v11513 = vpop.f32.mrf.mxu0
    %v11514 = vadd.f32 %v11473, %v11513
    %v11515 = vpop.f32.mrf.mxu0
    %v11516 = vpop.f32.mrf.mxu0
    %11517 = vdwg.mxu0
    %v11518 = vmax.f32 %v11348, 0.0
    %v11519 = vmax.f32 %v11350, 0.0
    %v11520 = vmax.f32 %v11512, 0.0
    %v11521 = vmax.f32 %v11514, 0.0
    %v11522 = vpack.c.bf16 %v11518, %v11518
    %v11523 = vpack.c.bf16 %v11519, %v11519
    %v11524 = vpack.c.bf16 %v11520, %v11520
    %v11525 = vpack.c.bf16 %v11521, %v11521
    %v11526 = vld [vmem:[#allocation8] sm:$0xf]
    %v11527 = vld [vmem:[#allocation8 + $0x4] sm:$0xf]
    %v11528 = vld [vmem:[#allocation8 + $0x8] sm:$0xf]
    %v11529 = vld [vmem:[#allocation8 + $0xc] sm:$0xf]
    %v11530 = vld [vmem:[#allocation8 + $0x10] sm:$0xf]
    %v11531 = vld [vmem:[#allocation8 + $0x14] sm:$0xf]
    %v11532 = vld [vmem:[#allocation8 + $0x18] sm:$0xf]
    %v11533 = vld [vmem:[#allocation8 + $0x1c] sm:$0xf]
    %v11534 = vld [vmem:[#allocation8 + $0x20] sm:$0xf]
    %v11535 = vld [vmem:[#allocation8 + $0x24] sm:$0xf]
    %v11536 = vld [vmem:[#allocation8 + $0x28] sm:$0xf]
    %v11537 = vld [vmem:[#allocation8 + $0x2c] sm:$0xf]
    %v11538 = vld [vmem:[#allocation8 + $0x30] sm:$0xf]
    %v11539 = vld [vmem:[#allocation8 + $0x34] sm:$0xf]
    %v11540 = vld [vmem:[#allocation8 + $0x38] sm:$0xf]
    %v11541 = vld [vmem:[#allocation8 + $0x3c] sm:$0xf]
    %v11542 = vld [vmem:[#allocation8 + $0x40] sm:$0xf]
    %v11543 = vld [vmem:[#allocation8 + $0x44] sm:$0xf]
    %v11544 = vld [vmem:[#allocation8 + $0x48] sm:$0xf]
    %v11545 = vld [vmem:[#allocation8 + $0x4c] sm:$0xf]
    %v11546 = vld [vmem:[#allocation8 + $0x50] sm:$0xf]
    %v11547 = vld [vmem:[#allocation8 + $0x54] sm:$0xf]
    %v11548 = vld [vmem:[#allocation8 + $0x58] sm:$0xf]
    %v11549 = vld [vmem:[#allocation8 + $0x5c] sm:$0xf]
    %v11550 = vld [vmem:[#allocation8 + $0x60] sm:$0xf]
    %v11551 = vld [vmem:[#allocation8 + $0x64] sm:$0xf]
    %v11552 = vld [vmem:[#allocation8 + $0x68] sm:$0xf]
    %v11553 = vld [vmem:[#allocation8 + $0x6c] sm:$0xf]
    %v11554 = vld [vmem:[#allocation8 + $0x70] sm:$0xf]
    %v11555 = vld [vmem:[#allocation8 + $0x74] sm:$0xf]
    %v11556 = vld [vmem:[#allocation8 + $0x78] sm:$0xf]
    %v11557 = vld [vmem:[#allocation8 + $0x7c] sm:$0xf]
    %v11558 = vld [vmem:[#allocation8 + $0x80] sm:$0xf]
    %v11559 = vld [vmem:[#allocation8 + $0x84] sm:$0xf]
    %v11560 = vld [vmem:[#allocation8 + $0x88] sm:$0xf]
    %v11561 = vld [vmem:[#allocation8 + $0x8c] sm:$0xf]
    %v11562 = vld [vmem:[#allocation8 + $0x90] sm:$0xf]
    %v11563 = vld [vmem:[#allocation8 + $0x94] sm:$0xf]
    %v11564 = vld [vmem:[#allocation8 + $0x98] sm:$0xf]
    %v11565 = vld [vmem:[#allocation8 + $0x9c] sm:$0xf]
    %v11566 = vld [vmem:[#allocation8 + $0xa0] sm:$0xf]
    %v11567 = vld [vmem:[#allocation8 + $0xa4] sm:$0xf]
    %v11568 = vld [vmem:[#allocation8 + $0xa8] sm:$0xf]
    %v11569 = vld [vmem:[#allocation8 + $0xac] sm:$0xf]
    %v11570 = vld [vmem:[#allocation8 + $0xb0] sm:$0xf]
    %v11571 = vld [vmem:[#allocation8 + $0xb4] sm:$0xf]
    %v11572 = vld [vmem:[#allocation8 + $0xb8] sm:$0xf]
    %v11573 = vld [vmem:[#allocation8 + $0xbc] sm:$0xf]
    %v11574 = vld [vmem:[#allocation8 + $0xc0] sm:$0xf]
    %v11575 = vld [vmem:[#allocation8 + $0xc4] sm:$0xf]
    %v11576 = vld [vmem:[#allocation10] sm:$0x1]
    %v11578 = vlaneseq
    %v11579 = vshrl.u32 %v11578, 7
    %v11580 = vsub.s32 0, %v11579
    %v11581 = vrot.slane %v11576, %v11580
    %v11633 = vunpack.c.l.b16 %v11526
    %v11634 = vunpack.c.l.b16 %v11527
    %v11635 = vunpack.c.l.b16 %v11528
    %v11636 = vunpack.c.l.b16 %v11529
    %v11637 = vunpack.c.l.b16 %v11530
    %v11638 = vunpack.c.l.b16 %v11531
    %v11639 = vunpack.c.l.b16 %v11532
    %v11640 = vunpack.c.l.b16 %v11533
    %v11641 = vunpack.c.l.b16 %v11534
    %v11642 = vunpack.c.l.b16 %v11535
    %v11643 = vunpack.c.l.b16 %v11536
    %v11644 = vunpack.c.l.b16 %v11537
    %v11645 = vunpack.c.l.b16 %v11538
    %v11646 = vunpack.c.l.b16 %v11539
    %v11647 = vunpack.c.l.b16 %v11540
    %v11648 = vunpack.c.l.b16 %v11541
    %v11649 = vunpack.c.l.b16 %v11542
    %v11650 = vunpack.c.l.b16 %v11543
    %v11651 = vunpack.c.l.b16 %v11544
    %v11652 = vunpack.c.l.b16 %v11545
    %v11653 = vunpack.c.l.b16 %v11546
    %v11654 = vunpack.c.l.b16 %v11547
    %v11655 = vunpack.c.l.b16 %v11548
    %v11656 = vunpack.c.l.b16 %v11549
    %v11657 = vunpack.c.l.b16 %v11550
    %v11658 = vunpack.c.l.b16 %v11551
    %v11659 = vunpack.c.l.b16 %v11552
    %v11660 = vunpack.c.l.b16 %v11553
    %v11661 = vunpack.c.l.b16 %v11554
    %v11662 = vunpack.c.l.b16 %v11555
    %v11663 = vunpack.c.l.b16 %v11556
    %v11664 = vunpack.c.l.b16 %v11557
    %v11665 = vunpack.c.l.b16 %v11558
    %v11666 = vunpack.c.l.b16 %v11559
    %v11667 = vunpack.c.l.b16 %v11560
    %v11668 = vunpack.c.l.b16 %v11561
    %v11669 = vunpack.c.l.b16 %v11562
    %v11670 = vunpack.c.l.b16 %v11563
    %v11671 = vunpack.c.l.b16 %v11564
    %v11672 = vunpack.c.l.b16 %v11565
    %v11673 = vunpack.c.l.b16 %v11566
    %v11674 = vunpack.c.l.b16 %v11567
    %v11675 = vunpack.c.l.b16 %v11568
    %v11676 = vunpack.c.l.b16 %v11569
    %v11677 = vunpack.c.l.b16 %v11570
    %v11678 = vunpack.c.l.b16 %v11571
    %v11679 = vunpack.c.l.b16 %v11572
    %v11680 = vunpack.c.l.b16 %v11573
    %v11681 = vunpack.c.l.b16 %v11574
    %v11682 = vunpack.c.l.b16 %v11575
    %v11683 = vpack.c.b16 %v11634, %v11633
    %v11684 = vpack.c.b16 %v11636, %v11635
    %v11685 = vpack.c.b16 %v11638, %v11637
    %v11686 = vpack.c.b16 %v11640, %v11639
    %v11687 = vpack.c.b16 %v11642, %v11641
    %v11688 = vpack.c.b16 %v11644, %v11643
    %v11689 = vpack.c.b16 %v11646, %v11645
    %v11690 = vpack.c.b16 %v11648, %v11647
    %v11691 = vpack.c.b16 %v11650, %v11649
    %v11692 = vpack.c.b16 %v11652, %v11651
    %v11693 = vpack.c.b16 %v11654, %v11653
    %v11694 = vpack.c.b16 %v11656, %v11655
    %v11695 = vpack.c.b16 %v11658, %v11657
    %v11696 = vpack.c.b16 %v11660, %v11659
    %v11697 = vpack.c.b16 %v11662, %v11661
    %v11698 = vpack.c.b16 %v11664, %v11663
    %v11699 = vpack.c.b16 %v11666, %v11665
    %v11700 = vpack.c.b16 %v11668, %v11667
    %v11701 = vpack.c.b16 %v11670, %v11669
    %v11702 = vpack.c.b16 %v11672, %v11671
    %v11703 = vpack.c.b16 %v11674, %v11673
    %v11704 = vpack.c.b16 %v11676, %v11675
    %v11705 = vpack.c.b16 %v11678, %v11677
    %v11706 = vpack.c.b16 %v11680, %v11679
    %v11707 = vpack.c.b16 %v11682, %v11681
    %vm11733 = vcmask 130048
    %v11735 = vsel %vm11733, %v11525, 0
    %11737 = vmatprep.subr.bf16.mxu0 0
    %11738 = vmatpush1.bf16.msra.mxu0 %v11690
    %11739 = vmatprep.subr.bf16.mxu0 0
    %11740 = vmatpush1.bf16.msra.mxu0 %v11689
    %11741 = vmatprep.subr.bf16.mxu0 0
    %11742 = vmatpush1.bf16.msra.mxu0 %v11688
    %11743 = vmatprep.subr.bf16.mxu0 0
    %11744 = vmatpush1.bf16.msra.mxu0 %v11687
    %11745 = vmatprep.subr.bf16.mxu0 0
    %11746 = vmatpush1.bf16.msra.mxu0 %v11686
    %11747 = vmatprep.subr.bf16.mxu0 0
    %11748 = vmatpush1.bf16.msra.mxu0 %v11685
    %11749 = vmatprep.subr.bf16.mxu0 0
    %11750 = vmatpush1.bf16.msra.mxu0 %v11684
    %11751 = vmatprep.subr.bf16.mxu0 0
    %11752 = vmatpush1.bf16.msra.mxu0 %v11683
    %11753 = vmatprep.subr.bf16.mxu0 0
    %11754 = vmatpush2.bf16.msra.mxu0 %v11698
    %11755 = vmatprep.subr.bf16.mxu0 0
    %11756 = vmatpush2.bf16.msra.mxu0 %v11697
    %11757 = vmatprep.subr.bf16.mxu0 0
    %11758 = vmatpush2.bf16.msra.mxu0 %v11696
    %11759 = vmatprep.subr.bf16.mxu0 0
    %11760 = vmatpush2.bf16.msra.mxu0 %v11695
    %11761 = vmatprep.subr.bf16.mxu0 0
    %11762 = vmatpush2.bf16.msra.mxu0 %v11694
    %11763 = vmatprep.subr.bf16.mxu0 0
    %11764 = vmatpush2.bf16.msra.mxu0 %v11693
    %11765 = vmatprep.subr.bf16.mxu0 0
    %11766 = vmatpush2.bf16.msra.mxu0 %v11692
    %11767 = vmatprep.subr.bf16.mxu0 0
    %11768 = vmatpush2.bf16.msra.mxu0 %v11691
    %11769 = vmatprep.mubr.bf16.mxu0 %v11523
    %11770 = vmatmul.mubr.bf16.gmra.mxu0 %v11522
    %v11771 = vpop.f32.mrf.mxu0
    %v11772 = vadd.f32 %v11581, %v11771
    %v11773 = vpop.f32.mrf.mxu0
    %v11774 = vpop.f32.mrf.mxu0
    %v11775 = vpop.f32.mrf.mxu0
    %11776 = vdwg.mxu0
    %11777 = vmatprep.subr.bf16.mxu0 0
    %11778 = vmatpush1.bf16.msra.mxu0 %v11706
    %11779 = vmatprep.subr.bf16.mxu0 0
    %11780 = vmatpush1.bf16.msra.mxu0 %v11705
    %11781 = vmatprep.subr.bf16.mxu0 0
    %11782 = vmatpush1.bf16.msra.mxu0 %v11704
    %11783 = vmatprep.subr.bf16.mxu0 0
    %11784 = vmatpush1.bf16.msra.mxu0 %v11703
    %11785 = vmatprep.subr.bf16.mxu0 0
    %11786 = vmatpush1.bf16.msra.mxu0 %v11702
    %11787 = vmatprep.subr.bf16.mxu0 0
    %11788 = vmatpush1.bf16.msra.mxu0 %v11701
    %11789 = vmatprep.subr.bf16.mxu0 0
    %11790 = vmatpush1.bf16.msra.mxu0 %v11700
    %11791 = vmatprep.subr.bf16.mxu0 0
    %11792 = vmatpush1.bf16.msra.mxu0 %v11699
    %11793 = vmatprep.subr.bf16.mxu0 0
    %11794 = vmatpush2.bf16.msra.mxu0 0
    %11795 = vmatprep.subr.bf16.mxu0 0
    %11796 = vmatpush2.bf16.msra.mxu0 0
    %11797 = vmatprep.subr.bf16.mxu0 0
    %11798 = vmatpush2.bf16.msra.mxu0 0
    %11799 = vmatprep.subr.bf16.mxu0 0
    %11800 = vmatpush2.bf16.msra.mxu0 0
    %11801 = vmatprep.subr.bf16.mxu0 0
    %11802 = vmatpush2.bf16.msra.mxu0 0
    %11803 = vmatprep.subr.bf16.mxu0 0
    %11804 = vmatpush2.bf16.msra.mxu0 0
    %11805 = vmatprep.subr.bf16.mxu0 0
    %11806 = vmatpush2.bf16.msra.mxu0 0
    %11807 = vmatprep.subr.bf16.mxu0 0
    %11808 = vmatpush2.bf16.msra.mxu0 %v11707
    %11809 = vmatprep.mubr.bf16.mxu0 %v11735
    %11810 = vmatmul.mubr.bf16.gmra.mxu0 %v11524
    %v11811 = vpop.f32.mrf.mxu0
    %v11812 = vadd.f32 %v11772, %v11811
    %v11813 = vpop.f32.mrf.mxu0
    %v11814 = vpop.f32.mrf.mxu0
    %v11815 = vpop.f32.mrf.mxu0
    %11816 = vdwg.mxu0
    %v11817 = vmax.f32 %v11812, 0.0
    %v11818 = vpack.c.bf16 %v11817, %v11817
    %v11819 = vld [vmem:[%s7] sm:$0xf]
    %v11820 = vld [vmem:[%s7 + $0x4] sm:$0xf]
    %v11821 = vld [vmem:[%s7 + $0x8] sm:$0xf]
    %v11822 = vld [vmem:[%s7 + $0xc] sm:$0xf]
    %v11823 = vld [vmem:[%s7 + $0x10] sm:$0xf]
    %v11824 = vld [vmem:[%s7 + $0x14] sm:$0xf]
    %v11825 = vld [vmem:[%s7 + $0x18] sm:$0xf]
    %v11826 = vld [vmem:[%s7 + $0x1c] sm:$0xf]
    %v11827 = vld [vmem:[%s7 + $0x20] sm:$0xf]
    %v11828 = vld [vmem:[%s7 + $0x24] sm:$0xf]
    %v11829 = vld [vmem:[%s7 + $0x28] sm:$0xf]
    %v11830 = vld [vmem:[%s7 + $0x2c] sm:$0xf]
    %v11831 = vld [vmem:[%s7 + $0x30] sm:$0x3]
    %v11832 = vld [vmem:[#allocation11] sm:$0x1]
    %v11834 = vlaneseq
    %v11835 = vshrl.u32 %v11834, 7
    %v11836 = vsub.s32 0, %v11835
    %v11837 = vrot.slane %v11832, %v11836
    %v11852 = vunpack.c.l.b16 %v11819
    %v11853 = vunpack.c.l.b16 %v11820
    %v11854 = vunpack.c.l.b16 %v11821
    %v11855 = vunpack.c.l.b16 %v11822
    %v11856 = vunpack.c.l.b16 %v11823
    %v11857 = vunpack.c.l.b16 %v11824
    %v11858 = vunpack.c.l.b16 %v11825
    %v11859 = vunpack.c.l.b16 %v11826
    %v11860 = vunpack.c.l.b16 %v11827
    %v11861 = vunpack.c.l.b16 %v11828
    %v11862 = vunpack.c.l.b16 %v11829
    %v11863 = vunpack.c.l.b16 %v11830
    %v11864 = vunpack.c.l.b16 %v11831
    %v11865 = vpack.c.b16 %v11853, %v11852
    %v11866 = vpack.c.b16 %v11855, %v11854
    %v11867 = vpack.c.b16 %v11857, %v11856
    %v11868 = vpack.c.b16 %v11859, %v11858
    %v11869 = vpack.c.b16 %v11861, %v11860
    %v11870 = vpack.c.b16 %v11863, %v11862
    %v11871 = vpack.c.b16 %v11864, %v11864
    %vm11878 = vcmask 818176
    %v11880 = vsel %vm11878, %v11818, 0
    %vm11882 = vcmask 1041408
    %v11884 = vsel %vm11882, %v11871, 0
    %11886 = vmatprep.subr.bf16.mxu0 0
    %11887 = vmatpush1.bf16.msra.mxu0 0
    %11888 = vmatprep.subr.bf16.mxu0 0
    %11889 = vmatpush1.bf16.msra.mxu0 %v11884
    %11890 = vmatprep.subr.bf16.mxu0 0
    %11891 = vmatpush1.bf16.msra.mxu0 %v11870
    %11892 = vmatprep.subr.bf16.mxu0 0
    %11893 = vmatpush1.bf16.msra.mxu0 %v11869
    %11894 = vmatprep.subr.bf16.mxu0 0
    %11895 = vmatpush1.bf16.msra.mxu0 %v11868
    %11896 = vmatprep.subr.bf16.mxu0 0
    %11897 = vmatpush1.bf16.msra.mxu0 %v11867
    %11898 = vmatprep.subr.bf16.mxu0 0
    %11899 = vmatpush1.bf16.msra.mxu0 %v11866
    %11900 = vmatprep.subr.bf16.mxu0 0
    %11901 = vmatpush1.bf16.msra.mxu0 %v11865
    %11902 = vmatprep.subr.bf16.mxu0 0
    %11903 = vmatpush2.bf16.msra.mxu0 0
    %11904 = vmatprep.subr.bf16.mxu0 0
    %11905 = vmatpush2.bf16.msra.mxu0 0
    %11906 = vmatprep.subr.bf16.mxu0 0
    %11907 = vmatpush2.bf16.msra.mxu0 0
    %11908 = vmatprep.subr.bf16.mxu0 0
    %11909 = vmatpush2.bf16.msra.mxu0 0
    %11910 = vmatprep.subr.bf16.mxu0 0
    %11911 = vmatpush2.bf16.msra.mxu0 0
    %11912 = vmatprep.subr.bf16.mxu0 0
    %11913 = vmatpush2.bf16.msra.mxu0 0
    %11914 = vmatprep.subr.bf16.mxu0 0
    %11915 = vmatpush2.bf16.msra.mxu0 0
    %11916 = vmatprep.subr.bf16.mxu0 0
    %11917 = vmatpush2.bf16.msra.mxu0 0
    %11918 = vmatprep.mubr.bf16.mxu0 0
    %11919 = vmatmul.mubr.bf16.gmra.mxu0 %v11880
    %v11920 = vpop.f32.mrf.mxu0
    %v11921 = vadd.f32 %v11837, %v11920
    %v11922 = vpop.f32.mrf.mxu0
    %v11923 = vpop.f32.mrf.mxu0
    %v11924 = vpop.f32.mrf.mxu0
    %11925 = vdwg.mxu0
    %vm11926 = vcmask 80896
    %11927 = vst.msk [vmem:[#allocation13] sm:$0xff] %vm11926, %v11921
    // Predicated region
    $region62: #{net_forward.1} parent=1 // pred_check
      _
    $region63: #{net_forward.1} parent=1 // pred_check_branch
      %11929 = sbr.rel (0) target = $region65
    $region64: #{net_forward.1} parent=1 // pred_region
      %s11931 = ssub.s32 128, 32
      %11932 = vsyncadd [#allocation4], %s11931
      %s11933 = sshll.u32 [#allocation13], 4
      %s11934 = int_to_ptr.vmem [resolvable:$true] %s11933
      %11939 = dma.vmem_to_hbm [thread:$0]  %s11934, 32, %s9, [#allocation4], 32, 32, 2
    $region65: #{net_forward.1} parent=1 // pred_fallthru
      _
    // Predicated region
    $region66: #{net_forward.1} parent=1 // pred_check
      _
    $region67: #{net_forward.1} parent=1 // pred_check_branch
      %11941 = sbr.rel (0) target = $region69
    $region68: #{net_forward.1} parent=1 // pred_region
      %11942 = dma.done [#allocation4], 128
    $region69: #{net_forward.1} parent=1 // pred_fallthru
      _
    %11943 = vsyncpa [#allocation3], 1
    %11944 = vsyncpa [#allocation6], 1
    %11945 = vsyncpa [#allocation9], 1
    %11946 = vsyncpa [#allocation12], 1
    %11947 = vsyncpa [#allocation4], 1

</llo_original>
